<compile_context>
chip_gen: v5e
topology: v5e:2x2
jax: 0.10.0
libtpu: 0.0.40
codegen_flags: <defaults>
</compile_context>

<pallas_src>
import jax
import jax.numpy as jnp
from jax import lax
from jax.experimental import pallas as pl
from jax.experimental.pallas import tpu as pltpu

INP = 3                 # real input channels
CIN = 4                 # input channels padded to 4 so every im2col tap is 4 lanes wide
OC = 4                  # out_chnl (config.channel), synthetic choice
N, H, W = 2, 16, 16
HO, WO = H - 2, W - 2   # 14, 14 : spatial size of every branch output
C6 = 6 * OC             # 24     : channels after CReLU
EPS = 1e-5
KDIM = 9 * CIN          # 36     : im2col contraction size (same for all 4 convs)


# -----------------------------------------------------------------------------
# Fused kernel: conv1 / conv2a / conv2b / conv3 (im2col + MXU matmuls)
#               + CReLU + InstanceNorm + 2x2 max-pool.
# -----------------------------------------------------------------------------
def conv_block_kernel(xp_ref, w_ref, b_ref, out_ref, pad_ref):
    # xp_ref  (N, H+4, W+4, CIN): input, spatially zero-padded by 2, channels padded 3->4
    # w_ref   (KDIM, 16)        : packed im2col weights [conv1 | conv2a | conv3 | conv2b]
    # b_ref   (1, 16)           : packed biases, same column order
    # out_ref (N, 7, WO-1, C6)  : H-pooled + W-pairwise-maxed result (even W cols = pool)
    # pad_ref (N, H+2, W+2, OC) : scratch: zero-padded conv2a output for conv2b's im2col
    xp = xp_ref[...]
    w = w_ref[...]
    bias = b_ref[...]

    def im2col(slices):
        # 9 taps, each (N, H, W, c)  ->  (N*H*W, 9*c).  The reshape only merges
        # leading dims (second-minor dim H=16 is a multiple of 8), so it is
        # tile-preserving.
        patches = jnp.concatenate(slices, axis=-1)
        return patches.reshape(N * H * W, patches.shape[-1])

    # ---- first layer: conv1 & conv2a share the dilation-1 patches; conv3 is dilation-2.
    #      Both are computed on the full 16x16 grid (interiors sliced later) so all
    #      matmul-row counts stay multiples of 8.
    p_d1 = im2col([xp[:, 1 + kh:1 + kh + H, 1 + kw:1 + kw + W, :]
                   for kh in range(3) for kw in range(3)])
    p_d2 = im2col([xp[:, 2 * kh:2 * kh + H, 2 * kw:2 * kw + W, :]
                   for kh in range(3) for kw in range(3)])

    r12 = jnp.dot(p_d1, w[:, 0:2 * OC],
                  preferred_element_type=jnp.float32) + bias[:, 0:2 * OC]     # (512, 8)
    r3 = jnp.dot(p_d2, w[:, 2 * OC:3 * OC],
                 preferred_element_type=jnp.float32) + bias[:, 2 * OC:3 * OC]  # (512, 4)
    r12 = r12.reshape(N, H, W, 2 * OC)

    # ---- conv2b on conv2a's full 16x16 (pad=1) output.  Zero-pad it to 18x18 through
    #      a VMEM scratch, then im2col on the 16x16 grid (only the interior is used).
    x2a = r12[..., OC:2 * OC]                                  # conv2a output, (N, H, W, OC)
    pad_ref[...] = jnp.zeros((N, H + 2, W + 2, OC), jnp.float32)
    pad_ref[:, 1:H + 1, 1:W + 1, :] = x2a
    p_2b = im2col([pad_ref[:, kh:kh + H, kw:kw + W, :]
                   for kh in range(3) for kw in range(3)])
    r2b = jnp.dot(p_2b, w[:, 3 * OC:4 * OC],
                  preferred_element_type=jnp.float32) + bias[:, 3 * OC:4 * OC]  # (512, 4)

    # ---- valid 14x14 interiors of the three branches, then CReLU.
    g1 = r12[:, 1:1 + HO, 1:1 + WO, 0:OC]                      # conv1
    g2 = r2b.reshape(N, H, W, OC)[:, 1:1 + HO, 1:1 + WO, :]    # conv2b(conv2a)
    g3 = r3.reshape(N, H, W, OC)[:, 1:1 + HO, 1:1 + WO, :]     # conv3 (dilated)
    v = jnp.concatenate([g1, g2, g3], axis=-1)                 # (N, HO, WO, 12)
    a = jnp.maximum(jnp.concatenate([v, -v], axis=-1), 0.0)    # (N, HO, WO, 24)

    # ---- InstanceNorm: per sample & channel over spatial, biased variance.
    inv_n = 1.0 / float(HO * WO)
    mean = jnp.sum(jnp.sum(a, axis=1, keepdims=True), axis=2, keepdims=True) * inv_n
    d = a - mean
    var = jnp.sum(jnp.sum(d * d, axis=1, keepdims=True), axis=2, keepdims=True) * inv_n
    an = d * lax.rsqrt(var + EPS)

    # TODO(synk): Dropout2d(p=0.005) and Dropout(p=0.2) are identity in inference mode.

    # ---- 2x2 max-pool, stride 2.  H pairs via a safe leading-dim reshape; W pairs via a
    #      pairwise max of adjacent columns.  The pooled values sit at even W indices and
    #      are selected by the wrapper, which keeps this a single dense store and avoids
    #      an in-kernel sublane relayout.
    hp = jnp.max(an.reshape(N, HO // 2, 2, WO, C6), axis=2)    # (N, 7, 14, 24)
    out_ref[...] = jnp.maximum(hp[:, :, 0:WO - 1, :], hp[:, :, 1:WO, :])  # (N, 7, 13, 24)


# -----------------------------------------------------------------------------
# Wrapper: layout plumbing (NCHW<->NHWC, padding, weight packing) stays in XLA.
# -----------------------------------------------------------------------------
def conv_block_forward(x_nchw, params):
    (w1, b1, w2a, b2a, w2b, b2b, w3, b3) = params   # weights OIHW, biases (OC,)

    # NCHW -> NHWC, zero-pad spatial by 2 and channels 3 -> 4.
    x = jnp.transpose(x_nchw, (0, 2, 3, 1)).astype(jnp.float32)
    xp = jnp.pad(x, ((0, 0), (2, 2), (2, 2), (0, CIN - INP)))

    def flat_w(wgt):
        # OIHW -> HWIO, pad cin to CIN, flatten to (9*CIN, oc) matching the kernel's
        # im2col column order (tap-major, input-channel-minor).
        hwio = jnp.transpose(wgt, (2, 3, 1, 0)).astype(jnp.float32)
        hwio = jnp.pad(hwio, ((0, 0), (0, 0), (0, CIN - hwio.shape[2]), (0, 0)))
        return hwio.reshape(-1, hwio.shape[-1])

    # Pack all four convs into one (36, 16) weight matrix + one (1, 16) bias row.
    w_pack = jnp.concatenate([flat_w(w1), flat_w(w2a), flat_w(w3), flat_w(w2b)], axis=1)
    b_pack = jnp.concatenate([b1, b2a, b3, b2b]).reshape(1, 4 * OC).astype(jnp.float32)

    out = pl.pallas_call(
        conv_block_kernel,
        out_shape=jax.ShapeDtypeStruct((N, HO // 2, WO - 1, C6), jnp.float32),
        grid=(1,),                                   # whole batch in a single grid step
        in_specs=[
            pl.BlockSpec((N, H + 4, W + 4, CIN), lambda i: (0, 0, 0, 0)),
            pl.BlockSpec((KDIM, 4 * OC), lambda i: (0, 0)),
            pl.BlockSpec((1, 4 * OC), lambda i: (0, 0)),
        ],
        out_specs=pl.BlockSpec((N, HO // 2, WO - 1, C6), lambda i: (0, 0, 0, 0)),
        scratch_shapes=[pltpu.VMEM((N, H + 2, W + 2, OC), jnp.float32)],
        compiler_params=pltpu.CompilerParams(dimension_semantics=("arbitrary",)),
    )(xp, w_pack, b_pack)

    y_nhwc = out[:, :, 0::2, :]                      # keep the pooled (even) W columns
    return jnp.transpose(y_nhwc, (0, 3, 1, 2))       # back to NCHW


# -----------------------------------------------------------------------------
# Pure-JAX reference (PyTorch semantics, NCHW) for verification.
# -----------------------------------------------------------------------------
def conv_block_reference(x, params):
    (w1, b1, w2a, b2a, w2b, b2b, w3, b3) = params

    def conv(xx, w, b, pad, dil):
        y = lax.conv_general_dilated(
            xx, w, window_strides=(1, 1), padding=pad, rhs_dilation=dil,
            dimension_numbers=('NCHW', 'OIHW', 'NCHW'))
        return y + b[None, :, None, None]

    br1 = conv(x, w1, b1, 'VALID', (1, 1))
    br2 = conv(conv(x, w2a, b2a, ((1, 1), (1, 1)), (1, 1)), w2b, b2b, 'VALID', (1, 1))
    br3 = conv(x, w3, b3, ((1, 1), (1, 1)), (2, 2))

    a = jnp.concatenate([br1, br2, br3], axis=1)
    a = jnp.concatenate([a, -a], axis=1)
    a = jnp.maximum(a, 0.0)

    mean = a.mean(axis=(2, 3), keepdims=True)
    var = ((a - mean) ** 2).mean(axis=(2, 3), keepdims=True)
    b = (a - mean) * lax.rsqrt(var + EPS)

    # dropout layers: identity in inference mode
    p = lax.reduce_window(b, -jnp.inf, lax.max,
                          window_dimensions=(1, 1, 2, 2),
                          window_strides=(1, 1, 2, 2), padding='VALID')
    return p


if __name__ == "__main__":
    key = jax.random.PRNGKey(0)
    keys = jax.random.split(key, 9)

    x = jax.random.normal(keys[0], (N, INP, H, W), dtype=jnp.float32)

    params = (
        0.1 * jax.random.normal(keys[1], (OC, INP, 3, 3), jnp.float32),   # conv1.weight
        0.1 * jax.random.normal(keys[2], (OC,), jnp.float32),             # conv1.bias
        0.1 * jax.random.normal(keys[3], (OC, INP, 3, 3), jnp.float32),   # conv2a.weight
        0.1 * jax.random.normal(keys[4], (OC,), jnp.float32),             # conv2a.bias
        0.1 * jax.random.normal(keys[5], (OC, OC, 3, 3), jnp.float32),    # conv2b.weight
        0.1 * jax.random.normal(keys[6], (OC,), jnp.float32),             # conv2b.bias
        0.1 * jax.random.normal(keys[7], (OC, INP, 3, 3), jnp.float32),   # conv3.weight
        0.1 * jax.random.normal(keys[8], (OC,), jnp.float32),             # conv3.bias
    )

    y = jax.jit(conv_block_forward)(x, params)
    y = jax.block_until_ready(y)

    y_ref = conv_block_reference(x, params)
    assert y.shape == (N, C6, HO // 2, WO // 2), y.shape
    assert jnp.allclose(y, y_ref, atol=1e-4, rtol=1e-4), \
        float(jnp.max(jnp.abs(y - y_ref)))

    print("KERNEL_OK")
</pallas_src>

<mosaic_0001>
module attributes {stable_mosaic.version = 11 : i64} {
  func.func @conv_block_kernel(%arg0: i32, %arg1: memref<2x20x20x4xf32, #tpu.memory_space<vmem>>, %arg2: memref<36x16xf32, #tpu.memory_space<vmem>>, %arg3: memref<1x16xf32, #tpu.memory_space<vmem>>, %arg4: memref<2x7x13x24xf32, #tpu.memory_space<vmem>>, %arg5: memref<2x18x18x4xf32, #tpu.memory_space<vmem>>) attributes {dimension_semantics = [#tpu.dimension_semantics<arbitrary>], iteration_bounds = array<i64: 1>, scalar_prefetch = 0 : i64, scratch_operands = 1 : i64, tpu.core_type = #tpu.core_type<tc>, window_params = [{pipeline_mode = #tpu.pipeline_mode<synchronous>, transform_indices = @transform_0, window_bounds = array<i64: 2, 20, 20, 4>}, {pipeline_mode = #tpu.pipeline_mode<synchronous>, transform_indices = @transform_1, window_bounds = array<i64: 36, 16>}, {pipeline_mode = #tpu.pipeline_mode<synchronous>, transform_indices = @transform_2, window_bounds = array<i64: 1, 16>}, {pipeline_mode = #tpu.pipeline_mode<synchronous>, transform_indices = @transform_3, window_bounds = array<i64: 2, 7, 13, 24>}]} {
    %c0 = arith.constant 0 : index
    %c0_0 = arith.constant 0 : index
    %c0_1 = arith.constant 0 : index
    %c0_2 = arith.constant 0 : index
    %0 = vector.load %arg1[%c0, %c0_0, %c0_1, %c0_2] : memref<2x20x20x4xf32, #tpu.memory_space<vmem>>, vector<2x20x20x4xf32>
    %c0_3 = arith.constant 0 : index
    %c0_4 = arith.constant 0 : index
    %1 = vector.load %arg2[%c0_3, %c0_4] : memref<36x16xf32, #tpu.memory_space<vmem>>, vector<36x16xf32>
    %c0_5 = arith.constant 0 : index
    %c0_6 = arith.constant 0 : index
    %2 = vector.load %arg3[%c0_5, %c0_6] : memref<1x16xf32, #tpu.memory_space<vmem>>, vector<1x16xf32>
    %3 = vector.extract_strided_slice %0 {offsets = [0, 1, 1, 0], sizes = [2, 16, 16, 4], strides = [1, 1, 1, 1]} : vector<2x20x20x4xf32> to vector<2x16x16x4xf32>
    %4 = vector.extract_strided_slice %0 {offsets = [0, 1, 2, 0], sizes = [2, 16, 16, 4], strides = [1, 1, 1, 1]} : vector<2x20x20x4xf32> to vector<2x16x16x4xf32>
    %5 = vector.extract_strided_slice %0 {offsets = [0, 1, 3, 0], sizes = [2, 16, 16, 4], strides = [1, 1, 1, 1]} : vector<2x20x20x4xf32> to vector<2x16x16x4xf32>
    %6 = vector.extract_strided_slice %0 {offsets = [0, 2, 1, 0], sizes = [2, 16, 16, 4], strides = [1, 1, 1, 1]} : vector<2x20x20x4xf32> to vector<2x16x16x4xf32>
    %7 = vector.extract_strided_slice %0 {offsets = [0, 2, 2, 0], sizes = [2, 16, 16, 4], strides = [1, 1, 1, 1]} : vector<2x20x20x4xf32> to vector<2x16x16x4xf32>
    %8 = vector.extract_strided_slice %0 {offsets = [0, 2, 3, 0], sizes = [2, 16, 16, 4], strides = [1, 1, 1, 1]} : vector<2x20x20x4xf32> to vector<2x16x16x4xf32>
    %9 = vector.extract_strided_slice %0 {offsets = [0, 3, 1, 0], sizes = [2, 16, 16, 4], strides = [1, 1, 1, 1]} : vector<2x20x20x4xf32> to vector<2x16x16x4xf32>
    %10 = vector.extract_strided_slice %0 {offsets = [0, 3, 2, 0], sizes = [2, 16, 16, 4], strides = [1, 1, 1, 1]} : vector<2x20x20x4xf32> to vector<2x16x16x4xf32>
    %11 = vector.extract_strided_slice %0 {offsets = [0, 3, 3, 0], sizes = [2, 16, 16, 4], strides = [1, 1, 1, 1]} : vector<2x20x20x4xf32> to vector<2x16x16x4xf32>
    %12 = tpu.concatenate %3, %4, %5, %6, %7, %8, %9, %10, %11 in 3 : vector<2x16x16x4xf32>, vector<2x16x16x4xf32>, vector<2x16x16x4xf32>, vector<2x16x16x4xf32>, vector<2x16x16x4xf32>, vector<2x16x16x4xf32>, vector<2x16x16x4xf32>, vector<2x16x16x4xf32>, vector<2x16x16x4xf32> -> vector<2x16x16x36xf32>
    %13 = vector.shape_cast %12 : vector<2x16x16x36xf32> to vector<512x36xf32>
    %14 = vector.extract_strided_slice %0 {offsets = [0, 0, 0, 0], sizes = [2, 16, 16, 4], strides = [1, 1, 1, 1]} : vector<2x20x20x4xf32> to vector<2x16x16x4xf32>
    %15 = vector.extract_strided_slice %0 {offsets = [0, 0, 2, 0], sizes = [2, 16, 16, 4], strides = [1, 1, 1, 1]} : vector<2x20x20x4xf32> to vector<2x16x16x4xf32>
    %16 = vector.extract_strided_slice %0 {offsets = [0, 0, 4, 0], sizes = [2, 16, 16, 4], strides = [1, 1, 1, 1]} : vector<2x20x20x4xf32> to vector<2x16x16x4xf32>
    %17 = vector.extract_strided_slice %0 {offsets = [0, 2, 0, 0], sizes = [2, 16, 16, 4], strides = [1, 1, 1, 1]} : vector<2x20x20x4xf32> to vector<2x16x16x4xf32>
    %18 = vector.extract_strided_slice %0 {offsets = [0, 2, 2, 0], sizes = [2, 16, 16, 4], strides = [1, 1, 1, 1]} : vector<2x20x20x4xf32> to vector<2x16x16x4xf32>
    %19 = vector.extract_strided_slice %0 {offsets = [0, 2, 4, 0], sizes = [2, 16, 16, 4], strides = [1, 1, 1, 1]} : vector<2x20x20x4xf32> to vector<2x16x16x4xf32>
    %20 = vector.extract_strided_slice %0 {offsets = [0, 4, 0, 0], sizes = [2, 16, 16, 4], strides = [1, 1, 1, 1]} : vector<2x20x20x4xf32> to vector<2x16x16x4xf32>
    %21 = vector.extract_strided_slice %0 {offsets = [0, 4, 2, 0], sizes = [2, 16, 16, 4], strides = [1, 1, 1, 1]} : vector<2x20x20x4xf32> to vector<2x16x16x4xf32>
    %22 = vector.extract_strided_slice %0 {offsets = [0, 4, 4, 0], sizes = [2, 16, 16, 4], strides = [1, 1, 1, 1]} : vector<2x20x20x4xf32> to vector<2x16x16x4xf32>
    %23 = tpu.concatenate %14, %15, %16, %17, %18, %19, %20, %21, %22 in 3 : vector<2x16x16x4xf32>, vector<2x16x16x4xf32>, vector<2x16x16x4xf32>, vector<2x16x16x4xf32>, vector<2x16x16x4xf32>, vector<2x16x16x4xf32>, vector<2x16x16x4xf32>, vector<2x16x16x4xf32>, vector<2x16x16x4xf32> -> vector<2x16x16x36xf32>
    %24 = vector.shape_cast %23 : vector<2x16x16x36xf32> to vector<512x36xf32>
    %25 = vector.extract_strided_slice %1 {offsets = [0, 0], sizes = [36, 8], strides = [1, 1]} : vector<36x16xf32> to vector<36x8xf32>
    %cst = arith.constant dense<0.000000e+00> : vector<512x8xf32>
    %26 = tpu.matmul %13, %25, %cst {dimension_numbers = #tpu.dot_dimension_numbers<[1], [0], [0], [1], [0, 0, 1, 1], [], []>} : vector<512x36xf32>, vector<36x8xf32>, vector<512x8xf32> -> vector<512x8xf32>
    %27 = vector.extract_strided_slice %2 {offsets = [0, 0], sizes = [1, 8], strides = [1, 1]} : vector<1x16xf32> to vector<1x8xf32>
    %28 = vector.broadcast %27 : vector<1x8xf32> to vector<512x8xf32>
    %29 = arith.addf %26, %28 : vector<512x8xf32>
    %30 = vector.extract_strided_slice %1 {offsets = [0, 8], sizes = [36, 4], strides = [1, 1]} : vector<36x16xf32> to vector<36x4xf32>
    %cst_7 = arith.constant dense<0.000000e+00> : vector<512x4xf32>
    %31 = tpu.matmul %24, %30, %cst_7 {dimension_numbers = #tpu.dot_dimension_numbers<[1], [0], [0], [1], [0, 0, 1, 1], [], []>} : vector<512x36xf32>, vector<36x4xf32>, vector<512x4xf32> -> vector<512x4xf32>
    %32 = vector.extract_strided_slice %2 {offsets = [0, 8], sizes = [1, 4], strides = [1, 1]} : vector<1x16xf32> to vector<1x4xf32>
    %33 = vector.broadcast %32 : vector<1x4xf32> to vector<512x4xf32>
    %34 = arith.addf %31, %33 : vector<512x4xf32>
    %35 = vector.shape_cast %29 : vector<512x8xf32> to vector<2x16x16x8xf32>
    %36 = vector.extract_strided_slice %35 {offsets = [0, 0, 0, 4], sizes = [2, 16, 16, 4], strides = [1, 1, 1, 1]} : vector<2x16x16x8xf32> to vector<2x16x16x4xf32>
    %cst_8 = arith.constant 0.000000e+00 : f32
    %37 = vector.broadcast %cst_8 : f32 to vector<2x18x18x4xf32>
    %c0_9 = arith.constant 0 : index
    %c0_10 = arith.constant 0 : index
    %c0_11 = arith.constant 0 : index
    %c0_12 = arith.constant 0 : index
    %38 = vector.load %arg5[%c0_9, %c0_10, %c0_11, %c0_12] : memref<2x18x18x4xf32, #tpu.memory_space<vmem>>, vector<2x18x18x4xf32>
    tpu.vector_store %arg5[%c0_9, %c0_10, %c0_11, %c0_12], %37 {strides = array<i32>} : memref<2x18x18x4xf32, #tpu.memory_space<vmem>>, vector<2x18x18x4xf32>,
    %c0_13 = arith.constant 0 : index
    %c1 = arith.constant 1 : index
    %c1_14 = arith.constant 1 : index
    %c0_15 = arith.constant 0 : index
    %39 = vector.load %arg5[%c0_13, %c1, %c1_14, %c0_15] : memref<2x18x18x4xf32, #tpu.memory_space<vmem>>, vector<2x16x16x4xf32>
    tpu.vector_store %arg5[%c0_13, %c1, %c1_14, %c0_15], %36 {strides = array<i32>} : memref<2x18x18x4xf32, #tpu.memory_space<vmem>>, vector<2x16x16x4xf32>,
    %c0_16 = arith.constant 0 : index
    %c0_17 = arith.constant 0 : index
    %c0_18 = arith.constant 0 : index
    %c0_19 = arith.constant 0 : index
    %40 = vector.load %arg5[%c0_16, %c0_17, %c0_18, %c0_19] : memref<2x18x18x4xf32, #tpu.memory_space<vmem>>, vector<2x16x16x4xf32>
    %c0_20 = arith.constant 0 : index
    %c0_21 = arith.constant 0 : index
    %c1_22 = arith.constant 1 : index
    %c0_23 = arith.constant 0 : index
    %41 = vector.load %arg5[%c0_20, %c0_21, %c1_22, %c0_23] : memref<2x18x18x4xf32, #tpu.memory_space<vmem>>, vector<2x16x16x4xf32>
    %c0_24 = arith.constant 0 : index
    %c0_25 = arith.constant 0 : index
    %c2 = arith.constant 2 : index
    %c0_26 = arith.constant 0 : index
    %42 = vector.load %arg5[%c0_24, %c0_25, %c2, %c0_26] : memref<2x18x18x4xf32, #tpu.memory_space<vmem>>, vector<2x16x16x4xf32>
    %c0_27 = arith.constant 0 : index
    %c1_28 = arith.constant 1 : index
    %c0_29 = arith.constant 0 : index
    %c0_30 = arith.constant 0 : index
    %43 = vector.load %arg5[%c0_27, %c1_28, %c0_29, %c0_30] : memref<2x18x18x4xf32, #tpu.memory_space<vmem>>, vector<2x16x16x4xf32>
    %c0_31 = arith.constant 0 : index
    %c1_32 = arith.constant 1 : index
    %c1_33 = arith.constant 1 : index
    %c0_34 = arith.constant 0 : index
    %44 = vector.load %arg5[%c0_31, %c1_32, %c1_33, %c0_34] : memref<2x18x18x4xf32, #tpu.memory_space<vmem>>, vector<2x16x16x4xf32>
    %c0_35 = arith.constant 0 : index
    %c1_36 = arith.constant 1 : index
    %c2_37 = arith.constant 2 : index
    %c0_38 = arith.constant 0 : index
    %45 = vector.load %arg5[%c0_35, %c1_36, %c2_37, %c0_38] : memref<2x18x18x4xf32, #tpu.memory_space<vmem>>, vector<2x16x16x4xf32>
    %c0_39 = arith.constant 0 : index
    %c2_40 = arith.constant 2 : index
    %c0_41 = arith.constant 0 : index
    %c0_42 = arith.constant 0 : index
    %46 = vector.load %arg5[%c0_39, %c2_40, %c0_41, %c0_42] : memref<2x18x18x4xf32, #tpu.memory_space<vmem>>, vector<2x16x16x4xf32>
    %c0_43 = arith.constant 0 : index
    %c2_44 = arith.constant 2 : index
    %c1_45 = arith.constant 1 : index
    %c0_46 = arith.constant 0 : index
    %47 = vector.load %arg5[%c0_43, %c2_44, %c1_45, %c0_46] : memref<2x18x18x4xf32, #tpu.memory_space<vmem>>, vector<2x16x16x4xf32>
    %c0_47 = arith.constant 0 : index
    %c2_48 = arith.constant 2 : index
    %c2_49 = arith.constant 2 : index
    %c0_50 = arith.constant 0 : index
    %48 = vector.load %arg5[%c0_47, %c2_48, %c2_49, %c0_50] : memref<2x18x18x4xf32, #tpu.memory_space<vmem>>, vector<2x16x16x4xf32>
    %49 = tpu.concatenate %40, %41, %42, %43, %44, %45, %46, %47, %48 in 3 : vector<2x16x16x4xf32>, vector<2x16x16x4xf32>, vector<2x16x16x4xf32>, vector<2x16x16x4xf32>, vector<2x16x16x4xf32>, vector<2x16x16x4xf32>, vector<2x16x16x4xf32>, vector<2x16x16x4xf32>, vector<2x16x16x4xf32> -> vector<2x16x16x36xf32>
    %50 = vector.shape_cast %49 : vector<2x16x16x36xf32> to vector<512x36xf32>
    %51 = vector.extract_strided_slice %1 {offsets = [0, 12], sizes = [36, 4], strides = [1, 1]} : vector<36x16xf32> to vector<36x4xf32>
    %cst_51 = arith.constant dense<0.000000e+00> : vector<512x4xf32>
    %52 = tpu.matmul %50, %51, %cst_51 {dimension_numbers = #tpu.dot_dimension_numbers<[1], [0], [0], [1], [0, 0, 1, 1], [], []>} : vector<512x36xf32>, vector<36x4xf32>, vector<512x4xf32> -> vector<512x4xf32>
    %53 = vector.extract_strided_slice %2 {offsets = [0, 12], sizes = [1, 4], strides = [1, 1]} : vector<1x16xf32> to vector<1x4xf32>
    %54 = vector.broadcast %53 : vector<1x4xf32> to vector<512x4xf32>
    %55 = arith.addf %52, %54 : vector<512x4xf32>
    %56 = vector.extract_strided_slice %35 {offsets = [0, 1, 1, 0], sizes = [2, 14, 14, 4], strides = [1, 1, 1, 1]} : vector<2x16x16x8xf32> to vector<2x14x14x4xf32>
    %57 = vector.shape_cast %55 : vector<512x4xf32> to vector<2x16x16x4xf32>
    %58 = vector.extract_strided_slice %57 {offsets = [0, 1, 1, 0], sizes = [2, 14, 14, 4], strides = [1, 1, 1, 1]} : vector<2x16x16x4xf32> to vector<2x14x14x4xf32>
    %59 = vector.shape_cast %34 : vector<512x4xf32> to vector<2x16x16x4xf32>
    %60 = vector.extract_strided_slice %59 {offsets = [0, 1, 1, 0], sizes = [2, 14, 14, 4], strides = [1, 1, 1, 1]} : vector<2x16x16x4xf32> to vector<2x14x14x4xf32>
    %61 = tpu.concatenate %56, %58, %60 in 3 : vector<2x14x14x4xf32>, vector<2x14x14x4xf32>, vector<2x14x14x4xf32> -> vector<2x14x14x12xf32>
    %cst_52 = arith.constant 0.000000e+00 : f32
    %62 = vector.broadcast %cst_52 : f32 to vector<2x14x14x12xf32>
    %63 = arith.subf %62, %61 : vector<2x14x14x12xf32>
    %64 = tpu.concatenate %61, %63 in 3 : vector<2x14x14x12xf32>, vector<2x14x14x12xf32> -> vector<2x14x14x24xf32>
    %cst_53 = arith.constant 0.000000e+00 : f32
    %65 = vector.broadcast %cst_53 : f32 to vector<2x14x14x24xf32>
    %66 = arith.maximumf %64, %65 : vector<2x14x14x24xf32>
    %cst_54 = arith.constant dense<0.000000e+00> : vector<2x14x24xf32>
    %67 = vector.multi_reduction <add>, %66, %cst_54 [1] : vector<2x14x14x24xf32> to vector<2x14x24xf32>
    %68 = vector.shape_cast %67 : vector<2x14x24xf32> to vector<2x1x14x24xf32>
    %cst_55 = arith.constant dense<0.000000e+00> : vector<2x1x24xf32>
    %69 = vector.multi_reduction <add>, %68, %cst_55 [2] : vector<2x1x14x24xf32> to vector<2x1x24xf32>
    %70 = vector.shape_cast %69 : vector<2x1x24xf32> to vector<2x1x1x24xf32>
    %cst_56 = arith.constant 0.00510204071 : f32
    %71 = vector.broadcast %cst_56 : f32 to vector<2x1x1x24xf32>
    %72 = arith.mulf %70, %71 : vector<2x1x1x24xf32>
    %73 = vector.broadcast %72 : vector<2x1x1x24xf32> to vector<2x14x14x24xf32>
    %74 = arith.subf %66, %73 : vector<2x14x14x24xf32>
    %75 = arith.mulf %74, %74 : vector<2x14x14x24xf32>
    %cst_57 = arith.constant dense<0.000000e+00> : vector<2x14x24xf32>
    %76 = vector.multi_reduction <add>, %75, %cst_57 [1] : vector<2x14x14x24xf32> to vector<2x14x24xf32>
    %77 = vector.shape_cast %76 : vector<2x14x24xf32> to vector<2x1x14x24xf32>
    %cst_58 = arith.constant dense<0.000000e+00> : vector<2x1x24xf32>
    %78 = vector.multi_reduction <add>, %77, %cst_58 [2] : vector<2x1x14x24xf32> to vector<2x1x24xf32>
    %79 = vector.shape_cast %78 : vector<2x1x24xf32> to vector<2x1x1x24xf32>
    %cst_59 = arith.constant 0.00510204071 : f32
    %80 = vector.broadcast %cst_59 : f32 to vector<2x1x1x24xf32>
    %81 = arith.mulf %79, %80 : vector<2x1x1x24xf32>
    %cst_60 = arith.constant 9.99999974E-6 : f32
    %82 = vector.broadcast %cst_60 : f32 to vector<2x1x1x24xf32>
    %83 = arith.addf %81, %82 : vector<2x1x1x24xf32>
    %84 = math.rsqrt %83 : vector<2x1x1x24xf32>
    %85 = vector.broadcast %84 : vector<2x1x1x24xf32> to vector<2x14x14x24xf32>
    %86 = arith.mulf %74, %85 : vector<2x14x14x24xf32>
    %87 = vector.shape_cast %86 : vector<2x14x14x24xf32> to vector<2x7x2x14x24xf32>
    %cst_61 = arith.constant dense<0xFF800000> : vector<2x7x14x24xf32>
    %88 = vector.multi_reduction <maximumf>, %87, %cst_61 [2] : vector<2x7x2x14x24xf32> to vector<2x7x14x24xf32>
    %89 = vector.extract_strided_slice %88 {offsets = [0, 0, 0, 0], sizes = [2, 7, 13, 24], strides = [1, 1, 1, 1]} : vector<2x7x14x24xf32> to vector<2x7x13x24xf32>
    %90 = vector.extract_strided_slice %88 {offsets = [0, 0, 1, 0], sizes = [2, 7, 13, 24], strides = [1, 1, 1, 1]} : vector<2x7x14x24xf32> to vector<2x7x13x24xf32>
    %91 = arith.maximumf %89, %90 : vector<2x7x13x24xf32>
    %c0_62 = arith.constant 0 : index
    %c0_63 = arith.constant 0 : index
    %c0_64 = arith.constant 0 : index
    %c0_65 = arith.constant 0 : index
    %92 = vector.load %arg4[%c0_62, %c0_63, %c0_64, %c0_65] : memref<2x7x13x24xf32, #tpu.memory_space<vmem>>, vector<2x7x13x24xf32>
    tpu.vector_store %arg4[%c0_62, %c0_63, %c0_64, %c0_65], %91 {strides = array<i32>} : memref<2x7x13x24xf32, #tpu.memory_space<vmem>>, vector<2x7x13x24xf32>,
    return
  }
  func.func @transform_0(%arg0: i32) -> (i32, i32, i32, i32) {
    %c0_i32 = arith.constant 0 : i32
    %c0_i32_0 = arith.constant 0 : i32
    %c0_i32_1 = arith.constant 0 : i32
    %c0_i32_2 = arith.constant 0 : i32
    %c0_i32_3 = arith.constant 0 : i32
    return %c0_i32, %c0_i32_0, %c0_i32_1, %c0_i32_2 : i32, i32, i32, i32
  }
  func.func @transform_1(%arg0: i32) -> (i32, i32) {
    %c0_i32 = arith.constant 0 : i32
    %c0_i32_0 = arith.constant 0 : i32
    %c0_i32_1 = arith.constant 0 : i32
    return %c0_i32, %c0_i32_0 : i32, i32
  }
  func.func @transform_2(%arg0: i32) -> (i32, i32) {
    %c0_i32 = arith.constant 0 : i32
    %c0_i32_0 = arith.constant 0 : i32
    %c0_i32_1 = arith.constant 0 : i32
    return %c0_i32, %c0_i32_0 : i32, i32
  }
  func.func @transform_3(%arg0: i32) -> (i32, i32, i32, i32) {
    %c0_i32 = arith.constant 0 : i32
    %c0_i32_0 = arith.constant 0 : i32
    %c0_i32_1 = arith.constant 0 : i32
    %c0_i32_2 = arith.constant 0 : i32
    %c0_i32_3 = arith.constant 0 : i32
    return %c0_i32, %c0_i32_0, %c0_i32_1, %c0_i32_2 : i32, i32, i32, i32
  }
}

</mosaic_0001>

<llo_original>
// kernel: conv_block_forward.1
$region0: #{conv_block_forward.1}
  #allocation0 [shape = 'u32[]', space=smem, size = 0x4, offset = 0x4, fixed_abs, tag = 'smem constant byte address 0x4 - core index']
  #allocation1 [shape = 'u32[72,128]{1,0:T(1,128)}', space=vmem, size = 0x9000, scoped, tag = 'internal scratch']
  #allocation2 [shape = 'f32[2,18,18,4]{3,2,1,0:T(8,128)}', space=vmem, size = 0x6c000, scoped, tag = 'scratch operand']
  %s0 = inlined_call_operand.vmem [shape: f32[2,20,20,4], index: 0, kind: input, shape index: {}]
  %s1 = inlined_call_operand.vmem [shape: f32[36,16], index: 1, kind: input, shape index: {}]
  %s2 = inlined_call_operand.vmem [shape: f32[1,16], index: 2, kind: input, shape index: {}]
  %s3 = inlined_call_operand.vmem [shape: f32[2,7,13,24], index: 3, kind: output, shape index: {}]
  %s4 = sld [smem:[#allocation0]]
  $region22: #{conv_block_forward.1} parent=0
    _
  %s6 = ssub.s32 1, %s4
  %s7 = scalar_select 0, %s6, %s4
  // Predicated region
  $region2: #{conv_block_forward.1} parent=0 // pred_check
    _
  $region3: #{conv_block_forward.1} parent=0 // pred_check_branch
    %9 = sbr.rel (0) target = $region5
  $region4: #{conv_block_forward.1} parent=0 // pred_region
    _
  $region5: #{conv_block_forward.1} parent=0 // pred_fallthru
    _
  // Predicated region
  $region6: #{conv_block_forward.1} parent=0 // pred_check
    _
  $region7: #{conv_block_forward.1} parent=0 // pred_check_branch
    %11 = sbr.rel (0) target = $region9
  $region8: #{conv_block_forward.1} parent=0 // pred_region
    _
  $region9: #{conv_block_forward.1} parent=0 // pred_fallthru
    _
  // Predicated region
  $region10: #{conv_block_forward.1} parent=0 // pred_check
    _
  $region11: #{conv_block_forward.1} parent=0 // pred_check_branch
    %13 = sbr.rel (0) target = $region13
  $region12: #{conv_block_forward.1} parent=0 // pred_region
    _
  $region13: #{conv_block_forward.1} parent=0 // pred_fallthru
    _
  %v14 = vld [vmem:[%s0] sm:$0xff]
  %v15 = vld [vmem:[%s0 + $0x8] sm:$0xff]
  %v16 = vld [vmem:[%s0 + $0x10] sm:$0xf]
  %v17 = vld [vmem:[%s0 + $0x18] sm:$0xff]
  %v18 = vld [vmem:[%s0 + $0x20] sm:$0xff]
  %v19 = vld [vmem:[%s0 + $0x28] sm:$0xf]
  %v20 = vld [vmem:[%s0 + $0x30] sm:$0xff]
  %v21 = vld [vmem:[%s0 + $0x38] sm:$0xff]
  %v22 = vld [vmem:[%s0 + $0x40] sm:$0xf]
  %v23 = vld [vmem:[%s0 + $0x48] sm:$0xff]
  %v24 = vld [vmem:[%s0 + $0x50] sm:$0xff]
  %v25 = vld [vmem:[%s0 + $0x58] sm:$0xf]
  %v26 = vld [vmem:[%s0 + $0x60] sm:$0xff]
  %v27 = vld [vmem:[%s0 + $0x68] sm:$0xff]
  %v28 = vld [vmem:[%s0 + $0x70] sm:$0xf]
  %v29 = vld [vmem:[%s0 + $0x78] sm:$0xff]
  %v30 = vld [vmem:[%s0 + $0x80] sm:$0xff]
  %v31 = vld [vmem:[%s0 + $0x88] sm:$0xf]
  %v32 = vld [vmem:[%s0 + $0x90] sm:$0xff]
  %v33 = vld [vmem:[%s0 + $0x98] sm:$0xff]
  %v34 = vld [vmem:[%s0 + $0xa0] sm:$0xf]
  %v35 = vld [vmem:[%s0 + $0xa8] sm:$0xff]
  %v36 = vld [vmem:[%s0 + $0xb0] sm:$0xff]
  %v37 = vld [vmem:[%s0 + $0xb8] sm:$0xf]
  %v38 = vld [vmem:[%s0 + $0xc0] sm:$0xff]
  %v39 = vld [vmem:[%s0 + $0xc8] sm:$0xff]
  %v40 = vld [vmem:[%s0 + $0xd0] sm:$0xf]
  %v41 = vld [vmem:[%s0 + $0xd8] sm:$0xff]
  %v42 = vld [vmem:[%s0 + $0xe0] sm:$0xff]
  %v43 = vld [vmem:[%s0 + $0xe8] sm:$0xf]
  %v44 = vld [vmem:[%s0 + $0xf0] sm:$0xff]
  %v45 = vld [vmem:[%s0 + $0xf8] sm:$0xff]
  %v46 = vld [vmem:[%s0 + $0x100] sm:$0xf]
  %v47 = vld [vmem:[%s0 + $0x108] sm:$0xff]
  %v48 = vld [vmem:[%s0 + $0x110] sm:$0xff]
  %v49 = vld [vmem:[%s0 + $0x118] sm:$0xf]
  %v50 = vld [vmem:[%s0 + $0x120] sm:$0xff]
  %v51 = vld [vmem:[%s0 + $0x128] sm:$0xff]
  %v52 = vld [vmem:[%s0 + $0x130] sm:$0xf]
  %v53 = vld [vmem:[%s0 + $0x138] sm:$0xff]
  %v54 = vld [vmem:[%s0 + $0x140] sm:$0xff]
  %v55 = vld [vmem:[%s0 + $0x148] sm:$0xf]
  %v56 = vld [vmem:[%s0 + $0x150] sm:$0xff]
  %v57 = vld [vmem:[%s0 + $0x158] sm:$0xff]
  %v58 = vld [vmem:[%s0 + $0x160] sm:$0xf]
  %v59 = vld [vmem:[%s0 + $0x168] sm:$0xff]
  %v60 = vld [vmem:[%s0 + $0x170] sm:$0xff]
  %v61 = vld [vmem:[%s0 + $0x178] sm:$0xf]
  %v62 = vld [vmem:[%s0 + $0x180] sm:$0xff]
  %v63 = vld [vmem:[%s0 + $0x188] sm:$0xff]
  %v64 = vld [vmem:[%s0 + $0x190] sm:$0xf]
  %v65 = vld [vmem:[%s0 + $0x198] sm:$0xff]
  %v66 = vld [vmem:[%s0 + $0x1a0] sm:$0xff]
  %v67 = vld [vmem:[%s0 + $0x1a8] sm:$0xf]
  %v68 = vld [vmem:[%s0 + $0x1b0] sm:$0xff]
  %v69 = vld [vmem:[%s0 + $0x1b8] sm:$0xff]
  %v70 = vld [vmem:[%s0 + $0x1c0] sm:$0xf]
  %v71 = vld [vmem:[%s0 + $0x1c8] sm:$0xff]
  %v72 = vld [vmem:[%s0 + $0x1d0] sm:$0xff]
  %v73 = vld [vmem:[%s0 + $0x1d8] sm:$0xf]
  %v74 = vld [vmem:[%s0 + $0x1e0] sm:$0xff]
  %v75 = vld [vmem:[%s0 + $0x1e8] sm:$0xff]
  %v76 = vld [vmem:[%s0 + $0x1f0] sm:$0xf]
  %v77 = vld [vmem:[%s0 + $0x1f8] sm:$0xff]
  %v78 = vld [vmem:[%s0 + $0x200] sm:$0xff]
  %v79 = vld [vmem:[%s0 + $0x208] sm:$0xf]
  %v80 = vld [vmem:[%s0 + $0x210] sm:$0xff]
  %v81 = vld [vmem:[%s0 + $0x218] sm:$0xff]
  %v82 = vld [vmem:[%s0 + $0x220] sm:$0xf]
  %v83 = vld [vmem:[%s0 + $0x228] sm:$0xff]
  %v84 = vld [vmem:[%s0 + $0x230] sm:$0xff]
  %v85 = vld [vmem:[%s0 + $0x238] sm:$0xf]
  %v86 = vld [vmem:[%s0 + $0x240] sm:$0xff]
  %v87 = vld [vmem:[%s0 + $0x248] sm:$0xff]
  %v88 = vld [vmem:[%s0 + $0x250] sm:$0xf]
  %v89 = vld [vmem:[%s0 + $0x258] sm:$0xff]
  %v90 = vld [vmem:[%s0 + $0x260] sm:$0xff]
  %v91 = vld [vmem:[%s0 + $0x268] sm:$0xf]
  %v92 = vld [vmem:[%s0 + $0x270] sm:$0xff]
  %v93 = vld [vmem:[%s0 + $0x278] sm:$0xff]
  %v94 = vld [vmem:[%s0 + $0x280] sm:$0xf]
  %v95 = vld [vmem:[%s0 + $0x288] sm:$0xff]
  %v96 = vld [vmem:[%s0 + $0x290] sm:$0xff]
  %v97 = vld [vmem:[%s0 + $0x298] sm:$0xf]
  %v98 = vld [vmem:[%s0 + $0x2a0] sm:$0xff]
  %v99 = vld [vmem:[%s0 + $0x2a8] sm:$0xff]
  %v100 = vld [vmem:[%s0 + $0x2b0] sm:$0xf]
  %v101 = vld [vmem:[%s0 + $0x2b8] sm:$0xff]
  %v102 = vld [vmem:[%s0 + $0x2c0] sm:$0xff]
  %v103 = vld [vmem:[%s0 + $0x2c8] sm:$0xf]
  %v104 = vld [vmem:[%s0 + $0x2d0] sm:$0xff]
  %v105 = vld [vmem:[%s0 + $0x2d8] sm:$0xff]
  %v106 = vld [vmem:[%s0 + $0x2e0] sm:$0xf]
  %v107 = vld [vmem:[%s0 + $0x2e8] sm:$0xff]
  %v108 = vld [vmem:[%s0 + $0x2f0] sm:$0xff]
  %v109 = vld [vmem:[%s0 + $0x2f8] sm:$0xf]
  %v110 = vld [vmem:[%s0 + $0x300] sm:$0xff]
  %v111 = vld [vmem:[%s0 + $0x308] sm:$0xff]
  %v112 = vld [vmem:[%s0 + $0x310] sm:$0xf]
  %v113 = vld [vmem:[%s0 + $0x318] sm:$0xff]
  %v114 = vld [vmem:[%s0 + $0x320] sm:$0xff]
  %v115 = vld [vmem:[%s0 + $0x328] sm:$0xf]
  %v116 = vld [vmem:[%s0 + $0x330] sm:$0xff]
  %v117 = vld [vmem:[%s0 + $0x338] sm:$0xff]
  %v118 = vld [vmem:[%s0 + $0x340] sm:$0xf]
  %v119 = vld [vmem:[%s0 + $0x348] sm:$0xff]
  %v120 = vld [vmem:[%s0 + $0x350] sm:$0xff]
  %v121 = vld [vmem:[%s0 + $0x358] sm:$0xf]
  %v122 = vld [vmem:[%s0 + $0x360] sm:$0xff]
  %v123 = vld [vmem:[%s0 + $0x368] sm:$0xff]
  %v124 = vld [vmem:[%s0 + $0x370] sm:$0xf]
  %v125 = vld [vmem:[%s0 + $0x378] sm:$0xff]
  %v126 = vld [vmem:[%s0 + $0x380] sm:$0xff]
  %v127 = vld [vmem:[%s0 + $0x388] sm:$0xf]
  %v128 = vld [vmem:[%s0 + $0x390] sm:$0xff]
  %v129 = vld [vmem:[%s0 + $0x398] sm:$0xff]
  %v130 = vld [vmem:[%s0 + $0x3a0] sm:$0xf]
  %v131 = vld [vmem:[%s0 + $0x3a8] sm:$0xff]
  %v132 = vld [vmem:[%s0 + $0x3b0] sm:$0xff]
  %v133 = vld [vmem:[%s0 + $0x3b8] sm:$0xf]
  %v134 = vld [vmem:[%s1] sm:$0xff]
  %v135 = vld [vmem:[%s1 + $0x8] sm:$0xff]
  %v136 = vld [vmem:[%s1 + $0x10] sm:$0xff]
  %v137 = vld [vmem:[%s1 + $0x18] sm:$0xff]
  %v138 = vld [vmem:[%s1 + $0x20] sm:$0xf]
  %v139 = vld [vmem:[%s2] sm:$0x1]
  %vm236 = vcmask 1046528
  %v237 = vrot.slane %v17, 1
  %v238 = vrot.slane %v18, 1
  %v239 = vsel %vm236, %v237, %v238
  %v240 = vrot.slane %v19, 1
  %v241 = vsel %vm236, %v238, %v240
  %v242 = vrot.slane %v20, 1
  %v243 = vrot.slane %v21, 1
  %v244 = vsel %vm236, %v242, %v243
  %v245 = vrot.slane %v22, 1
  %v246 = vsel %vm236, %v243, %v245
  %v247 = vrot.slane %v23, 1
  %v248 = vrot.slane %v24, 1
  %v249 = vsel %vm236, %v247, %v248
  %v250 = vrot.slane %v25, 1
  %v251 = vsel %vm236, %v248, %v250
  %v252 = vrot.slane %v26, 1
  %v253 = vrot.slane %v27, 1
  %v254 = vsel %vm236, %v252, %v253
  %v255 = vrot.slane %v28, 1
  %v256 = vsel %vm236, %v253, %v255
  %v257 = vrot.slane %v29, 1
  %v258 = vrot.slane %v30, 1
  %v259 = vsel %vm236, %v257, %v258
  %v260 = vrot.slane %v31, 1
  %v261 = vsel %vm236, %v258, %v260
  %v262 = vrot.slane %v32, 1
  %v263 = vrot.slane %v33, 1
  %v264 = vsel %vm236, %v262, %v263
  %v265 = vrot.slane %v34, 1
  %v266 = vsel %vm236, %v263, %v265
  %v267 = vrot.slane %v35, 1
  %v268 = vrot.slane %v36, 1
  %v269 = vsel %vm236, %v267, %v268
  %v270 = vrot.slane %v37, 1
  %v271 = vsel %vm236, %v268, %v270
  %v272 = vrot.slane %v38, 1
  %v273 = vrot.slane %v39, 1
  %v274 = vsel %vm236, %v272, %v273
  %v275 = vrot.slane %v40, 1
  %v276 = vsel %vm236, %v273, %v275
  %v277 = vrot.slane %v41, 1
  %v278 = vrot.slane %v42, 1
  %v279 = vsel %vm236, %v277, %v278
  %v280 = vrot.slane %v43, 1
  %v281 = vsel %vm236, %v278, %v280
  %v282 = vrot.slane %v44, 1
  %v283 = vrot.slane %v45, 1
  %v284 = vsel %vm236, %v282, %v283
  %v285 = vrot.slane %v46, 1
  %v286 = vsel %vm236, %v283, %v285
  %v287 = vrot.slane %v47, 1
  %v288 = vrot.slane %v48, 1
  %v289 = vsel %vm236, %v287, %v288
  %v290 = vrot.slane %v49, 1
  %v291 = vsel %vm236, %v288, %v290
  %v292 = vrot.slane %v50, 1
  %v293 = vrot.slane %v51, 1
  %v294 = vsel %vm236, %v292, %v293
  %v295 = vrot.slane %v52, 1
  %v296 = vsel %vm236, %v293, %v295
  %v297 = vrot.slane %v53, 1
  %v298 = vrot.slane %v54, 1
  %v299 = vsel %vm236, %v297, %v298
  %v300 = vrot.slane %v55, 1
  %v301 = vsel %vm236, %v298, %v300
  %v302 = vrot.slane %v56, 1
  %v303 = vrot.slane %v57, 1
  %v304 = vsel %vm236, %v302, %v303
  %v305 = vrot.slane %v58, 1
  %v306 = vsel %vm236, %v303, %v305
  %v307 = vrot.slane %v59, 1
  %v308 = vrot.slane %v60, 1
  %v309 = vsel %vm236, %v307, %v308
  %v310 = vrot.slane %v61, 1
  %v311 = vsel %vm236, %v308, %v310
  %v312 = vrot.slane %v62, 1
  %v313 = vrot.slane %v63, 1
  %v314 = vsel %vm236, %v312, %v313
  %v315 = vrot.slane %v64, 1
  %v316 = vsel %vm236, %v313, %v315
  %v317 = vrot.slane %v77, 1
  %v318 = vrot.slane %v78, 1
  %v319 = vsel %vm236, %v317, %v318
  %v320 = vrot.slane %v79, 1
  %v321 = vsel %vm236, %v318, %v320
  %v322 = vrot.slane %v80, 1
  %v323 = vrot.slane %v81, 1
  %v324 = vsel %vm236, %v322, %v323
  %v325 = vrot.slane %v82, 1
  %v326 = vsel %vm236, %v323, %v325
  %v327 = vrot.slane %v83, 1
  %v328 = vrot.slane %v84, 1
  %v329 = vsel %vm236, %v327, %v328
  %v330 = vrot.slane %v85, 1
  %v331 = vsel %vm236, %v328, %v330
  %v332 = vrot.slane %v86, 1
  %v333 = vrot.slane %v87, 1
  %v334 = vsel %vm236, %v332, %v333
  %v335 = vrot.slane %v88, 1
  %v336 = vsel %vm236, %v333, %v335
  %v337 = vrot.slane %v89, 1
  %v338 = vrot.slane %v90, 1
  %v339 = vsel %vm236, %v337, %v338
  %v340 = vrot.slane %v91, 1
  %v341 = vsel %vm236, %v338, %v340
  %v342 = vrot.slane %v92, 1
  %v343 = vrot.slane %v93, 1
  %v344 = vsel %vm236, %v342, %v343
  %v345 = vrot.slane %v94, 1
  %v346 = vsel %vm236, %v343, %v345
  %v347 = vrot.slane %v95, 1
  %v348 = vrot.slane %v96, 1
  %v349 = vsel %vm236, %v347, %v348
  %v350 = vrot.slane %v97, 1
  %v351 = vsel %vm236, %v348, %v350
  %v352 = vrot.slane %v98, 1
  %v353 = vrot.slane %v99, 1
  %v354 = vsel %vm236, %v352, %v353
  %v355 = vrot.slane %v100, 1
  %v356 = vsel %vm236, %v353, %v355
  %v357 = vrot.slane %v101, 1
  %v358 = vrot.slane %v102, 1
  %v359 = vsel %vm236, %v357, %v358
  %v360 = vrot.slane %v103, 1
  %v361 = vsel %vm236, %v358, %v360
  %v362 = vrot.slane %v104, 1
  %v363 = vrot.slane %v105, 1
  %v364 = vsel %vm236, %v362, %v363
  %v365 = vrot.slane %v106, 1
  %v366 = vsel %vm236, %v363, %v365
  %v367 = vrot.slane %v107, 1
  %v368 = vrot.slane %v108, 1
  %v369 = vsel %vm236, %v367, %v368
  %v370 = vrot.slane %v109, 1
  %v371 = vsel %vm236, %v368, %v370
  %v372 = vrot.slane %v110, 1
  %v373 = vrot.slane %v111, 1
  %v374 = vsel %vm236, %v372, %v373
  %v375 = vrot.slane %v112, 1
  %v376 = vsel %vm236, %v373, %v375
  %v377 = vrot.slane %v113, 1
  %v378 = vrot.slane %v114, 1
  %v379 = vsel %vm236, %v377, %v378
  %v380 = vrot.slane %v115, 1
  %v381 = vsel %vm236, %v378, %v380
  %v382 = vrot.slane %v116, 1
  %v383 = vrot.slane %v117, 1
  %v384 = vsel %vm236, %v382, %v383
  %v385 = vrot.slane %v118, 1
  %v386 = vsel %vm236, %v383, %v385
  %v387 = vrot.slane %v119, 1
  %v388 = vrot.slane %v120, 1
  %v389 = vsel %vm236, %v387, %v388
  %v390 = vrot.slane %v121, 1
  %v391 = vsel %vm236, %v388, %v390
  %v392 = vrot.slane %v122, 1
  %v393 = vrot.slane %v123, 1
  %v394 = vsel %vm236, %v392, %v393
  %v395 = vrot.slane %v124, 1
  %v396 = vsel %vm236, %v393, %v395
  %397 = vrot.lane.b32.xlu0 %v239, 4
  %v398 = vpop.permute.xlu0 %397
  %399 = vrot.lane.b32.xlu0 %v241, 4
  %v400 = vpop.permute.xlu0 %399
  %401 = vrot.lane.b32.xlu0 %v240, 4
  %v402 = vpop.permute.xlu0 %401
  %403 = vrot.lane.b32.xlu0 %v244, 4
  %v404 = vpop.permute.xlu0 %403
  %405 = vrot.lane.b32.xlu0 %v246, 4
  %v406 = vpop.permute.xlu0 %405
  %407 = vrot.lane.b32.xlu0 %v245, 4
  %v408 = vpop.permute.xlu0 %407
  %409 = vrot.lane.b32.xlu0 %v249, 4
  %v410 = vpop.permute.xlu0 %409
  %411 = vrot.lane.b32.xlu0 %v251, 4
  %v412 = vpop.permute.xlu0 %411
  %413 = vrot.lane.b32.xlu0 %v250, 4
  %v414 = vpop.permute.xlu0 %413
  %415 = vrot.lane.b32.xlu0 %v254, 4
  %v416 = vpop.permute.xlu0 %415
  %417 = vrot.lane.b32.xlu0 %v256, 4
  %v418 = vpop.permute.xlu0 %417
  %419 = vrot.lane.b32.xlu0 %v255, 4
  %v420 = vpop.permute.xlu0 %419
  %421 = vrot.lane.b32.xlu0 %v259, 4
  %v422 = vpop.permute.xlu0 %421
  %423 = vrot.lane.b32.xlu0 %v261, 4
  %v424 = vpop.permute.xlu0 %423
  %425 = vrot.lane.b32.xlu0 %v260, 4
  %v426 = vpop.permute.xlu0 %425
  %427 = vrot.lane.b32.xlu0 %v264, 4
  %v428 = vpop.permute.xlu0 %427
  %429 = vrot.lane.b32.xlu0 %v266, 4
  %v430 = vpop.permute.xlu0 %429
  %431 = vrot.lane.b32.xlu0 %v265, 4
  %v432 = vpop.permute.xlu0 %431
  %433 = vrot.lane.b32.xlu0 %v269, 4
  %v434 = vpop.permute.xlu0 %433
  %435 = vrot.lane.b32.xlu0 %v271, 4
  %v436 = vpop.permute.xlu0 %435
  %437 = vrot.lane.b32.xlu0 %v270, 4
  %v438 = vpop.permute.xlu0 %437
  %439 = vrot.lane.b32.xlu0 %v274, 4
  %v440 = vpop.permute.xlu0 %439
  %441 = vrot.lane.b32.xlu0 %v276, 4
  %v442 = vpop.permute.xlu0 %441
  %443 = vrot.lane.b32.xlu0 %v275, 4
  %v444 = vpop.permute.xlu0 %443
  %445 = vrot.lane.b32.xlu0 %v279, 4
  %v446 = vpop.permute.xlu0 %445
  %447 = vrot.lane.b32.xlu0 %v281, 4
  %v448 = vpop.permute.xlu0 %447
  %449 = vrot.lane.b32.xlu0 %v280, 4
  %v450 = vpop.permute.xlu0 %449
  %451 = vrot.lane.b32.xlu0 %v284, 4
  %v452 = vpop.permute.xlu0 %451
  %453 = vrot.lane.b32.xlu0 %v286, 4
  %v454 = vpop.permute.xlu0 %453
  %455 = vrot.lane.b32.xlu0 %v285, 4
  %v456 = vpop.permute.xlu0 %455
  %457 = vrot.lane.b32.xlu0 %v289, 4
  %v458 = vpop.permute.xlu0 %457
  %459 = vrot.lane.b32.xlu0 %v291, 4
  %v460 = vpop.permute.xlu0 %459
  %461 = vrot.lane.b32.xlu0 %v290, 4
  %v462 = vpop.permute.xlu0 %461
  %463 = vrot.lane.b32.xlu0 %v294, 4
  %v464 = vpop.permute.xlu0 %463
  %465 = vrot.lane.b32.xlu0 %v296, 4
  %v466 = vpop.permute.xlu0 %465
  %467 = vrot.lane.b32.xlu0 %v295, 4
  %v468 = vpop.permute.xlu0 %467
  %469 = vrot.lane.b32.xlu0 %v299, 4
  %v470 = vpop.permute.xlu0 %469
  %471 = vrot.lane.b32.xlu0 %v301, 4
  %v472 = vpop.permute.xlu0 %471
  %473 = vrot.lane.b32.xlu0 %v300, 4
  %v474 = vpop.permute.xlu0 %473
  %475 = vrot.lane.b32.xlu0 %v304, 4
  %v476 = vpop.permute.xlu0 %475
  %477 = vrot.lane.b32.xlu0 %v306, 4
  %v478 = vpop.permute.xlu0 %477
  %479 = vrot.lane.b32.xlu0 %v305, 4
  %v480 = vpop.permute.xlu0 %479
  %481 = vrot.lane.b32.xlu0 %v309, 4
  %v482 = vpop.permute.xlu0 %481
  %483 = vrot.lane.b32.xlu0 %v311, 4
  %v484 = vpop.permute.xlu0 %483
  %485 = vrot.lane.b32.xlu0 %v310, 4
  %v486 = vpop.permute.xlu0 %485
  %487 = vrot.lane.b32.xlu0 %v314, 4
  %v488 = vpop.permute.xlu0 %487
  %489 = vrot.lane.b32.xlu0 %v316, 4
  %v490 = vpop.permute.xlu0 %489
  %491 = vrot.lane.b32.xlu0 %v315, 4
  %v492 = vpop.permute.xlu0 %491
  %493 = vrot.lane.b32.xlu0 %v319, 4
  %v494 = vpop.permute.xlu0 %493
  %495 = vrot.lane.b32.xlu0 %v321, 4
  %v496 = vpop.permute.xlu0 %495
  %497 = vrot.lane.b32.xlu0 %v320, 4
  %v498 = vpop.permute.xlu0 %497
  %499 = vrot.lane.b32.xlu0 %v324, 4
  %v500 = vpop.permute.xlu0 %499
  %501 = vrot.lane.b32.xlu0 %v326, 4
  %v502 = vpop.permute.xlu0 %501
  %503 = vrot.lane.b32.xlu0 %v325, 4
  %v504 = vpop.permute.xlu0 %503
  %505 = vrot.lane.b32.xlu0 %v329, 4
  %v506 = vpop.permute.xlu0 %505
  %507 = vrot.lane.b32.xlu0 %v331, 4
  %v508 = vpop.permute.xlu0 %507
  %509 = vrot.lane.b32.xlu0 %v330, 4
  %v510 = vpop.permute.xlu0 %509
  %511 = vrot.lane.b32.xlu0 %v334, 4
  %v512 = vpop.permute.xlu0 %511
  %513 = vrot.lane.b32.xlu0 %v336, 4
  %v514 = vpop.permute.xlu0 %513
  %515 = vrot.lane.b32.xlu0 %v335, 4
  %v516 = vpop.permute.xlu0 %515
  %517 = vrot.lane.b32.xlu0 %v339, 4
  %v518 = vpop.permute.xlu0 %517
  %519 = vrot.lane.b32.xlu0 %v341, 4
  %v520 = vpop.permute.xlu0 %519
  %521 = vrot.lane.b32.xlu0 %v340, 4
  %v522 = vpop.permute.xlu0 %521
  %523 = vrot.lane.b32.xlu0 %v344, 4
  %v524 = vpop.permute.xlu0 %523
  %525 = vrot.lane.b32.xlu0 %v346, 4
  %v526 = vpop.permute.xlu0 %525
  %527 = vrot.lane.b32.xlu0 %v345, 4
  %v528 = vpop.permute.xlu0 %527
  %529 = vrot.lane.b32.xlu0 %v349, 4
  %v530 = vpop.permute.xlu0 %529
  %531 = vrot.lane.b32.xlu0 %v351, 4
  %v532 = vpop.permute.xlu0 %531
  %533 = vrot.lane.b32.xlu0 %v350, 4
  %v534 = vpop.permute.xlu0 %533
  %535 = vrot.lane.b32.xlu0 %v354, 4
  %v536 = vpop.permute.xlu0 %535
  %537 = vrot.lane.b32.xlu0 %v356, 4
  %v538 = vpop.permute.xlu0 %537
  %539 = vrot.lane.b32.xlu0 %v355, 4
  %v540 = vpop.permute.xlu0 %539
  %541 = vrot.lane.b32.xlu0 %v359, 4
  %v542 = vpop.permute.xlu0 %541
  %543 = vrot.lane.b32.xlu0 %v361, 4
  %v544 = vpop.permute.xlu0 %543
  %545 = vrot.lane.b32.xlu0 %v360, 4
  %v546 = vpop.permute.xlu0 %545
  %547 = vrot.lane.b32.xlu0 %v364, 4
  %v548 = vpop.permute.xlu0 %547
  %549 = vrot.lane.b32.xlu0 %v366, 4
  %v550 = vpop.permute.xlu0 %549
  %551 = vrot.lane.b32.xlu0 %v365, 4
  %v552 = vpop.permute.xlu0 %551
  %553 = vrot.lane.b32.xlu0 %v369, 4
  %v554 = vpop.permute.xlu0 %553
  %555 = vrot.lane.b32.xlu0 %v371, 4
  %v556 = vpop.permute.xlu0 %555
  %557 = vrot.lane.b32.xlu0 %v370, 4
  %v558 = vpop.permute.xlu0 %557
  %559 = vrot.lane.b32.xlu0 %v374, 4
  %v560 = vpop.permute.xlu0 %559
  %561 = vrot.lane.b32.xlu0 %v376, 4
  %v562 = vpop.permute.xlu0 %561
  %563 = vrot.lane.b32.xlu0 %v375, 4
  %v564 = vpop.permute.xlu0 %563
  %565 = vrot.lane.b32.xlu0 %v379, 4
  %v566 = vpop.permute.xlu0 %565
  %567 = vrot.lane.b32.xlu0 %v381, 4
  %v568 = vpop.permute.xlu0 %567
  %569 = vrot.lane.b32.xlu0 %v380, 4
  %v570 = vpop.permute.xlu0 %569
  %571 = vrot.lane.b32.xlu0 %v384, 4
  %v572 = vpop.permute.xlu0 %571
  %573 = vrot.lane.b32.xlu0 %v386, 4
  %v574 = vpop.permute.xlu0 %573
  %575 = vrot.lane.b32.xlu0 %v385, 4
  %v576 = vpop.permute.xlu0 %575
  %577 = vrot.lane.b32.xlu0 %v389, 4
  %v578 = vpop.permute.xlu0 %577
  %579 = vrot.lane.b32.xlu0 %v391, 4
  %v580 = vpop.permute.xlu0 %579
  %581 = vrot.lane.b32.xlu0 %v390, 4
  %v582 = vpop.permute.xlu0 %581
  %583 = vrot.lane.b32.xlu0 %v394, 4
  %v584 = vpop.permute.xlu0 %583
  %585 = vrot.lane.b32.xlu0 %v396, 4
  %v586 = vpop.permute.xlu0 %585
  %587 = vrot.lane.b32.xlu0 %v395, 4
  %v588 = vpop.permute.xlu0 %587
  %vm685 = vcmask 1045504
  %v686 = vrot.slane %v17, 2
  %v687 = vrot.slane %v18, 2
  %v688 = vsel %vm685, %v686, %v687
  %v689 = vrot.slane %v19, 2
  %v690 = vsel %vm685, %v687, %v689
  %v691 = vrot.slane %v20, 2
  %v692 = vrot.slane %v21, 2
  %v693 = vsel %vm685, %v691, %v692
  %v694 = vrot.slane %v22, 2
  %v695 = vsel %vm685, %v692, %v694
  %v696 = vrot.slane %v23, 2
  %v697 = vrot.slane %v24, 2
  %v698 = vsel %vm685, %v696, %v697
  %v699 = vrot.slane %v25, 2
  %v700 = vsel %vm685, %v697, %v699
  %v701 = vrot.slane %v26, 2
  %v702 = vrot.slane %v27, 2
  %v703 = vsel %vm685, %v701, %v702
  %v704 = vrot.slane %v28, 2
  %v705 = vsel %vm685, %v702, %v704
  %v706 = vrot.slane %v29, 2
  %v707 = vrot.slane %v30, 2
  %v708 = vsel %vm685, %v706, %v707
  %v709 = vrot.slane %v31, 2
  %v710 = vsel %vm685, %v707, %v709
  %v711 = vrot.slane %v32, 2
  %v712 = vrot.slane %v33, 2
  %v713 = vsel %vm685, %v711, %v712
  %v714 = vrot.slane %v34, 2
  %v715 = vsel %vm685, %v712, %v714
  %v716 = vrot.slane %v35, 2
  %v717 = vrot.slane %v36, 2
  %v718 = vsel %vm685, %v716, %v717
  %v719 = vrot.slane %v37, 2
  %v720 = vsel %vm685, %v717, %v719
  %v721 = vrot.slane %v38, 2
  %v722 = vrot.slane %v39, 2
  %v723 = vsel %vm685, %v721, %v722
  %v724 = vrot.slane %v40, 2
  %v725 = vsel %vm685, %v722, %v724
  %v726 = vrot.slane %v41, 2
  %v727 = vrot.slane %v42, 2
  %v728 = vsel %vm685, %v726, %v727
  %v729 = vrot.slane %v43, 2
  %v730 = vsel %vm685, %v727, %v729
  %v731 = vrot.slane %v44, 2
  %v732 = vrot.slane %v45, 2
  %v733 = vsel %vm685, %v731, %v732
  %v734 = vrot.slane %v46, 2
  %v735 = vsel %vm685, %v732, %v734
  %v736 = vrot.slane %v47, 2
  %v737 = vrot.slane %v48, 2
  %v738 = vsel %vm685, %v736, %v737
  %v739 = vrot.slane %v49, 2
  %v740 = vsel %vm685, %v737, %v739
  %v741 = vrot.slane %v50, 2
  %v742 = vrot.slane %v51, 2
  %v743 = vsel %vm685, %v741, %v742
  %v744 = vrot.slane %v52, 2
  %v745 = vsel %vm685, %v742, %v744
  %v746 = vrot.slane %v53, 2
  %v747 = vrot.slane %v54, 2
  %v748 = vsel %vm685, %v746, %v747
  %v749 = vrot.slane %v55, 2
  %v750 = vsel %vm685, %v747, %v749
  %v751 = vrot.slane %v56, 2
  %v752 = vrot.slane %v57, 2
  %v753 = vsel %vm685, %v751, %v752
  %v754 = vrot.slane %v58, 2
  %v755 = vsel %vm685, %v752, %v754
  %v756 = vrot.slane %v59, 2
  %v757 = vrot.slane %v60, 2
  %v758 = vsel %vm685, %v756, %v757
  %v759 = vrot.slane %v61, 2
  %v760 = vsel %vm685, %v757, %v759
  %v761 = vrot.slane %v62, 2
  %v762 = vrot.slane %v63, 2
  %v763 = vsel %vm685, %v761, %v762
  %v764 = vrot.slane %v64, 2
  %v765 = vsel %vm685, %v762, %v764
  %v766 = vrot.slane %v77, 2
  %v767 = vrot.slane %v78, 2
  %v768 = vsel %vm685, %v766, %v767
  %v769 = vrot.slane %v79, 2
  %v770 = vsel %vm685, %v767, %v769
  %v771 = vrot.slane %v80, 2
  %v772 = vrot.slane %v81, 2
  %v773 = vsel %vm685, %v771, %v772
  %v774 = vrot.slane %v82, 2
  %v775 = vsel %vm685, %v772, %v774
  %v776 = vrot.slane %v83, 2
  %v777 = vrot.slane %v84, 2
  %v778 = vsel %vm685, %v776, %v777
  %v779 = vrot.slane %v85, 2
  %v780 = vsel %vm685, %v777, %v779
  %v781 = vrot.slane %v86, 2
  %v782 = vrot.slane %v87, 2
  %v783 = vsel %vm685, %v781, %v782
  %v784 = vrot.slane %v88, 2
  %v785 = vsel %vm685, %v782, %v784
  %v786 = vrot.slane %v89, 2
  %v787 = vrot.slane %v90, 2
  %v788 = vsel %vm685, %v786, %v787
  %v789 = vrot.slane %v91, 2
  %v790 = vsel %vm685, %v787, %v789
  %v791 = vrot.slane %v92, 2
  %v792 = vrot.slane %v93, 2
  %v793 = vsel %vm685, %v791, %v792
  %v794 = vrot.slane %v94, 2
  %v795 = vsel %vm685, %v792, %v794
  %v796 = vrot.slane %v95, 2
  %v797 = vrot.slane %v96, 2
  %v798 = vsel %vm685, %v796, %v797
  %v799 = vrot.slane %v97, 2
  %v800 = vsel %vm685, %v797, %v799
  %v801 = vrot.slane %v98, 2
  %v802 = vrot.slane %v99, 2
  %v803 = vsel %vm685, %v801, %v802
  %v804 = vrot.slane %v100, 2
  %v805 = vsel %vm685, %v802, %v804
  %v806 = vrot.slane %v101, 2
  %v807 = vrot.slane %v102, 2
  %v808 = vsel %vm685, %v806, %v807
  %v809 = vrot.slane %v103, 2
  %v810 = vsel %vm685, %v807, %v809
  %v811 = vrot.slane %v104, 2
  %v812 = vrot.slane %v105, 2
  %v813 = vsel %vm685, %v811, %v812
  %v814 = vrot.slane %v106, 2
  %v815 = vsel %vm685, %v812, %v814
  %v816 = vrot.slane %v107, 2
  %v817 = vrot.slane %v108, 2
  %v818 = vsel %vm685, %v816, %v817
  %v819 = vrot.slane %v109, 2
  %v820 = vsel %vm685, %v817, %v819
  %v821 = vrot.slane %v110, 2
  %v822 = vrot.slane %v111, 2
  %v823 = vsel %vm685, %v821, %v822
  %v824 = vrot.slane %v112, 2
  %v825 = vsel %vm685, %v822, %v824
  %v826 = vrot.slane %v113, 2
  %v827 = vrot.slane %v114, 2
  %v828 = vsel %vm685, %v826, %v827
  %v829 = vrot.slane %v115, 2
  %v830 = vsel %vm685, %v827, %v829
  %v831 = vrot.slane %v116, 2
  %v832 = vrot.slane %v117, 2
  %v833 = vsel %vm685, %v831, %v832
  %v834 = vrot.slane %v118, 2
  %v835 = vsel %vm685, %v832, %v834
  %v836 = vrot.slane %v119, 2
  %v837 = vrot.slane %v120, 2
  %v838 = vsel %vm685, %v836, %v837
  %v839 = vrot.slane %v121, 2
  %v840 = vsel %vm685, %v837, %v839
  %v841 = vrot.slane %v122, 2
  %v842 = vrot.slane %v123, 2
  %v843 = vsel %vm685, %v841, %v842
  %v844 = vrot.slane %v124, 2
  %v845 = vsel %vm685, %v842, %v844
  %846 = vrot.lane.b32.xlu0 %v688, 8
  %v847 = vpop.permute.xlu0 %846
  %848 = vrot.lane.b32.xlu0 %v690, 8
  %v849 = vpop.permute.xlu0 %848
  %850 = vrot.lane.b32.xlu0 %v689, 8
  %v851 = vpop.permute.xlu0 %850
  %852 = vrot.lane.b32.xlu0 %v693, 8
  %v853 = vpop.permute.xlu0 %852
  %854 = vrot.lane.b32.xlu0 %v695, 8
  %v855 = vpop.permute.xlu0 %854
  %856 = vrot.lane.b32.xlu0 %v694, 8
  %v857 = vpop.permute.xlu0 %856
  %858 = vrot.lane.b32.xlu0 %v698, 8
  %v859 = vpop.permute.xlu0 %858
  %860 = vrot.lane.b32.xlu0 %v700, 8
  %v861 = vpop.permute.xlu0 %860
  %862 = vrot.lane.b32.xlu0 %v699, 8
  %v863 = vpop.permute.xlu0 %862
  %864 = vrot.lane.b32.xlu0 %v703, 8
  %v865 = vpop.permute.xlu0 %864
  %866 = vrot.lane.b32.xlu0 %v705, 8
  %v867 = vpop.permute.xlu0 %866
  %868 = vrot.lane.b32.xlu0 %v704, 8
  %v869 = vpop.permute.xlu0 %868
  %870 = vrot.lane.b32.xlu0 %v708, 8
  %v871 = vpop.permute.xlu0 %870
  %872 = vrot.lane.b32.xlu0 %v710, 8
  %v873 = vpop.permute.xlu0 %872
  %874 = vrot.lane.b32.xlu0 %v709, 8
  %v875 = vpop.permute.xlu0 %874
  %876 = vrot.lane.b32.xlu0 %v713, 8
  %v877 = vpop.permute.xlu0 %876
  %878 = vrot.lane.b32.xlu0 %v715, 8
  %v879 = vpop.permute.xlu0 %878
  %880 = vrot.lane.b32.xlu0 %v714, 8
  %v881 = vpop.permute.xlu0 %880
  %882 = vrot.lane.b32.xlu0 %v718, 8
  %v883 = vpop.permute.xlu0 %882
  %884 = vrot.lane.b32.xlu0 %v720, 8
  %v885 = vpop.permute.xlu0 %884
  %886 = vrot.lane.b32.xlu0 %v719, 8
  %v887 = vpop.permute.xlu0 %886
  %888 = vrot.lane.b32.xlu0 %v723, 8
  %v889 = vpop.permute.xlu0 %888
  %890 = vrot.lane.b32.xlu0 %v725, 8
  %v891 = vpop.permute.xlu0 %890
  %892 = vrot.lane.b32.xlu0 %v724, 8
  %v893 = vpop.permute.xlu0 %892
  %894 = vrot.lane.b32.xlu0 %v728, 8
  %v895 = vpop.permute.xlu0 %894
  %896 = vrot.lane.b32.xlu0 %v730, 8
  %v897 = vpop.permute.xlu0 %896
  %898 = vrot.lane.b32.xlu0 %v729, 8
  %v899 = vpop.permute.xlu0 %898
  %900 = vrot.lane.b32.xlu0 %v733, 8
  %v901 = vpop.permute.xlu0 %900
  %902 = vrot.lane.b32.xlu0 %v735, 8
  %v903 = vpop.permute.xlu0 %902
  %904 = vrot.lane.b32.xlu0 %v734, 8
  %v905 = vpop.permute.xlu0 %904
  %906 = vrot.lane.b32.xlu0 %v738, 8
  %v907 = vpop.permute.xlu0 %906
  %908 = vrot.lane.b32.xlu0 %v740, 8
  %v909 = vpop.permute.xlu0 %908
  %910 = vrot.lane.b32.xlu0 %v739, 8
  %v911 = vpop.permute.xlu0 %910
  %912 = vrot.lane.b32.xlu0 %v743, 8
  %v913 = vpop.permute.xlu0 %912
  %914 = vrot.lane.b32.xlu0 %v745, 8
  %v915 = vpop.permute.xlu0 %914
  %916 = vrot.lane.b32.xlu0 %v744, 8
  %v917 = vpop.permute.xlu0 %916
  %918 = vrot.lane.b32.xlu0 %v748, 8
  %v919 = vpop.permute.xlu0 %918
  %920 = vrot.lane.b32.xlu0 %v750, 8
  %v921 = vpop.permute.xlu0 %920
  %922 = vrot.lane.b32.xlu0 %v749, 8
  %v923 = vpop.permute.xlu0 %922
  %924 = vrot.lane.b32.xlu0 %v753, 8
  %v925 = vpop.permute.xlu0 %924
  %926 = vrot.lane.b32.xlu0 %v755, 8
  %v927 = vpop.permute.xlu0 %926
  %928 = vrot.lane.b32.xlu0 %v754, 8
  %v929 = vpop.permute.xlu0 %928
  %930 = vrot.lane.b32.xlu0 %v758, 8
  %v931 = vpop.permute.xlu0 %930
  %932 = vrot.lane.b32.xlu0 %v760, 8
  %v933 = vpop.permute.xlu0 %932
  %934 = vrot.lane.b32.xlu0 %v759, 8
  %v935 = vpop.permute.xlu0 %934
  %936 = vrot.lane.b32.xlu0 %v763, 8
  %v937 = vpop.permute.xlu0 %936
  %938 = vrot.lane.b32.xlu0 %v765, 8
  %v939 = vpop.permute.xlu0 %938
  %940 = vrot.lane.b32.xlu0 %v764, 8
  %v941 = vpop.permute.xlu0 %940
  %942 = vrot.lane.b32.xlu0 %v768, 8
  %v943 = vpop.permute.xlu0 %942
  %944 = vrot.lane.b32.xlu0 %v770, 8
  %v945 = vpop.permute.xlu0 %944
  %946 = vrot.lane.b32.xlu0 %v769, 8
  %v947 = vpop.permute.xlu0 %946
  %948 = vrot.lane.b32.xlu0 %v773, 8
  %v949 = vpop.permute.xlu0 %948
  %950 = vrot.lane.b32.xlu0 %v775, 8
  %v951 = vpop.permute.xlu0 %950
  %952 = vrot.lane.b32.xlu0 %v774, 8
  %v953 = vpop.permute.xlu0 %952
  %954 = vrot.lane.b32.xlu0 %v778, 8
  %v955 = vpop.permute.xlu0 %954
  %956 = vrot.lane.b32.xlu0 %v780, 8
  %v957 = vpop.permute.xlu0 %956
  %958 = vrot.lane.b32.xlu0 %v779, 8
  %v959 = vpop.permute.xlu0 %958
  %960 = vrot.lane.b32.xlu0 %v783, 8
  %v961 = vpop.permute.xlu0 %960
  %962 = vrot.lane.b32.xlu0 %v785, 8
  %v963 = vpop.permute.xlu0 %962
  %964 = vrot.lane.b32.xlu0 %v784, 8
  %v965 = vpop.permute.xlu0 %964
  %966 = vrot.lane.b32.xlu0 %v788, 8
  %v967 = vpop.permute.xlu0 %966
  %968 = vrot.lane.b32.xlu0 %v790, 8
  %v969 = vpop.permute.xlu0 %968
  %970 = vrot.lane.b32.xlu0 %v789, 8
  %v971 = vpop.permute.xlu0 %970
  %972 = vrot.lane.b32.xlu0 %v793, 8
  %v973 = vpop.permute.xlu0 %972
  %974 = vrot.lane.b32.xlu0 %v795, 8
  %v975 = vpop.permute.xlu0 %974
  %976 = vrot.lane.b32.xlu0 %v794, 8
  %v977 = vpop.permute.xlu0 %976
  %978 = vrot.lane.b32.xlu0 %v798, 8
  %v979 = vpop.permute.xlu0 %978
  %980 = vrot.lane.b32.xlu0 %v800, 8
  %v981 = vpop.permute.xlu0 %980
  %982 = vrot.lane.b32.xlu0 %v799, 8
  %v983 = vpop.permute.xlu0 %982
  %984 = vrot.lane.b32.xlu0 %v803, 8
  %v985 = vpop.permute.xlu0 %984
  %986 = vrot.lane.b32.xlu0 %v805, 8
  %v987 = vpop.permute.xlu0 %986
  %988 = vrot.lane.b32.xlu0 %v804, 8
  %v989 = vpop.permute.xlu0 %988
  %990 = vrot.lane.b32.xlu0 %v808, 8
  %v991 = vpop.permute.xlu0 %990
  %992 = vrot.lane.b32.xlu0 %v810, 8
  %v993 = vpop.permute.xlu0 %992
  %994 = vrot.lane.b32.xlu0 %v809, 8
  %v995 = vpop.permute.xlu0 %994
  %996 = vrot.lane.b32.xlu0 %v813, 8
  %v997 = vpop.permute.xlu0 %996
  %998 = vrot.lane.b32.xlu0 %v815, 8
  %v999 = vpop.permute.xlu0 %998
  %1000 = vrot.lane.b32.xlu0 %v814, 8
  %v1001 = vpop.permute.xlu0 %1000
  %1002 = vrot.lane.b32.xlu0 %v818, 8
  %v1003 = vpop.permute.xlu0 %1002
  %1004 = vrot.lane.b32.xlu0 %v820, 8
  %v1005 = vpop.permute.xlu0 %1004
  %1006 = vrot.lane.b32.xlu0 %v819, 8
  %v1007 = vpop.permute.xlu0 %1006
  %1008 = vrot.lane.b32.xlu0 %v823, 8
  %v1009 = vpop.permute.xlu0 %1008
  %1010 = vrot.lane.b32.xlu0 %v825, 8
  %v1011 = vpop.permute.xlu0 %1010
  %1012 = vrot.lane.b32.xlu0 %v824, 8
  %v1013 = vpop.permute.xlu0 %1012
  %1014 = vrot.lane.b32.xlu0 %v828, 8
  %v1015 = vpop.permute.xlu0 %1014
  %1016 = vrot.lane.b32.xlu0 %v830, 8
  %v1017 = vpop.permute.xlu0 %1016
  %1018 = vrot.lane.b32.xlu0 %v829, 8
  %v1019 = vpop.permute.xlu0 %1018
  %1020 = vrot.lane.b32.xlu0 %v833, 8
  %v1021 = vpop.permute.xlu0 %1020
  %1022 = vrot.lane.b32.xlu0 %v835, 8
  %v1023 = vpop.permute.xlu0 %1022
  %1024 = vrot.lane.b32.xlu0 %v834, 8
  %v1025 = vpop.permute.xlu0 %1024
  %1026 = vrot.lane.b32.xlu0 %v838, 8
  %v1027 = vpop.permute.xlu0 %1026
  %1028 = vrot.lane.b32.xlu0 %v840, 8
  %v1029 = vpop.permute.xlu0 %1028
  %1030 = vrot.lane.b32.xlu0 %v839, 8
  %v1031 = vpop.permute.xlu0 %1030
  %1032 = vrot.lane.b32.xlu0 %v843, 8
  %v1033 = vpop.permute.xlu0 %1032
  %1034 = vrot.lane.b32.xlu0 %v845, 8
  %v1035 = vpop.permute.xlu0 %1034
  %1036 = vrot.lane.b32.xlu0 %v844, 8
  %v1037 = vpop.permute.xlu0 %1036
  %1140 = vrot.lane.b32.xlu0 %v20, 12
  %v1141 = vpop.permute.xlu0 %1140
  %1142 = vrot.lane.b32.xlu0 %v21, 12
  %v1143 = vpop.permute.xlu0 %1142
  %1144 = vrot.lane.b32.xlu0 %v22, 12
  %v1145 = vpop.permute.xlu0 %1144
  %1146 = vrot.lane.b32.xlu0 %v23, 12
  %v1147 = vpop.permute.xlu0 %1146
  %1148 = vrot.lane.b32.xlu0 %v24, 12
  %v1149 = vpop.permute.xlu0 %1148
  %1150 = vrot.lane.b32.xlu0 %v25, 12
  %v1151 = vpop.permute.xlu0 %1150
  %1152 = vrot.lane.b32.xlu0 %v26, 12
  %v1153 = vpop.permute.xlu0 %1152
  %1154 = vrot.lane.b32.xlu0 %v27, 12
  %v1155 = vpop.permute.xlu0 %1154
  %1156 = vrot.lane.b32.xlu0 %v28, 12
  %v1157 = vpop.permute.xlu0 %1156
  %1158 = vrot.lane.b32.xlu0 %v29, 12
  %v1159 = vpop.permute.xlu0 %1158
  %1160 = vrot.lane.b32.xlu0 %v30, 12
  %v1161 = vpop.permute.xlu0 %1160
  %1162 = vrot.lane.b32.xlu0 %v31, 12
  %v1163 = vpop.permute.xlu0 %1162
  %1164 = vrot.lane.b32.xlu0 %v32, 12
  %v1165 = vpop.permute.xlu0 %1164
  %1166 = vrot.lane.b32.xlu0 %v33, 12
  %v1167 = vpop.permute.xlu0 %1166
  %1168 = vrot.lane.b32.xlu0 %v34, 12
  %v1169 = vpop.permute.xlu0 %1168
  %1170 = vrot.lane.b32.xlu0 %v35, 12
  %v1171 = vpop.permute.xlu0 %1170
  %1172 = vrot.lane.b32.xlu0 %v36, 12
  %v1173 = vpop.permute.xlu0 %1172
  %1174 = vrot.lane.b32.xlu0 %v37, 12
  %v1175 = vpop.permute.xlu0 %1174
  %1176 = vrot.lane.b32.xlu0 %v38, 12
  %v1177 = vpop.permute.xlu0 %1176
  %1178 = vrot.lane.b32.xlu0 %v39, 12
  %v1179 = vpop.permute.xlu0 %1178
  %1180 = vrot.lane.b32.xlu0 %v40, 12
  %v1181 = vpop.permute.xlu0 %1180
  %1182 = vrot.lane.b32.xlu0 %v41, 12
  %v1183 = vpop.permute.xlu0 %1182
  %1184 = vrot.lane.b32.xlu0 %v42, 12
  %v1185 = vpop.permute.xlu0 %1184
  %1186 = vrot.lane.b32.xlu0 %v43, 12
  %v1187 = vpop.permute.xlu0 %1186
  %1188 = vrot.lane.b32.xlu0 %v44, 12
  %v1189 = vpop.permute.xlu0 %1188
  %1190 = vrot.lane.b32.xlu0 %v45, 12
  %v1191 = vpop.permute.xlu0 %1190
  %1192 = vrot.lane.b32.xlu0 %v46, 12
  %v1193 = vpop.permute.xlu0 %1192
  %1194 = vrot.lane.b32.xlu0 %v47, 12
  %v1195 = vpop.permute.xlu0 %1194
  %1196 = vrot.lane.b32.xlu0 %v48, 12
  %v1197 = vpop.permute.xlu0 %1196
  %1198 = vrot.lane.b32.xlu0 %v49, 12
  %v1199 = vpop.permute.xlu0 %1198
  %1200 = vrot.lane.b32.xlu0 %v50, 12
  %v1201 = vpop.permute.xlu0 %1200
  %1202 = vrot.lane.b32.xlu0 %v51, 12
  %v1203 = vpop.permute.xlu0 %1202
  %1204 = vrot.lane.b32.xlu0 %v52, 12
  %v1205 = vpop.permute.xlu0 %1204
  %1206 = vrot.lane.b32.xlu0 %v53, 12
  %v1207 = vpop.permute.xlu0 %1206
  %1208 = vrot.lane.b32.xlu0 %v54, 12
  %v1209 = vpop.permute.xlu0 %1208
  %1210 = vrot.lane.b32.xlu0 %v55, 12
  %v1211 = vpop.permute.xlu0 %1210
  %1212 = vrot.lane.b32.xlu0 %v56, 12
  %v1213 = vpop.permute.xlu0 %1212
  %1214 = vrot.lane.b32.xlu0 %v57, 12
  %v1215 = vpop.permute.xlu0 %1214
  %1216 = vrot.lane.b32.xlu0 %v58, 12
  %v1217 = vpop.permute.xlu0 %1216
  %1218 = vrot.lane.b32.xlu0 %v59, 12
  %v1219 = vpop.permute.xlu0 %1218
  %1220 = vrot.lane.b32.xlu0 %v60, 12
  %v1221 = vpop.permute.xlu0 %1220
  %1222 = vrot.lane.b32.xlu0 %v61, 12
  %v1223 = vpop.permute.xlu0 %1222
  %1224 = vrot.lane.b32.xlu0 %v62, 12
  %v1225 = vpop.permute.xlu0 %1224
  %1226 = vrot.lane.b32.xlu0 %v63, 12
  %v1227 = vpop.permute.xlu0 %1226
  %1228 = vrot.lane.b32.xlu0 %v64, 12
  %v1229 = vpop.permute.xlu0 %1228
  %1230 = vrot.lane.b32.xlu0 %v65, 12
  %v1231 = vpop.permute.xlu0 %1230
  %1232 = vrot.lane.b32.xlu0 %v66, 12
  %v1233 = vpop.permute.xlu0 %1232
  %1234 = vrot.lane.b32.xlu0 %v67, 12
  %v1235 = vpop.permute.xlu0 %1234
  %1236 = vrot.lane.b32.xlu0 %v80, 12
  %v1237 = vpop.permute.xlu0 %1236
  %1238 = vrot.lane.b32.xlu0 %v81, 12
  %v1239 = vpop.permute.xlu0 %1238
  %1240 = vrot.lane.b32.xlu0 %v82, 12
  %v1241 = vpop.permute.xlu0 %1240
  %1242 = vrot.lane.b32.xlu0 %v83, 12
  %v1243 = vpop.permute.xlu0 %1242
  %1244 = vrot.lane.b32.xlu0 %v84, 12
  %v1245 = vpop.permute.xlu0 %1244
  %1246 = vrot.lane.b32.xlu0 %v85, 12
  %v1247 = vpop.permute.xlu0 %1246
  %1248 = vrot.lane.b32.xlu0 %v86, 12
  %v1249 = vpop.permute.xlu0 %1248
  %1250 = vrot.lane.b32.xlu0 %v87, 12
  %v1251 = vpop.permute.xlu0 %1250
  %1252 = vrot.lane.b32.xlu0 %v88, 12
  %v1253 = vpop.permute.xlu0 %1252
  %1254 = vrot.lane.b32.xlu0 %v89, 12
  %v1255 = vpop.permute.xlu0 %1254
  %1256 = vrot.lane.b32.xlu0 %v90, 12
  %v1257 = vpop.permute.xlu0 %1256
  %1258 = vrot.lane.b32.xlu0 %v91, 12
  %v1259 = vpop.permute.xlu0 %1258
  %1260 = vrot.lane.b32.xlu0 %v92, 12
  %v1261 = vpop.permute.xlu0 %1260
  %1262 = vrot.lane.b32.xlu0 %v93, 12
  %v1263 = vpop.permute.xlu0 %1262
  %1264 = vrot.lane.b32.xlu0 %v94, 12
  %v1265 = vpop.permute.xlu0 %1264
  %1266 = vrot.lane.b32.xlu0 %v95, 12
  %v1267 = vpop.permute.xlu0 %1266
  %1268 = vrot.lane.b32.xlu0 %v96, 12
  %v1269 = vpop.permute.xlu0 %1268
  %1270 = vrot.lane.b32.xlu0 %v97, 12
  %v1271 = vpop.permute.xlu0 %1270
  %1272 = vrot.lane.b32.xlu0 %v98, 12
  %v1273 = vpop.permute.xlu0 %1272
  %1274 = vrot.lane.b32.xlu0 %v99, 12
  %v1275 = vpop.permute.xlu0 %1274
  %1276 = vrot.lane.b32.xlu0 %v100, 12
  %v1277 = vpop.permute.xlu0 %1276
  %1278 = vrot.lane.b32.xlu0 %v101, 12
  %v1279 = vpop.permute.xlu0 %1278
  %1280 = vrot.lane.b32.xlu0 %v102, 12
  %v1281 = vpop.permute.xlu0 %1280
  %1282 = vrot.lane.b32.xlu0 %v103, 12
  %v1283 = vpop.permute.xlu0 %1282
  %1284 = vrot.lane.b32.xlu0 %v104, 12
  %v1285 = vpop.permute.xlu0 %1284
  %1286 = vrot.lane.b32.xlu0 %v105, 12
  %v1287 = vpop.permute.xlu0 %1286
  %1288 = vrot.lane.b32.xlu0 %v106, 12
  %v1289 = vpop.permute.xlu0 %1288
  %1290 = vrot.lane.b32.xlu0 %v107, 12
  %v1291 = vpop.permute.xlu0 %1290
  %1292 = vrot.lane.b32.xlu0 %v108, 12
  %v1293 = vpop.permute.xlu0 %1292
  %1294 = vrot.lane.b32.xlu0 %v109, 12
  %v1295 = vpop.permute.xlu0 %1294
  %1296 = vrot.lane.b32.xlu0 %v110, 12
  %v1297 = vpop.permute.xlu0 %1296
  %1298 = vrot.lane.b32.xlu0 %v111, 12
  %v1299 = vpop.permute.xlu0 %1298
  %1300 = vrot.lane.b32.xlu0 %v112, 12
  %v1301 = vpop.permute.xlu0 %1300
  %1302 = vrot.lane.b32.xlu0 %v113, 12
  %v1303 = vpop.permute.xlu0 %1302
  %1304 = vrot.lane.b32.xlu0 %v114, 12
  %v1305 = vpop.permute.xlu0 %1304
  %1306 = vrot.lane.b32.xlu0 %v115, 12
  %v1307 = vpop.permute.xlu0 %1306
  %1308 = vrot.lane.b32.xlu0 %v116, 12
  %v1309 = vpop.permute.xlu0 %1308
  %1310 = vrot.lane.b32.xlu0 %v117, 12
  %v1311 = vpop.permute.xlu0 %1310
  %1312 = vrot.lane.b32.xlu0 %v118, 12
  %v1313 = vpop.permute.xlu0 %1312
  %1314 = vrot.lane.b32.xlu0 %v119, 12
  %v1315 = vpop.permute.xlu0 %1314
  %1316 = vrot.lane.b32.xlu0 %v120, 12
  %v1317 = vpop.permute.xlu0 %1316
  %1318 = vrot.lane.b32.xlu0 %v121, 12
  %v1319 = vpop.permute.xlu0 %1318
  %1320 = vrot.lane.b32.xlu0 %v122, 12
  %v1321 = vpop.permute.xlu0 %1320
  %1322 = vrot.lane.b32.xlu0 %v123, 12
  %v1323 = vpop.permute.xlu0 %1322
  %1324 = vrot.lane.b32.xlu0 %v124, 12
  %v1325 = vpop.permute.xlu0 %1324
  %1326 = vrot.lane.b32.xlu0 %v125, 12
  %v1327 = vpop.permute.xlu0 %1326
  %1328 = vrot.lane.b32.xlu0 %v126, 12
  %v1329 = vpop.permute.xlu0 %1328
  %1330 = vrot.lane.b32.xlu0 %v127, 12
  %v1331 = vpop.permute.xlu0 %1330
  %v1428 = vrot.slane %v65, 1
  %v1429 = vrot.slane %v66, 1
  %v1430 = vsel %vm236, %v1428, %v1429
  %v1431 = vrot.slane %v67, 1
  %v1432 = vsel %vm236, %v1429, %v1431
  %v1433 = vrot.slane %v125, 1
  %v1434 = vrot.slane %v126, 1
  %v1435 = vsel %vm236, %v1433, %v1434
  %v1436 = vrot.slane %v127, 1
  %v1437 = vsel %vm236, %v1434, %v1436
  %1438 = vrot.lane.b32.xlu0 %v244, 16
  %v1439 = vpop.permute.xlu0 %1438
  %1440 = vrot.lane.b32.xlu0 %v246, 16
  %v1441 = vpop.permute.xlu0 %1440
  %1442 = vrot.lane.b32.xlu0 %v245, 16
  %v1443 = vpop.permute.xlu0 %1442
  %1444 = vrot.lane.b32.xlu0 %v249, 16
  %v1445 = vpop.permute.xlu0 %1444
  %1446 = vrot.lane.b32.xlu0 %v251, 16
  %v1447 = vpop.permute.xlu0 %1446
  %1448 = vrot.lane.b32.xlu0 %v250, 16
  %v1449 = vpop.permute.xlu0 %1448
  %1450 = vrot.lane.b32.xlu0 %v254, 16
  %v1451 = vpop.permute.xlu0 %1450
  %1452 = vrot.lane.b32.xlu0 %v256, 16
  %v1453 = vpop.permute.xlu0 %1452
  %1454 = vrot.lane.b32.xlu0 %v255, 16
  %v1455 = vpop.permute.xlu0 %1454
  %1456 = vrot.lane.b32.xlu0 %v259, 16
  %v1457 = vpop.permute.xlu0 %1456
  %1458 = vrot.lane.b32.xlu0 %v261, 16
  %v1459 = vpop.permute.xlu0 %1458
  %1460 = vrot.lane.b32.xlu0 %v260, 16
  %v1461 = vpop.permute.xlu0 %1460
  %1462 = vrot.lane.b32.xlu0 %v264, 16
  %v1463 = vpop.permute.xlu0 %1462
  %1464 = vrot.lane.b32.xlu0 %v266, 16
  %v1465 = vpop.permute.xlu0 %1464
  %1466 = vrot.lane.b32.xlu0 %v265, 16
  %v1467 = vpop.permute.xlu0 %1466
  %1468 = vrot.lane.b32.xlu0 %v269, 16
  %v1469 = vpop.permute.xlu0 %1468
  %1470 = vrot.lane.b32.xlu0 %v271, 16
  %v1471 = vpop.permute.xlu0 %1470
  %1472 = vrot.lane.b32.xlu0 %v270, 16
  %v1473 = vpop.permute.xlu0 %1472
  %1474 = vrot.lane.b32.xlu0 %v274, 16
  %v1475 = vpop.permute.xlu0 %1474
  %1476 = vrot.lane.b32.xlu0 %v276, 16
  %v1477 = vpop.permute.xlu0 %1476
  %1478 = vrot.lane.b32.xlu0 %v275, 16
  %v1479 = vpop.permute.xlu0 %1478
  %1480 = vrot.lane.b32.xlu0 %v279, 16
  %v1481 = vpop.permute.xlu0 %1480
  %1482 = vrot.lane.b32.xlu0 %v281, 16
  %v1483 = vpop.permute.xlu0 %1482
  %1484 = vrot.lane.b32.xlu0 %v280, 16
  %v1485 = vpop.permute.xlu0 %1484
  %1486 = vrot.lane.b32.xlu0 %v284, 16
  %v1487 = vpop.permute.xlu0 %1486
  %1488 = vrot.lane.b32.xlu0 %v286, 16
  %v1489 = vpop.permute.xlu0 %1488
  %1490 = vrot.lane.b32.xlu0 %v285, 16
  %v1491 = vpop.permute.xlu0 %1490
  %1492 = vrot.lane.b32.xlu0 %v289, 16
  %v1493 = vpop.permute.xlu0 %1492
  %1494 = vrot.lane.b32.xlu0 %v291, 16
  %v1495 = vpop.permute.xlu0 %1494
  %1496 = vrot.lane.b32.xlu0 %v290, 16
  %v1497 = vpop.permute.xlu0 %1496
  %1498 = vrot.lane.b32.xlu0 %v294, 16
  %v1499 = vpop.permute.xlu0 %1498
  %1500 = vrot.lane.b32.xlu0 %v296, 16
  %v1501 = vpop.permute.xlu0 %1500
  %1502 = vrot.lane.b32.xlu0 %v295, 16
  %v1503 = vpop.permute.xlu0 %1502
  %1504 = vrot.lane.b32.xlu0 %v299, 16
  %v1505 = vpop.permute.xlu0 %1504
  %1506 = vrot.lane.b32.xlu0 %v301, 16
  %v1507 = vpop.permute.xlu0 %1506
  %1508 = vrot.lane.b32.xlu0 %v300, 16
  %v1509 = vpop.permute.xlu0 %1508
  %1510 = vrot.lane.b32.xlu0 %v304, 16
  %v1511 = vpop.permute.xlu0 %1510
  %1512 = vrot.lane.b32.xlu0 %v306, 16
  %v1513 = vpop.permute.xlu0 %1512
  %1514 = vrot.lane.b32.xlu0 %v305, 16
  %v1515 = vpop.permute.xlu0 %1514
  %1516 = vrot.lane.b32.xlu0 %v309, 16
  %v1517 = vpop.permute.xlu0 %1516
  %1518 = vrot.lane.b32.xlu0 %v311, 16
  %v1519 = vpop.permute.xlu0 %1518
  %1520 = vrot.lane.b32.xlu0 %v310, 16
  %v1521 = vpop.permute.xlu0 %1520
  %1522 = vrot.lane.b32.xlu0 %v314, 16
  %v1523 = vpop.permute.xlu0 %1522
  %1524 = vrot.lane.b32.xlu0 %v316, 16
  %v1525 = vpop.permute.xlu0 %1524
  %1526 = vrot.lane.b32.xlu0 %v315, 16
  %v1527 = vpop.permute.xlu0 %1526
  %1528 = vrot.lane.b32.xlu0 %v1430, 16
  %v1529 = vpop.permute.xlu0 %1528
  %1530 = vrot.lane.b32.xlu0 %v1432, 16
  %v1531 = vpop.permute.xlu0 %1530
  %1532 = vrot.lane.b32.xlu0 %v1431, 16
  %v1533 = vpop.permute.xlu0 %1532
  %1534 = vrot.lane.b32.xlu0 %v324, 16
  %v1535 = vpop.permute.xlu0 %1534
  %1536 = vrot.lane.b32.xlu0 %v326, 16
  %v1537 = vpop.permute.xlu0 %1536
  %1538 = vrot.lane.b32.xlu0 %v325, 16
  %v1539 = vpop.permute.xlu0 %1538
  %1540 = vrot.lane.b32.xlu0 %v329, 16
  %v1541 = vpop.permute.xlu0 %1540
  %1542 = vrot.lane.b32.xlu0 %v331, 16
  %v1543 = vpop.permute.xlu0 %1542
  %1544 = vrot.lane.b32.xlu0 %v330, 16
  %v1545 = vpop.permute.xlu0 %1544
  %1546 = vrot.lane.b32.xlu0 %v334, 16
  %v1547 = vpop.permute.xlu0 %1546
  %1548 = vrot.lane.b32.xlu0 %v336, 16
  %v1549 = vpop.permute.xlu0 %1548
  %1550 = vrot.lane.b32.xlu0 %v335, 16
  %v1551 = vpop.permute.xlu0 %1550
  %1552 = vrot.lane.b32.xlu0 %v339, 16
  %v1553 = vpop.permute.xlu0 %1552
  %1554 = vrot.lane.b32.xlu0 %v341, 16
  %v1555 = vpop.permute.xlu0 %1554
  %1556 = vrot.lane.b32.xlu0 %v340, 16
  %v1557 = vpop.permute.xlu0 %1556
  %1558 = vrot.lane.b32.xlu0 %v344, 16
  %v1559 = vpop.permute.xlu0 %1558
  %1560 = vrot.lane.b32.xlu0 %v346, 16
  %v1561 = vpop.permute.xlu0 %1560
  %1562 = vrot.lane.b32.xlu0 %v345, 16
  %v1563 = vpop.permute.xlu0 %1562
  %1564 = vrot.lane.b32.xlu0 %v349, 16
  %v1565 = vpop.permute.xlu0 %1564
  %1566 = vrot.lane.b32.xlu0 %v351, 16
  %v1567 = vpop.permute.xlu0 %1566
  %1568 = vrot.lane.b32.xlu0 %v350, 16
  %v1569 = vpop.permute.xlu0 %1568
  %1570 = vrot.lane.b32.xlu0 %v354, 16
  %v1571 = vpop.permute.xlu0 %1570
  %1572 = vrot.lane.b32.xlu0 %v356, 16
  %v1573 = vpop.permute.xlu0 %1572
  %1574 = vrot.lane.b32.xlu0 %v355, 16
  %v1575 = vpop.permute.xlu0 %1574
  %1576 = vrot.lane.b32.xlu0 %v359, 16
  %v1577 = vpop.permute.xlu0 %1576
  %1578 = vrot.lane.b32.xlu0 %v361, 16
  %v1579 = vpop.permute.xlu0 %1578
  %1580 = vrot.lane.b32.xlu0 %v360, 16
  %v1581 = vpop.permute.xlu0 %1580
  %1582 = vrot.lane.b32.xlu0 %v364, 16
  %v1583 = vpop.permute.xlu0 %1582
  %1584 = vrot.lane.b32.xlu0 %v366, 16
  %v1585 = vpop.permute.xlu0 %1584
  %1586 = vrot.lane.b32.xlu0 %v365, 16
  %v1587 = vpop.permute.xlu0 %1586
  %1588 = vrot.lane.b32.xlu0 %v369, 16
  %v1589 = vpop.permute.xlu0 %1588
  %1590 = vrot.lane.b32.xlu0 %v371, 16
  %v1591 = vpop.permute.xlu0 %1590
  %1592 = vrot.lane.b32.xlu0 %v370, 16
  %v1593 = vpop.permute.xlu0 %1592
  %1594 = vrot.lane.b32.xlu0 %v374, 16
  %v1595 = vpop.permute.xlu0 %1594
  %1596 = vrot.lane.b32.xlu0 %v376, 16
  %v1597 = vpop.permute.xlu0 %1596
  %1598 = vrot.lane.b32.xlu0 %v375, 16
  %v1599 = vpop.permute.xlu0 %1598
  %1600 = vrot.lane.b32.xlu0 %v379, 16
  %v1601 = vpop.permute.xlu0 %1600
  %1602 = vrot.lane.b32.xlu0 %v381, 16
  %v1603 = vpop.permute.xlu0 %1602
  %1604 = vrot.lane.b32.xlu0 %v380, 16
  %v1605 = vpop.permute.xlu0 %1604
  %1606 = vrot.lane.b32.xlu0 %v384, 16
  %v1607 = vpop.permute.xlu0 %1606
  %1608 = vrot.lane.b32.xlu0 %v386, 16
  %v1609 = vpop.permute.xlu0 %1608
  %1610 = vrot.lane.b32.xlu0 %v385, 16
  %v1611 = vpop.permute.xlu0 %1610
  %1612 = vrot.lane.b32.xlu0 %v389, 16
  %v1613 = vpop.permute.xlu0 %1612
  %1614 = vrot.lane.b32.xlu0 %v391, 16
  %v1615 = vpop.permute.xlu0 %1614
  %1616 = vrot.lane.b32.xlu0 %v390, 16
  %v1617 = vpop.permute.xlu0 %1616
  %1618 = vrot.lane.b32.xlu0 %v394, 16
  %v1619 = vpop.permute.xlu0 %1618
  %1620 = vrot.lane.b32.xlu0 %v396, 16
  %v1621 = vpop.permute.xlu0 %1620
  %1622 = vrot.lane.b32.xlu0 %v395, 16
  %v1623 = vpop.permute.xlu0 %1622
  %1624 = vrot.lane.b32.xlu0 %v1435, 16
  %v1625 = vpop.permute.xlu0 %1624
  %1626 = vrot.lane.b32.xlu0 %v1437, 16
  %v1627 = vpop.permute.xlu0 %1626
  %1628 = vrot.lane.b32.xlu0 %v1436, 16
  %v1629 = vpop.permute.xlu0 %1628
  %v1726 = vrot.slane %v65, 2
  %v1727 = vrot.slane %v66, 2
  %v1728 = vsel %vm685, %v1726, %v1727
  %v1729 = vrot.slane %v67, 2
  %v1730 = vsel %vm685, %v1727, %v1729
  %v1731 = vrot.slane %v125, 2
  %v1732 = vrot.slane %v126, 2
  %v1733 = vsel %vm685, %v1731, %v1732
  %v1734 = vrot.slane %v127, 2
  %v1735 = vsel %vm685, %v1732, %v1734
  %1736 = vrot.lane.b32.xlu0 %v693, 20
  %v1737 = vpop.permute.xlu0 %1736
  %1738 = vrot.lane.b32.xlu0 %v695, 20
  %v1739 = vpop.permute.xlu0 %1738
  %1740 = vrot.lane.b32.xlu0 %v694, 20
  %v1741 = vpop.permute.xlu0 %1740
  %1742 = vrot.lane.b32.xlu0 %v698, 20
  %v1743 = vpop.permute.xlu0 %1742
  %1744 = vrot.lane.b32.xlu0 %v700, 20
  %v1745 = vpop.permute.xlu0 %1744
  %1746 = vrot.lane.b32.xlu0 %v699, 20
  %v1747 = vpop.permute.xlu0 %1746
  %1748 = vrot.lane.b32.xlu0 %v703, 20
  %v1749 = vpop.permute.xlu0 %1748
  %1750 = vrot.lane.b32.xlu0 %v705, 20
  %v1751 = vpop.permute.xlu0 %1750
  %1752 = vrot.lane.b32.xlu0 %v704, 20
  %v1753 = vpop.permute.xlu0 %1752
  %1754 = vrot.lane.b32.xlu0 %v708, 20
  %v1755 = vpop.permute.xlu0 %1754
  %1756 = vrot.lane.b32.xlu0 %v710, 20
  %v1757 = vpop.permute.xlu0 %1756
  %1758 = vrot.lane.b32.xlu0 %v709, 20
  %v1759 = vpop.permute.xlu0 %1758
  %1760 = vrot.lane.b32.xlu0 %v713, 20
  %v1761 = vpop.permute.xlu0 %1760
  %1762 = vrot.lane.b32.xlu0 %v715, 20
  %v1763 = vpop.permute.xlu0 %1762
  %1764 = vrot.lane.b32.xlu0 %v714, 20
  %v1765 = vpop.permute.xlu0 %1764
  %1766 = vrot.lane.b32.xlu0 %v718, 20
  %v1767 = vpop.permute.xlu0 %1766
  %1768 = vrot.lane.b32.xlu0 %v720, 20
  %v1769 = vpop.permute.xlu0 %1768
  %1770 = vrot.lane.b32.xlu0 %v719, 20
  %v1771 = vpop.permute.xlu0 %1770
  %1772 = vrot.lane.b32.xlu0 %v723, 20
  %v1773 = vpop.permute.xlu0 %1772
  %1774 = vrot.lane.b32.xlu0 %v725, 20
  %v1775 = vpop.permute.xlu0 %1774
  %1776 = vrot.lane.b32.xlu0 %v724, 20
  %v1777 = vpop.permute.xlu0 %1776
  %1778 = vrot.lane.b32.xlu0 %v728, 20
  %v1779 = vpop.permute.xlu0 %1778
  %1780 = vrot.lane.b32.xlu0 %v730, 20
  %v1781 = vpop.permute.xlu0 %1780
  %1782 = vrot.lane.b32.xlu0 %v729, 20
  %v1783 = vpop.permute.xlu0 %1782
  %1784 = vrot.lane.b32.xlu0 %v733, 20
  %v1785 = vpop.permute.xlu0 %1784
  %1786 = vrot.lane.b32.xlu0 %v735, 20
  %v1787 = vpop.permute.xlu0 %1786
  %1788 = vrot.lane.b32.xlu0 %v734, 20
  %v1789 = vpop.permute.xlu0 %1788
  %1790 = vrot.lane.b32.xlu0 %v738, 20
  %v1791 = vpop.permute.xlu0 %1790
  %1792 = vrot.lane.b32.xlu0 %v740, 20
  %v1793 = vpop.permute.xlu0 %1792
  %1794 = vrot.lane.b32.xlu0 %v739, 20
  %v1795 = vpop.permute.xlu0 %1794
  %1796 = vrot.lane.b32.xlu0 %v743, 20
  %v1797 = vpop.permute.xlu0 %1796
  %1798 = vrot.lane.b32.xlu0 %v745, 20
  %v1799 = vpop.permute.xlu0 %1798
  %1800 = vrot.lane.b32.xlu0 %v744, 20
  %v1801 = vpop.permute.xlu0 %1800
  %1802 = vrot.lane.b32.xlu0 %v748, 20
  %v1803 = vpop.permute.xlu0 %1802
  %1804 = vrot.lane.b32.xlu0 %v750, 20
  %v1805 = vpop.permute.xlu0 %1804
  %1806 = vrot.lane.b32.xlu0 %v749, 20
  %v1807 = vpop.permute.xlu0 %1806
  %1808 = vrot.lane.b32.xlu0 %v753, 20
  %v1809 = vpop.permute.xlu0 %1808
  %1810 = vrot.lane.b32.xlu0 %v755, 20
  %v1811 = vpop.permute.xlu0 %1810
  %1812 = vrot.lane.b32.xlu0 %v754, 20
  %v1813 = vpop.permute.xlu0 %1812
  %1814 = vrot.lane.b32.xlu0 %v758, 20
  %v1815 = vpop.permute.xlu0 %1814
  %1816 = vrot.lane.b32.xlu0 %v760, 20
  %v1817 = vpop.permute.xlu0 %1816
  %1818 = vrot.lane.b32.xlu0 %v759, 20
  %v1819 = vpop.permute.xlu0 %1818
  %1820 = vrot.lane.b32.xlu0 %v763, 20
  %v1821 = vpop.permute.xlu0 %1820
  %1822 = vrot.lane.b32.xlu0 %v765, 20
  %v1823 = vpop.permute.xlu0 %1822
  %1824 = vrot.lane.b32.xlu0 %v764, 20
  %v1825 = vpop.permute.xlu0 %1824
  %1826 = vrot.lane.b32.xlu0 %v1728, 20
  %v1827 = vpop.permute.xlu0 %1826
  %1828 = vrot.lane.b32.xlu0 %v1730, 20
  %v1829 = vpop.permute.xlu0 %1828
  %1830 = vrot.lane.b32.xlu0 %v1729, 20
  %v1831 = vpop.permute.xlu0 %1830
  %1832 = vrot.lane.b32.xlu0 %v773, 20
  %v1833 = vpop.permute.xlu0 %1832
  %1834 = vrot.lane.b32.xlu0 %v775, 20
  %v1835 = vpop.permute.xlu0 %1834
  %1836 = vrot.lane.b32.xlu0 %v774, 20
  %v1837 = vpop.permute.xlu0 %1836
  %1838 = vrot.lane.b32.xlu0 %v778, 20
  %v1839 = vpop.permute.xlu0 %1838
  %1840 = vrot.lane.b32.xlu0 %v780, 20
  %v1841 = vpop.permute.xlu0 %1840
  %1842 = vrot.lane.b32.xlu0 %v779, 20
  %v1843 = vpop.permute.xlu0 %1842
  %1844 = vrot.lane.b32.xlu0 %v783, 20
  %v1845 = vpop.permute.xlu0 %1844
  %1846 = vrot.lane.b32.xlu0 %v785, 20
  %v1847 = vpop.permute.xlu0 %1846
  %1848 = vrot.lane.b32.xlu0 %v784, 20
  %v1849 = vpop.permute.xlu0 %1848
  %1850 = vrot.lane.b32.xlu0 %v788, 20
  %v1851 = vpop.permute.xlu0 %1850
  %1852 = vrot.lane.b32.xlu0 %v790, 20
  %v1853 = vpop.permute.xlu0 %1852
  %1854 = vrot.lane.b32.xlu0 %v789, 20
  %v1855 = vpop.permute.xlu0 %1854
  %1856 = vrot.lane.b32.xlu0 %v793, 20
  %v1857 = vpop.permute.xlu0 %1856
  %1858 = vrot.lane.b32.xlu0 %v795, 20
  %v1859 = vpop.permute.xlu0 %1858
  %1860 = vrot.lane.b32.xlu0 %v794, 20
  %v1861 = vpop.permute.xlu0 %1860
  %1862 = vrot.lane.b32.xlu0 %v798, 20
  %v1863 = vpop.permute.xlu0 %1862
  %1864 = vrot.lane.b32.xlu0 %v800, 20
  %v1865 = vpop.permute.xlu0 %1864
  %1866 = vrot.lane.b32.xlu0 %v799, 20
  %v1867 = vpop.permute.xlu0 %1866
  %1868 = vrot.lane.b32.xlu0 %v803, 20
  %v1869 = vpop.permute.xlu0 %1868
  %1870 = vrot.lane.b32.xlu0 %v805, 20
  %v1871 = vpop.permute.xlu0 %1870
  %1872 = vrot.lane.b32.xlu0 %v804, 20
  %v1873 = vpop.permute.xlu0 %1872
  %1874 = vrot.lane.b32.xlu0 %v808, 20
  %v1875 = vpop.permute.xlu0 %1874
  %1876 = vrot.lane.b32.xlu0 %v810, 20
  %v1877 = vpop.permute.xlu0 %1876
  %1878 = vrot.lane.b32.xlu0 %v809, 20
  %v1879 = vpop.permute.xlu0 %1878
  %1880 = vrot.lane.b32.xlu0 %v813, 20
  %v1881 = vpop.permute.xlu0 %1880
  %1882 = vrot.lane.b32.xlu0 %v815, 20
  %v1883 = vpop.permute.xlu0 %1882
  %1884 = vrot.lane.b32.xlu0 %v814, 20
  %v1885 = vpop.permute.xlu0 %1884
  %1886 = vrot.lane.b32.xlu0 %v818, 20
  %v1887 = vpop.permute.xlu0 %1886
  %1888 = vrot.lane.b32.xlu0 %v820, 20
  %v1889 = vpop.permute.xlu0 %1888
  %1890 = vrot.lane.b32.xlu0 %v819, 20
  %v1891 = vpop.permute.xlu0 %1890
  %1892 = vrot.lane.b32.xlu0 %v823, 20
  %v1893 = vpop.permute.xlu0 %1892
  %1894 = vrot.lane.b32.xlu0 %v825, 20
  %v1895 = vpop.permute.xlu0 %1894
  %1896 = vrot.lane.b32.xlu0 %v824, 20
  %v1897 = vpop.permute.xlu0 %1896
  %1898 = vrot.lane.b32.xlu0 %v828, 20
  %v1899 = vpop.permute.xlu0 %1898
  %1900 = vrot.lane.b32.xlu0 %v830, 20
  %v1901 = vpop.permute.xlu0 %1900
  %1902 = vrot.lane.b32.xlu0 %v829, 20
  %v1903 = vpop.permute.xlu0 %1902
  %1904 = vrot.lane.b32.xlu0 %v833, 20
  %v1905 = vpop.permute.xlu0 %1904
  %1906 = vrot.lane.b32.xlu0 %v835, 20
  %v1907 = vpop.permute.xlu0 %1906
  %1908 = vrot.lane.b32.xlu0 %v834, 20
  %v1909 = vpop.permute.xlu0 %1908
  %1910 = vrot.lane.b32.xlu0 %v838, 20
  %v1911 = vpop.permute.xlu0 %1910
  %1912 = vrot.lane.b32.xlu0 %v840, 20
  %v1913 = vpop.permute.xlu0 %1912
  %1914 = vrot.lane.b32.xlu0 %v839, 20
  %v1915 = vpop.permute.xlu0 %1914
  %1916 = vrot.lane.b32.xlu0 %v843, 20
  %v1917 = vpop.permute.xlu0 %1916
  %1918 = vrot.lane.b32.xlu0 %v845, 20
  %v1919 = vpop.permute.xlu0 %1918
  %1920 = vrot.lane.b32.xlu0 %v844, 20
  %v1921 = vpop.permute.xlu0 %1920
  %1922 = vrot.lane.b32.xlu0 %v1733, 20
  %v1923 = vpop.permute.xlu0 %1922
  %1924 = vrot.lane.b32.xlu0 %v1735, 20
  %v1925 = vpop.permute.xlu0 %1924
  %1926 = vrot.lane.b32.xlu0 %v1734, 20
  %v1927 = vpop.permute.xlu0 %1926
  %2030 = vrot.lane.b32.xlu0 %v23, 24
  %v2031 = vpop.permute.xlu0 %2030
  %2032 = vrot.lane.b32.xlu0 %v24, 24
  %v2033 = vpop.permute.xlu0 %2032
  %2034 = vrot.lane.b32.xlu0 %v25, 24
  %v2035 = vpop.permute.xlu0 %2034
  %2036 = vrot.lane.b32.xlu0 %v26, 24
  %v2037 = vpop.permute.xlu0 %2036
  %2038 = vrot.lane.b32.xlu0 %v27, 24
  %v2039 = vpop.permute.xlu0 %2038
  %2040 = vrot.lane.b32.xlu0 %v28, 24
  %v2041 = vpop.permute.xlu0 %2040
  %2042 = vrot.lane.b32.xlu0 %v29, 24
  %v2043 = vpop.permute.xlu0 %2042
  %2044 = vrot.lane.b32.xlu0 %v30, 24
  %v2045 = vpop.permute.xlu0 %2044
  %2046 = vrot.lane.b32.xlu0 %v31, 24
  %v2047 = vpop.permute.xlu0 %2046
  %2048 = vrot.lane.b32.xlu0 %v32, 24
  %v2049 = vpop.permute.xlu0 %2048
  %2050 = vrot.lane.b32.xlu0 %v33, 24
  %v2051 = vpop.permute.xlu0 %2050
  %2052 = vrot.lane.b32.xlu0 %v34, 24
  %v2053 = vpop.permute.xlu0 %2052
  %2054 = vrot.lane.b32.xlu0 %v35, 24
  %v2055 = vpop.permute.xlu0 %2054
  %2056 = vrot.lane.b32.xlu0 %v36, 24
  %v2057 = vpop.permute.xlu0 %2056
  %2058 = vrot.lane.b32.xlu0 %v37, 24
  %v2059 = vpop.permute.xlu0 %2058
  %2060 = vrot.lane.b32.xlu0 %v38, 24
  %v2061 = vpop.permute.xlu0 %2060
  %2062 = vrot.lane.b32.xlu0 %v39, 24
  %v2063 = vpop.permute.xlu0 %2062
  %2064 = vrot.lane.b32.xlu0 %v40, 24
  %v2065 = vpop.permute.xlu0 %2064
  %2066 = vrot.lane.b32.xlu0 %v41, 24
  %v2067 = vpop.permute.xlu0 %2066
  %2068 = vrot.lane.b32.xlu0 %v42, 24
  %v2069 = vpop.permute.xlu0 %2068
  %2070 = vrot.lane.b32.xlu0 %v43, 24
  %v2071 = vpop.permute.xlu0 %2070
  %2072 = vrot.lane.b32.xlu0 %v44, 24
  %v2073 = vpop.permute.xlu0 %2072
  %2074 = vrot.lane.b32.xlu0 %v45, 24
  %v2075 = vpop.permute.xlu0 %2074
  %2076 = vrot.lane.b32.xlu0 %v46, 24
  %v2077 = vpop.permute.xlu0 %2076
  %2078 = vrot.lane.b32.xlu0 %v47, 24
  %v2079 = vpop.permute.xlu0 %2078
  %2080 = vrot.lane.b32.xlu0 %v48, 24
  %v2081 = vpop.permute.xlu0 %2080
  %2082 = vrot.lane.b32.xlu0 %v49, 24
  %v2083 = vpop.permute.xlu0 %2082
  %2084 = vrot.lane.b32.xlu0 %v50, 24
  %v2085 = vpop.permute.xlu0 %2084
  %2086 = vrot.lane.b32.xlu0 %v51, 24
  %v2087 = vpop.permute.xlu0 %2086
  %2088 = vrot.lane.b32.xlu0 %v52, 24
  %v2089 = vpop.permute.xlu0 %2088
  %2090 = vrot.lane.b32.xlu0 %v53, 24
  %v2091 = vpop.permute.xlu0 %2090
  %2092 = vrot.lane.b32.xlu0 %v54, 24
  %v2093 = vpop.permute.xlu0 %2092
  %2094 = vrot.lane.b32.xlu0 %v55, 24
  %v2095 = vpop.permute.xlu0 %2094
  %2096 = vrot.lane.b32.xlu0 %v56, 24
  %v2097 = vpop.permute.xlu0 %2096
  %2098 = vrot.lane.b32.xlu0 %v57, 24
  %v2099 = vpop.permute.xlu0 %2098
  %2100 = vrot.lane.b32.xlu0 %v58, 24
  %v2101 = vpop.permute.xlu0 %2100
  %2102 = vrot.lane.b32.xlu0 %v59, 24
  %v2103 = vpop.permute.xlu0 %2102
  %2104 = vrot.lane.b32.xlu0 %v60, 24
  %v2105 = vpop.permute.xlu0 %2104
  %2106 = vrot.lane.b32.xlu0 %v61, 24
  %v2107 = vpop.permute.xlu0 %2106
  %2108 = vrot.lane.b32.xlu0 %v62, 24
  %v2109 = vpop.permute.xlu0 %2108
  %2110 = vrot.lane.b32.xlu0 %v63, 24
  %v2111 = vpop.permute.xlu0 %2110
  %2112 = vrot.lane.b32.xlu0 %v64, 24
  %v2113 = vpop.permute.xlu0 %2112
  %2114 = vrot.lane.b32.xlu0 %v65, 24
  %v2115 = vpop.permute.xlu0 %2114
  %2116 = vrot.lane.b32.xlu0 %v66, 24
  %v2117 = vpop.permute.xlu0 %2116
  %2118 = vrot.lane.b32.xlu0 %v67, 24
  %v2119 = vpop.permute.xlu0 %2118
  %2120 = vrot.lane.b32.xlu0 %v68, 24
  %v2121 = vpop.permute.xlu0 %2120
  %2122 = vrot.lane.b32.xlu0 %v69, 24
  %v2123 = vpop.permute.xlu0 %2122
  %2124 = vrot.lane.b32.xlu0 %v70, 24
  %v2125 = vpop.permute.xlu0 %2124
  %2126 = vrot.lane.b32.xlu0 %v83, 24
  %v2127 = vpop.permute.xlu0 %2126
  %2128 = vrot.lane.b32.xlu0 %v84, 24
  %v2129 = vpop.permute.xlu0 %2128
  %2130 = vrot.lane.b32.xlu0 %v85, 24
  %v2131 = vpop.permute.xlu0 %2130
  %2132 = vrot.lane.b32.xlu0 %v86, 24
  %v2133 = vpop.permute.xlu0 %2132
  %2134 = vrot.lane.b32.xlu0 %v87, 24
  %v2135 = vpop.permute.xlu0 %2134
  %2136 = vrot.lane.b32.xlu0 %v88, 24
  %v2137 = vpop.permute.xlu0 %2136
  %2138 = vrot.lane.b32.xlu0 %v89, 24
  %v2139 = vpop.permute.xlu0 %2138
  %2140 = vrot.lane.b32.xlu0 %v90, 24
  %v2141 = vpop.permute.xlu0 %2140
  %2142 = vrot.lane.b32.xlu0 %v91, 24
  %v2143 = vpop.permute.xlu0 %2142
  %2144 = vrot.lane.b32.xlu0 %v92, 24
  %v2145 = vpop.permute.xlu0 %2144
  %2146 = vrot.lane.b32.xlu0 %v93, 24
  %v2147 = vpop.permute.xlu0 %2146
  %2148 = vrot.lane.b32.xlu0 %v94, 24
  %v2149 = vpop.permute.xlu0 %2148
  %2150 = vrot.lane.b32.xlu0 %v95, 24
  %v2151 = vpop.permute.xlu0 %2150
  %2152 = vrot.lane.b32.xlu0 %v96, 24
  %v2153 = vpop.permute.xlu0 %2152
  %2154 = vrot.lane.b32.xlu0 %v97, 24
  %v2155 = vpop.permute.xlu0 %2154
  %2156 = vrot.lane.b32.xlu0 %v98, 24
  %v2157 = vpop.permute.xlu0 %2156
  %2158 = vrot.lane.b32.xlu0 %v99, 24
  %v2159 = vpop.permute.xlu0 %2158
  %2160 = vrot.lane.b32.xlu0 %v100, 24
  %v2161 = vpop.permute.xlu0 %2160
  %2162 = vrot.lane.b32.xlu0 %v101, 24
  %v2163 = vpop.permute.xlu0 %2162
  %2164 = vrot.lane.b32.xlu0 %v102, 24
  %v2165 = vpop.permute.xlu0 %2164
  %2166 = vrot.lane.b32.xlu0 %v103, 24
  %v2167 = vpop.permute.xlu0 %2166
  %2168 = vrot.lane.b32.xlu0 %v104, 24
  %v2169 = vpop.permute.xlu0 %2168
  %2170 = vrot.lane.b32.xlu0 %v105, 24
  %v2171 = vpop.permute.xlu0 %2170
  %2172 = vrot.lane.b32.xlu0 %v106, 24
  %v2173 = vpop.permute.xlu0 %2172
  %2174 = vrot.lane.b32.xlu0 %v107, 24
  %v2175 = vpop.permute.xlu0 %2174
  %2176 = vrot.lane.b32.xlu0 %v108, 24
  %v2177 = vpop.permute.xlu0 %2176
  %2178 = vrot.lane.b32.xlu0 %v109, 24
  %v2179 = vpop.permute.xlu0 %2178
  %2180 = vrot.lane.b32.xlu0 %v110, 24
  %v2181 = vpop.permute.xlu0 %2180
  %2182 = vrot.lane.b32.xlu0 %v111, 24
  %v2183 = vpop.permute.xlu0 %2182
  %2184 = vrot.lane.b32.xlu0 %v112, 24
  %v2185 = vpop.permute.xlu0 %2184
  %2186 = vrot.lane.b32.xlu0 %v113, 24
  %v2187 = vpop.permute.xlu0 %2186
  %2188 = vrot.lane.b32.xlu0 %v114, 24
  %v2189 = vpop.permute.xlu0 %2188
  %2190 = vrot.lane.b32.xlu0 %v115, 24
  %v2191 = vpop.permute.xlu0 %2190
  %2192 = vrot.lane.b32.xlu0 %v116, 24
  %v2193 = vpop.permute.xlu0 %2192
  %2194 = vrot.lane.b32.xlu0 %v117, 24
  %v2195 = vpop.permute.xlu0 %2194
  %2196 = vrot.lane.b32.xlu0 %v118, 24
  %v2197 = vpop.permute.xlu0 %2196
  %2198 = vrot.lane.b32.xlu0 %v119, 24
  %v2199 = vpop.permute.xlu0 %2198
  %2200 = vrot.lane.b32.xlu0 %v120, 24
  %v2201 = vpop.permute.xlu0 %2200
  %2202 = vrot.lane.b32.xlu0 %v121, 24
  %v2203 = vpop.permute.xlu0 %2202
  %2204 = vrot.lane.b32.xlu0 %v122, 24
  %v2205 = vpop.permute.xlu0 %2204
  %2206 = vrot.lane.b32.xlu0 %v123, 24
  %v2207 = vpop.permute.xlu0 %2206
  %2208 = vrot.lane.b32.xlu0 %v124, 24
  %v2209 = vpop.permute.xlu0 %2208
  %2210 = vrot.lane.b32.xlu0 %v125, 24
  %v2211 = vpop.permute.xlu0 %2210
  %2212 = vrot.lane.b32.xlu0 %v126, 24
  %v2213 = vpop.permute.xlu0 %2212
  %2214 = vrot.lane.b32.xlu0 %v127, 24
  %v2215 = vpop.permute.xlu0 %2214
  %2216 = vrot.lane.b32.xlu0 %v128, 24
  %v2217 = vpop.permute.xlu0 %2216
  %2218 = vrot.lane.b32.xlu0 %v129, 24
  %v2219 = vpop.permute.xlu0 %2218
  %2220 = vrot.lane.b32.xlu0 %v130, 24
  %v2221 = vpop.permute.xlu0 %2220
  %v2318 = vrot.slane %v68, 1
  %v2319 = vrot.slane %v69, 1
  %v2320 = vsel %vm236, %v2318, %v2319
  %v2321 = vrot.slane %v70, 1
  %v2322 = vsel %vm236, %v2319, %v2321
  %v2323 = vrot.slane %v128, 1
  %v2324 = vrot.slane %v129, 1
  %v2325 = vsel %vm236, %v2323, %v2324
  %v2326 = vrot.slane %v130, 1
  %v2327 = vsel %vm236, %v2324, %v2326
  %2328 = vrot.lane.b32.xlu0 %v249, 28
  %v2329 = vpop.permute.xlu0 %2328
  %2330 = vrot.lane.b32.xlu0 %v251, 28
  %v2331 = vpop.permute.xlu0 %2330
  %2332 = vrot.lane.b32.xlu0 %v250, 28
  %v2333 = vpop.permute.xlu0 %2332
  %2334 = vrot.lane.b32.xlu0 %v254, 28
  %v2335 = vpop.permute.xlu0 %2334
  %2336 = vrot.lane.b32.xlu0 %v256, 28
  %v2337 = vpop.permute.xlu0 %2336
  %2338 = vrot.lane.b32.xlu0 %v255, 28
  %v2339 = vpop.permute.xlu0 %2338
  %2340 = vrot.lane.b32.xlu0 %v259, 28
  %v2341 = vpop.permute.xlu0 %2340
  %2342 = vrot.lane.b32.xlu0 %v261, 28
  %v2343 = vpop.permute.xlu0 %2342
  %2344 = vrot.lane.b32.xlu0 %v260, 28
  %v2345 = vpop.permute.xlu0 %2344
  %2346 = vrot.lane.b32.xlu0 %v264, 28
  %v2347 = vpop.permute.xlu0 %2346
  %2348 = vrot.lane.b32.xlu0 %v266, 28
  %v2349 = vpop.permute.xlu0 %2348
  %2350 = vrot.lane.b32.xlu0 %v265, 28
  %v2351 = vpop.permute.xlu0 %2350
  %2352 = vrot.lane.b32.xlu0 %v269, 28
  %v2353 = vpop.permute.xlu0 %2352
  %2354 = vrot.lane.b32.xlu0 %v271, 28
  %v2355 = vpop.permute.xlu0 %2354
  %2356 = vrot.lane.b32.xlu0 %v270, 28
  %v2357 = vpop.permute.xlu0 %2356
  %2358 = vrot.lane.b32.xlu0 %v274, 28
  %v2359 = vpop.permute.xlu0 %2358
  %2360 = vrot.lane.b32.xlu0 %v276, 28
  %v2361 = vpop.permute.xlu0 %2360
  %2362 = vrot.lane.b32.xlu0 %v275, 28
  %v2363 = vpop.permute.xlu0 %2362
  %2364 = vrot.lane.b32.xlu0 %v279, 28
  %v2365 = vpop.permute.xlu0 %2364
  %2366 = vrot.lane.b32.xlu0 %v281, 28
  %v2367 = vpop.permute.xlu0 %2366
  %2368 = vrot.lane.b32.xlu0 %v280, 28
  %v2369 = vpop.permute.xlu0 %2368
  %2370 = vrot.lane.b32.xlu0 %v284, 28
  %v2371 = vpop.permute.xlu0 %2370
  %2372 = vrot.lane.b32.xlu0 %v286, 28
  %v2373 = vpop.permute.xlu0 %2372
  %2374 = vrot.lane.b32.xlu0 %v285, 28
  %v2375 = vpop.permute.xlu0 %2374
  %2376 = vrot.lane.b32.xlu0 %v289, 28
  %v2377 = vpop.permute.xlu0 %2376
  %2378 = vrot.lane.b32.xlu0 %v291, 28
  %v2379 = vpop.permute.xlu0 %2378
  %2380 = vrot.lane.b32.xlu0 %v290, 28
  %v2381 = vpop.permute.xlu0 %2380
  %2382 = vrot.lane.b32.xlu0 %v294, 28
  %v2383 = vpop.permute.xlu0 %2382
  %2384 = vrot.lane.b32.xlu0 %v296, 28
  %v2385 = vpop.permute.xlu0 %2384
  %2386 = vrot.lane.b32.xlu0 %v295, 28
  %v2387 = vpop.permute.xlu0 %2386
  %2388 = vrot.lane.b32.xlu0 %v299, 28
  %v2389 = vpop.permute.xlu0 %2388
  %2390 = vrot.lane.b32.xlu0 %v301, 28
  %v2391 = vpop.permute.xlu0 %2390
  %2392 = vrot.lane.b32.xlu0 %v300, 28
  %v2393 = vpop.permute.xlu0 %2392
  %2394 = vrot.lane.b32.xlu0 %v304, 28
  %v2395 = vpop.permute.xlu0 %2394
  %2396 = vrot.lane.b32.xlu0 %v306, 28
  %v2397 = vpop.permute.xlu0 %2396
  %2398 = vrot.lane.b32.xlu0 %v305, 28
  %v2399 = vpop.permute.xlu0 %2398
  %2400 = vrot.lane.b32.xlu0 %v309, 28
  %v2401 = vpop.permute.xlu0 %2400
  %2402 = vrot.lane.b32.xlu0 %v311, 28
  %v2403 = vpop.permute.xlu0 %2402
  %2404 = vrot.lane.b32.xlu0 %v310, 28
  %v2405 = vpop.permute.xlu0 %2404
  %2406 = vrot.lane.b32.xlu0 %v314, 28
  %v2407 = vpop.permute.xlu0 %2406
  %2408 = vrot.lane.b32.xlu0 %v316, 28
  %v2409 = vpop.permute.xlu0 %2408
  %2410 = vrot.lane.b32.xlu0 %v315, 28
  %v2411 = vpop.permute.xlu0 %2410
  %2412 = vrot.lane.b32.xlu0 %v1430, 28
  %v2413 = vpop.permute.xlu0 %2412
  %2414 = vrot.lane.b32.xlu0 %v1432, 28
  %v2415 = vpop.permute.xlu0 %2414
  %2416 = vrot.lane.b32.xlu0 %v1431, 28
  %v2417 = vpop.permute.xlu0 %2416
  %2418 = vrot.lane.b32.xlu0 %v2320, 28
  %v2419 = vpop.permute.xlu0 %2418
  %2420 = vrot.lane.b32.xlu0 %v2322, 28
  %v2421 = vpop.permute.xlu0 %2420
  %2422 = vrot.lane.b32.xlu0 %v2321, 28
  %v2423 = vpop.permute.xlu0 %2422
  %2424 = vrot.lane.b32.xlu0 %v329, 28
  %v2425 = vpop.permute.xlu0 %2424
  %2426 = vrot.lane.b32.xlu0 %v331, 28
  %v2427 = vpop.permute.xlu0 %2426
  %2428 = vrot.lane.b32.xlu0 %v330, 28
  %v2429 = vpop.permute.xlu0 %2428
  %2430 = vrot.lane.b32.xlu0 %v334, 28
  %v2431 = vpop.permute.xlu0 %2430
  %2432 = vrot.lane.b32.xlu0 %v336, 28
  %v2433 = vpop.permute.xlu0 %2432
  %2434 = vrot.lane.b32.xlu0 %v335, 28
  %v2435 = vpop.permute.xlu0 %2434
  %2436 = vrot.lane.b32.xlu0 %v339, 28
  %v2437 = vpop.permute.xlu0 %2436
  %2438 = vrot.lane.b32.xlu0 %v341, 28
  %v2439 = vpop.permute.xlu0 %2438
  %2440 = vrot.lane.b32.xlu0 %v340, 28
  %v2441 = vpop.permute.xlu0 %2440
  %2442 = vrot.lane.b32.xlu0 %v344, 28
  %v2443 = vpop.permute.xlu0 %2442
  %2444 = vrot.lane.b32.xlu0 %v346, 28
  %v2445 = vpop.permute.xlu0 %2444
  %2446 = vrot.lane.b32.xlu0 %v345, 28
  %v2447 = vpop.permute.xlu0 %2446
  %2448 = vrot.lane.b32.xlu0 %v349, 28
  %v2449 = vpop.permute.xlu0 %2448
  %2450 = vrot.lane.b32.xlu0 %v351, 28
  %v2451 = vpop.permute.xlu0 %2450
  %2452 = vrot.lane.b32.xlu0 %v350, 28
  %v2453 = vpop.permute.xlu0 %2452
  %2454 = vrot.lane.b32.xlu0 %v354, 28
  %v2455 = vpop.permute.xlu0 %2454
  %2456 = vrot.lane.b32.xlu0 %v356, 28
  %v2457 = vpop.permute.xlu0 %2456
  %2458 = vrot.lane.b32.xlu0 %v355, 28
  %v2459 = vpop.permute.xlu0 %2458
  %2460 = vrot.lane.b32.xlu0 %v359, 28
  %v2461 = vpop.permute.xlu0 %2460
  %2462 = vrot.lane.b32.xlu0 %v361, 28
  %v2463 = vpop.permute.xlu0 %2462
  %2464 = vrot.lane.b32.xlu0 %v360, 28
  %v2465 = vpop.permute.xlu0 %2464
  %2466 = vrot.lane.b32.xlu0 %v364, 28
  %v2467 = vpop.permute.xlu0 %2466
  %2468 = vrot.lane.b32.xlu0 %v366, 28
  %v2469 = vpop.permute.xlu0 %2468
  %2470 = vrot.lane.b32.xlu0 %v365, 28
  %v2471 = vpop.permute.xlu0 %2470
  %2472 = vrot.lane.b32.xlu0 %v369, 28
  %v2473 = vpop.permute.xlu0 %2472
  %2474 = vrot.lane.b32.xlu0 %v371, 28
  %v2475 = vpop.permute.xlu0 %2474
  %2476 = vrot.lane.b32.xlu0 %v370, 28
  %v2477 = vpop.permute.xlu0 %2476
  %2478 = vrot.lane.b32.xlu0 %v374, 28
  %v2479 = vpop.permute.xlu0 %2478
  %2480 = vrot.lane.b32.xlu0 %v376, 28
  %v2481 = vpop.permute.xlu0 %2480
  %2482 = vrot.lane.b32.xlu0 %v375, 28
  %v2483 = vpop.permute.xlu0 %2482
  %2484 = vrot.lane.b32.xlu0 %v379, 28
  %v2485 = vpop.permute.xlu0 %2484
  %2486 = vrot.lane.b32.xlu0 %v381, 28
  %v2487 = vpop.permute.xlu0 %2486
  %2488 = vrot.lane.b32.xlu0 %v380, 28
  %v2489 = vpop.permute.xlu0 %2488
  %2490 = vrot.lane.b32.xlu0 %v384, 28
  %v2491 = vpop.permute.xlu0 %2490
  %2492 = vrot.lane.b32.xlu0 %v386, 28
  %v2493 = vpop.permute.xlu0 %2492
  %2494 = vrot.lane.b32.xlu0 %v385, 28
  %v2495 = vpop.permute.xlu0 %2494
  %2496 = vrot.lane.b32.xlu0 %v389, 28
  %v2497 = vpop.permute.xlu0 %2496
  %2498 = vrot.lane.b32.xlu0 %v391, 28
  %v2499 = vpop.permute.xlu0 %2498
  %2500 = vrot.lane.b32.xlu0 %v390, 28
  %v2501 = vpop.permute.xlu0 %2500
  %2502 = vrot.lane.b32.xlu0 %v394, 28
  %v2503 = vpop.permute.xlu0 %2502
  %2504 = vrot.lane.b32.xlu0 %v396, 28
  %v2505 = vpop.permute.xlu0 %2504
  %2506 = vrot.lane.b32.xlu0 %v395, 28
  %v2507 = vpop.permute.xlu0 %2506
  %2508 = vrot.lane.b32.xlu0 %v1435, 28
  %v2509 = vpop.permute.xlu0 %2508
  %2510 = vrot.lane.b32.xlu0 %v1437, 28
  %v2511 = vpop.permute.xlu0 %2510
  %2512 = vrot.lane.b32.xlu0 %v1436, 28
  %v2513 = vpop.permute.xlu0 %2512
  %2514 = vrot.lane.b32.xlu0 %v2325, 28
  %v2515 = vpop.permute.xlu0 %2514
  %2516 = vrot.lane.b32.xlu0 %v2327, 28
  %v2517 = vpop.permute.xlu0 %2516
  %2518 = vrot.lane.b32.xlu0 %v2326, 28
  %v2519 = vpop.permute.xlu0 %2518
  %v2616 = vrot.slane %v68, 2
  %v2617 = vrot.slane %v69, 2
  %v2618 = vsel %vm685, %v2616, %v2617
  %v2619 = vrot.slane %v70, 2
  %v2620 = vsel %vm685, %v2617, %v2619
  %v2621 = vrot.slane %v128, 2
  %v2622 = vrot.slane %v129, 2
  %v2623 = vsel %vm685, %v2621, %v2622
  %v2624 = vrot.slane %v130, 2
  %v2625 = vsel %vm685, %v2622, %v2624
  %2626 = vrot.lane.b32.xlu0 %v698, 32
  %v2627 = vpop.permute.xlu0 %2626
  %2628 = vrot.lane.b32.xlu0 %v700, 32
  %v2629 = vpop.permute.xlu0 %2628
  %2630 = vrot.lane.b32.xlu0 %v699, 32
  %v2631 = vpop.permute.xlu0 %2630
  %2632 = vrot.lane.b32.xlu0 %v703, 32
  %v2633 = vpop.permute.xlu0 %2632
  %2634 = vrot.lane.b32.xlu0 %v705, 32
  %v2635 = vpop.permute.xlu0 %2634
  %2636 = vrot.lane.b32.xlu0 %v704, 32
  %v2637 = vpop.permute.xlu0 %2636
  %2638 = vrot.lane.b32.xlu0 %v708, 32
  %v2639 = vpop.permute.xlu0 %2638
  %2640 = vrot.lane.b32.xlu0 %v710, 32
  %v2641 = vpop.permute.xlu0 %2640
  %2642 = vrot.lane.b32.xlu0 %v709, 32
  %v2643 = vpop.permute.xlu0 %2642
  %2644 = vrot.lane.b32.xlu0 %v713, 32
  %v2645 = vpop.permute.xlu0 %2644
  %2646 = vrot.lane.b32.xlu0 %v715, 32
  %v2647 = vpop.permute.xlu0 %2646
  %2648 = vrot.lane.b32.xlu0 %v714, 32
  %v2649 = vpop.permute.xlu0 %2648
  %2650 = vrot.lane.b32.xlu0 %v718, 32
  %v2651 = vpop.permute.xlu0 %2650
  %2652 = vrot.lane.b32.xlu0 %v720, 32
  %v2653 = vpop.permute.xlu0 %2652
  %2654 = vrot.lane.b32.xlu0 %v719, 32
  %v2655 = vpop.permute.xlu0 %2654
  %2656 = vrot.lane.b32.xlu0 %v723, 32
  %v2657 = vpop.permute.xlu0 %2656
  %2658 = vrot.lane.b32.xlu0 %v725, 32
  %v2659 = vpop.permute.xlu0 %2658
  %2660 = vrot.lane.b32.xlu0 %v724, 32
  %v2661 = vpop.permute.xlu0 %2660
  %2662 = vrot.lane.b32.xlu0 %v728, 32
  %v2663 = vpop.permute.xlu0 %2662
  %2664 = vrot.lane.b32.xlu0 %v730, 32
  %v2665 = vpop.permute.xlu0 %2664
  %2666 = vrot.lane.b32.xlu0 %v729, 32
  %v2667 = vpop.permute.xlu0 %2666
  %2668 = vrot.lane.b32.xlu0 %v733, 32
  %v2669 = vpop.permute.xlu0 %2668
  %2670 = vrot.lane.b32.xlu0 %v735, 32
  %v2671 = vpop.permute.xlu0 %2670
  %2672 = vrot.lane.b32.xlu0 %v734, 32
  %v2673 = vpop.permute.xlu0 %2672
  %2674 = vrot.lane.b32.xlu0 %v738, 32
  %v2675 = vpop.permute.xlu0 %2674
  %2676 = vrot.lane.b32.xlu0 %v740, 32
  %v2677 = vpop.permute.xlu0 %2676
  %2678 = vrot.lane.b32.xlu0 %v739, 32
  %v2679 = vpop.permute.xlu0 %2678
  %2680 = vrot.lane.b32.xlu0 %v743, 32
  %v2681 = vpop.permute.xlu0 %2680
  %2682 = vrot.lane.b32.xlu0 %v745, 32
  %v2683 = vpop.permute.xlu0 %2682
  %2684 = vrot.lane.b32.xlu0 %v744, 32
  %v2685 = vpop.permute.xlu0 %2684
  %2686 = vrot.lane.b32.xlu0 %v748, 32
  %v2687 = vpop.permute.xlu0 %2686
  %2688 = vrot.lane.b32.xlu0 %v750, 32
  %v2689 = vpop.permute.xlu0 %2688
  %2690 = vrot.lane.b32.xlu0 %v749, 32
  %v2691 = vpop.permute.xlu0 %2690
  %2692 = vrot.lane.b32.xlu0 %v753, 32
  %v2693 = vpop.permute.xlu0 %2692
  %2694 = vrot.lane.b32.xlu0 %v755, 32
  %v2695 = vpop.permute.xlu0 %2694
  %2696 = vrot.lane.b32.xlu0 %v754, 32
  %v2697 = vpop.permute.xlu0 %2696
  %2698 = vrot.lane.b32.xlu0 %v758, 32
  %v2699 = vpop.permute.xlu0 %2698
  %2700 = vrot.lane.b32.xlu0 %v760, 32
  %v2701 = vpop.permute.xlu0 %2700
  %2702 = vrot.lane.b32.xlu0 %v759, 32
  %v2703 = vpop.permute.xlu0 %2702
  %2704 = vrot.lane.b32.xlu0 %v763, 32
  %v2705 = vpop.permute.xlu0 %2704
  %2706 = vrot.lane.b32.xlu0 %v765, 32
  %v2707 = vpop.permute.xlu0 %2706
  %2708 = vrot.lane.b32.xlu0 %v764, 32
  %v2709 = vpop.permute.xlu0 %2708
  %2710 = vrot.lane.b32.xlu0 %v1728, 32
  %v2711 = vpop.permute.xlu0 %2710
  %2712 = vrot.lane.b32.xlu0 %v1730, 32
  %v2713 = vpop.permute.xlu0 %2712
  %2714 = vrot.lane.b32.xlu0 %v1729, 32
  %v2715 = vpop.permute.xlu0 %2714
  %2716 = vrot.lane.b32.xlu0 %v2618, 32
  %v2717 = vpop.permute.xlu0 %2716
  %2718 = vrot.lane.b32.xlu0 %v2620, 32
  %v2719 = vpop.permute.xlu0 %2718
  %2720 = vrot.lane.b32.xlu0 %v2619, 32
  %v2721 = vpop.permute.xlu0 %2720
  %2722 = vrot.lane.b32.xlu0 %v778, 32
  %v2723 = vpop.permute.xlu0 %2722
  %2724 = vrot.lane.b32.xlu0 %v780, 32
  %v2725 = vpop.permute.xlu0 %2724
  %2726 = vrot.lane.b32.xlu0 %v779, 32
  %v2727 = vpop.permute.xlu0 %2726
  %2728 = vrot.lane.b32.xlu0 %v783, 32
  %v2729 = vpop.permute.xlu0 %2728
  %2730 = vrot.lane.b32.xlu0 %v785, 32
  %v2731 = vpop.permute.xlu0 %2730
  %2732 = vrot.lane.b32.xlu0 %v784, 32
  %v2733 = vpop.permute.xlu0 %2732
  %2734 = vrot.lane.b32.xlu0 %v788, 32
  %v2735 = vpop.permute.xlu0 %2734
  %2736 = vrot.lane.b32.xlu0 %v790, 32
  %v2737 = vpop.permute.xlu0 %2736
  %2738 = vrot.lane.b32.xlu0 %v789, 32
  %v2739 = vpop.permute.xlu0 %2738
  %2740 = vrot.lane.b32.xlu0 %v793, 32
  %v2741 = vpop.permute.xlu0 %2740
  %2742 = vrot.lane.b32.xlu0 %v795, 32
  %v2743 = vpop.permute.xlu0 %2742
  %2744 = vrot.lane.b32.xlu0 %v794, 32
  %v2745 = vpop.permute.xlu0 %2744
  %2746 = vrot.lane.b32.xlu0 %v798, 32
  %v2747 = vpop.permute.xlu0 %2746
  %2748 = vrot.lane.b32.xlu0 %v800, 32
  %v2749 = vpop.permute.xlu0 %2748
  %2750 = vrot.lane.b32.xlu0 %v799, 32
  %v2751 = vpop.permute.xlu0 %2750
  %2752 = vrot.lane.b32.xlu0 %v803, 32
  %v2753 = vpop.permute.xlu0 %2752
  %2754 = vrot.lane.b32.xlu0 %v805, 32
  %v2755 = vpop.permute.xlu0 %2754
  %2756 = vrot.lane.b32.xlu0 %v804, 32
  %v2757 = vpop.permute.xlu0 %2756
  %2758 = vrot.lane.b32.xlu0 %v808, 32
  %v2759 = vpop.permute.xlu0 %2758
  %2760 = vrot.lane.b32.xlu0 %v810, 32
  %v2761 = vpop.permute.xlu0 %2760
  %2762 = vrot.lane.b32.xlu0 %v809, 32
  %v2763 = vpop.permute.xlu0 %2762
  %2764 = vrot.lane.b32.xlu0 %v813, 32
  %v2765 = vpop.permute.xlu0 %2764
  %2766 = vrot.lane.b32.xlu0 %v815, 32
  %v2767 = vpop.permute.xlu0 %2766
  %2768 = vrot.lane.b32.xlu0 %v814, 32
  %v2769 = vpop.permute.xlu0 %2768
  %2770 = vrot.lane.b32.xlu0 %v818, 32
  %v2771 = vpop.permute.xlu0 %2770
  %2772 = vrot.lane.b32.xlu0 %v820, 32
  %v2773 = vpop.permute.xlu0 %2772
  %2774 = vrot.lane.b32.xlu0 %v819, 32
  %v2775 = vpop.permute.xlu0 %2774
  %2776 = vrot.lane.b32.xlu0 %v823, 32
  %v2777 = vpop.permute.xlu0 %2776
  %2778 = vrot.lane.b32.xlu0 %v825, 32
  %v2779 = vpop.permute.xlu0 %2778
  %2780 = vrot.lane.b32.xlu0 %v824, 32
  %v2781 = vpop.permute.xlu0 %2780
  %2782 = vrot.lane.b32.xlu0 %v828, 32
  %v2783 = vpop.permute.xlu0 %2782
  %2784 = vrot.lane.b32.xlu0 %v830, 32
  %v2785 = vpop.permute.xlu0 %2784
  %2786 = vrot.lane.b32.xlu0 %v829, 32
  %v2787 = vpop.permute.xlu0 %2786
  %2788 = vrot.lane.b32.xlu0 %v833, 32
  %v2789 = vpop.permute.xlu0 %2788
  %2790 = vrot.lane.b32.xlu0 %v835, 32
  %v2791 = vpop.permute.xlu0 %2790
  %2792 = vrot.lane.b32.xlu0 %v834, 32
  %v2793 = vpop.permute.xlu0 %2792
  %2794 = vrot.lane.b32.xlu0 %v838, 32
  %v2795 = vpop.permute.xlu0 %2794
  %2796 = vrot.lane.b32.xlu0 %v840, 32
  %v2797 = vpop.permute.xlu0 %2796
  %2798 = vrot.lane.b32.xlu0 %v839, 32
  %v2799 = vpop.permute.xlu0 %2798
  %2800 = vrot.lane.b32.xlu0 %v843, 32
  %v2801 = vpop.permute.xlu0 %2800
  %2802 = vrot.lane.b32.xlu0 %v845, 32
  %v2803 = vpop.permute.xlu0 %2802
  %2804 = vrot.lane.b32.xlu0 %v844, 32
  %v2805 = vpop.permute.xlu0 %2804
  %2806 = vrot.lane.b32.xlu0 %v1733, 32
  %v2807 = vpop.permute.xlu0 %2806
  %2808 = vrot.lane.b32.xlu0 %v1735, 32
  %v2809 = vpop.permute.xlu0 %2808
  %2810 = vrot.lane.b32.xlu0 %v1734, 32
  %v2811 = vpop.permute.xlu0 %2810
  %2812 = vrot.lane.b32.xlu0 %v2623, 32
  %v2813 = vpop.permute.xlu0 %2812
  %2814 = vrot.lane.b32.xlu0 %v2625, 32
  %v2815 = vpop.permute.xlu0 %2814
  %2816 = vrot.lane.b32.xlu0 %v2624, 32
  %v2817 = vpop.permute.xlu0 %2816
  %vm2914 = vcmask 31744
  %v2915 = vsel %vm2914, %v17, %v398
  %v2916 = vsel %vm2914, %v18, %v400
  %v2917 = vsel %vm2914, %v19, %v402
  %v2918 = vsel %vm2914, %v20, %v404
  %v2919 = vsel %vm2914, %v21, %v406
  %v2920 = vsel %vm2914, %v22, %v408
  %v2921 = vsel %vm2914, %v23, %v410
  %v2922 = vsel %vm2914, %v24, %v412
  %v2923 = vsel %vm2914, %v25, %v414
  %v2924 = vsel %vm2914, %v26, %v416
  %v2925 = vsel %vm2914, %v27, %v418
  %v2926 = vsel %vm2914, %v28, %v420
  %v2927 = vsel %vm2914, %v29, %v422
  %v2928 = vsel %vm2914, %v30, %v424
  %v2929 = vsel %vm2914, %v31, %v426
  %v2930 = vsel %vm2914, %v32, %v428
  %v2931 = vsel %vm2914, %v33, %v430
  %v2932 = vsel %vm2914, %v34, %v432
  %v2933 = vsel %vm2914, %v35, %v434
  %v2934 = vsel %vm2914, %v36, %v436
  %v2935 = vsel %vm2914, %v37, %v438
  %v2936 = vsel %vm2914, %v38, %v440
  %v2937 = vsel %vm2914, %v39, %v442
  %v2938 = vsel %vm2914, %v40, %v444
  %v2939 = vsel %vm2914, %v41, %v446
  %v2940 = vsel %vm2914, %v42, %v448
  %v2941 = vsel %vm2914, %v43, %v450
  %v2942 = vsel %vm2914, %v44, %v452
  %v2943 = vsel %vm2914, %v45, %v454
  %v2944 = vsel %vm2914, %v46, %v456
  %v2945 = vsel %vm2914, %v47, %v458
  %v2946 = vsel %vm2914, %v48, %v460
  %v2947 = vsel %vm2914, %v49, %v462
  %v2948 = vsel %vm2914, %v50, %v464
  %v2949 = vsel %vm2914, %v51, %v466
  %v2950 = vsel %vm2914, %v52, %v468
  %v2951 = vsel %vm2914, %v53, %v470
  %v2952 = vsel %vm2914, %v54, %v472
  %v2953 = vsel %vm2914, %v55, %v474
  %v2954 = vsel %vm2914, %v56, %v476
  %v2955 = vsel %vm2914, %v57, %v478
  %v2956 = vsel %vm2914, %v58, %v480
  %v2957 = vsel %vm2914, %v59, %v482
  %v2958 = vsel %vm2914, %v60, %v484
  %v2959 = vsel %vm2914, %v61, %v486
  %v2960 = vsel %vm2914, %v62, %v488
  %v2961 = vsel %vm2914, %v63, %v490
  %v2962 = vsel %vm2914, %v64, %v492
  %v2963 = vsel %vm2914, %v77, %v494
  %v2964 = vsel %vm2914, %v78, %v496
  %v2965 = vsel %vm2914, %v79, %v498
  %v2966 = vsel %vm2914, %v80, %v500
  %v2967 = vsel %vm2914, %v81, %v502
  %v2968 = vsel %vm2914, %v82, %v504
  %v2969 = vsel %vm2914, %v83, %v506
  %v2970 = vsel %vm2914, %v84, %v508
  %v2971 = vsel %vm2914, %v85, %v510
  %v2972 = vsel %vm2914, %v86, %v512
  %v2973 = vsel %vm2914, %v87, %v514
  %v2974 = vsel %vm2914, %v88, %v516
  %v2975 = vsel %vm2914, %v89, %v518
  %v2976 = vsel %vm2914, %v90, %v520
  %v2977 = vsel %vm2914, %v91, %v522
  %v2978 = vsel %vm2914, %v92, %v524
  %v2979 = vsel %vm2914, %v93, %v526
  %v2980 = vsel %vm2914, %v94, %v528
  %v2981 = vsel %vm2914, %v95, %v530
  %v2982 = vsel %vm2914, %v96, %v532
  %v2983 = vsel %vm2914, %v97, %v534
  %v2984 = vsel %vm2914, %v98, %v536
  %v2985 = vsel %vm2914, %v99, %v538
  %v2986 = vsel %vm2914, %v100, %v540
  %v2987 = vsel %vm2914, %v101, %v542
  %v2988 = vsel %vm2914, %v102, %v544
  %v2989 = vsel %vm2914, %v103, %v546
  %v2990 = vsel %vm2914, %v104, %v548
  %v2991 = vsel %vm2914, %v105, %v550
  %v2992 = vsel %vm2914, %v106, %v552
  %v2993 = vsel %vm2914, %v107, %v554
  %v2994 = vsel %vm2914, %v108, %v556
  %v2995 = vsel %vm2914, %v109, %v558
  %v2996 = vsel %vm2914, %v110, %v560
  %v2997 = vsel %vm2914, %v111, %v562
  %v2998 = vsel %vm2914, %v112, %v564
  %v2999 = vsel %vm2914, %v113, %v566
  %v3000 = vsel %vm2914, %v114, %v568
  %v3001 = vsel %vm2914, %v115, %v570
  %v3002 = vsel %vm2914, %v116, %v572
  %v3003 = vsel %vm2914, %v117, %v574
  %v3004 = vsel %vm2914, %v118, %v576
  %v3005 = vsel %vm2914, %v119, %v578
  %v3006 = vsel %vm2914, %v120, %v580
  %v3007 = vsel %vm2914, %v121, %v582
  %v3008 = vsel %vm2914, %v122, %v584
  %v3009 = vsel %vm2914, %v123, %v586
  %v3010 = vsel %vm2914, %v124, %v588
  %vm3011 = vcmask 64512
  %v3012 = vsel %vm3011, %v2915, %v847
  %v3013 = vsel %vm3011, %v2916, %v849
  %v3014 = vsel %vm3011, %v2917, %v851
  %v3015 = vsel %vm3011, %v2918, %v853
  %v3016 = vsel %vm3011, %v2919, %v855
  %v3017 = vsel %vm3011, %v2920, %v857
  %v3018 = vsel %vm3011, %v2921, %v859
  %v3019 = vsel %vm3011, %v2922, %v861
  %v3020 = vsel %vm3011, %v2923, %v863
  %v3021 = vsel %vm3011, %v2924, %v865
  %v3022 = vsel %vm3011, %v2925, %v867
  %v3023 = vsel %vm3011, %v2926, %v869
  %v3024 = vsel %vm3011, %v2927, %v871
  %v3025 = vsel %vm3011, %v2928, %v873
  %v3026 = vsel %vm3011, %v2929, %v875
  %v3027 = vsel %vm3011, %v2930, %v877
  %v3028 = vsel %vm3011, %v2931, %v879
  %v3029 = vsel %vm3011, %v2932, %v881
  %v3030 = vsel %vm3011, %v2933, %v883
  %v3031 = vsel %vm3011, %v2934, %v885
  %v3032 = vsel %vm3011, %v2935, %v887
  %v3033 = vsel %vm3011, %v2936, %v889
  %v3034 = vsel %vm3011, %v2937, %v891
  %v3035 = vsel %vm3011, %v2938, %v893
  %v3036 = vsel %vm3011, %v2939, %v895
  %v3037 = vsel %vm3011, %v2940, %v897
  %v3038 = vsel %vm3011, %v2941, %v899
  %v3039 = vsel %vm3011, %v2942, %v901
  %v3040 = vsel %vm3011, %v2943, %v903
  %v3041 = vsel %vm3011, %v2944, %v905
  %v3042 = vsel %vm3011, %v2945, %v907
  %v3043 = vsel %vm3011, %v2946, %v909
  %v3044 = vsel %vm3011, %v2947, %v911
  %v3045 = vsel %vm3011, %v2948, %v913
  %v3046 = vsel %vm3011, %v2949, %v915
  %v3047 = vsel %vm3011, %v2950, %v917
  %v3048 = vsel %vm3011, %v2951, %v919
  %v3049 = vsel %vm3011, %v2952, %v921
  %v3050 = vsel %vm3011, %v2953, %v923
  %v3051 = vsel %vm3011, %v2954, %v925
  %v3052 = vsel %vm3011, %v2955, %v927
  %v3053 = vsel %vm3011, %v2956, %v929
  %v3054 = vsel %vm3011, %v2957, %v931
  %v3055 = vsel %vm3011, %v2958, %v933
  %v3056 = vsel %vm3011, %v2959, %v935
  %v3057 = vsel %vm3011, %v2960, %v937
  %v3058 = vsel %vm3011, %v2961, %v939
  %v3059 = vsel %vm3011, %v2962, %v941
  %v3060 = vsel %vm3011, %v2963, %v943
  %v3061 = vsel %vm3011, %v2964, %v945
  %v3062 = vsel %vm3011, %v2965, %v947
  %v3063 = vsel %vm3011, %v2966, %v949
  %v3064 = vsel %vm3011, %v2967, %v951
  %v3065 = vsel %vm3011, %v2968, %v953
  %v3066 = vsel %vm3011, %v2969, %v955
  %v3067 = vsel %vm3011, %v2970, %v957
  %v3068 = vsel %vm3011, %v2971, %v959
  %v3069 = vsel %vm3011, %v2972, %v961
  %v3070 = vsel %vm3011, %v2973, %v963
  %v3071 = vsel %vm3011, %v2974, %v965
  %v3072 = vsel %vm3011, %v2975, %v967
  %v3073 = vsel %vm3011, %v2976, %v969
  %v3074 = vsel %vm3011, %v2977, %v971
  %v3075 = vsel %vm3011, %v2978, %v973
  %v3076 = vsel %vm3011, %v2979, %v975
  %v3077 = vsel %vm3011, %v2980, %v977
  %v3078 = vsel %vm3011, %v2981, %v979
  %v3079 = vsel %vm3011, %v2982, %v981
  %v3080 = vsel %vm3011, %v2983, %v983
  %v3081 = vsel %vm3011, %v2984, %v985
  %v3082 = vsel %vm3011, %v2985, %v987
  %v3083 = vsel %vm3011, %v2986, %v989
  %v3084 = vsel %vm3011, %v2987, %v991
  %v3085 = vsel %vm3011, %v2988, %v993
  %v3086 = vsel %vm3011, %v2989, %v995
  %v3087 = vsel %vm3011, %v2990, %v997
  %v3088 = vsel %vm3011, %v2991, %v999
  %v3089 = vsel %vm3011, %v2992, %v1001
  %v3090 = vsel %vm3011, %v2993, %v1003
  %v3091 = vsel %vm3011, %v2994, %v1005
  %v3092 = vsel %vm3011, %v2995, %v1007
  %v3093 = vsel %vm3011, %v2996, %v1009
  %v3094 = vsel %vm3011, %v2997, %v1011
  %v3095 = vsel %vm3011, %v2998, %v1013
  %v3096 = vsel %vm3011, %v2999, %v1015
  %v3097 = vsel %vm3011, %v3000, %v1017
  %v3098 = vsel %vm3011, %v3001, %v1019
  %v3099 = vsel %vm3011, %v3002, %v1021
  %v3100 = vsel %vm3011, %v3003, %v1023
  %v3101 = vsel %vm3011, %v3004, %v1025
  %v3102 = vsel %vm3011, %v3005, %v1027
  %v3103 = vsel %vm3011, %v3006, %v1029
  %v3104 = vsel %vm3011, %v3007, %v1031
  %v3105 = vsel %vm3011, %v3008, %v1033
  %v3106 = vsel %vm3011, %v3009, %v1035
  %v3107 = vsel %vm3011, %v3010, %v1037
  %vm3108 = vcmask 97280
  %v3109 = vsel %vm3108, %v3012, %v1141
  %v3110 = vsel %vm3108, %v3013, %v1143
  %v3111 = vsel %vm3108, %v3014, %v1145
  %v3112 = vsel %vm3108, %v3015, %v1147
  %v3113 = vsel %vm3108, %v3016, %v1149
  %v3114 = vsel %vm3108, %v3017, %v1151
  %v3115 = vsel %vm3108, %v3018, %v1153
  %v3116 = vsel %vm3108, %v3019, %v1155
  %v3117 = vsel %vm3108, %v3020, %v1157
  %v3118 = vsel %vm3108, %v3021, %v1159
  %v3119 = vsel %vm3108, %v3022, %v1161
  %v3120 = vsel %vm3108, %v3023, %v1163
  %v3121 = vsel %vm3108, %v3024, %v1165
  %v3122 = vsel %vm3108, %v3025, %v1167
  %v3123 = vsel %vm3108, %v3026, %v1169
  %v3124 = vsel %vm3108, %v3027, %v1171
  %v3125 = vsel %vm3108, %v3028, %v1173
  %v3126 = vsel %vm3108, %v3029, %v1175
  %v3127 = vsel %vm3108, %v3030, %v1177
  %v3128 = vsel %vm3108, %v3031, %v1179
  %v3129 = vsel %vm3108, %v3032, %v1181
  %v3130 = vsel %vm3108, %v3033, %v1183
  %v3131 = vsel %vm3108, %v3034, %v1185
  %v3132 = vsel %vm3108, %v3035, %v1187
  %v3133 = vsel %vm3108, %v3036, %v1189
  %v3134 = vsel %vm3108, %v3037, %v1191
  %v3135 = vsel %vm3108, %v3038, %v1193
  %v3136 = vsel %vm3108, %v3039, %v1195
  %v3137 = vsel %vm3108, %v3040, %v1197
  %v3138 = vsel %vm3108, %v3041, %v1199
  %v3139 = vsel %vm3108, %v3042, %v1201
  %v3140 = vsel %vm3108, %v3043, %v1203
  %v3141 = vsel %vm3108, %v3044, %v1205
  %v3142 = vsel %vm3108, %v3045, %v1207
  %v3143 = vsel %vm3108, %v3046, %v1209
  %v3144 = vsel %vm3108, %v3047, %v1211
  %v3145 = vsel %vm3108, %v3048, %v1213
  %v3146 = vsel %vm3108, %v3049, %v1215
  %v3147 = vsel %vm3108, %v3050, %v1217
  %v3148 = vsel %vm3108, %v3051, %v1219
  %v3149 = vsel %vm3108, %v3052, %v1221
  %v3150 = vsel %vm3108, %v3053, %v1223
  %v3151 = vsel %vm3108, %v3054, %v1225
  %v3152 = vsel %vm3108, %v3055, %v1227
  %v3153 = vsel %vm3108, %v3056, %v1229
  %v3154 = vsel %vm3108, %v3057, %v1231
  %v3155 = vsel %vm3108, %v3058, %v1233
  %v3156 = vsel %vm3108, %v3059, %v1235
  %v3157 = vsel %vm3108, %v3060, %v1237
  %v3158 = vsel %vm3108, %v3061, %v1239
  %v3159 = vsel %vm3108, %v3062, %v1241
  %v3160 = vsel %vm3108, %v3063, %v1243
  %v3161 = vsel %vm3108, %v3064, %v1245
  %v3162 = vsel %vm3108, %v3065, %v1247
  %v3163 = vsel %vm3108, %v3066, %v1249
  %v3164 = vsel %vm3108, %v3067, %v1251
  %v3165 = vsel %vm3108, %v3068, %v1253
  %v3166 = vsel %vm3108, %v3069, %v1255
  %v3167 = vsel %vm3108, %v3070, %v1257
  %v3168 = vsel %vm3108, %v3071, %v1259
  %v3169 = vsel %vm3108, %v3072, %v1261
  %v3170 = vsel %vm3108, %v3073, %v1263
  %v3171 = vsel %vm3108, %v3074, %v1265
  %v3172 = vsel %vm3108, %v3075, %v1267
  %v3173 = vsel %vm3108, %v3076, %v1269
  %v3174 = vsel %vm3108, %v3077, %v1271
  %v3175 = vsel %vm3108, %v3078, %v1273
  %v3176 = vsel %vm3108, %v3079, %v1275
  %v3177 = vsel %vm3108, %v3080, %v1277
  %v3178 = vsel %vm3108, %v3081, %v1279
  %v3179 = vsel %vm3108, %v3082, %v1281
  %v3180 = vsel %vm3108, %v3083, %v1283
  %v3181 = vsel %vm3108, %v3084, %v1285
  %v3182 = vsel %vm3108, %v3085, %v1287
  %v3183 = vsel %vm3108, %v3086, %v1289
  %v3184 = vsel %vm3108, %v3087, %v1291
  %v3185 = vsel %vm3108, %v3088, %v1293
  %v3186 = vsel %vm3108, %v3089, %v1295
  %v3187 = vsel %vm3108, %v3090, %v1297
  %v3188 = vsel %vm3108, %v3091, %v1299
  %v3189 = vsel %vm3108, %v3092, %v1301
  %v3190 = vsel %vm3108, %v3093, %v1303
  %v3191 = vsel %vm3108, %v3094, %v1305
  %v3192 = vsel %vm3108, %v3095, %v1307
  %v3193 = vsel %vm3108, %v3096, %v1309
  %v3194 = vsel %vm3108, %v3097, %v1311
  %v3195 = vsel %vm3108, %v3098, %v1313
  %v3196 = vsel %vm3108, %v3099, %v1315
  %v3197 = vsel %vm3108, %v3100, %v1317
  %v3198 = vsel %vm3108, %v3101, %v1319
  %v3199 = vsel %vm3108, %v3102, %v1321
  %v3200 = vsel %vm3108, %v3103, %v1323
  %v3201 = vsel %vm3108, %v3104, %v1325
  %v3202 = vsel %vm3108, %v3105, %v1327
  %v3203 = vsel %vm3108, %v3106, %v1329
  %v3204 = vsel %vm3108, %v3107, %v1331
  %vm3205 = vcmask 130048
  %v3206 = vsel %vm3205, %v3109, %v1439
  %v3207 = vsel %vm3205, %v3110, %v1441
  %v3208 = vsel %vm3205, %v3111, %v1443
  %v3209 = vsel %vm3205, %v3112, %v1445
  %v3210 = vsel %vm3205, %v3113, %v1447
  %v3211 = vsel %vm3205, %v3114, %v1449
  %v3212 = vsel %vm3205, %v3115, %v1451
  %v3213 = vsel %vm3205, %v3116, %v1453
  %v3214 = vsel %vm3205, %v3117, %v1455
  %v3215 = vsel %vm3205, %v3118, %v1457
  %v3216 = vsel %vm3205, %v3119, %v1459
  %v3217 = vsel %vm3205, %v3120, %v1461
  %v3218 = vsel %vm3205, %v3121, %v1463
  %v3219 = vsel %vm3205, %v3122, %v1465
  %v3220 = vsel %vm3205, %v3123, %v1467
  %v3221 = vsel %vm3205, %v3124, %v1469
  %v3222 = vsel %vm3205, %v3125, %v1471
  %v3223 = vsel %vm3205, %v3126, %v1473
  %v3224 = vsel %vm3205, %v3127, %v1475
  %v3225 = vsel %vm3205, %v3128, %v1477
  %v3226 = vsel %vm3205, %v3129, %v1479
  %v3227 = vsel %vm3205, %v3130, %v1481
  %v3228 = vsel %vm3205, %v3131, %v1483
  %v3229 = vsel %vm3205, %v3132, %v1485
  %v3230 = vsel %vm3205, %v3133, %v1487
  %v3231 = vsel %vm3205, %v3134, %v1489
  %v3232 = vsel %vm3205, %v3135, %v1491
  %v3233 = vsel %vm3205, %v3136, %v1493
  %v3234 = vsel %vm3205, %v3137, %v1495
  %v3235 = vsel %vm3205, %v3138, %v1497
  %v3236 = vsel %vm3205, %v3139, %v1499
  %v3237 = vsel %vm3205, %v3140, %v1501
  %v3238 = vsel %vm3205, %v3141, %v1503
  %v3239 = vsel %vm3205, %v3142, %v1505
  %v3240 = vsel %vm3205, %v3143, %v1507
  %v3241 = vsel %vm3205, %v3144, %v1509
  %v3242 = vsel %vm3205, %v3145, %v1511
  %v3243 = vsel %vm3205, %v3146, %v1513
  %v3244 = vsel %vm3205, %v3147, %v1515
  %v3245 = vsel %vm3205, %v3148, %v1517
  %v3246 = vsel %vm3205, %v3149, %v1519
  %v3247 = vsel %vm3205, %v3150, %v1521
  %v3248 = vsel %vm3205, %v3151, %v1523
  %v3249 = vsel %vm3205, %v3152, %v1525
  %v3250 = vsel %vm3205, %v3153, %v1527
  %v3251 = vsel %vm3205, %v3154, %v1529
  %v3252 = vsel %vm3205, %v3155, %v1531
  %v3253 = vsel %vm3205, %v3156, %v1533
  %v3254 = vsel %vm3205, %v3157, %v1535
  %v3255 = vsel %vm3205, %v3158, %v1537
  %v3256 = vsel %vm3205, %v3159, %v1539
  %v3257 = vsel %vm3205, %v3160, %v1541
  %v3258 = vsel %vm3205, %v3161, %v1543
  %v3259 = vsel %vm3205, %v3162, %v1545
  %v3260 = vsel %vm3205, %v3163, %v1547
  %v3261 = vsel %vm3205, %v3164, %v1549
  %v3262 = vsel %vm3205, %v3165, %v1551
  %v3263 = vsel %vm3205, %v3166, %v1553
  %v3264 = vsel %vm3205, %v3167, %v1555
  %v3265 = vsel %vm3205, %v3168, %v1557
  %v3266 = vsel %vm3205, %v3169, %v1559
  %v3267 = vsel %vm3205, %v3170, %v1561
  %v3268 = vsel %vm3205, %v3171, %v1563
  %v3269 = vsel %vm3205, %v3172, %v1565
  %v3270 = vsel %vm3205, %v3173, %v1567
  %v3271 = vsel %vm3205, %v3174, %v1569
  %v3272 = vsel %vm3205, %v3175, %v1571
  %v3273 = vsel %vm3205, %v3176, %v1573
  %v3274 = vsel %vm3205, %v3177, %v1575
  %v3275 = vsel %vm3205, %v3178, %v1577
  %v3276 = vsel %vm3205, %v3179, %v1579
  %v3277 = vsel %vm3205, %v3180, %v1581
  %v3278 = vsel %vm3205, %v3181, %v1583
  %v3279 = vsel %vm3205, %v3182, %v1585
  %v3280 = vsel %vm3205, %v3183, %v1587
  %v3281 = vsel %vm3205, %v3184, %v1589
  %v3282 = vsel %vm3205, %v3185, %v1591
  %v3283 = vsel %vm3205, %v3186, %v1593
  %v3284 = vsel %vm3205, %v3187, %v1595
  %v3285 = vsel %vm3205, %v3188, %v1597
  %v3286 = vsel %vm3205, %v3189, %v1599
  %v3287 = vsel %vm3205, %v3190, %v1601
  %v3288 = vsel %vm3205, %v3191, %v1603
  %v3289 = vsel %vm3205, %v3192, %v1605
  %v3290 = vsel %vm3205, %v3193, %v1607
  %v3291 = vsel %vm3205, %v3194, %v1609
  %v3292 = vsel %vm3205, %v3195, %v1611
  %v3293 = vsel %vm3205, %v3196, %v1613
  %v3294 = vsel %vm3205, %v3197, %v1615
  %v3295 = vsel %vm3205, %v3198, %v1617
  %v3296 = vsel %vm3205, %v3199, %v1619
  %v3297 = vsel %vm3205, %v3200, %v1621
  %v3298 = vsel %vm3205, %v3201, %v1623
  %v3299 = vsel %vm3205, %v3202, %v1625
  %v3300 = vsel %vm3205, %v3203, %v1627
  %v3301 = vsel %vm3205, %v3204, %v1629
  %vm3302 = vcmask 162816
  %v3303 = vsel %vm3302, %v3206, %v1737
  %v3304 = vsel %vm3302, %v3207, %v1739
  %v3305 = vsel %vm3302, %v3208, %v1741
  %v3306 = vsel %vm3302, %v3209, %v1743
  %v3307 = vsel %vm3302, %v3210, %v1745
  %v3308 = vsel %vm3302, %v3211, %v1747
  %v3309 = vsel %vm3302, %v3212, %v1749
  %v3310 = vsel %vm3302, %v3213, %v1751
  %v3311 = vsel %vm3302, %v3214, %v1753
  %v3312 = vsel %vm3302, %v3215, %v1755
  %v3313 = vsel %vm3302, %v3216, %v1757
  %v3314 = vsel %vm3302, %v3217, %v1759
  %v3315 = vsel %vm3302, %v3218, %v1761
  %v3316 = vsel %vm3302, %v3219, %v1763
  %v3317 = vsel %vm3302, %v3220, %v1765
  %v3318 = vsel %vm3302, %v3221, %v1767
  %v3319 = vsel %vm3302, %v3222, %v1769
  %v3320 = vsel %vm3302, %v3223, %v1771
  %v3321 = vsel %vm3302, %v3224, %v1773
  %v3322 = vsel %vm3302, %v3225, %v1775
  %v3323 = vsel %vm3302, %v3226, %v1777
  %v3324 = vsel %vm3302, %v3227, %v1779
  %v3325 = vsel %vm3302, %v3228, %v1781
  %v3326 = vsel %vm3302, %v3229, %v1783
  %v3327 = vsel %vm3302, %v3230, %v1785
  %v3328 = vsel %vm3302, %v3231, %v1787
  %v3329 = vsel %vm3302, %v3232, %v1789
  %v3330 = vsel %vm3302, %v3233, %v1791
  %v3331 = vsel %vm3302, %v3234, %v1793
  %v3332 = vsel %vm3302, %v3235, %v1795
  %v3333 = vsel %vm3302, %v3236, %v1797
  %v3334 = vsel %vm3302, %v3237, %v1799
  %v3335 = vsel %vm3302, %v3238, %v1801
  %v3336 = vsel %vm3302, %v3239, %v1803
  %v3337 = vsel %vm3302, %v3240, %v1805
  %v3338 = vsel %vm3302, %v3241, %v1807
  %v3339 = vsel %vm3302, %v3242, %v1809
  %v3340 = vsel %vm3302, %v3243, %v1811
  %v3341 = vsel %vm3302, %v3244, %v1813
  %v3342 = vsel %vm3302, %v3245, %v1815
  %v3343 = vsel %vm3302, %v3246, %v1817
  %v3344 = vsel %vm3302, %v3247, %v1819
  %v3345 = vsel %vm3302, %v3248, %v1821
  %v3346 = vsel %vm3302, %v3249, %v1823
  %v3347 = vsel %vm3302, %v3250, %v1825
  %v3348 = vsel %vm3302, %v3251, %v1827
  %v3349 = vsel %vm3302, %v3252, %v1829
  %v3350 = vsel %vm3302, %v3253, %v1831
  %v3351 = vsel %vm3302, %v3254, %v1833
  %v3352 = vsel %vm3302, %v3255, %v1835
  %v3353 = vsel %vm3302, %v3256, %v1837
  %v3354 = vsel %vm3302, %v3257, %v1839
  %v3355 = vsel %vm3302, %v3258, %v1841
  %v3356 = vsel %vm3302, %v3259, %v1843
  %v3357 = vsel %vm3302, %v3260, %v1845
  %v3358 = vsel %vm3302, %v3261, %v1847
  %v3359 = vsel %vm3302, %v3262, %v1849
  %v3360 = vsel %vm3302, %v3263, %v1851
  %v3361 = vsel %vm3302, %v3264, %v1853
  %v3362 = vsel %vm3302, %v3265, %v1855
  %v3363 = vsel %vm3302, %v3266, %v1857
  %v3364 = vsel %vm3302, %v3267, %v1859
  %v3365 = vsel %vm3302, %v3268, %v1861
  %v3366 = vsel %vm3302, %v3269, %v1863
  %v3367 = vsel %vm3302, %v3270, %v1865
  %v3368 = vsel %vm3302, %v3271, %v1867
  %v3369 = vsel %vm3302, %v3272, %v1869
  %v3370 = vsel %vm3302, %v3273, %v1871
  %v3371 = vsel %vm3302, %v3274, %v1873
  %v3372 = vsel %vm3302, %v3275, %v1875
  %v3373 = vsel %vm3302, %v3276, %v1877
  %v3374 = vsel %vm3302, %v3277, %v1879
  %v3375 = vsel %vm3302, %v3278, %v1881
  %v3376 = vsel %vm3302, %v3279, %v1883
  %v3377 = vsel %vm3302, %v3280, %v1885
  %v3378 = vsel %vm3302, %v3281, %v1887
  %v3379 = vsel %vm3302, %v3282, %v1889
  %v3380 = vsel %vm3302, %v3283, %v1891
  %v3381 = vsel %vm3302, %v3284, %v1893
  %v3382 = vsel %vm3302, %v3285, %v1895
  %v3383 = vsel %vm3302, %v3286, %v1897
  %v3384 = vsel %vm3302, %v3287, %v1899
  %v3385 = vsel %vm3302, %v3288, %v1901
  %v3386 = vsel %vm3302, %v3289, %v1903
  %v3387 = vsel %vm3302, %v3290, %v1905
  %v3388 = vsel %vm3302, %v3291, %v1907
  %v3389 = vsel %vm3302, %v3292, %v1909
  %v3390 = vsel %vm3302, %v3293, %v1911
  %v3391 = vsel %vm3302, %v3294, %v1913
  %v3392 = vsel %vm3302, %v3295, %v1915
  %v3393 = vsel %vm3302, %v3296, %v1917
  %v3394 = vsel %vm3302, %v3297, %v1919
  %v3395 = vsel %vm3302, %v3298, %v1921
  %v3396 = vsel %vm3302, %v3299, %v1923
  %v3397 = vsel %vm3302, %v3300, %v1925
  %v3398 = vsel %vm3302, %v3301, %v1927
  %vm3399 = vcmask 195584
  %v3400 = vsel %vm3399, %v3303, %v2031
  %v3401 = vsel %vm3399, %v3304, %v2033
  %v3402 = vsel %vm3399, %v3305, %v2035
  %v3403 = vsel %vm3399, %v3306, %v2037
  %v3404 = vsel %vm3399, %v3307, %v2039
  %v3405 = vsel %vm3399, %v3308, %v2041
  %v3406 = vsel %vm3399, %v3309, %v2043
  %v3407 = vsel %vm3399, %v3310, %v2045
  %v3408 = vsel %vm3399, %v3311, %v2047
  %v3409 = vsel %vm3399, %v3312, %v2049
  %v3410 = vsel %vm3399, %v3313, %v2051
  %v3411 = vsel %vm3399, %v3314, %v2053
  %v3412 = vsel %vm3399, %v3315, %v2055
  %v3413 = vsel %vm3399, %v3316, %v2057
  %v3414 = vsel %vm3399, %v3317, %v2059
  %v3415 = vsel %vm3399, %v3318, %v2061
  %v3416 = vsel %vm3399, %v3319, %v2063
  %v3417 = vsel %vm3399, %v3320, %v2065
  %v3418 = vsel %vm3399, %v3321, %v2067
  %v3419 = vsel %vm3399, %v3322, %v2069
  %v3420 = vsel %vm3399, %v3323, %v2071
  %v3421 = vsel %vm3399, %v3324, %v2073
  %v3422 = vsel %vm3399, %v3325, %v2075
  %v3423 = vsel %vm3399, %v3326, %v2077
  %v3424 = vsel %vm3399, %v3327, %v2079
  %v3425 = vsel %vm3399, %v3328, %v2081
  %v3426 = vsel %vm3399, %v3329, %v2083
  %v3427 = vsel %vm3399, %v3330, %v2085
  %v3428 = vsel %vm3399, %v3331, %v2087
  %v3429 = vsel %vm3399, %v3332, %v2089
  %v3430 = vsel %vm3399, %v3333, %v2091
  %v3431 = vsel %vm3399, %v3334, %v2093
  %v3432 = vsel %vm3399, %v3335, %v2095
  %v3433 = vsel %vm3399, %v3336, %v2097
  %v3434 = vsel %vm3399, %v3337, %v2099
  %v3435 = vsel %vm3399, %v3338, %v2101
  %v3436 = vsel %vm3399, %v3339, %v2103
  %v3437 = vsel %vm3399, %v3340, %v2105
  %v3438 = vsel %vm3399, %v3341, %v2107
  %v3439 = vsel %vm3399, %v3342, %v2109
  %v3440 = vsel %vm3399, %v3343, %v2111
  %v3441 = vsel %vm3399, %v3344, %v2113
  %v3442 = vsel %vm3399, %v3345, %v2115
  %v3443 = vsel %vm3399, %v3346, %v2117
  %v3444 = vsel %vm3399, %v3347, %v2119
  %v3445 = vsel %vm3399, %v3348, %v2121
  %v3446 = vsel %vm3399, %v3349, %v2123
  %v3447 = vsel %vm3399, %v3350, %v2125
  %v3448 = vsel %vm3399, %v3351, %v2127
  %v3449 = vsel %vm3399, %v3352, %v2129
  %v3450 = vsel %vm3399, %v3353, %v2131
  %v3451 = vsel %vm3399, %v3354, %v2133
  %v3452 = vsel %vm3399, %v3355, %v2135
  %v3453 = vsel %vm3399, %v3356, %v2137
  %v3454 = vsel %vm3399, %v3357, %v2139
  %v3455 = vsel %vm3399, %v3358, %v2141
  %v3456 = vsel %vm3399, %v3359, %v2143
  %v3457 = vsel %vm3399, %v3360, %v2145
  %v3458 = vsel %vm3399, %v3361, %v2147
  %v3459 = vsel %vm3399, %v3362, %v2149
  %v3460 = vsel %vm3399, %v3363, %v2151
  %v3461 = vsel %vm3399, %v3364, %v2153
  %v3462 = vsel %vm3399, %v3365, %v2155
  %v3463 = vsel %vm3399, %v3366, %v2157
  %v3464 = vsel %vm3399, %v3367, %v2159
  %v3465 = vsel %vm3399, %v3368, %v2161
  %v3466 = vsel %vm3399, %v3369, %v2163
  %v3467 = vsel %vm3399, %v3370, %v2165
  %v3468 = vsel %vm3399, %v3371, %v2167
  %v3469 = vsel %vm3399, %v3372, %v2169
  %v3470 = vsel %vm3399, %v3373, %v2171
  %v3471 = vsel %vm3399, %v3374, %v2173
  %v3472 = vsel %vm3399, %v3375, %v2175
  %v3473 = vsel %vm3399, %v3376, %v2177
  %v3474 = vsel %vm3399, %v3377, %v2179
  %v3475 = vsel %vm3399, %v3378, %v2181
  %v3476 = vsel %vm3399, %v3379, %v2183
  %v3477 = vsel %vm3399, %v3380, %v2185
  %v3478 = vsel %vm3399, %v3381, %v2187
  %v3479 = vsel %vm3399, %v3382, %v2189
  %v3480 = vsel %vm3399, %v3383, %v2191
  %v3481 = vsel %vm3399, %v3384, %v2193
  %v3482 = vsel %vm3399, %v3385, %v2195
  %v3483 = vsel %vm3399, %v3386, %v2197
  %v3484 = vsel %vm3399, %v3387, %v2199
  %v3485 = vsel %vm3399, %v3388, %v2201
  %v3486 = vsel %vm3399, %v3389, %v2203
  %v3487 = vsel %vm3399, %v3390, %v2205
  %v3488 = vsel %vm3399, %v3391, %v2207
  %v3489 = vsel %vm3399, %v3392, %v2209
  %v3490 = vsel %vm3399, %v3393, %v2211
  %v3491 = vsel %vm3399, %v3394, %v2213
  %v3492 = vsel %vm3399, %v3395, %v2215
  %v3493 = vsel %vm3399, %v3396, %v2217
  %v3494 = vsel %vm3399, %v3397, %v2219
  %v3495 = vsel %vm3399, %v3398, %v2221
  %vm3496 = vcmask 228352
  %v3497 = vsel %vm3496, %v3400, %v2329
  %v3498 = vsel %vm3496, %v3401, %v2331
  %v3499 = vsel %vm3496, %v3402, %v2333
  %v3500 = vsel %vm3496, %v3403, %v2335
  %v3501 = vsel %vm3496, %v3404, %v2337
  %v3502 = vsel %vm3496, %v3405, %v2339
  %v3503 = vsel %vm3496, %v3406, %v2341
  %v3504 = vsel %vm3496, %v3407, %v2343
  %v3505 = vsel %vm3496, %v3408, %v2345
  %v3506 = vsel %vm3496, %v3409, %v2347
  %v3507 = vsel %vm3496, %v3410, %v2349
  %v3508 = vsel %vm3496, %v3411, %v2351
  %v3509 = vsel %vm3496, %v3412, %v2353
  %v3510 = vsel %vm3496, %v3413, %v2355
  %v3511 = vsel %vm3496, %v3414, %v2357
  %v3512 = vsel %vm3496, %v3415, %v2359
  %v3513 = vsel %vm3496, %v3416, %v2361
  %v3514 = vsel %vm3496, %v3417, %v2363
  %v3515 = vsel %vm3496, %v3418, %v2365
  %v3516 = vsel %vm3496, %v3419, %v2367
  %v3517 = vsel %vm3496, %v3420, %v2369
  %v3518 = vsel %vm3496, %v3421, %v2371
  %v3519 = vsel %vm3496, %v3422, %v2373
  %v3520 = vsel %vm3496, %v3423, %v2375
  %v3521 = vsel %vm3496, %v3424, %v2377
  %v3522 = vsel %vm3496, %v3425, %v2379
  %v3523 = vsel %vm3496, %v3426, %v2381
  %v3524 = vsel %vm3496, %v3427, %v2383
  %v3525 = vsel %vm3496, %v3428, %v2385
  %v3526 = vsel %vm3496, %v3429, %v2387
  %v3527 = vsel %vm3496, %v3430, %v2389
  %v3528 = vsel %vm3496, %v3431, %v2391
  %v3529 = vsel %vm3496, %v3432, %v2393
  %v3530 = vsel %vm3496, %v3433, %v2395
  %v3531 = vsel %vm3496, %v3434, %v2397
  %v3532 = vsel %vm3496, %v3435, %v2399
  %v3533 = vsel %vm3496, %v3436, %v2401
  %v3534 = vsel %vm3496, %v3437, %v2403
  %v3535 = vsel %vm3496, %v3438, %v2405
  %v3536 = vsel %vm3496, %v3439, %v2407
  %v3537 = vsel %vm3496, %v3440, %v2409
  %v3538 = vsel %vm3496, %v3441, %v2411
  %v3539 = vsel %vm3496, %v3442, %v2413
  %v3540 = vsel %vm3496, %v3443, %v2415
  %v3541 = vsel %vm3496, %v3444, %v2417
  %v3542 = vsel %vm3496, %v3445, %v2419
  %v3543 = vsel %vm3496, %v3446, %v2421
  %v3544 = vsel %vm3496, %v3447, %v2423
  %v3545 = vsel %vm3496, %v3448, %v2425
  %v3546 = vsel %vm3496, %v3449, %v2427
  %v3547 = vsel %vm3496, %v3450, %v2429
  %v3548 = vsel %vm3496, %v3451, %v2431
  %v3549 = vsel %vm3496, %v3452, %v2433
  %v3550 = vsel %vm3496, %v3453, %v2435
  %v3551 = vsel %vm3496, %v3454, %v2437
  %v3552 = vsel %vm3496, %v3455, %v2439
  %v3553 = vsel %vm3496, %v3456, %v2441
  %v3554 = vsel %vm3496, %v3457, %v2443
  %v3555 = vsel %vm3496, %v3458, %v2445
  %v3556 = vsel %vm3496, %v3459, %v2447
  %v3557 = vsel %vm3496, %v3460, %v2449
  %v3558 = vsel %vm3496, %v3461, %v2451
  %v3559 = vsel %vm3496, %v3462, %v2453
  %v3560 = vsel %vm3496, %v3463, %v2455
  %v3561 = vsel %vm3496, %v3464, %v2457
  %v3562 = vsel %vm3496, %v3465, %v2459
  %v3563 = vsel %vm3496, %v3466, %v2461
  %v3564 = vsel %vm3496, %v3467, %v2463
  %v3565 = vsel %vm3496, %v3468, %v2465
  %v3566 = vsel %vm3496, %v3469, %v2467
  %v3567 = vsel %vm3496, %v3470, %v2469
  %v3568 = vsel %vm3496, %v3471, %v2471
  %v3569 = vsel %vm3496, %v3472, %v2473
  %v3570 = vsel %vm3496, %v3473, %v2475
  %v3571 = vsel %vm3496, %v3474, %v2477
  %v3572 = vsel %vm3496, %v3475, %v2479
  %v3573 = vsel %vm3496, %v3476, %v2481
  %v3574 = vsel %vm3496, %v3477, %v2483
  %v3575 = vsel %vm3496, %v3478, %v2485
  %v3576 = vsel %vm3496, %v3479, %v2487
  %v3577 = vsel %vm3496, %v3480, %v2489
  %v3578 = vsel %vm3496, %v3481, %v2491
  %v3579 = vsel %vm3496, %v3482, %v2493
  %v3580 = vsel %vm3496, %v3483, %v2495
  %v3581 = vsel %vm3496, %v3484, %v2497
  %v3582 = vsel %vm3496, %v3485, %v2499
  %v3583 = vsel %vm3496, %v3486, %v2501
  %v3584 = vsel %vm3496, %v3487, %v2503
  %v3585 = vsel %vm3496, %v3488, %v2505
  %v3586 = vsel %vm3496, %v3489, %v2507
  %v3587 = vsel %vm3496, %v3490, %v2509
  %v3588 = vsel %vm3496, %v3491, %v2511
  %v3589 = vsel %vm3496, %v3492, %v2513
  %v3590 = vsel %vm3496, %v3493, %v2515
  %v3591 = vsel %vm3496, %v3494, %v2517
  %v3592 = vsel %vm3496, %v3495, %v2519
  %vm3593 = vcmask 261120
  %v3594 = vsel %vm3593, %v3497, %v2627
  %v3595 = vsel %vm3593, %v3498, %v2629
  %v3596 = vsel %vm3593, %v3499, %v2631
  %v3597 = vsel %vm3593, %v3500, %v2633
  %v3598 = vsel %vm3593, %v3501, %v2635
  %v3599 = vsel %vm3593, %v3502, %v2637
  %v3600 = vsel %vm3593, %v3503, %v2639
  %v3601 = vsel %vm3593, %v3504, %v2641
  %v3602 = vsel %vm3593, %v3505, %v2643
  %v3603 = vsel %vm3593, %v3506, %v2645
  %v3604 = vsel %vm3593, %v3507, %v2647
  %v3605 = vsel %vm3593, %v3508, %v2649
  %v3606 = vsel %vm3593, %v3509, %v2651
  %v3607 = vsel %vm3593, %v3510, %v2653
  %v3608 = vsel %vm3593, %v3511, %v2655
  %v3609 = vsel %vm3593, %v3512, %v2657
  %v3610 = vsel %vm3593, %v3513, %v2659
  %v3611 = vsel %vm3593, %v3514, %v2661
  %v3612 = vsel %vm3593, %v3515, %v2663
  %v3613 = vsel %vm3593, %v3516, %v2665
  %v3614 = vsel %vm3593, %v3517, %v2667
  %v3615 = vsel %vm3593, %v3518, %v2669
  %v3616 = vsel %vm3593, %v3519, %v2671
  %v3617 = vsel %vm3593, %v3520, %v2673
  %v3618 = vsel %vm3593, %v3521, %v2675
  %v3619 = vsel %vm3593, %v3522, %v2677
  %v3620 = vsel %vm3593, %v3523, %v2679
  %v3621 = vsel %vm3593, %v3524, %v2681
  %v3622 = vsel %vm3593, %v3525, %v2683
  %v3623 = vsel %vm3593, %v3526, %v2685
  %v3624 = vsel %vm3593, %v3527, %v2687
  %v3625 = vsel %vm3593, %v3528, %v2689
  %v3626 = vsel %vm3593, %v3529, %v2691
  %v3627 = vsel %vm3593, %v3530, %v2693
  %v3628 = vsel %vm3593, %v3531, %v2695
  %v3629 = vsel %vm3593, %v3532, %v2697
  %v3630 = vsel %vm3593, %v3533, %v2699
  %v3631 = vsel %vm3593, %v3534, %v2701
  %v3632 = vsel %vm3593, %v3535, %v2703
  %v3633 = vsel %vm3593, %v3536, %v2705
  %v3634 = vsel %vm3593, %v3537, %v2707
  %v3635 = vsel %vm3593, %v3538, %v2709
  %v3636 = vsel %vm3593, %v3539, %v2711
  %v3637 = vsel %vm3593, %v3540, %v2713
  %v3638 = vsel %vm3593, %v3541, %v2715
  %v3639 = vsel %vm3593, %v3542, %v2717
  %v3640 = vsel %vm3593, %v3543, %v2719
  %v3641 = vsel %vm3593, %v3544, %v2721
  %v3642 = vsel %vm3593, %v3545, %v2723
  %v3643 = vsel %vm3593, %v3546, %v2725
  %v3644 = vsel %vm3593, %v3547, %v2727
  %v3645 = vsel %vm3593, %v3548, %v2729
  %v3646 = vsel %vm3593, %v3549, %v2731
  %v3647 = vsel %vm3593, %v3550, %v2733
  %v3648 = vsel %vm3593, %v3551, %v2735
  %v3649 = vsel %vm3593, %v3552, %v2737
  %v3650 = vsel %vm3593, %v3553, %v2739
  %v3651 = vsel %vm3593, %v3554, %v2741
  %v3652 = vsel %vm3593, %v3555, %v2743
  %v3653 = vsel %vm3593, %v3556, %v2745
  %v3654 = vsel %vm3593, %v3557, %v2747
  %v3655 = vsel %vm3593, %v3558, %v2749
  %v3656 = vsel %vm3593, %v3559, %v2751
  %v3657 = vsel %vm3593, %v3560, %v2753
  %v3658 = vsel %vm3593, %v3561, %v2755
  %v3659 = vsel %vm3593, %v3562, %v2757
  %v3660 = vsel %vm3593, %v3563, %v2759
  %v3661 = vsel %vm3593, %v3564, %v2761
  %v3662 = vsel %vm3593, %v3565, %v2763
  %v3663 = vsel %vm3593, %v3566, %v2765
  %v3664 = vsel %vm3593, %v3567, %v2767
  %v3665 = vsel %vm3593, %v3568, %v2769
  %v3666 = vsel %vm3593, %v3569, %v2771
  %v3667 = vsel %vm3593, %v3570, %v2773
  %v3668 = vsel %vm3593, %v3571, %v2775
  %v3669 = vsel %vm3593, %v3572, %v2777
  %v3670 = vsel %vm3593, %v3573, %v2779
  %v3671 = vsel %vm3593, %v3574, %v2781
  %v3672 = vsel %vm3593, %v3575, %v2783
  %v3673 = vsel %vm3593, %v3576, %v2785
  %v3674 = vsel %vm3593, %v3577, %v2787
  %v3675 = vsel %vm3593, %v3578, %v2789
  %v3676 = vsel %vm3593, %v3579, %v2791
  %v3677 = vsel %vm3593, %v3580, %v2793
  %v3678 = vsel %vm3593, %v3581, %v2795
  %v3679 = vsel %vm3593, %v3582, %v2797
  %v3680 = vsel %vm3593, %v3583, %v2799
  %v3681 = vsel %vm3593, %v3584, %v2801
  %v3682 = vsel %vm3593, %v3585, %v2803
  %v3683 = vsel %vm3593, %v3586, %v2805
  %v3684 = vsel %vm3593, %v3587, %v2807
  %v3685 = vsel %vm3593, %v3588, %v2809
  %v3686 = vsel %vm3593, %v3589, %v2811
  %v3687 = vsel %vm3593, %v3590, %v2813
  %v3688 = vsel %vm3593, %v3591, %v2815
  %v3689 = vsel %vm3593, %v3592, %v2817
  %v3786 = vrot.slane %v3594, 1
  %v3787 = vrot.slane %v3595, 1
  %v3788 = vsel %vm236, %v3786, %v3787
  %v3789 = vrot.slane %v3596, 1
  %v3790 = vsel %vm236, %v3787, %v3789
  %v3791 = vrot.slane %v3597, 1
  %v3792 = vrot.slane %v3598, 1
  %v3793 = vsel %vm236, %v3791, %v3792
  %v3794 = vrot.slane %v3599, 1
  %v3795 = vsel %vm236, %v3792, %v3794
  %v3796 = vrot.slane %v3600, 1
  %v3797 = vrot.slane %v3601, 1
  %v3798 = vsel %vm236, %v3796, %v3797
  %v3799 = vrot.slane %v3602, 1
  %v3800 = vsel %vm236, %v3797, %v3799
  %v3801 = vrot.slane %v3603, 1
  %v3802 = vrot.slane %v3604, 1
  %v3803 = vsel %vm236, %v3801, %v3802
  %v3804 = vrot.slane %v3605, 1
  %v3805 = vsel %vm236, %v3802, %v3804
  %v3806 = vrot.slane %v3606, 1
  %v3807 = vrot.slane %v3607, 1
  %v3808 = vsel %vm236, %v3806, %v3807
  %v3809 = vrot.slane %v3608, 1
  %v3810 = vsel %vm236, %v3807, %v3809
  %v3811 = vrot.slane %v3609, 1
  %v3812 = vrot.slane %v3610, 1
  %v3813 = vsel %vm236, %v3811, %v3812
  %v3814 = vrot.slane %v3611, 1
  %v3815 = vsel %vm236, %v3812, %v3814
  %v3816 = vrot.slane %v3612, 1
  %v3817 = vrot.slane %v3613, 1
  %v3818 = vsel %vm236, %v3816, %v3817
  %v3819 = vrot.slane %v3614, 1
  %v3820 = vsel %vm236, %v3817, %v3819
  %v3821 = vrot.slane %v3615, 1
  %v3822 = vrot.slane %v3616, 1
  %v3823 = vsel %vm236, %v3821, %v3822
  %v3824 = vrot.slane %v3617, 1
  %v3825 = vsel %vm236, %v3822, %v3824
  %v3826 = vrot.slane %v3618, 1
  %v3827 = vrot.slane %v3619, 1
  %v3828 = vsel %vm236, %v3826, %v3827
  %v3829 = vrot.slane %v3620, 1
  %v3830 = vsel %vm236, %v3827, %v3829
  %v3831 = vrot.slane %v3621, 1
  %v3832 = vrot.slane %v3622, 1
  %v3833 = vsel %vm236, %v3831, %v3832
  %v3834 = vrot.slane %v3623, 1
  %v3835 = vsel %vm236, %v3832, %v3834
  %v3836 = vrot.slane %v3624, 1
  %v3837 = vrot.slane %v3625, 1
  %v3838 = vsel %vm236, %v3836, %v3837
  %v3839 = vrot.slane %v3626, 1
  %v3840 = vsel %vm236, %v3837, %v3839
  %v3841 = vrot.slane %v3627, 1
  %v3842 = vrot.slane %v3628, 1
  %v3843 = vsel %vm236, %v3841, %v3842
  %v3844 = vrot.slane %v3629, 1
  %v3845 = vsel %vm236, %v3842, %v3844
  %v3846 = vrot.slane %v3630, 1
  %v3847 = vrot.slane %v3631, 1
  %v3848 = vsel %vm236, %v3846, %v3847
  %v3849 = vrot.slane %v3632, 1
  %v3850 = vsel %vm236, %v3847, %v3849
  %v3851 = vrot.slane %v3633, 1
  %v3852 = vrot.slane %v3634, 1
  %v3853 = vsel %vm236, %v3851, %v3852
  %v3854 = vrot.slane %v3635, 1
  %v3855 = vsel %vm236, %v3852, %v3854
  %v3856 = vrot.slane %v3636, 1
  %v3857 = vrot.slane %v3637, 1
  %v3858 = vsel %vm236, %v3856, %v3857
  %v3859 = vrot.slane %v3638, 1
  %v3860 = vsel %vm236, %v3857, %v3859
  %v3861 = vrot.slane %v3639, 1
  %v3862 = vrot.slane %v3640, 1
  %v3863 = vsel %vm236, %v3861, %v3862
  %v3864 = vrot.slane %v3641, 1
  %v3865 = vsel %vm236, %v3862, %v3864
  %v3866 = vrot.slane %v3642, 1
  %v3867 = vrot.slane %v3643, 1
  %v3868 = vsel %vm236, %v3866, %v3867
  %v3869 = vrot.slane %v3644, 1
  %v3870 = vsel %vm236, %v3867, %v3869
  %v3871 = vrot.slane %v3645, 1
  %v3872 = vrot.slane %v3646, 1
  %v3873 = vsel %vm236, %v3871, %v3872
  %v3874 = vrot.slane %v3647, 1
  %v3875 = vsel %vm236, %v3872, %v3874
  %v3876 = vrot.slane %v3648, 1
  %v3877 = vrot.slane %v3649, 1
  %v3878 = vsel %vm236, %v3876, %v3877
  %v3879 = vrot.slane %v3650, 1
  %v3880 = vsel %vm236, %v3877, %v3879
  %v3881 = vrot.slane %v3651, 1
  %v3882 = vrot.slane %v3652, 1
  %v3883 = vsel %vm236, %v3881, %v3882
  %v3884 = vrot.slane %v3653, 1
  %v3885 = vsel %vm236, %v3882, %v3884
  %v3886 = vrot.slane %v3654, 1
  %v3887 = vrot.slane %v3655, 1
  %v3888 = vsel %vm236, %v3886, %v3887
  %v3889 = vrot.slane %v3656, 1
  %v3890 = vsel %vm236, %v3887, %v3889
  %v3891 = vrot.slane %v3657, 1
  %v3892 = vrot.slane %v3658, 1
  %v3893 = vsel %vm236, %v3891, %v3892
  %v3894 = vrot.slane %v3659, 1
  %v3895 = vsel %vm236, %v3892, %v3894
  %v3896 = vrot.slane %v3660, 1
  %v3897 = vrot.slane %v3661, 1
  %v3898 = vsel %vm236, %v3896, %v3897
  %v3899 = vrot.slane %v3662, 1
  %v3900 = vsel %vm236, %v3897, %v3899
  %v3901 = vrot.slane %v3663, 1
  %v3902 = vrot.slane %v3664, 1
  %v3903 = vsel %vm236, %v3901, %v3902
  %v3904 = vrot.slane %v3665, 1
  %v3905 = vsel %vm236, %v3902, %v3904
  %v3906 = vrot.slane %v3666, 1
  %v3907 = vrot.slane %v3667, 1
  %v3908 = vsel %vm236, %v3906, %v3907
  %v3909 = vrot.slane %v3668, 1
  %v3910 = vsel %vm236, %v3907, %v3909
  %v3911 = vrot.slane %v3669, 1
  %v3912 = vrot.slane %v3670, 1
  %v3913 = vsel %vm236, %v3911, %v3912
  %v3914 = vrot.slane %v3671, 1
  %v3915 = vsel %vm236, %v3912, %v3914
  %v3916 = vrot.slane %v3672, 1
  %v3917 = vrot.slane %v3673, 1
  %v3918 = vsel %vm236, %v3916, %v3917
  %v3919 = vrot.slane %v3674, 1
  %v3920 = vsel %vm236, %v3917, %v3919
  %v3921 = vrot.slane %v3675, 1
  %v3922 = vrot.slane %v3676, 1
  %v3923 = vsel %vm236, %v3921, %v3922
  %v3924 = vrot.slane %v3677, 1
  %v3925 = vsel %vm236, %v3922, %v3924
  %v3926 = vrot.slane %v3678, 1
  %v3927 = vrot.slane %v3679, 1
  %v3928 = vsel %vm236, %v3926, %v3927
  %v3929 = vrot.slane %v3680, 1
  %v3930 = vsel %vm236, %v3927, %v3929
  %v3931 = vrot.slane %v3681, 1
  %v3932 = vrot.slane %v3682, 1
  %v3933 = vsel %vm236, %v3931, %v3932
  %v3934 = vrot.slane %v3683, 1
  %v3935 = vsel %vm236, %v3932, %v3934
  %v3936 = vrot.slane %v3684, 1
  %v3937 = vrot.slane %v3685, 1
  %v3938 = vsel %vm236, %v3936, %v3937
  %v3939 = vrot.slane %v3686, 1
  %v3940 = vsel %vm236, %v3937, %v3939
  %v3941 = vrot.slane %v3687, 1
  %v3942 = vrot.slane %v3688, 1
  %v3943 = vsel %vm236, %v3941, %v3942
  %v3944 = vrot.slane %v3689, 1
  %v3945 = vsel %vm236, %v3942, %v3944
  %v3952 = vrot.slane %v14, 2
  %v3953 = vrot.slane %v15, 2
  %v3954 = vsel %vm685, %v3952, %v3953
  %v3955 = vrot.slane %v16, 2
  %v3956 = vsel %vm685, %v3953, %v3955
  %v3957 = vrot.slane %v74, 2
  %v3958 = vrot.slane %v75, 2
  %v3959 = vsel %vm685, %v3957, %v3958
  %v3960 = vrot.slane %v76, 2
  %v3961 = vsel %vm685, %v3958, %v3960
  %3962 = vrot.lane.b32.xlu0 %v3954, 4
  %v3963 = vpop.permute.xlu0 %3962
  %3964 = vrot.lane.b32.xlu0 %v3956, 4
  %v3965 = vpop.permute.xlu0 %3964
  %3966 = vrot.lane.b32.xlu0 %v688, 4
  %v3967 = vpop.permute.xlu0 %3966
  %3968 = vrot.lane.b32.xlu0 %v690, 4
  %v3969 = vpop.permute.xlu0 %3968
  %3970 = vrot.lane.b32.xlu0 %v693, 4
  %v3971 = vpop.permute.xlu0 %3970
  %3972 = vrot.lane.b32.xlu0 %v695, 4
  %v3973 = vpop.permute.xlu0 %3972
  %3974 = vrot.lane.b32.xlu0 %v698, 4
  %v3975 = vpop.permute.xlu0 %3974
  %3976 = vrot.lane.b32.xlu0 %v700, 4
  %v3977 = vpop.permute.xlu0 %3976
  %3978 = vrot.lane.b32.xlu0 %v703, 4
  %v3979 = vpop.permute.xlu0 %3978
  %3980 = vrot.lane.b32.xlu0 %v705, 4
  %v3981 = vpop.permute.xlu0 %3980
  %3982 = vrot.lane.b32.xlu0 %v708, 4
  %v3983 = vpop.permute.xlu0 %3982
  %3984 = vrot.lane.b32.xlu0 %v710, 4
  %v3985 = vpop.permute.xlu0 %3984
  %3986 = vrot.lane.b32.xlu0 %v713, 4
  %v3987 = vpop.permute.xlu0 %3986
  %3988 = vrot.lane.b32.xlu0 %v715, 4
  %v3989 = vpop.permute.xlu0 %3988
  %3990 = vrot.lane.b32.xlu0 %v718, 4
  %v3991 = vpop.permute.xlu0 %3990
  %3992 = vrot.lane.b32.xlu0 %v720, 4
  %v3993 = vpop.permute.xlu0 %3992
  %3994 = vrot.lane.b32.xlu0 %v723, 4
  %v3995 = vpop.permute.xlu0 %3994
  %3996 = vrot.lane.b32.xlu0 %v725, 4
  %v3997 = vpop.permute.xlu0 %3996
  %3998 = vrot.lane.b32.xlu0 %v728, 4
  %v3999 = vpop.permute.xlu0 %3998
  %4000 = vrot.lane.b32.xlu0 %v730, 4
  %v4001 = vpop.permute.xlu0 %4000
  %4002 = vrot.lane.b32.xlu0 %v733, 4
  %v4003 = vpop.permute.xlu0 %4002
  %4004 = vrot.lane.b32.xlu0 %v735, 4
  %v4005 = vpop.permute.xlu0 %4004
  %4006 = vrot.lane.b32.xlu0 %v738, 4
  %v4007 = vpop.permute.xlu0 %4006
  %4008 = vrot.lane.b32.xlu0 %v740, 4
  %v4009 = vpop.permute.xlu0 %4008
  %4010 = vrot.lane.b32.xlu0 %v743, 4
  %v4011 = vpop.permute.xlu0 %4010
  %4012 = vrot.lane.b32.xlu0 %v745, 4
  %v4013 = vpop.permute.xlu0 %4012
  %4014 = vrot.lane.b32.xlu0 %v748, 4
  %v4015 = vpop.permute.xlu0 %4014
  %4016 = vrot.lane.b32.xlu0 %v750, 4
  %v4017 = vpop.permute.xlu0 %4016
  %4018 = vrot.lane.b32.xlu0 %v753, 4
  %v4019 = vpop.permute.xlu0 %4018
  %4020 = vrot.lane.b32.xlu0 %v755, 4
  %v4021 = vpop.permute.xlu0 %4020
  %4022 = vrot.lane.b32.xlu0 %v758, 4
  %v4023 = vpop.permute.xlu0 %4022
  %4024 = vrot.lane.b32.xlu0 %v760, 4
  %v4025 = vpop.permute.xlu0 %4024
  %4026 = vrot.lane.b32.xlu0 %v3959, 4
  %v4027 = vpop.permute.xlu0 %4026
  %4028 = vrot.lane.b32.xlu0 %v3961, 4
  %v4029 = vpop.permute.xlu0 %4028
  %4030 = vrot.lane.b32.xlu0 %v768, 4
  %v4031 = vpop.permute.xlu0 %4030
  %4032 = vrot.lane.b32.xlu0 %v770, 4
  %v4033 = vpop.permute.xlu0 %4032
  %4034 = vrot.lane.b32.xlu0 %v773, 4
  %v4035 = vpop.permute.xlu0 %4034
  %4036 = vrot.lane.b32.xlu0 %v775, 4
  %v4037 = vpop.permute.xlu0 %4036
  %4038 = vrot.lane.b32.xlu0 %v778, 4
  %v4039 = vpop.permute.xlu0 %4038
  %4040 = vrot.lane.b32.xlu0 %v780, 4
  %v4041 = vpop.permute.xlu0 %4040
  %4042 = vrot.lane.b32.xlu0 %v783, 4
  %v4043 = vpop.permute.xlu0 %4042
  %4044 = vrot.lane.b32.xlu0 %v785, 4
  %v4045 = vpop.permute.xlu0 %4044
  %4046 = vrot.lane.b32.xlu0 %v788, 4
  %v4047 = vpop.permute.xlu0 %4046
  %4048 = vrot.lane.b32.xlu0 %v790, 4
  %v4049 = vpop.permute.xlu0 %4048
  %4050 = vrot.lane.b32.xlu0 %v793, 4
  %v4051 = vpop.permute.xlu0 %4050
  %4052 = vrot.lane.b32.xlu0 %v795, 4
  %v4053 = vpop.permute.xlu0 %4052
  %4054 = vrot.lane.b32.xlu0 %v798, 4
  %v4055 = vpop.permute.xlu0 %4054
  %4056 = vrot.lane.b32.xlu0 %v800, 4
  %v4057 = vpop.permute.xlu0 %4056
  %4058 = vrot.lane.b32.xlu0 %v803, 4
  %v4059 = vpop.permute.xlu0 %4058
  %4060 = vrot.lane.b32.xlu0 %v805, 4
  %v4061 = vpop.permute.xlu0 %4060
  %4062 = vrot.lane.b32.xlu0 %v808, 4
  %v4063 = vpop.permute.xlu0 %4062
  %4064 = vrot.lane.b32.xlu0 %v810, 4
  %v4065 = vpop.permute.xlu0 %4064
  %4066 = vrot.lane.b32.xlu0 %v813, 4
  %v4067 = vpop.permute.xlu0 %4066
  %4068 = vrot.lane.b32.xlu0 %v815, 4
  %v4069 = vpop.permute.xlu0 %4068
  %4070 = vrot.lane.b32.xlu0 %v818, 4
  %v4071 = vpop.permute.xlu0 %4070
  %4072 = vrot.lane.b32.xlu0 %v820, 4
  %v4073 = vpop.permute.xlu0 %4072
  %4074 = vrot.lane.b32.xlu0 %v823, 4
  %v4075 = vpop.permute.xlu0 %4074
  %4076 = vrot.lane.b32.xlu0 %v825, 4
  %v4077 = vpop.permute.xlu0 %4076
  %4078 = vrot.lane.b32.xlu0 %v828, 4
  %v4079 = vpop.permute.xlu0 %4078
  %4080 = vrot.lane.b32.xlu0 %v830, 4
  %v4081 = vpop.permute.xlu0 %4080
  %4082 = vrot.lane.b32.xlu0 %v833, 4
  %v4083 = vpop.permute.xlu0 %4082
  %4084 = vrot.lane.b32.xlu0 %v835, 4
  %v4085 = vpop.permute.xlu0 %4084
  %4086 = vrot.lane.b32.xlu0 %v838, 4
  %v4087 = vpop.permute.xlu0 %4086
  %4088 = vrot.lane.b32.xlu0 %v840, 4
  %v4089 = vpop.permute.xlu0 %4088
  %vm4154 = vcmask 1043456
  %v4155 = vrot.slane %v14, 4
  %v4156 = vrot.slane %v15, 4
  %v4157 = vsel %vm4154, %v4155, %v4156
  %v4158 = vrot.slane %v16, 4
  %v4159 = vsel %vm4154, %v4156, %v4158
  %v4160 = vrot.slane %v17, 4
  %v4161 = vrot.slane %v18, 4
  %v4162 = vsel %vm4154, %v4160, %v4161
  %v4163 = vrot.slane %v19, 4
  %v4164 = vsel %vm4154, %v4161, %v4163
  %v4165 = vrot.slane %v20, 4
  %v4166 = vrot.slane %v21, 4
  %v4167 = vsel %vm4154, %v4165, %v4166
  %v4168 = vrot.slane %v22, 4
  %v4169 = vsel %vm4154, %v4166, %v4168
  %v4170 = vrot.slane %v23, 4
  %v4171 = vrot.slane %v24, 4
  %v4172 = vsel %vm4154, %v4170, %v4171
  %v4173 = vrot.slane %v25, 4
  %v4174 = vsel %vm4154, %v4171, %v4173
  %v4175 = vrot.slane %v26, 4
  %v4176 = vrot.slane %v27, 4
  %v4177 = vsel %vm4154, %v4175, %v4176
  %v4178 = vrot.slane %v28, 4
  %v4179 = vsel %vm4154, %v4176, %v4178
  %v4180 = vrot.slane %v29, 4
  %v4181 = vrot.slane %v30, 4
  %v4182 = vsel %vm4154, %v4180, %v4181
  %v4183 = vrot.slane %v31, 4
  %v4184 = vsel %vm4154, %v4181, %v4183
  %v4185 = vrot.slane %v32, 4
  %v4186 = vrot.slane %v33, 4
  %v4187 = vsel %vm4154, %v4185, %v4186
  %v4188 = vrot.slane %v34, 4
  %v4189 = vsel %vm4154, %v4186, %v4188
  %v4190 = vrot.slane %v35, 4
  %v4191 = vrot.slane %v36, 4
  %v4192 = vsel %vm4154, %v4190, %v4191
  %v4193 = vrot.slane %v37, 4
  %v4194 = vsel %vm4154, %v4191, %v4193
  %v4195 = vrot.slane %v38, 4
  %v4196 = vrot.slane %v39, 4
  %v4197 = vsel %vm4154, %v4195, %v4196
  %v4198 = vrot.slane %v40, 4
  %v4199 = vsel %vm4154, %v4196, %v4198
  %v4200 = vrot.slane %v41, 4
  %v4201 = vrot.slane %v42, 4
  %v4202 = vsel %vm4154, %v4200, %v4201
  %v4203 = vrot.slane %v43, 4
  %v4204 = vsel %vm4154, %v4201, %v4203
  %v4205 = vrot.slane %v44, 4
  %v4206 = vrot.slane %v45, 4
  %v4207 = vsel %vm4154, %v4205, %v4206
  %v4208 = vrot.slane %v46, 4
  %v4209 = vsel %vm4154, %v4206, %v4208
  %v4210 = vrot.slane %v47, 4
  %v4211 = vrot.slane %v48, 4
  %v4212 = vsel %vm4154, %v4210, %v4211
  %v4213 = vrot.slane %v49, 4
  %v4214 = vsel %vm4154, %v4211, %v4213
  %v4215 = vrot.slane %v50, 4
  %v4216 = vrot.slane %v51, 4
  %v4217 = vsel %vm4154, %v4215, %v4216
  %v4218 = vrot.slane %v52, 4
  %v4219 = vsel %vm4154, %v4216, %v4218
  %v4220 = vrot.slane %v53, 4
  %v4221 = vrot.slane %v54, 4
  %v4222 = vsel %vm4154, %v4220, %v4221
  %v4223 = vrot.slane %v55, 4
  %v4224 = vsel %vm4154, %v4221, %v4223
  %v4225 = vrot.slane %v56, 4
  %v4226 = vrot.slane %v57, 4
  %v4227 = vsel %vm4154, %v4225, %v4226
  %v4228 = vrot.slane %v58, 4
  %v4229 = vsel %vm4154, %v4226, %v4228
  %v4230 = vrot.slane %v59, 4
  %v4231 = vrot.slane %v60, 4
  %v4232 = vsel %vm4154, %v4230, %v4231
  %v4233 = vrot.slane %v61, 4
  %v4234 = vsel %vm4154, %v4231, %v4233
  %v4235 = vrot.slane %v74, 4
  %v4236 = vrot.slane %v75, 4
  %v4237 = vsel %vm4154, %v4235, %v4236
  %v4238 = vrot.slane %v76, 4
  %v4239 = vsel %vm4154, %v4236, %v4238
  %v4240 = vrot.slane %v77, 4
  %v4241 = vrot.slane %v78, 4
  %v4242 = vsel %vm4154, %v4240, %v4241
  %v4243 = vrot.slane %v79, 4
  %v4244 = vsel %vm4154, %v4241, %v4243
  %v4245 = vrot.slane %v80, 4
  %v4246 = vrot.slane %v81, 4
  %v4247 = vsel %vm4154, %v4245, %v4246
  %v4248 = vrot.slane %v82, 4
  %v4249 = vsel %vm4154, %v4246, %v4248
  %v4250 = vrot.slane %v83, 4
  %v4251 = vrot.slane %v84, 4
  %v4252 = vsel %vm4154, %v4250, %v4251
  %v4253 = vrot.slane %v85, 4
  %v4254 = vsel %vm4154, %v4251, %v4253
  %v4255 = vrot.slane %v86, 4
  %v4256 = vrot.slane %v87, 4
  %v4257 = vsel %vm4154, %v4255, %v4256
  %v4258 = vrot.slane %v88, 4
  %v4259 = vsel %vm4154, %v4256, %v4258
  %v4260 = vrot.slane %v89, 4
  %v4261 = vrot.slane %v90, 4
  %v4262 = vsel %vm4154, %v4260, %v4261
  %v4263 = vrot.slane %v91, 4
  %v4264 = vsel %vm4154, %v4261, %v4263
  %v4265 = vrot.slane %v92, 4
  %v4266 = vrot.slane %v93, 4
  %v4267 = vsel %vm4154, %v4265, %v4266
  %v4268 = vrot.slane %v94, 4
  %v4269 = vsel %vm4154, %v4266, %v4268
  %v4270 = vrot.slane %v95, 4
  %v4271 = vrot.slane %v96, 4
  %v4272 = vsel %vm4154, %v4270, %v4271
  %v4273 = vrot.slane %v97, 4
  %v4274 = vsel %vm4154, %v4271, %v4273
  %v4275 = vrot.slane %v98, 4
  %v4276 = vrot.slane %v99, 4
  %v4277 = vsel %vm4154, %v4275, %v4276
  %v4278 = vrot.slane %v100, 4
  %v4279 = vsel %vm4154, %v4276, %v4278
  %v4280 = vrot.slane %v101, 4
  %v4281 = vrot.slane %v102, 4
  %v4282 = vsel %vm4154, %v4280, %v4281
  %v4283 = vrot.slane %v103, 4
  %v4284 = vsel %vm4154, %v4281, %v4283
  %v4285 = vrot.slane %v104, 4
  %v4286 = vrot.slane %v105, 4
  %v4287 = vsel %vm4154, %v4285, %v4286
  %v4288 = vrot.slane %v106, 4
  %v4289 = vsel %vm4154, %v4286, %v4288
  %v4290 = vrot.slane %v107, 4
  %v4291 = vrot.slane %v108, 4
  %v4292 = vsel %vm4154, %v4290, %v4291
  %v4293 = vrot.slane %v109, 4
  %v4294 = vsel %vm4154, %v4291, %v4293
  %v4295 = vrot.slane %v110, 4
  %v4296 = vrot.slane %v111, 4
  %v4297 = vsel %vm4154, %v4295, %v4296
  %v4298 = vrot.slane %v112, 4
  %v4299 = vsel %vm4154, %v4296, %v4298
  %v4300 = vrot.slane %v113, 4
  %v4301 = vrot.slane %v114, 4
  %v4302 = vsel %vm4154, %v4300, %v4301
  %v4303 = vrot.slane %v115, 4
  %v4304 = vsel %vm4154, %v4301, %v4303
  %v4305 = vrot.slane %v116, 4
  %v4306 = vrot.slane %v117, 4
  %v4307 = vsel %vm4154, %v4305, %v4306
  %v4308 = vrot.slane %v118, 4
  %v4309 = vsel %vm4154, %v4306, %v4308
  %v4310 = vrot.slane %v119, 4
  %v4311 = vrot.slane %v120, 4
  %v4312 = vsel %vm4154, %v4310, %v4311
  %v4313 = vrot.slane %v121, 4
  %v4314 = vsel %vm4154, %v4311, %v4313
  %4315 = vrot.lane.b32.xlu0 %v4157, 8
  %v4316 = vpop.permute.xlu0 %4315
  %4317 = vrot.lane.b32.xlu0 %v4159, 8
  %v4318 = vpop.permute.xlu0 %4317
  %4319 = vrot.lane.b32.xlu0 %v4162, 8
  %v4320 = vpop.permute.xlu0 %4319
  %4321 = vrot.lane.b32.xlu0 %v4164, 8
  %v4322 = vpop.permute.xlu0 %4321
  %4323 = vrot.lane.b32.xlu0 %v4167, 8
  %v4324 = vpop.permute.xlu0 %4323
  %4325 = vrot.lane.b32.xlu0 %v4169, 8
  %v4326 = vpop.permute.xlu0 %4325
  %4327 = vrot.lane.b32.xlu0 %v4172, 8
  %v4328 = vpop.permute.xlu0 %4327
  %4329 = vrot.lane.b32.xlu0 %v4174, 8
  %v4330 = vpop.permute.xlu0 %4329
  %4331 = vrot.lane.b32.xlu0 %v4177, 8
  %v4332 = vpop.permute.xlu0 %4331
  %4333 = vrot.lane.b32.xlu0 %v4179, 8
  %v4334 = vpop.permute.xlu0 %4333
  %4335 = vrot.lane.b32.xlu0 %v4182, 8
  %v4336 = vpop.permute.xlu0 %4335
  %4337 = vrot.lane.b32.xlu0 %v4184, 8
  %v4338 = vpop.permute.xlu0 %4337
  %4339 = vrot.lane.b32.xlu0 %v4187, 8
  %v4340 = vpop.permute.xlu0 %4339
  %4341 = vrot.lane.b32.xlu0 %v4189, 8
  %v4342 = vpop.permute.xlu0 %4341
  %4343 = vrot.lane.b32.xlu0 %v4192, 8
  %v4344 = vpop.permute.xlu0 %4343
  %4345 = vrot.lane.b32.xlu0 %v4194, 8
  %v4346 = vpop.permute.xlu0 %4345
  %4347 = vrot.lane.b32.xlu0 %v4197, 8
  %v4348 = vpop.permute.xlu0 %4347
  %4349 = vrot.lane.b32.xlu0 %v4199, 8
  %v4350 = vpop.permute.xlu0 %4349
  %4351 = vrot.lane.b32.xlu0 %v4202, 8
  %v4352 = vpop.permute.xlu0 %4351
  %4353 = vrot.lane.b32.xlu0 %v4204, 8
  %v4354 = vpop.permute.xlu0 %4353
  %4355 = vrot.lane.b32.xlu0 %v4207, 8
  %v4356 = vpop.permute.xlu0 %4355
  %4357 = vrot.lane.b32.xlu0 %v4209, 8
  %v4358 = vpop.permute.xlu0 %4357
  %4359 = vrot.lane.b32.xlu0 %v4212, 8
  %v4360 = vpop.permute.xlu0 %4359
  %4361 = vrot.lane.b32.xlu0 %v4214, 8
  %v4362 = vpop.permute.xlu0 %4361
  %4363 = vrot.lane.b32.xlu0 %v4217, 8
  %v4364 = vpop.permute.xlu0 %4363
  %4365 = vrot.lane.b32.xlu0 %v4219, 8
  %v4366 = vpop.permute.xlu0 %4365
  %4367 = vrot.lane.b32.xlu0 %v4222, 8
  %v4368 = vpop.permute.xlu0 %4367
  %4369 = vrot.lane.b32.xlu0 %v4224, 8
  %v4370 = vpop.permute.xlu0 %4369
  %4371 = vrot.lane.b32.xlu0 %v4227, 8
  %v4372 = vpop.permute.xlu0 %4371
  %4373 = vrot.lane.b32.xlu0 %v4229, 8
  %v4374 = vpop.permute.xlu0 %4373
  %4375 = vrot.lane.b32.xlu0 %v4232, 8
  %v4376 = vpop.permute.xlu0 %4375
  %4377 = vrot.lane.b32.xlu0 %v4234, 8
  %v4378 = vpop.permute.xlu0 %4377
  %4379 = vrot.lane.b32.xlu0 %v4237, 8
  %v4380 = vpop.permute.xlu0 %4379
  %4381 = vrot.lane.b32.xlu0 %v4239, 8
  %v4382 = vpop.permute.xlu0 %4381
  %4383 = vrot.lane.b32.xlu0 %v4242, 8
  %v4384 = vpop.permute.xlu0 %4383
  %4385 = vrot.lane.b32.xlu0 %v4244, 8
  %v4386 = vpop.permute.xlu0 %4385
  %4387 = vrot.lane.b32.xlu0 %v4247, 8
  %v4388 = vpop.permute.xlu0 %4387
  %4389 = vrot.lane.b32.xlu0 %v4249, 8
  %v4390 = vpop.permute.xlu0 %4389
  %4391 = vrot.lane.b32.xlu0 %v4252, 8
  %v4392 = vpop.permute.xlu0 %4391
  %4393 = vrot.lane.b32.xlu0 %v4254, 8
  %v4394 = vpop.permute.xlu0 %4393
  %4395 = vrot.lane.b32.xlu0 %v4257, 8
  %v4396 = vpop.permute.xlu0 %4395
  %4397 = vrot.lane.b32.xlu0 %v4259, 8
  %v4398 = vpop.permute.xlu0 %4397
  %4399 = vrot.lane.b32.xlu0 %v4262, 8
  %v4400 = vpop.permute.xlu0 %4399
  %4401 = vrot.lane.b32.xlu0 %v4264, 8
  %v4402 = vpop.permute.xlu0 %4401
  %4403 = vrot.lane.b32.xlu0 %v4267, 8
  %v4404 = vpop.permute.xlu0 %4403
  %4405 = vrot.lane.b32.xlu0 %v4269, 8
  %v4406 = vpop.permute.xlu0 %4405
  %4407 = vrot.lane.b32.xlu0 %v4272, 8
  %v4408 = vpop.permute.xlu0 %4407
  %4409 = vrot.lane.b32.xlu0 %v4274, 8
  %v4410 = vpop.permute.xlu0 %4409
  %4411 = vrot.lane.b32.xlu0 %v4277, 8
  %v4412 = vpop.permute.xlu0 %4411
  %4413 = vrot.lane.b32.xlu0 %v4279, 8
  %v4414 = vpop.permute.xlu0 %4413
  %4415 = vrot.lane.b32.xlu0 %v4282, 8
  %v4416 = vpop.permute.xlu0 %4415
  %4417 = vrot.lane.b32.xlu0 %v4284, 8
  %v4418 = vpop.permute.xlu0 %4417
  %4419 = vrot.lane.b32.xlu0 %v4287, 8
  %v4420 = vpop.permute.xlu0 %4419
  %4421 = vrot.lane.b32.xlu0 %v4289, 8
  %v4422 = vpop.permute.xlu0 %4421
  %4423 = vrot.lane.b32.xlu0 %v4292, 8
  %v4424 = vpop.permute.xlu0 %4423
  %4425 = vrot.lane.b32.xlu0 %v4294, 8
  %v4426 = vpop.permute.xlu0 %4425
  %4427 = vrot.lane.b32.xlu0 %v4297, 8
  %v4428 = vpop.permute.xlu0 %4427
  %4429 = vrot.lane.b32.xlu0 %v4299, 8
  %v4430 = vpop.permute.xlu0 %4429
  %4431 = vrot.lane.b32.xlu0 %v4302, 8
  %v4432 = vpop.permute.xlu0 %4431
  %4433 = vrot.lane.b32.xlu0 %v4304, 8
  %v4434 = vpop.permute.xlu0 %4433
  %4435 = vrot.lane.b32.xlu0 %v4307, 8
  %v4436 = vpop.permute.xlu0 %4435
  %4437 = vrot.lane.b32.xlu0 %v4309, 8
  %v4438 = vpop.permute.xlu0 %4437
  %4439 = vrot.lane.b32.xlu0 %v4312, 8
  %v4440 = vpop.permute.xlu0 %4439
  %4441 = vrot.lane.b32.xlu0 %v4314, 8
  %v4442 = vpop.permute.xlu0 %4441
  %4507 = vrot.lane.b32.xlu0 %v693, 16
  %v4508 = vpop.permute.xlu0 %4507
  %4509 = vrot.lane.b32.xlu0 %v695, 16
  %v4510 = vpop.permute.xlu0 %4509
  %4511 = vrot.lane.b32.xlu0 %v698, 16
  %v4512 = vpop.permute.xlu0 %4511
  %4513 = vrot.lane.b32.xlu0 %v700, 16
  %v4514 = vpop.permute.xlu0 %4513
  %4515 = vrot.lane.b32.xlu0 %v703, 16
  %v4516 = vpop.permute.xlu0 %4515
  %4517 = vrot.lane.b32.xlu0 %v705, 16
  %v4518 = vpop.permute.xlu0 %4517
  %4519 = vrot.lane.b32.xlu0 %v708, 16
  %v4520 = vpop.permute.xlu0 %4519
  %4521 = vrot.lane.b32.xlu0 %v710, 16
  %v4522 = vpop.permute.xlu0 %4521
  %4523 = vrot.lane.b32.xlu0 %v713, 16
  %v4524 = vpop.permute.xlu0 %4523
  %4525 = vrot.lane.b32.xlu0 %v715, 16
  %v4526 = vpop.permute.xlu0 %4525
  %4527 = vrot.lane.b32.xlu0 %v718, 16
  %v4528 = vpop.permute.xlu0 %4527
  %4529 = vrot.lane.b32.xlu0 %v720, 16
  %v4530 = vpop.permute.xlu0 %4529
  %4531 = vrot.lane.b32.xlu0 %v723, 16
  %v4532 = vpop.permute.xlu0 %4531
  %4533 = vrot.lane.b32.xlu0 %v725, 16
  %v4534 = vpop.permute.xlu0 %4533
  %4535 = vrot.lane.b32.xlu0 %v728, 16
  %v4536 = vpop.permute.xlu0 %4535
  %4537 = vrot.lane.b32.xlu0 %v730, 16
  %v4538 = vpop.permute.xlu0 %4537
  %4539 = vrot.lane.b32.xlu0 %v733, 16
  %v4540 = vpop.permute.xlu0 %4539
  %4541 = vrot.lane.b32.xlu0 %v735, 16
  %v4542 = vpop.permute.xlu0 %4541
  %4543 = vrot.lane.b32.xlu0 %v738, 16
  %v4544 = vpop.permute.xlu0 %4543
  %4545 = vrot.lane.b32.xlu0 %v740, 16
  %v4546 = vpop.permute.xlu0 %4545
  %4547 = vrot.lane.b32.xlu0 %v743, 16
  %v4548 = vpop.permute.xlu0 %4547
  %4549 = vrot.lane.b32.xlu0 %v745, 16
  %v4550 = vpop.permute.xlu0 %4549
  %4551 = vrot.lane.b32.xlu0 %v748, 16
  %v4552 = vpop.permute.xlu0 %4551
  %4553 = vrot.lane.b32.xlu0 %v750, 16
  %v4554 = vpop.permute.xlu0 %4553
  %4555 = vrot.lane.b32.xlu0 %v753, 16
  %v4556 = vpop.permute.xlu0 %4555
  %4557 = vrot.lane.b32.xlu0 %v755, 16
  %v4558 = vpop.permute.xlu0 %4557
  %4559 = vrot.lane.b32.xlu0 %v758, 16
  %v4560 = vpop.permute.xlu0 %4559
  %4561 = vrot.lane.b32.xlu0 %v760, 16
  %v4562 = vpop.permute.xlu0 %4561
  %4563 = vrot.lane.b32.xlu0 %v763, 16
  %v4564 = vpop.permute.xlu0 %4563
  %4565 = vrot.lane.b32.xlu0 %v765, 16
  %v4566 = vpop.permute.xlu0 %4565
  %4567 = vrot.lane.b32.xlu0 %v1728, 16
  %v4568 = vpop.permute.xlu0 %4567
  %4569 = vrot.lane.b32.xlu0 %v1730, 16
  %v4570 = vpop.permute.xlu0 %4569
  %4571 = vrot.lane.b32.xlu0 %v773, 16
  %v4572 = vpop.permute.xlu0 %4571
  %4573 = vrot.lane.b32.xlu0 %v775, 16
  %v4574 = vpop.permute.xlu0 %4573
  %4575 = vrot.lane.b32.xlu0 %v778, 16
  %v4576 = vpop.permute.xlu0 %4575
  %4577 = vrot.lane.b32.xlu0 %v780, 16
  %v4578 = vpop.permute.xlu0 %4577
  %4579 = vrot.lane.b32.xlu0 %v783, 16
  %v4580 = vpop.permute.xlu0 %4579
  %4581 = vrot.lane.b32.xlu0 %v785, 16
  %v4582 = vpop.permute.xlu0 %4581
  %4583 = vrot.lane.b32.xlu0 %v788, 16
  %v4584 = vpop.permute.xlu0 %4583
  %4585 = vrot.lane.b32.xlu0 %v790, 16
  %v4586 = vpop.permute.xlu0 %4585
  %4587 = vrot.lane.b32.xlu0 %v793, 16
  %v4588 = vpop.permute.xlu0 %4587
  %4589 = vrot.lane.b32.xlu0 %v795, 16
  %v4590 = vpop.permute.xlu0 %4589
  %4591 = vrot.lane.b32.xlu0 %v798, 16
  %v4592 = vpop.permute.xlu0 %4591
  %4593 = vrot.lane.b32.xlu0 %v800, 16
  %v4594 = vpop.permute.xlu0 %4593
  %4595 = vrot.lane.b32.xlu0 %v803, 16
  %v4596 = vpop.permute.xlu0 %4595
  %4597 = vrot.lane.b32.xlu0 %v805, 16
  %v4598 = vpop.permute.xlu0 %4597
  %4599 = vrot.lane.b32.xlu0 %v808, 16
  %v4600 = vpop.permute.xlu0 %4599
  %4601 = vrot.lane.b32.xlu0 %v810, 16
  %v4602 = vpop.permute.xlu0 %4601
  %4603 = vrot.lane.b32.xlu0 %v813, 16
  %v4604 = vpop.permute.xlu0 %4603
  %4605 = vrot.lane.b32.xlu0 %v815, 16
  %v4606 = vpop.permute.xlu0 %4605
  %4607 = vrot.lane.b32.xlu0 %v818, 16
  %v4608 = vpop.permute.xlu0 %4607
  %4609 = vrot.lane.b32.xlu0 %v820, 16
  %v4610 = vpop.permute.xlu0 %4609
  %4611 = vrot.lane.b32.xlu0 %v823, 16
  %v4612 = vpop.permute.xlu0 %4611
  %4613 = vrot.lane.b32.xlu0 %v825, 16
  %v4614 = vpop.permute.xlu0 %4613
  %4615 = vrot.lane.b32.xlu0 %v828, 16
  %v4616 = vpop.permute.xlu0 %4615
  %4617 = vrot.lane.b32.xlu0 %v830, 16
  %v4618 = vpop.permute.xlu0 %4617
  %4619 = vrot.lane.b32.xlu0 %v833, 16
  %v4620 = vpop.permute.xlu0 %4619
  %4621 = vrot.lane.b32.xlu0 %v835, 16
  %v4622 = vpop.permute.xlu0 %4621
  %4623 = vrot.lane.b32.xlu0 %v838, 16
  %v4624 = vpop.permute.xlu0 %4623
  %4625 = vrot.lane.b32.xlu0 %v840, 16
  %v4626 = vpop.permute.xlu0 %4625
  %4627 = vrot.lane.b32.xlu0 %v843, 16
  %v4628 = vpop.permute.xlu0 %4627
  %4629 = vrot.lane.b32.xlu0 %v845, 16
  %v4630 = vpop.permute.xlu0 %4629
  %4631 = vrot.lane.b32.xlu0 %v1733, 16
  %v4632 = vpop.permute.xlu0 %4631
  %4633 = vrot.lane.b32.xlu0 %v1735, 16
  %v4634 = vpop.permute.xlu0 %4633
  %v4699 = vrot.slane %v62, 4
  %v4700 = vrot.slane %v63, 4
  %v4701 = vsel %vm4154, %v4699, %v4700
  %v4702 = vrot.slane %v64, 4
  %v4703 = vsel %vm4154, %v4700, %v4702
  %v4704 = vrot.slane %v65, 4
  %v4705 = vrot.slane %v66, 4
  %v4706 = vsel %vm4154, %v4704, %v4705
  %v4707 = vrot.slane %v67, 4
  %v4708 = vsel %vm4154, %v4705, %v4707
  %v4709 = vrot.slane %v122, 4
  %v4710 = vrot.slane %v123, 4
  %v4711 = vsel %vm4154, %v4709, %v4710
  %v4712 = vrot.slane %v124, 4
  %v4713 = vsel %vm4154, %v4710, %v4712
  %v4714 = vrot.slane %v125, 4
  %v4715 = vrot.slane %v126, 4
  %v4716 = vsel %vm4154, %v4714, %v4715
  %v4717 = vrot.slane %v127, 4
  %v4718 = vsel %vm4154, %v4715, %v4717
  %4719 = vrot.lane.b32.xlu0 %v4167, 20
  %v4720 = vpop.permute.xlu0 %4719
  %4721 = vrot.lane.b32.xlu0 %v4169, 20
  %v4722 = vpop.permute.xlu0 %4721
  %4723 = vrot.lane.b32.xlu0 %v4172, 20
  %v4724 = vpop.permute.xlu0 %4723
  %4725 = vrot.lane.b32.xlu0 %v4174, 20
  %v4726 = vpop.permute.xlu0 %4725
  %4727 = vrot.lane.b32.xlu0 %v4177, 20
  %v4728 = vpop.permute.xlu0 %4727
  %4729 = vrot.lane.b32.xlu0 %v4179, 20
  %v4730 = vpop.permute.xlu0 %4729
  %4731 = vrot.lane.b32.xlu0 %v4182, 20
  %v4732 = vpop.permute.xlu0 %4731
  %4733 = vrot.lane.b32.xlu0 %v4184, 20
  %v4734 = vpop.permute.xlu0 %4733
  %4735 = vrot.lane.b32.xlu0 %v4187, 20
  %v4736 = vpop.permute.xlu0 %4735
  %4737 = vrot.lane.b32.xlu0 %v4189, 20
  %v4738 = vpop.permute.xlu0 %4737
  %4739 = vrot.lane.b32.xlu0 %v4192, 20
  %v4740 = vpop.permute.xlu0 %4739
  %4741 = vrot.lane.b32.xlu0 %v4194, 20
  %v4742 = vpop.permute.xlu0 %4741
  %4743 = vrot.lane.b32.xlu0 %v4197, 20
  %v4744 = vpop.permute.xlu0 %4743
  %4745 = vrot.lane.b32.xlu0 %v4199, 20
  %v4746 = vpop.permute.xlu0 %4745
  %4747 = vrot.lane.b32.xlu0 %v4202, 20
  %v4748 = vpop.permute.xlu0 %4747
  %4749 = vrot.lane.b32.xlu0 %v4204, 20
  %v4750 = vpop.permute.xlu0 %4749
  %4751 = vrot.lane.b32.xlu0 %v4207, 20
  %v4752 = vpop.permute.xlu0 %4751
  %4753 = vrot.lane.b32.xlu0 %v4209, 20
  %v4754 = vpop.permute.xlu0 %4753
  %4755 = vrot.lane.b32.xlu0 %v4212, 20
  %v4756 = vpop.permute.xlu0 %4755
  %4757 = vrot.lane.b32.xlu0 %v4214, 20
  %v4758 = vpop.permute.xlu0 %4757
  %4759 = vrot.lane.b32.xlu0 %v4217, 20
  %v4760 = vpop.permute.xlu0 %4759
  %4761 = vrot.lane.b32.xlu0 %v4219, 20
  %v4762 = vpop.permute.xlu0 %4761
  %4763 = vrot.lane.b32.xlu0 %v4222, 20
  %v4764 = vpop.permute.xlu0 %4763
  %4765 = vrot.lane.b32.xlu0 %v4224, 20
  %v4766 = vpop.permute.xlu0 %4765
  %4767 = vrot.lane.b32.xlu0 %v4227, 20
  %v4768 = vpop.permute.xlu0 %4767
  %4769 = vrot.lane.b32.xlu0 %v4229, 20
  %v4770 = vpop.permute.xlu0 %4769
  %4771 = vrot.lane.b32.xlu0 %v4232, 20
  %v4772 = vpop.permute.xlu0 %4771
  %4773 = vrot.lane.b32.xlu0 %v4234, 20
  %v4774 = vpop.permute.xlu0 %4773
  %4775 = vrot.lane.b32.xlu0 %v4701, 20
  %v4776 = vpop.permute.xlu0 %4775
  %4777 = vrot.lane.b32.xlu0 %v4703, 20
  %v4778 = vpop.permute.xlu0 %4777
  %4779 = vrot.lane.b32.xlu0 %v4706, 20
  %v4780 = vpop.permute.xlu0 %4779
  %4781 = vrot.lane.b32.xlu0 %v4708, 20
  %v4782 = vpop.permute.xlu0 %4781
  %4783 = vrot.lane.b32.xlu0 %v4247, 20
  %v4784 = vpop.permute.xlu0 %4783
  %4785 = vrot.lane.b32.xlu0 %v4249, 20
  %v4786 = vpop.permute.xlu0 %4785
  %4787 = vrot.lane.b32.xlu0 %v4252, 20
  %v4788 = vpop.permute.xlu0 %4787
  %4789 = vrot.lane.b32.xlu0 %v4254, 20
  %v4790 = vpop.permute.xlu0 %4789
  %4791 = vrot.lane.b32.xlu0 %v4257, 20
  %v4792 = vpop.permute.xlu0 %4791
  %4793 = vrot.lane.b32.xlu0 %v4259, 20
  %v4794 = vpop.permute.xlu0 %4793
  %4795 = vrot.lane.b32.xlu0 %v4262, 20
  %v4796 = vpop.permute.xlu0 %4795
  %4797 = vrot.lane.b32.xlu0 %v4264, 20
  %v4798 = vpop.permute.xlu0 %4797
  %4799 = vrot.lane.b32.xlu0 %v4267, 20
  %v4800 = vpop.permute.xlu0 %4799
  %4801 = vrot.lane.b32.xlu0 %v4269, 20
  %v4802 = vpop.permute.xlu0 %4801
  %4803 = vrot.lane.b32.xlu0 %v4272, 20
  %v4804 = vpop.permute.xlu0 %4803
  %4805 = vrot.lane.b32.xlu0 %v4274, 20
  %v4806 = vpop.permute.xlu0 %4805
  %4807 = vrot.lane.b32.xlu0 %v4277, 20
  %v4808 = vpop.permute.xlu0 %4807
  %4809 = vrot.lane.b32.xlu0 %v4279, 20
  %v4810 = vpop.permute.xlu0 %4809
  %4811 = vrot.lane.b32.xlu0 %v4282, 20
  %v4812 = vpop.permute.xlu0 %4811
  %4813 = vrot.lane.b32.xlu0 %v4284, 20
  %v4814 = vpop.permute.xlu0 %4813
  %4815 = vrot.lane.b32.xlu0 %v4287, 20
  %v4816 = vpop.permute.xlu0 %4815
  %4817 = vrot.lane.b32.xlu0 %v4289, 20
  %v4818 = vpop.permute.xlu0 %4817
  %4819 = vrot.lane.b32.xlu0 %v4292, 20
  %v4820 = vpop.permute.xlu0 %4819
  %4821 = vrot.lane.b32.xlu0 %v4294, 20
  %v4822 = vpop.permute.xlu0 %4821
  %4823 = vrot.lane.b32.xlu0 %v4297, 20
  %v4824 = vpop.permute.xlu0 %4823
  %4825 = vrot.lane.b32.xlu0 %v4299, 20
  %v4826 = vpop.permute.xlu0 %4825
  %4827 = vrot.lane.b32.xlu0 %v4302, 20
  %v4828 = vpop.permute.xlu0 %4827
  %4829 = vrot.lane.b32.xlu0 %v4304, 20
  %v4830 = vpop.permute.xlu0 %4829
  %4831 = vrot.lane.b32.xlu0 %v4307, 20
  %v4832 = vpop.permute.xlu0 %4831
  %4833 = vrot.lane.b32.xlu0 %v4309, 20
  %v4834 = vpop.permute.xlu0 %4833
  %4835 = vrot.lane.b32.xlu0 %v4312, 20
  %v4836 = vpop.permute.xlu0 %4835
  %4837 = vrot.lane.b32.xlu0 %v4314, 20
  %v4838 = vpop.permute.xlu0 %4837
  %4839 = vrot.lane.b32.xlu0 %v4711, 20
  %v4840 = vpop.permute.xlu0 %4839
  %4841 = vrot.lane.b32.xlu0 %v4713, 20
  %v4842 = vpop.permute.xlu0 %4841
  %4843 = vrot.lane.b32.xlu0 %v4716, 20
  %v4844 = vpop.permute.xlu0 %4843
  %4845 = vrot.lane.b32.xlu0 %v4718, 20
  %v4846 = vpop.permute.xlu0 %4845
  %4915 = vrot.lane.b32.xlu0 %v71, 24
  %v4916 = vpop.permute.xlu0 %4915
  %4917 = vrot.lane.b32.xlu0 %v72, 24
  %v4918 = vpop.permute.xlu0 %4917
  %4919 = vrot.lane.b32.xlu0 %v131, 24
  %v4920 = vpop.permute.xlu0 %4919
  %4921 = vrot.lane.b32.xlu0 %v132, 24
  %v4922 = vpop.permute.xlu0 %4921
  %v4929 = vrot.slane %v71, 2
  %v4930 = vrot.slane %v72, 2
  %v4931 = vsel %vm685, %v4929, %v4930
  %v4932 = vrot.slane %v73, 2
  %v4933 = vsel %vm685, %v4930, %v4932
  %v4934 = vrot.slane %v131, 2
  %v4935 = vrot.slane %v132, 2
  %v4936 = vsel %vm685, %v4934, %v4935
  %v4937 = vrot.slane %v133, 2
  %v4938 = vsel %vm685, %v4935, %v4937
  %4939 = vrot.lane.b32.xlu0 %v703, 28
  %v4940 = vpop.permute.xlu0 %4939
  %4941 = vrot.lane.b32.xlu0 %v705, 28
  %v4942 = vpop.permute.xlu0 %4941
  %4943 = vrot.lane.b32.xlu0 %v708, 28
  %v4944 = vpop.permute.xlu0 %4943
  %4945 = vrot.lane.b32.xlu0 %v710, 28
  %v4946 = vpop.permute.xlu0 %4945
  %4947 = vrot.lane.b32.xlu0 %v713, 28
  %v4948 = vpop.permute.xlu0 %4947
  %4949 = vrot.lane.b32.xlu0 %v715, 28
  %v4950 = vpop.permute.xlu0 %4949
  %4951 = vrot.lane.b32.xlu0 %v718, 28
  %v4952 = vpop.permute.xlu0 %4951
  %4953 = vrot.lane.b32.xlu0 %v720, 28
  %v4954 = vpop.permute.xlu0 %4953
  %4955 = vrot.lane.b32.xlu0 %v723, 28
  %v4956 = vpop.permute.xlu0 %4955
  %4957 = vrot.lane.b32.xlu0 %v725, 28
  %v4958 = vpop.permute.xlu0 %4957
  %4959 = vrot.lane.b32.xlu0 %v728, 28
  %v4960 = vpop.permute.xlu0 %4959
  %4961 = vrot.lane.b32.xlu0 %v730, 28
  %v4962 = vpop.permute.xlu0 %4961
  %4963 = vrot.lane.b32.xlu0 %v733, 28
  %v4964 = vpop.permute.xlu0 %4963
  %4965 = vrot.lane.b32.xlu0 %v735, 28
  %v4966 = vpop.permute.xlu0 %4965
  %4967 = vrot.lane.b32.xlu0 %v738, 28
  %v4968 = vpop.permute.xlu0 %4967
  %4969 = vrot.lane.b32.xlu0 %v740, 28
  %v4970 = vpop.permute.xlu0 %4969
  %4971 = vrot.lane.b32.xlu0 %v743, 28
  %v4972 = vpop.permute.xlu0 %4971
  %4973 = vrot.lane.b32.xlu0 %v745, 28
  %v4974 = vpop.permute.xlu0 %4973
  %4975 = vrot.lane.b32.xlu0 %v748, 28
  %v4976 = vpop.permute.xlu0 %4975
  %4977 = vrot.lane.b32.xlu0 %v750, 28
  %v4978 = vpop.permute.xlu0 %4977
  %4979 = vrot.lane.b32.xlu0 %v753, 28
  %v4980 = vpop.permute.xlu0 %4979
  %4981 = vrot.lane.b32.xlu0 %v755, 28
  %v4982 = vpop.permute.xlu0 %4981
  %4983 = vrot.lane.b32.xlu0 %v758, 28
  %v4984 = vpop.permute.xlu0 %4983
  %4985 = vrot.lane.b32.xlu0 %v760, 28
  %v4986 = vpop.permute.xlu0 %4985
  %4987 = vrot.lane.b32.xlu0 %v763, 28
  %v4988 = vpop.permute.xlu0 %4987
  %4989 = vrot.lane.b32.xlu0 %v765, 28
  %v4990 = vpop.permute.xlu0 %4989
  %4991 = vrot.lane.b32.xlu0 %v1728, 28
  %v4992 = vpop.permute.xlu0 %4991
  %4993 = vrot.lane.b32.xlu0 %v1730, 28
  %v4994 = vpop.permute.xlu0 %4993
  %4995 = vrot.lane.b32.xlu0 %v2618, 28
  %v4996 = vpop.permute.xlu0 %4995
  %4997 = vrot.lane.b32.xlu0 %v2620, 28
  %v4998 = vpop.permute.xlu0 %4997
  %4999 = vrot.lane.b32.xlu0 %v4931, 28
  %v5000 = vpop.permute.xlu0 %4999
  %5001 = vrot.lane.b32.xlu0 %v4933, 28
  %v5002 = vpop.permute.xlu0 %5001
  %5003 = vrot.lane.b32.xlu0 %v783, 28
  %v5004 = vpop.permute.xlu0 %5003
  %5005 = vrot.lane.b32.xlu0 %v785, 28
  %v5006 = vpop.permute.xlu0 %5005
  %5007 = vrot.lane.b32.xlu0 %v788, 28
  %v5008 = vpop.permute.xlu0 %5007
  %5009 = vrot.lane.b32.xlu0 %v790, 28
  %v5010 = vpop.permute.xlu0 %5009
  %5011 = vrot.lane.b32.xlu0 %v793, 28
  %v5012 = vpop.permute.xlu0 %5011
  %5013 = vrot.lane.b32.xlu0 %v795, 28
  %v5014 = vpop.permute.xlu0 %5013
  %5015 = vrot.lane.b32.xlu0 %v798, 28
  %v5016 = vpop.permute.xlu0 %5015
  %5017 = vrot.lane.b32.xlu0 %v800, 28
  %v5018 = vpop.permute.xlu0 %5017
  %5019 = vrot.lane.b32.xlu0 %v803, 28
  %v5020 = vpop.permute.xlu0 %5019
  %5021 = vrot.lane.b32.xlu0 %v805, 28
  %v5022 = vpop.permute.xlu0 %5021
  %5023 = vrot.lane.b32.xlu0 %v808, 28
  %v5024 = vpop.permute.xlu0 %5023
  %5025 = vrot.lane.b32.xlu0 %v810, 28
  %v5026 = vpop.permute.xlu0 %5025
  %5027 = vrot.lane.b32.xlu0 %v813, 28
  %v5028 = vpop.permute.xlu0 %5027
  %5029 = vrot.lane.b32.xlu0 %v815, 28
  %v5030 = vpop.permute.xlu0 %5029
  %5031 = vrot.lane.b32.xlu0 %v818, 28
  %v5032 = vpop.permute.xlu0 %5031
  %5033 = vrot.lane.b32.xlu0 %v820, 28
  %v5034 = vpop.permute.xlu0 %5033
  %5035 = vrot.lane.b32.xlu0 %v823, 28
  %v5036 = vpop.permute.xlu0 %5035
  %5037 = vrot.lane.b32.xlu0 %v825, 28
  %v5038 = vpop.permute.xlu0 %5037
  %5039 = vrot.lane.b32.xlu0 %v828, 28
  %v5040 = vpop.permute.xlu0 %5039
  %5041 = vrot.lane.b32.xlu0 %v830, 28
  %v5042 = vpop.permute.xlu0 %5041
  %5043 = vrot.lane.b32.xlu0 %v833, 28
  %v5044 = vpop.permute.xlu0 %5043
  %5045 = vrot.lane.b32.xlu0 %v835, 28
  %v5046 = vpop.permute.xlu0 %5045
  %5047 = vrot.lane.b32.xlu0 %v838, 28
  %v5048 = vpop.permute.xlu0 %5047
  %5049 = vrot.lane.b32.xlu0 %v840, 28
  %v5050 = vpop.permute.xlu0 %5049
  %5051 = vrot.lane.b32.xlu0 %v843, 28
  %v5052 = vpop.permute.xlu0 %5051
  %5053 = vrot.lane.b32.xlu0 %v845, 28
  %v5054 = vpop.permute.xlu0 %5053
  %5055 = vrot.lane.b32.xlu0 %v1733, 28
  %v5056 = vpop.permute.xlu0 %5055
  %5057 = vrot.lane.b32.xlu0 %v1735, 28
  %v5058 = vpop.permute.xlu0 %5057
  %5059 = vrot.lane.b32.xlu0 %v2623, 28
  %v5060 = vpop.permute.xlu0 %5059
  %5061 = vrot.lane.b32.xlu0 %v2625, 28
  %v5062 = vpop.permute.xlu0 %5061
  %5063 = vrot.lane.b32.xlu0 %v4936, 28
  %v5064 = vpop.permute.xlu0 %5063
  %5065 = vrot.lane.b32.xlu0 %v4938, 28
  %v5066 = vpop.permute.xlu0 %5065
  %v5131 = vrot.slane %v68, 4
  %v5132 = vrot.slane %v69, 4
  %v5133 = vsel %vm4154, %v5131, %v5132
  %v5134 = vrot.slane %v70, 4
  %v5135 = vsel %vm4154, %v5132, %v5134
  %v5136 = vrot.slane %v71, 4
  %v5137 = vrot.slane %v72, 4
  %v5138 = vsel %vm4154, %v5136, %v5137
  %v5139 = vrot.slane %v73, 4
  %v5140 = vsel %vm4154, %v5137, %v5139
  %v5141 = vrot.slane %v128, 4
  %v5142 = vrot.slane %v129, 4
  %v5143 = vsel %vm4154, %v5141, %v5142
  %v5144 = vrot.slane %v130, 4
  %v5145 = vsel %vm4154, %v5142, %v5144
  %v5146 = vrot.slane %v131, 4
  %v5147 = vrot.slane %v132, 4
  %v5148 = vsel %vm4154, %v5146, %v5147
  %v5149 = vrot.slane %v133, 4
  %v5150 = vsel %vm4154, %v5147, %v5149
  %5151 = vrot.lane.b32.xlu0 %v4177, 32
  %v5152 = vpop.permute.xlu0 %5151
  %5153 = vrot.lane.b32.xlu0 %v4179, 32
  %v5154 = vpop.permute.xlu0 %5153
  %5155 = vrot.lane.b32.xlu0 %v4182, 32
  %v5156 = vpop.permute.xlu0 %5155
  %5157 = vrot.lane.b32.xlu0 %v4184, 32
  %v5158 = vpop.permute.xlu0 %5157
  %5159 = vrot.lane.b32.xlu0 %v4187, 32
  %v5160 = vpop.permute.xlu0 %5159
  %5161 = vrot.lane.b32.xlu0 %v4189, 32
  %v5162 = vpop.permute.xlu0 %5161
  %5163 = vrot.lane.b32.xlu0 %v4192, 32
  %v5164 = vpop.permute.xlu0 %5163
  %5165 = vrot.lane.b32.xlu0 %v4194, 32
  %v5166 = vpop.permute.xlu0 %5165
  %5167 = vrot.lane.b32.xlu0 %v4197, 32
  %v5168 = vpop.permute.xlu0 %5167
  %5169 = vrot.lane.b32.xlu0 %v4199, 32
  %v5170 = vpop.permute.xlu0 %5169
  %5171 = vrot.lane.b32.xlu0 %v4202, 32
  %v5172 = vpop.permute.xlu0 %5171
  %5173 = vrot.lane.b32.xlu0 %v4204, 32
  %v5174 = vpop.permute.xlu0 %5173
  %5175 = vrot.lane.b32.xlu0 %v4207, 32
  %v5176 = vpop.permute.xlu0 %5175
  %5177 = vrot.lane.b32.xlu0 %v4209, 32
  %v5178 = vpop.permute.xlu0 %5177
  %5179 = vrot.lane.b32.xlu0 %v4212, 32
  %v5180 = vpop.permute.xlu0 %5179
  %5181 = vrot.lane.b32.xlu0 %v4214, 32
  %v5182 = vpop.permute.xlu0 %5181
  %5183 = vrot.lane.b32.xlu0 %v4217, 32
  %v5184 = vpop.permute.xlu0 %5183
  %5185 = vrot.lane.b32.xlu0 %v4219, 32
  %v5186 = vpop.permute.xlu0 %5185
  %5187 = vrot.lane.b32.xlu0 %v4222, 32
  %v5188 = vpop.permute.xlu0 %5187
  %5189 = vrot.lane.b32.xlu0 %v4224, 32
  %v5190 = vpop.permute.xlu0 %5189
  %5191 = vrot.lane.b32.xlu0 %v4227, 32
  %v5192 = vpop.permute.xlu0 %5191
  %5193 = vrot.lane.b32.xlu0 %v4229, 32
  %v5194 = vpop.permute.xlu0 %5193
  %5195 = vrot.lane.b32.xlu0 %v4232, 32
  %v5196 = vpop.permute.xlu0 %5195
  %5197 = vrot.lane.b32.xlu0 %v4234, 32
  %v5198 = vpop.permute.xlu0 %5197
  %5199 = vrot.lane.b32.xlu0 %v4701, 32
  %v5200 = vpop.permute.xlu0 %5199
  %5201 = vrot.lane.b32.xlu0 %v4703, 32
  %v5202 = vpop.permute.xlu0 %5201
  %5203 = vrot.lane.b32.xlu0 %v4706, 32
  %v5204 = vpop.permute.xlu0 %5203
  %5205 = vrot.lane.b32.xlu0 %v4708, 32
  %v5206 = vpop.permute.xlu0 %5205
  %5207 = vrot.lane.b32.xlu0 %v5133, 32
  %v5208 = vpop.permute.xlu0 %5207
  %5209 = vrot.lane.b32.xlu0 %v5135, 32
  %v5210 = vpop.permute.xlu0 %5209
  %5211 = vrot.lane.b32.xlu0 %v5138, 32
  %v5212 = vpop.permute.xlu0 %5211
  %5213 = vrot.lane.b32.xlu0 %v5140, 32
  %v5214 = vpop.permute.xlu0 %5213
  %5215 = vrot.lane.b32.xlu0 %v4257, 32
  %v5216 = vpop.permute.xlu0 %5215
  %5217 = vrot.lane.b32.xlu0 %v4259, 32
  %v5218 = vpop.permute.xlu0 %5217
  %5219 = vrot.lane.b32.xlu0 %v4262, 32
  %v5220 = vpop.permute.xlu0 %5219
  %5221 = vrot.lane.b32.xlu0 %v4264, 32
  %v5222 = vpop.permute.xlu0 %5221
  %5223 = vrot.lane.b32.xlu0 %v4267, 32
  %v5224 = vpop.permute.xlu0 %5223
  %5225 = vrot.lane.b32.xlu0 %v4269, 32
  %v5226 = vpop.permute.xlu0 %5225
  %5227 = vrot.lane.b32.xlu0 %v4272, 32
  %v5228 = vpop.permute.xlu0 %5227
  %5229 = vrot.lane.b32.xlu0 %v4274, 32
  %v5230 = vpop.permute.xlu0 %5229
  %5231 = vrot.lane.b32.xlu0 %v4277, 32
  %v5232 = vpop.permute.xlu0 %5231
  %5233 = vrot.lane.b32.xlu0 %v4279, 32
  %v5234 = vpop.permute.xlu0 %5233
  %5235 = vrot.lane.b32.xlu0 %v4282, 32
  %v5236 = vpop.permute.xlu0 %5235
  %5237 = vrot.lane.b32.xlu0 %v4284, 32
  %v5238 = vpop.permute.xlu0 %5237
  %5239 = vrot.lane.b32.xlu0 %v4287, 32
  %v5240 = vpop.permute.xlu0 %5239
  %5241 = vrot.lane.b32.xlu0 %v4289, 32
  %v5242 = vpop.permute.xlu0 %5241
  %5243 = vrot.lane.b32.xlu0 %v4292, 32
  %v5244 = vpop.permute.xlu0 %5243
  %5245 = vrot.lane.b32.xlu0 %v4294, 32
  %v5246 = vpop.permute.xlu0 %5245
  %5247 = vrot.lane.b32.xlu0 %v4297, 32
  %v5248 = vpop.permute.xlu0 %5247
  %5249 = vrot.lane.b32.xlu0 %v4299, 32
  %v5250 = vpop.permute.xlu0 %5249
  %5251 = vrot.lane.b32.xlu0 %v4302, 32
  %v5252 = vpop.permute.xlu0 %5251
  %5253 = vrot.lane.b32.xlu0 %v4304, 32
  %v5254 = vpop.permute.xlu0 %5253
  %5255 = vrot.lane.b32.xlu0 %v4307, 32
  %v5256 = vpop.permute.xlu0 %5255
  %5257 = vrot.lane.b32.xlu0 %v4309, 32
  %v5258 = vpop.permute.xlu0 %5257
  %5259 = vrot.lane.b32.xlu0 %v4312, 32
  %v5260 = vpop.permute.xlu0 %5259
  %5261 = vrot.lane.b32.xlu0 %v4314, 32
  %v5262 = vpop.permute.xlu0 %5261
  %5263 = vrot.lane.b32.xlu0 %v4711, 32
  %v5264 = vpop.permute.xlu0 %5263
  %5265 = vrot.lane.b32.xlu0 %v4713, 32
  %v5266 = vpop.permute.xlu0 %5265
  %5267 = vrot.lane.b32.xlu0 %v4716, 32
  %v5268 = vpop.permute.xlu0 %5267
  %5269 = vrot.lane.b32.xlu0 %v4718, 32
  %v5270 = vpop.permute.xlu0 %5269
  %5271 = vrot.lane.b32.xlu0 %v5143, 32
  %v5272 = vpop.permute.xlu0 %5271
  %5273 = vrot.lane.b32.xlu0 %v5145, 32
  %v5274 = vpop.permute.xlu0 %5273
  %5275 = vrot.lane.b32.xlu0 %v5148, 32
  %v5276 = vpop.permute.xlu0 %5275
  %5277 = vrot.lane.b32.xlu0 %v5150, 32
  %v5278 = vpop.permute.xlu0 %5277
  %v5343 = vsel %vm2914, %v14, %v3963
  %v5344 = vsel %vm2914, %v15, %v3965
  %v5345 = vsel %vm2914, %v17, %v3967
  %v5346 = vsel %vm2914, %v18, %v3969
  %v5347 = vsel %vm2914, %v20, %v3971
  %v5348 = vsel %vm2914, %v21, %v3973
  %v5349 = vsel %vm2914, %v23, %v3975
  %v5350 = vsel %vm2914, %v24, %v3977
  %v5351 = vsel %vm2914, %v26, %v3979
  %v5352 = vsel %vm2914, %v27, %v3981
  %v5353 = vsel %vm2914, %v29, %v3983
  %v5354 = vsel %vm2914, %v30, %v3985
  %v5355 = vsel %vm2914, %v32, %v3987
  %v5356 = vsel %vm2914, %v33, %v3989
  %v5357 = vsel %vm2914, %v35, %v3991
  %v5358 = vsel %vm2914, %v36, %v3993
  %v5359 = vsel %vm2914, %v38, %v3995
  %v5360 = vsel %vm2914, %v39, %v3997
  %v5361 = vsel %vm2914, %v41, %v3999
  %v5362 = vsel %vm2914, %v42, %v4001
  %v5363 = vsel %vm2914, %v44, %v4003
  %v5364 = vsel %vm2914, %v45, %v4005
  %v5365 = vsel %vm2914, %v47, %v4007
  %v5366 = vsel %vm2914, %v48, %v4009
  %v5367 = vsel %vm2914, %v50, %v4011
  %v5368 = vsel %vm2914, %v51, %v4013
  %v5369 = vsel %vm2914, %v53, %v4015
  %v5370 = vsel %vm2914, %v54, %v4017
  %v5371 = vsel %vm2914, %v56, %v4019
  %v5372 = vsel %vm2914, %v57, %v4021
  %v5373 = vsel %vm2914, %v59, %v4023
  %v5374 = vsel %vm2914, %v60, %v4025
  %v5375 = vsel %vm2914, %v74, %v4027
  %v5376 = vsel %vm2914, %v75, %v4029
  %v5377 = vsel %vm2914, %v77, %v4031
  %v5378 = vsel %vm2914, %v78, %v4033
  %v5379 = vsel %vm2914, %v80, %v4035
  %v5380 = vsel %vm2914, %v81, %v4037
  %v5381 = vsel %vm2914, %v83, %v4039
  %v5382 = vsel %vm2914, %v84, %v4041
  %v5383 = vsel %vm2914, %v86, %v4043
  %v5384 = vsel %vm2914, %v87, %v4045
  %v5385 = vsel %vm2914, %v89, %v4047
  %v5386 = vsel %vm2914, %v90, %v4049
  %v5387 = vsel %vm2914, %v92, %v4051
  %v5388 = vsel %vm2914, %v93, %v4053
  %v5389 = vsel %vm2914, %v95, %v4055
  %v5390 = vsel %vm2914, %v96, %v4057
  %v5391 = vsel %vm2914, %v98, %v4059
  %v5392 = vsel %vm2914, %v99, %v4061
  %v5393 = vsel %vm2914, %v101, %v4063
  %v5394 = vsel %vm2914, %v102, %v4065
  %v5395 = vsel %vm2914, %v104, %v4067
  %v5396 = vsel %vm2914, %v105, %v4069
  %v5397 = vsel %vm2914, %v107, %v4071
  %v5398 = vsel %vm2914, %v108, %v4073
  %v5399 = vsel %vm2914, %v110, %v4075
  %v5400 = vsel %vm2914, %v111, %v4077
  %v5401 = vsel %vm2914, %v113, %v4079
  %v5402 = vsel %vm2914, %v114, %v4081
  %v5403 = vsel %vm2914, %v116, %v4083
  %v5404 = vsel %vm2914, %v117, %v4085
  %v5405 = vsel %vm2914, %v119, %v4087
  %v5406 = vsel %vm2914, %v120, %v4089
  %v5407 = vsel %vm3011, %v5343, %v4316
  %v5408 = vsel %vm3011, %v5344, %v4318
  %v5409 = vsel %vm3011, %v5345, %v4320
  %v5410 = vsel %vm3011, %v5346, %v4322
  %v5411 = vsel %vm3011, %v5347, %v4324
  %v5412 = vsel %vm3011, %v5348, %v4326
  %v5413 = vsel %vm3011, %v5349, %v4328
  %v5414 = vsel %vm3011, %v5350, %v4330
  %v5415 = vsel %vm3011, %v5351, %v4332
  %v5416 = vsel %vm3011, %v5352, %v4334
  %v5417 = vsel %vm3011, %v5353, %v4336
  %v5418 = vsel %vm3011, %v5354, %v4338
  %v5419 = vsel %vm3011, %v5355, %v4340
  %v5420 = vsel %vm3011, %v5356, %v4342
  %v5421 = vsel %vm3011, %v5357, %v4344
  %v5422 = vsel %vm3011, %v5358, %v4346
  %v5423 = vsel %vm3011, %v5359, %v4348
  %v5424 = vsel %vm3011, %v5360, %v4350
  %v5425 = vsel %vm3011, %v5361, %v4352
  %v5426 = vsel %vm3011, %v5362, %v4354
  %v5427 = vsel %vm3011, %v5363, %v4356
  %v5428 = vsel %vm3011, %v5364, %v4358
  %v5429 = vsel %vm3011, %v5365, %v4360
  %v5430 = vsel %vm3011, %v5366, %v4362
  %v5431 = vsel %vm3011, %v5367, %v4364
  %v5432 = vsel %vm3011, %v5368, %v4366
  %v5433 = vsel %vm3011, %v5369, %v4368
  %v5434 = vsel %vm3011, %v5370, %v4370
  %v5435 = vsel %vm3011, %v5371, %v4372
  %v5436 = vsel %vm3011, %v5372, %v4374
  %v5437 = vsel %vm3011, %v5373, %v4376
  %v5438 = vsel %vm3011, %v5374, %v4378
  %v5439 = vsel %vm3011, %v5375, %v4380
  %v5440 = vsel %vm3011, %v5376, %v4382
  %v5441 = vsel %vm3011, %v5377, %v4384
  %v5442 = vsel %vm3011, %v5378, %v4386
  %v5443 = vsel %vm3011, %v5379, %v4388
  %v5444 = vsel %vm3011, %v5380, %v4390
  %v5445 = vsel %vm3011, %v5381, %v4392
  %v5446 = vsel %vm3011, %v5382, %v4394
  %v5447 = vsel %vm3011, %v5383, %v4396
  %v5448 = vsel %vm3011, %v5384, %v4398
  %v5449 = vsel %vm3011, %v5385, %v4400
  %v5450 = vsel %vm3011, %v5386, %v4402
  %v5451 = vsel %vm3011, %v5387, %v4404
  %v5452 = vsel %vm3011, %v5388, %v4406
  %v5453 = vsel %vm3011, %v5389, %v4408
  %v5454 = vsel %vm3011, %v5390, %v4410
  %v5455 = vsel %vm3011, %v5391, %v4412
  %v5456 = vsel %vm3011, %v5392, %v4414
  %v5457 = vsel %vm3011, %v5393, %v4416
  %v5458 = vsel %vm3011, %v5394, %v4418
  %v5459 = vsel %vm3011, %v5395, %v4420
  %v5460 = vsel %vm3011, %v5396, %v4422
  %v5461 = vsel %vm3011, %v5397, %v4424
  %v5462 = vsel %vm3011, %v5398, %v4426
  %v5463 = vsel %vm3011, %v5399, %v4428
  %v5464 = vsel %vm3011, %v5400, %v4430
  %v5465 = vsel %vm3011, %v5401, %v4432
  %v5466 = vsel %vm3011, %v5402, %v4434
  %v5467 = vsel %vm3011, %v5403, %v4436
  %v5468 = vsel %vm3011, %v5404, %v4438
  %v5469 = vsel %vm3011, %v5405, %v4440
  %v5470 = vsel %vm3011, %v5406, %v4442
  %v5471 = vsel %vm3108, %v5407, %v1141
  %v5472 = vsel %vm3108, %v5408, %v1143
  %v5473 = vsel %vm3108, %v5409, %v1147
  %v5474 = vsel %vm3108, %v5410, %v1149
  %v5475 = vsel %vm3108, %v5411, %v1153
  %v5476 = vsel %vm3108, %v5412, %v1155
  %v5477 = vsel %vm3108, %v5413, %v1159
  %v5478 = vsel %vm3108, %v5414, %v1161
  %v5479 = vsel %vm3108, %v5415, %v1165
  %v5480 = vsel %vm3108, %v5416, %v1167
  %v5481 = vsel %vm3108, %v5417, %v1171
  %v5482 = vsel %vm3108, %v5418, %v1173
  %v5483 = vsel %vm3108, %v5419, %v1177
  %v5484 = vsel %vm3108, %v5420, %v1179
  %v5485 = vsel %vm3108, %v5421, %v1183
  %v5486 = vsel %vm3108, %v5422, %v1185
  %v5487 = vsel %vm3108, %v5423, %v1189
  %v5488 = vsel %vm3108, %v5424, %v1191
  %v5489 = vsel %vm3108, %v5425, %v1195
  %v5490 = vsel %vm3108, %v5426, %v1197
  %v5491 = vsel %vm3108, %v5427, %v1201
  %v5492 = vsel %vm3108, %v5428, %v1203
  %v5493 = vsel %vm3108, %v5429, %v1207
  %v5494 = vsel %vm3108, %v5430, %v1209
  %v5495 = vsel %vm3108, %v5431, %v1213
  %v5496 = vsel %vm3108, %v5432, %v1215
  %v5497 = vsel %vm3108, %v5433, %v1219
  %v5498 = vsel %vm3108, %v5434, %v1221
  %v5499 = vsel %vm3108, %v5435, %v1225
  %v5500 = vsel %vm3108, %v5436, %v1227
  %v5501 = vsel %vm3108, %v5437, %v1231
  %v5502 = vsel %vm3108, %v5438, %v1233
  %v5503 = vsel %vm3108, %v5439, %v1237
  %v5504 = vsel %vm3108, %v5440, %v1239
  %v5505 = vsel %vm3108, %v5441, %v1243
  %v5506 = vsel %vm3108, %v5442, %v1245
  %v5507 = vsel %vm3108, %v5443, %v1249
  %v5508 = vsel %vm3108, %v5444, %v1251
  %v5509 = vsel %vm3108, %v5445, %v1255
  %v5510 = vsel %vm3108, %v5446, %v1257
  %v5511 = vsel %vm3108, %v5447, %v1261
  %v5512 = vsel %vm3108, %v5448, %v1263
  %v5513 = vsel %vm3108, %v5449, %v1267
  %v5514 = vsel %vm3108, %v5450, %v1269
  %v5515 = vsel %vm3108, %v5451, %v1273
  %v5516 = vsel %vm3108, %v5452, %v1275
  %v5517 = vsel %vm3108, %v5453, %v1279
  %v5518 = vsel %vm3108, %v5454, %v1281
  %v5519 = vsel %vm3108, %v5455, %v1285
  %v5520 = vsel %vm3108, %v5456, %v1287
  %v5521 = vsel %vm3108, %v5457, %v1291
  %v5522 = vsel %vm3108, %v5458, %v1293
  %v5523 = vsel %vm3108, %v5459, %v1297
  %v5524 = vsel %vm3108, %v5460, %v1299
  %v5525 = vsel %vm3108, %v5461, %v1303
  %v5526 = vsel %vm3108, %v5462, %v1305
  %v5527 = vsel %vm3108, %v5463, %v1309
  %v5528 = vsel %vm3108, %v5464, %v1311
  %v5529 = vsel %vm3108, %v5465, %v1315
  %v5530 = vsel %vm3108, %v5466, %v1317
  %v5531 = vsel %vm3108, %v5467, %v1321
  %v5532 = vsel %vm3108, %v5468, %v1323
  %v5533 = vsel %vm3108, %v5469, %v1327
  %v5534 = vsel %vm3108, %v5470, %v1329
  %v5535 = vsel %vm3205, %v5471, %v4508
  %v5536 = vsel %vm3205, %v5472, %v4510
  %v5537 = vsel %vm3205, %v5473, %v4512
  %v5538 = vsel %vm3205, %v5474, %v4514
  %v5539 = vsel %vm3205, %v5475, %v4516
  %v5540 = vsel %vm3205, %v5476, %v4518
  %v5541 = vsel %vm3205, %v5477, %v4520
  %v5542 = vsel %vm3205, %v5478, %v4522
  %v5543 = vsel %vm3205, %v5479, %v4524
  %v5544 = vsel %vm3205, %v5480, %v4526
  %v5545 = vsel %vm3205, %v5481, %v4528
  %v5546 = vsel %vm3205, %v5482, %v4530
  %v5547 = vsel %vm3205, %v5483, %v4532
  %v5548 = vsel %vm3205, %v5484, %v4534
  %v5549 = vsel %vm3205, %v5485, %v4536
  %v5550 = vsel %vm3205, %v5486, %v4538
  %v5551 = vsel %vm3205, %v5487, %v4540
  %v5552 = vsel %vm3205, %v5488, %v4542
  %v5553 = vsel %vm3205, %v5489, %v4544
  %v5554 = vsel %vm3205, %v5490, %v4546
  %v5555 = vsel %vm3205, %v5491, %v4548
  %v5556 = vsel %vm3205, %v5492, %v4550
  %v5557 = vsel %vm3205, %v5493, %v4552
  %v5558 = vsel %vm3205, %v5494, %v4554
  %v5559 = vsel %vm3205, %v5495, %v4556
  %v5560 = vsel %vm3205, %v5496, %v4558
  %v5561 = vsel %vm3205, %v5497, %v4560
  %v5562 = vsel %vm3205, %v5498, %v4562
  %v5563 = vsel %vm3205, %v5499, %v4564
  %v5564 = vsel %vm3205, %v5500, %v4566
  %v5565 = vsel %vm3205, %v5501, %v4568
  %v5566 = vsel %vm3205, %v5502, %v4570
  %v5567 = vsel %vm3205, %v5503, %v4572
  %v5568 = vsel %vm3205, %v5504, %v4574
  %v5569 = vsel %vm3205, %v5505, %v4576
  %v5570 = vsel %vm3205, %v5506, %v4578
  %v5571 = vsel %vm3205, %v5507, %v4580
  %v5572 = vsel %vm3205, %v5508, %v4582
  %v5573 = vsel %vm3205, %v5509, %v4584
  %v5574 = vsel %vm3205, %v5510, %v4586
  %v5575 = vsel %vm3205, %v5511, %v4588
  %v5576 = vsel %vm3205, %v5512, %v4590
  %v5577 = vsel %vm3205, %v5513, %v4592
  %v5578 = vsel %vm3205, %v5514, %v4594
  %v5579 = vsel %vm3205, %v5515, %v4596
  %v5580 = vsel %vm3205, %v5516, %v4598
  %v5581 = vsel %vm3205, %v5517, %v4600
  %v5582 = vsel %vm3205, %v5518, %v4602
  %v5583 = vsel %vm3205, %v5519, %v4604
  %v5584 = vsel %vm3205, %v5520, %v4606
  %v5585 = vsel %vm3205, %v5521, %v4608
  %v5586 = vsel %vm3205, %v5522, %v4610
  %v5587 = vsel %vm3205, %v5523, %v4612
  %v5588 = vsel %vm3205, %v5524, %v4614
  %v5589 = vsel %vm3205, %v5525, %v4616
  %v5590 = vsel %vm3205, %v5526, %v4618
  %v5591 = vsel %vm3205, %v5527, %v4620
  %v5592 = vsel %vm3205, %v5528, %v4622
  %v5593 = vsel %vm3205, %v5529, %v4624
  %v5594 = vsel %vm3205, %v5530, %v4626
  %v5595 = vsel %vm3205, %v5531, %v4628
  %v5596 = vsel %vm3205, %v5532, %v4630
  %v5597 = vsel %vm3205, %v5533, %v4632
  %v5598 = vsel %vm3205, %v5534, %v4634
  %v5599 = vsel %vm3302, %v5535, %v4720
  %v5600 = vsel %vm3302, %v5536, %v4722
  %v5601 = vsel %vm3302, %v5537, %v4724
  %v5602 = vsel %vm3302, %v5538, %v4726
  %v5603 = vsel %vm3302, %v5539, %v4728
  %v5604 = vsel %vm3302, %v5540, %v4730
  %v5605 = vsel %vm3302, %v5541, %v4732
  %v5606 = vsel %vm3302, %v5542, %v4734
  %v5607 = vsel %vm3302, %v5543, %v4736
  %v5608 = vsel %vm3302, %v5544, %v4738
  %v5609 = vsel %vm3302, %v5545, %v4740
  %v5610 = vsel %vm3302, %v5546, %v4742
  %v5611 = vsel %vm3302, %v5547, %v4744
  %v5612 = vsel %vm3302, %v5548, %v4746
  %v5613 = vsel %vm3302, %v5549, %v4748
  %v5614 = vsel %vm3302, %v5550, %v4750
  %v5615 = vsel %vm3302, %v5551, %v4752
  %v5616 = vsel %vm3302, %v5552, %v4754
  %v5617 = vsel %vm3302, %v5553, %v4756
  %v5618 = vsel %vm3302, %v5554, %v4758
  %v5619 = vsel %vm3302, %v5555, %v4760
  %v5620 = vsel %vm3302, %v5556, %v4762
  %v5621 = vsel %vm3302, %v5557, %v4764
  %v5622 = vsel %vm3302, %v5558, %v4766
  %v5623 = vsel %vm3302, %v5559, %v4768
  %v5624 = vsel %vm3302, %v5560, %v4770
  %v5625 = vsel %vm3302, %v5561, %v4772
  %v5626 = vsel %vm3302, %v5562, %v4774
  %v5627 = vsel %vm3302, %v5563, %v4776
  %v5628 = vsel %vm3302, %v5564, %v4778
  %v5629 = vsel %vm3302, %v5565, %v4780
  %v5630 = vsel %vm3302, %v5566, %v4782
  %v5631 = vsel %vm3302, %v5567, %v4784
  %v5632 = vsel %vm3302, %v5568, %v4786
  %v5633 = vsel %vm3302, %v5569, %v4788
  %v5634 = vsel %vm3302, %v5570, %v4790
  %v5635 = vsel %vm3302, %v5571, %v4792
  %v5636 = vsel %vm3302, %v5572, %v4794
  %v5637 = vsel %vm3302, %v5573, %v4796
  %v5638 = vsel %vm3302, %v5574, %v4798
  %v5639 = vsel %vm3302, %v5575, %v4800
  %v5640 = vsel %vm3302, %v5576, %v4802
  %v5641 = vsel %vm3302, %v5577, %v4804
  %v5642 = vsel %vm3302, %v5578, %v4806
  %v5643 = vsel %vm3302, %v5579, %v4808
  %v5644 = vsel %vm3302, %v5580, %v4810
  %v5645 = vsel %vm3302, %v5581, %v4812
  %v5646 = vsel %vm3302, %v5582, %v4814
  %v5647 = vsel %vm3302, %v5583, %v4816
  %v5648 = vsel %vm3302, %v5584, %v4818
  %v5649 = vsel %vm3302, %v5585, %v4820
  %v5650 = vsel %vm3302, %v5586, %v4822
  %v5651 = vsel %vm3302, %v5587, %v4824
  %v5652 = vsel %vm3302, %v5588, %v4826
  %v5653 = vsel %vm3302, %v5589, %v4828
  %v5654 = vsel %vm3302, %v5590, %v4830
  %v5655 = vsel %vm3302, %v5591, %v4832
  %v5656 = vsel %vm3302, %v5592, %v4834
  %v5657 = vsel %vm3302, %v5593, %v4836
  %v5658 = vsel %vm3302, %v5594, %v4838
  %v5659 = vsel %vm3302, %v5595, %v4840
  %v5660 = vsel %vm3302, %v5596, %v4842
  %v5661 = vsel %vm3302, %v5597, %v4844
  %v5662 = vsel %vm3302, %v5598, %v4846
  %v5663 = vsel %vm3399, %v5599, %v2037
  %v5664 = vsel %vm3399, %v5600, %v2039
  %v5665 = vsel %vm3399, %v5601, %v2043
  %v5666 = vsel %vm3399, %v5602, %v2045
  %v5667 = vsel %vm3399, %v5603, %v2049
  %v5668 = vsel %vm3399, %v5604, %v2051
  %v5669 = vsel %vm3399, %v5605, %v2055
  %v5670 = vsel %vm3399, %v5606, %v2057
  %v5671 = vsel %vm3399, %v5607, %v2061
  %v5672 = vsel %vm3399, %v5608, %v2063
  %v5673 = vsel %vm3399, %v5609, %v2067
  %v5674 = vsel %vm3399, %v5610, %v2069
  %v5675 = vsel %vm3399, %v5611, %v2073
  %v5676 = vsel %vm3399, %v5612, %v2075
  %v5677 = vsel %vm3399, %v5613, %v2079
  %v5678 = vsel %vm3399, %v5614, %v2081
  %v5679 = vsel %vm3399, %v5615, %v2085
  %v5680 = vsel %vm3399, %v5616, %v2087
  %v5681 = vsel %vm3399, %v5617, %v2091
  %v5682 = vsel %vm3399, %v5618, %v2093
  %v5683 = vsel %vm3399, %v5619, %v2097
  %v5684 = vsel %vm3399, %v5620, %v2099
  %v5685 = vsel %vm3399, %v5621, %v2103
  %v5686 = vsel %vm3399, %v5622, %v2105
  %v5687 = vsel %vm3399, %v5623, %v2109
  %v5688 = vsel %vm3399, %v5624, %v2111
  %v5689 = vsel %vm3399, %v5625, %v2115
  %v5690 = vsel %vm3399, %v5626, %v2117
  %v5691 = vsel %vm3399, %v5627, %v2121
  %v5692 = vsel %vm3399, %v5628, %v2123
  %v5693 = vsel %vm3399, %v5629, %v4916
  %v5694 = vsel %vm3399, %v5630, %v4918
  %v5695 = vsel %vm3399, %v5631, %v2133
  %v5696 = vsel %vm3399, %v5632, %v2135
  %v5697 = vsel %vm3399, %v5633, %v2139
  %v5698 = vsel %vm3399, %v5634, %v2141
  %v5699 = vsel %vm3399, %v5635, %v2145
  %v5700 = vsel %vm3399, %v5636, %v2147
  %v5701 = vsel %vm3399, %v5637, %v2151
  %v5702 = vsel %vm3399, %v5638, %v2153
  %v5703 = vsel %vm3399, %v5639, %v2157
  %v5704 = vsel %vm3399, %v5640, %v2159
  %v5705 = vsel %vm3399, %v5641, %v2163
  %v5706 = vsel %vm3399, %v5642, %v2165
  %v5707 = vsel %vm3399, %v5643, %v2169
  %v5708 = vsel %vm3399, %v5644, %v2171
  %v5709 = vsel %vm3399, %v5645, %v2175
  %v5710 = vsel %vm3399, %v5646, %v2177
  %v5711 = vsel %vm3399, %v5647, %v2181
  %v5712 = vsel %vm3399, %v5648, %v2183
  %v5713 = vsel %vm3399, %v5649, %v2187
  %v5714 = vsel %vm3399, %v5650, %v2189
  %v5715 = vsel %vm3399, %v5651, %v2193
  %v5716 = vsel %vm3399, %v5652, %v2195
  %v5717 = vsel %vm3399, %v5653, %v2199
  %v5718 = vsel %vm3399, %v5654, %v2201
  %v5719 = vsel %vm3399, %v5655, %v2205
  %v5720 = vsel %vm3399, %v5656, %v2207
  %v5721 = vsel %vm3399, %v5657, %v2211
  %v5722 = vsel %vm3399, %v5658, %v2213
  %v5723 = vsel %vm3399, %v5659, %v2217
  %v5724 = vsel %vm3399, %v5660, %v2219
  %v5725 = vsel %vm3399, %v5661, %v4920
  %v5726 = vsel %vm3399, %v5662, %v4922
  %v5727 = vsel %vm3496, %v5663, %v4940
  %v5728 = vsel %vm3496, %v5664, %v4942
  %v5729 = vsel %vm3496, %v5665, %v4944
  %v5730 = vsel %vm3496, %v5666, %v4946
  %v5731 = vsel %vm3496, %v5667, %v4948
  %v5732 = vsel %vm3496, %v5668, %v4950
  %v5733 = vsel %vm3496, %v5669, %v4952
  %v5734 = vsel %vm3496, %v5670, %v4954
  %v5735 = vsel %vm3496, %v5671, %v4956
  %v5736 = vsel %vm3496, %v5672, %v4958
  %v5737 = vsel %vm3496, %v5673, %v4960
  %v5738 = vsel %vm3496, %v5674, %v4962
  %v5739 = vsel %vm3496, %v5675, %v4964
  %v5740 = vsel %vm3496, %v5676, %v4966
  %v5741 = vsel %vm3496, %v5677, %v4968
  %v5742 = vsel %vm3496, %v5678, %v4970
  %v5743 = vsel %vm3496, %v5679, %v4972
  %v5744 = vsel %vm3496, %v5680, %v4974
  %v5745 = vsel %vm3496, %v5681, %v4976
  %v5746 = vsel %vm3496, %v5682, %v4978
  %v5747 = vsel %vm3496, %v5683, %v4980
  %v5748 = vsel %vm3496, %v5684, %v4982
  %v5749 = vsel %vm3496, %v5685, %v4984
  %v5750 = vsel %vm3496, %v5686, %v4986
  %v5751 = vsel %vm3496, %v5687, %v4988
  %v5752 = vsel %vm3496, %v5688, %v4990
  %v5753 = vsel %vm3496, %v5689, %v4992
  %v5754 = vsel %vm3496, %v5690, %v4994
  %v5755 = vsel %vm3496, %v5691, %v4996
  %v5756 = vsel %vm3496, %v5692, %v4998
  %v5757 = vsel %vm3496, %v5693, %v5000
  %v5758 = vsel %vm3496, %v5694, %v5002
  %v5759 = vsel %vm3496, %v5695, %v5004
  %v5760 = vsel %vm3496, %v5696, %v5006
  %v5761 = vsel %vm3496, %v5697, %v5008
  %v5762 = vsel %vm3496, %v5698, %v5010
  %v5763 = vsel %vm3496, %v5699, %v5012
  %v5764 = vsel %vm3496, %v5700, %v5014
  %v5765 = vsel %vm3496, %v5701, %v5016
  %v5766 = vsel %vm3496, %v5702, %v5018
  %v5767 = vsel %vm3496, %v5703, %v5020
  %v5768 = vsel %vm3496, %v5704, %v5022
  %v5769 = vsel %vm3496, %v5705, %v5024
  %v5770 = vsel %vm3496, %v5706, %v5026
  %v5771 = vsel %vm3496, %v5707, %v5028
  %v5772 = vsel %vm3496, %v5708, %v5030
  %v5773 = vsel %vm3496, %v5709, %v5032
  %v5774 = vsel %vm3496, %v5710, %v5034
  %v5775 = vsel %vm3496, %v5711, %v5036
  %v5776 = vsel %vm3496, %v5712, %v5038
  %v5777 = vsel %vm3496, %v5713, %v5040
  %v5778 = vsel %vm3496, %v5714, %v5042
  %v5779 = vsel %vm3496, %v5715, %v5044
  %v5780 = vsel %vm3496, %v5716, %v5046
  %v5781 = vsel %vm3496, %v5717, %v5048
  %v5782 = vsel %vm3496, %v5718, %v5050
  %v5783 = vsel %vm3496, %v5719, %v5052
  %v5784 = vsel %vm3496, %v5720, %v5054
  %v5785 = vsel %vm3496, %v5721, %v5056
  %v5786 = vsel %vm3496, %v5722, %v5058
  %v5787 = vsel %vm3496, %v5723, %v5060
  %v5788 = vsel %vm3496, %v5724, %v5062
  %v5789 = vsel %vm3496, %v5725, %v5064
  %v5790 = vsel %vm3496, %v5726, %v5066
  %v5791 = vsel %vm3593, %v5727, %v5152
  %v5792 = vsel %vm3593, %v5728, %v5154
  %v5793 = vsel %vm3593, %v5729, %v5156
  %v5794 = vsel %vm3593, %v5730, %v5158
  %v5795 = vsel %vm3593, %v5731, %v5160
  %v5796 = vsel %vm3593, %v5732, %v5162
  %v5797 = vsel %vm3593, %v5733, %v5164
  %v5798 = vsel %vm3593, %v5734, %v5166
  %v5799 = vsel %vm3593, %v5735, %v5168
  %v5800 = vsel %vm3593, %v5736, %v5170
  %v5801 = vsel %vm3593, %v5737, %v5172
  %v5802 = vsel %vm3593, %v5738, %v5174
  %v5803 = vsel %vm3593, %v5739, %v5176
  %v5804 = vsel %vm3593, %v5740, %v5178
  %v5805 = vsel %vm3593, %v5741, %v5180
  %v5806 = vsel %vm3593, %v5742, %v5182
  %v5807 = vsel %vm3593, %v5743, %v5184
  %v5808 = vsel %vm3593, %v5744, %v5186
  %v5809 = vsel %vm3593, %v5745, %v5188
  %v5810 = vsel %vm3593, %v5746, %v5190
  %v5811 = vsel %vm3593, %v5747, %v5192
  %v5812 = vsel %vm3593, %v5748, %v5194
  %v5813 = vsel %vm3593, %v5749, %v5196
  %v5814 = vsel %vm3593, %v5750, %v5198
  %v5815 = vsel %vm3593, %v5751, %v5200
  %v5816 = vsel %vm3593, %v5752, %v5202
  %v5817 = vsel %vm3593, %v5753, %v5204
  %v5818 = vsel %vm3593, %v5754, %v5206
  %v5819 = vsel %vm3593, %v5755, %v5208
  %v5820 = vsel %vm3593, %v5756, %v5210
  %v5821 = vsel %vm3593, %v5757, %v5212
  %v5822 = vsel %vm3593, %v5758, %v5214
  %v5823 = vsel %vm3593, %v5759, %v5216
  %v5824 = vsel %vm3593, %v5760, %v5218
  %v5825 = vsel %vm3593, %v5761, %v5220
  %v5826 = vsel %vm3593, %v5762, %v5222
  %v5827 = vsel %vm3593, %v5763, %v5224
  %v5828 = vsel %vm3593, %v5764, %v5226
  %v5829 = vsel %vm3593, %v5765, %v5228
  %v5830 = vsel %vm3593, %v5766, %v5230
  %v5831 = vsel %vm3593, %v5767, %v5232
  %v5832 = vsel %vm3593, %v5768, %v5234
  %v5833 = vsel %vm3593, %v5769, %v5236
  %v5834 = vsel %vm3593, %v5770, %v5238
  %v5835 = vsel %vm3593, %v5771, %v5240
  %v5836 = vsel %vm3593, %v5772, %v5242
  %v5837 = vsel %vm3593, %v5773, %v5244
  %v5838 = vsel %vm3593, %v5774, %v5246
  %v5839 = vsel %vm3593, %v5775, %v5248
  %v5840 = vsel %vm3593, %v5776, %v5250
  %v5841 = vsel %vm3593, %v5777, %v5252
  %v5842 = vsel %vm3593, %v5778, %v5254
  %v5843 = vsel %vm3593, %v5779, %v5256
  %v5844 = vsel %vm3593, %v5780, %v5258
  %v5845 = vsel %vm3593, %v5781, %v5260
  %v5846 = vsel %vm3593, %v5782, %v5262
  %v5847 = vsel %vm3593, %v5783, %v5264
  %v5848 = vsel %vm3593, %v5784, %v5266
  %v5849 = vsel %vm3593, %v5785, %v5268
  %v5850 = vsel %vm3593, %v5786, %v5270
  %v5851 = vsel %vm3593, %v5787, %v5272
  %v5852 = vsel %vm3593, %v5788, %v5274
  %v5853 = vsel %vm3593, %v5789, %v5276
  %v5854 = vsel %vm3593, %v5790, %v5278
  %v5856 = vperm.slane %v139, 0
  %vm5858 = vcmask 293888
  %v5859 = vsel %vm5858, %v3788, 0
  %v5861 = vsel %vm5858, %v3790, 0
  %v5863 = vsel %vm5858, %v3793, 0
  %v5865 = vsel %vm5858, %v3795, 0
  %v5867 = vsel %vm5858, %v3798, 0
  %v5869 = vsel %vm5858, %v3800, 0
  %v5871 = vsel %vm5858, %v3803, 0
  %v5873 = vsel %vm5858, %v3805, 0
  %v5875 = vsel %vm5858, %v3808, 0
  %v5877 = vsel %vm5858, %v3810, 0
  %v5879 = vsel %vm5858, %v3813, 0
  %v5881 = vsel %vm5858, %v3815, 0
  %v5883 = vsel %vm5858, %v3818, 0
  %v5885 = vsel %vm5858, %v3820, 0
  %v5887 = vsel %vm5858, %v3823, 0
  %v5889 = vsel %vm5858, %v3825, 0
  %v5891 = vsel %vm5858, %v3828, 0
  %v5893 = vsel %vm5858, %v3830, 0
  %v5895 = vsel %vm5858, %v3833, 0
  %v5897 = vsel %vm5858, %v3835, 0
  %v5899 = vsel %vm5858, %v3838, 0
  %v5901 = vsel %vm5858, %v3840, 0
  %v5903 = vsel %vm5858, %v3843, 0
  %v5905 = vsel %vm5858, %v3845, 0
  %v5907 = vsel %vm5858, %v3848, 0
  %v5909 = vsel %vm5858, %v3850, 0
  %v5911 = vsel %vm5858, %v3853, 0
  %v5913 = vsel %vm5858, %v3855, 0
  %v5915 = vsel %vm5858, %v3858, 0
  %v5917 = vsel %vm5858, %v3860, 0
  %v5919 = vsel %vm5858, %v3863, 0
  %v5921 = vsel %vm5858, %v3865, 0
  %v5923 = vsel %vm5858, %v3868, 0
  %v5925 = vsel %vm5858, %v3870, 0
  %v5927 = vsel %vm5858, %v3873, 0
  %v5929 = vsel %vm5858, %v3875, 0
  %v5931 = vsel %vm5858, %v3878, 0
  %v5933 = vsel %vm5858, %v3880, 0
  %v5935 = vsel %vm5858, %v3883, 0
  %v5937 = vsel %vm5858, %v3885, 0
  %v5939 = vsel %vm5858, %v3888, 0
  %v5941 = vsel %vm5858, %v3890, 0
  %v5943 = vsel %vm5858, %v3893, 0
  %v5945 = vsel %vm5858, %v3895, 0
  %v5947 = vsel %vm5858, %v3898, 0
  %v5949 = vsel %vm5858, %v3900, 0
  %v5951 = vsel %vm5858, %v3903, 0
  %v5953 = vsel %vm5858, %v3905, 0
  %v5955 = vsel %vm5858, %v3908, 0
  %v5957 = vsel %vm5858, %v3910, 0
  %v5959 = vsel %vm5858, %v3913, 0
  %v5961 = vsel %vm5858, %v3915, 0
  %v5963 = vsel %vm5858, %v3918, 0
  %v5965 = vsel %vm5858, %v3920, 0
  %v5967 = vsel %vm5858, %v3923, 0
  %v5969 = vsel %vm5858, %v3925, 0
  %v5971 = vsel %vm5858, %v3928, 0
  %v5973 = vsel %vm5858, %v3930, 0
  %v5975 = vsel %vm5858, %v3933, 0
  %v5977 = vsel %vm5858, %v3935, 0
  %v5979 = vsel %vm5858, %v3938, 0
  %v5981 = vsel %vm5858, %v3940, 0
  %v5983 = vsel %vm5858, %v3943, 0
  %v5985 = vsel %vm5858, %v3945, 0
  %v5988 = vsel %vm4154, %v138, 0
  %5990 = vmatpush.msra.mxu0 0.0
  %5991 = vmatpush.msra.mxu0 0.0
  %5992 = vmatpush.msra.mxu0 0.0
  %5993 = vmatpush.msra.mxu0 0.0
  %5994 = vmatpush.msra.mxu0 0.0
  %5995 = vmatpush.msra.mxu0 0.0
  %5996 = vmatpush.msra.mxu0 0.0
  %5997 = vmatpush.msra.mxu0 0.0
  %5998 = vmatpush.msra.mxu0 0.0
  %5999 = vmatpush.msra.mxu0 0.0
  %6000 = vmatpush.msra.mxu0 0.0
  %6001 = vmatpush.msra.mxu0 %v5988
  %6002 = vmatpush.msra.mxu0 %v137
  %6003 = vmatpush.msra.mxu0 %v136
  %6004 = vmatpush.msra.mxu0 %v135
  %6005 = vmatpush.msra.mxu0 %v134
  %6006 = vmatmul.f32.gmra.mxu0 %v5859
  %v6007 = vpop.f32.mrf.mxu0
  %v6008 = vadd.f32 %v5856, %v6007
  %6009 = vmatmul.f32.gmra.mxu0 %v5861
  %v6010 = vpop.f32.mrf.mxu0
  %v6011 = vadd.f32 %v5856, %v6010
  %6012 = vmatmul.f32.gmra.mxu0 %v5863
  %v6013 = vpop.f32.mrf.mxu0
  %v6014 = vadd.f32 %v5856, %v6013
  %6015 = vmatmul.f32.gmra.mxu0 %v5865
  %v6016 = vpop.f32.mrf.mxu0
  %v6017 = vadd.f32 %v5856, %v6016
  %6018 = vmatmul.f32.gmra.mxu0 %v5867
  %v6019 = vpop.f32.mrf.mxu0
  %v6020 = vadd.f32 %v5856, %v6019
  %6021 = vmatmul.f32.gmra.mxu0 %v5869
  %v6022 = vpop.f32.mrf.mxu0
  %v6023 = vadd.f32 %v5856, %v6022
  %6024 = vmatmul.f32.gmra.mxu0 %v5871
  %v6025 = vpop.f32.mrf.mxu0
  %v6026 = vadd.f32 %v5856, %v6025
  %6027 = vmatmul.f32.gmra.mxu0 %v5873
  %v6028 = vpop.f32.mrf.mxu0
  %v6029 = vadd.f32 %v5856, %v6028
  %6030 = vmatmul.f32.gmra.mxu0 %v5875
  %v6031 = vpop.f32.mrf.mxu0
  %v6032 = vadd.f32 %v5856, %v6031
  %6033 = vmatmul.f32.gmra.mxu0 %v5877
  %v6034 = vpop.f32.mrf.mxu0
  %v6035 = vadd.f32 %v5856, %v6034
  %6036 = vmatmul.f32.gmra.mxu0 %v5879
  %v6037 = vpop.f32.mrf.mxu0
  %v6038 = vadd.f32 %v5856, %v6037
  %6039 = vmatmul.f32.gmra.mxu0 %v5881
  %v6040 = vpop.f32.mrf.mxu0
  %v6041 = vadd.f32 %v5856, %v6040
  %6042 = vmatmul.f32.gmra.mxu0 %v5883
  %v6043 = vpop.f32.mrf.mxu0
  %v6044 = vadd.f32 %v5856, %v6043
  %6045 = vmatmul.f32.gmra.mxu0 %v5885
  %v6046 = vpop.f32.mrf.mxu0
  %v6047 = vadd.f32 %v5856, %v6046
  %6048 = vmatmul.f32.gmra.mxu0 %v5887
  %v6049 = vpop.f32.mrf.mxu0
  %v6050 = vadd.f32 %v5856, %v6049
  %6051 = vmatmul.f32.gmra.mxu0 %v5889
  %v6052 = vpop.f32.mrf.mxu0
  %v6053 = vadd.f32 %v5856, %v6052
  %6054 = vmatmul.f32.gmra.mxu0 %v5891
  %v6055 = vpop.f32.mrf.mxu0
  %v6056 = vadd.f32 %v5856, %v6055
  %6057 = vmatmul.f32.gmra.mxu0 %v5893
  %v6058 = vpop.f32.mrf.mxu0
  %v6059 = vadd.f32 %v5856, %v6058
  %6060 = vmatmul.f32.gmra.mxu0 %v5895
  %v6061 = vpop.f32.mrf.mxu0
  %v6062 = vadd.f32 %v5856, %v6061
  %6063 = vmatmul.f32.gmra.mxu0 %v5897
  %v6064 = vpop.f32.mrf.mxu0
  %v6065 = vadd.f32 %v5856, %v6064
  %6066 = vmatmul.f32.gmra.mxu0 %v5899
  %v6067 = vpop.f32.mrf.mxu0
  %v6068 = vadd.f32 %v5856, %v6067
  %6069 = vmatmul.f32.gmra.mxu0 %v5901
  %v6070 = vpop.f32.mrf.mxu0
  %v6071 = vadd.f32 %v5856, %v6070
  %6072 = vmatmul.f32.gmra.mxu0 %v5903
  %v6073 = vpop.f32.mrf.mxu0
  %v6074 = vadd.f32 %v5856, %v6073
  %6075 = vmatmul.f32.gmra.mxu0 %v5905
  %v6076 = vpop.f32.mrf.mxu0
  %v6077 = vadd.f32 %v5856, %v6076
  %6078 = vmatmul.f32.gmra.mxu0 %v5907
  %v6079 = vpop.f32.mrf.mxu0
  %v6080 = vadd.f32 %v5856, %v6079
  %6081 = vmatmul.f32.gmra.mxu0 %v5909
  %v6082 = vpop.f32.mrf.mxu0
  %v6083 = vadd.f32 %v5856, %v6082
  %6084 = vmatmul.f32.gmra.mxu0 %v5911
  %v6085 = vpop.f32.mrf.mxu0
  %v6086 = vadd.f32 %v5856, %v6085
  %6087 = vmatmul.f32.gmra.mxu0 %v5913
  %v6088 = vpop.f32.mrf.mxu0
  %v6089 = vadd.f32 %v5856, %v6088
  %6090 = vmatmul.f32.gmra.mxu0 %v5915
  %v6091 = vpop.f32.mrf.mxu0
  %v6092 = vadd.f32 %v5856, %v6091
  %6093 = vmatmul.f32.gmra.mxu0 %v5917
  %v6094 = vpop.f32.mrf.mxu0
  %v6095 = vadd.f32 %v5856, %v6094
  %6096 = vmatmul.f32.gmra.mxu0 %v5919
  %v6097 = vpop.f32.mrf.mxu0
  %v6098 = vadd.f32 %v5856, %v6097
  %6099 = vmatmul.f32.gmra.mxu0 %v5921
  %v6100 = vpop.f32.mrf.mxu0
  %v6101 = vadd.f32 %v5856, %v6100
  %6102 = vmatmul.f32.gmra.mxu0 %v5923
  %v6103 = vpop.f32.mrf.mxu0
  %v6104 = vadd.f32 %v5856, %v6103
  %6105 = vmatmul.f32.gmra.mxu0 %v5925
  %v6106 = vpop.f32.mrf.mxu0
  %v6107 = vadd.f32 %v5856, %v6106
  %6108 = vmatmul.f32.gmra.mxu0 %v5927
  %v6109 = vpop.f32.mrf.mxu0
  %v6110 = vadd.f32 %v5856, %v6109
  %6111 = vmatmul.f32.gmra.mxu0 %v5929
  %v6112 = vpop.f32.mrf.mxu0
  %v6113 = vadd.f32 %v5856, %v6112
  %6114 = vmatmul.f32.gmra.mxu0 %v5931
  %v6115 = vpop.f32.mrf.mxu0
  %v6116 = vadd.f32 %v5856, %v6115
  %6117 = vmatmul.f32.gmra.mxu0 %v5933
  %v6118 = vpop.f32.mrf.mxu0
  %v6119 = vadd.f32 %v5856, %v6118
  %6120 = vmatmul.f32.gmra.mxu0 %v5935
  %v6121 = vpop.f32.mrf.mxu0
  %v6122 = vadd.f32 %v5856, %v6121
  %6123 = vmatmul.f32.gmra.mxu0 %v5937
  %v6124 = vpop.f32.mrf.mxu0
  %v6125 = vadd.f32 %v5856, %v6124
  %6126 = vmatmul.f32.gmra.mxu0 %v5939
  %v6127 = vpop.f32.mrf.mxu0
  %v6128 = vadd.f32 %v5856, %v6127
  %6129 = vmatmul.f32.gmra.mxu0 %v5941
  %v6130 = vpop.f32.mrf.mxu0
  %v6131 = vadd.f32 %v5856, %v6130
  %6132 = vmatmul.f32.gmra.mxu0 %v5943
  %v6133 = vpop.f32.mrf.mxu0
  %v6134 = vadd.f32 %v5856, %v6133
  %6135 = vmatmul.f32.gmra.mxu0 %v5945
  %v6136 = vpop.f32.mrf.mxu0
  %v6137 = vadd.f32 %v5856, %v6136
  %6138 = vmatmul.f32.gmra.mxu0 %v5947
  %v6139 = vpop.f32.mrf.mxu0
  %v6140 = vadd.f32 %v5856, %v6139
  %6141 = vmatmul.f32.gmra.mxu0 %v5949
  %v6142 = vpop.f32.mrf.mxu0
  %v6143 = vadd.f32 %v5856, %v6142
  %6144 = vmatmul.f32.gmra.mxu0 %v5951
  %v6145 = vpop.f32.mrf.mxu0
  %v6146 = vadd.f32 %v5856, %v6145
  %6147 = vmatmul.f32.gmra.mxu0 %v5953
  %v6148 = vpop.f32.mrf.mxu0
  %v6149 = vadd.f32 %v5856, %v6148
  %6150 = vmatmul.f32.gmra.mxu0 %v5955
  %v6151 = vpop.f32.mrf.mxu0
  %v6152 = vadd.f32 %v5856, %v6151
  %6153 = vmatmul.f32.gmra.mxu0 %v5957
  %v6154 = vpop.f32.mrf.mxu0
  %v6155 = vadd.f32 %v5856, %v6154
  %6156 = vmatmul.f32.gmra.mxu0 %v5959
  %v6157 = vpop.f32.mrf.mxu0
  %v6158 = vadd.f32 %v5856, %v6157
  %6159 = vmatmul.f32.gmra.mxu0 %v5961
  %v6160 = vpop.f32.mrf.mxu0
  %v6161 = vadd.f32 %v5856, %v6160
  %6162 = vmatmul.f32.gmra.mxu0 %v5963
  %v6163 = vpop.f32.mrf.mxu0
  %v6164 = vadd.f32 %v5856, %v6163
  %6165 = vmatmul.f32.gmra.mxu0 %v5965
  %v6166 = vpop.f32.mrf.mxu0
  %v6167 = vadd.f32 %v5856, %v6166
  %6168 = vmatmul.f32.gmra.mxu0 %v5967
  %v6169 = vpop.f32.mrf.mxu0
  %v6170 = vadd.f32 %v5856, %v6169
  %6171 = vmatmul.f32.gmra.mxu0 %v5969
  %v6172 = vpop.f32.mrf.mxu0
  %v6173 = vadd.f32 %v5856, %v6172
  %6174 = vmatmul.f32.gmra.mxu0 %v5971
  %v6175 = vpop.f32.mrf.mxu0
  %v6176 = vadd.f32 %v5856, %v6175
  %6177 = vmatmul.f32.gmra.mxu0 %v5973
  %v6178 = vpop.f32.mrf.mxu0
  %v6179 = vadd.f32 %v5856, %v6178
  %6180 = vmatmul.f32.gmra.mxu0 %v5975
  %v6181 = vpop.f32.mrf.mxu0
  %v6182 = vadd.f32 %v5856, %v6181
  %6183 = vmatmul.f32.gmra.mxu0 %v5977
  %v6184 = vpop.f32.mrf.mxu0
  %v6185 = vadd.f32 %v5856, %v6184
  %6186 = vmatmul.f32.gmra.mxu0 %v5979
  %v6187 = vpop.f32.mrf.mxu0
  %v6188 = vadd.f32 %v5856, %v6187
  %6189 = vmatmul.f32.gmra.mxu0 %v5981
  %v6190 = vpop.f32.mrf.mxu0
  %v6191 = vadd.f32 %v5856, %v6190
  %6192 = vmatmul.f32.gmra.mxu0 %v5983
  %v6193 = vpop.f32.mrf.mxu0
  %v6194 = vadd.f32 %v5856, %v6193
  %6195 = vmatmul.f32.gmra.mxu0 %v5985
  %v6196 = vpop.f32.mrf.mxu0
  %v6197 = vadd.f32 %v5856, %v6196
  %6198 = vdwg.mxu0
  %6203 = vrot.lane.b32.xlu0 %v134, 120
  %v6204 = vpop.permute.xlu0 %6203
  %6205 = vrot.lane.b32.xlu0 %v135, 120
  %v6206 = vpop.permute.xlu0 %6205
  %6207 = vrot.lane.b32.xlu0 %v136, 120
  %v6208 = vpop.permute.xlu0 %6207
  %6209 = vrot.lane.b32.xlu0 %v137, 120
  %v6210 = vpop.permute.xlu0 %6209
  %6211 = vrot.lane.b32.xlu0 %v138, 120
  %v6212 = vpop.permute.xlu0 %6211
  %6217 = vrot.lane.b32.xlu0 %v5856, 120
  %v6218 = vpop.permute.xlu0 %6217
  %v6221 = vsel %vm5858, %v5791, 0
  %v6224 = vsel %vm5858, %v5792, 0
  %v6227 = vsel %vm5858, %v5793, 0
  %v6230 = vsel %vm5858, %v5794, 0
  %v6233 = vsel %vm5858, %v5795, 0
  %v6236 = vsel %vm5858, %v5796, 0
  %v6239 = vsel %vm5858, %v5797, 0
  %v6242 = vsel %vm5858, %v5798, 0
  %v6245 = vsel %vm5858, %v5799, 0
  %v6248 = vsel %vm5858, %v5800, 0
  %v6251 = vsel %vm5858, %v5801, 0
  %v6254 = vsel %vm5858, %v5802, 0
  %v6257 = vsel %vm5858, %v5803, 0
  %v6260 = vsel %vm5858, %v5804, 0
  %v6263 = vsel %vm5858, %v5805, 0
  %v6266 = vsel %vm5858, %v5806, 0
  %v6269 = vsel %vm5858, %v5807, 0
  %v6272 = vsel %vm5858, %v5808, 0
  %v6275 = vsel %vm5858, %v5809, 0
  %v6278 = vsel %vm5858, %v5810, 0
  %v6281 = vsel %vm5858, %v5811, 0
  %v6284 = vsel %vm5858, %v5812, 0
  %v6287 = vsel %vm5858, %v5813, 0
  %v6290 = vsel %vm5858, %v5814, 0
  %v6293 = vsel %vm5858, %v5815, 0
  %v6296 = vsel %vm5858, %v5816, 0
  %v6299 = vsel %vm5858, %v5817, 0
  %v6302 = vsel %vm5858, %v5818, 0
  %v6305 = vsel %vm5858, %v5819, 0
  %v6308 = vsel %vm5858, %v5820, 0
  %v6311 = vsel %vm5858, %v5821, 0
  %v6314 = vsel %vm5858, %v5822, 0
  %v6317 = vsel %vm5858, %v5823, 0
  %v6320 = vsel %vm5858, %v5824, 0
  %v6323 = vsel %vm5858, %v5825, 0
  %v6326 = vsel %vm5858, %v5826, 0
  %v6329 = vsel %vm5858, %v5827, 0
  %v6332 = vsel %vm5858, %v5828, 0
  %v6335 = vsel %vm5858, %v5829, 0
  %v6338 = vsel %vm5858, %v5830, 0
  %v6341 = vsel %vm5858, %v5831, 0
  %v6344 = vsel %vm5858, %v5832, 0
  %v6347 = vsel %vm5858, %v5833, 0
  %v6350 = vsel %vm5858, %v5834, 0
  %v6353 = vsel %vm5858, %v5835, 0
  %v6356 = vsel %vm5858, %v5836, 0
  %v6359 = vsel %vm5858, %v5837, 0
  %v6362 = vsel %vm5858, %v5838, 0
  %v6365 = vsel %vm5858, %v5839, 0
  %v6368 = vsel %vm5858, %v5840, 0
  %v6371 = vsel %vm5858, %v5841, 0
  %v6374 = vsel %vm5858, %v5842, 0
  %v6377 = vsel %vm5858, %v5843, 0
  %v6380 = vsel %vm5858, %v5844, 0
  %v6383 = vsel %vm5858, %v5845, 0
  %v6386 = vsel %vm5858, %v5846, 0
  %v6389 = vsel %vm5858, %v5847, 0
  %v6392 = vsel %vm5858, %v5848, 0
  %v6395 = vsel %vm5858, %v5849, 0
  %v6398 = vsel %vm5858, %v5850, 0
  %v6401 = vsel %vm5858, %v5851, 0
  %v6404 = vsel %vm5858, %v5852, 0
  %v6407 = vsel %vm5858, %v5853, 0
  %v6410 = vsel %vm5858, %v5854, 0
  %v6412 = vsel %vm4154, %v6212, 0
  %6414 = vmatpush.msra.mxu0 0.0
  %6415 = vmatpush.msra.mxu0 0.0
  %6416 = vmatpush.msra.mxu0 0.0
  %6417 = vmatpush.msra.mxu0 0.0
  %6418 = vmatpush.msra.mxu0 0.0
  %6419 = vmatpush.msra.mxu0 0.0
  %6420 = vmatpush.msra.mxu0 0.0
  %6421 = vmatpush.msra.mxu0 0.0
  %6422 = vmatpush.msra.mxu0 0.0
  %6423 = vmatpush.msra.mxu0 0.0
  %6424 = vmatpush.msra.mxu0 0.0
  %6425 = vmatpush.msra.mxu0 %v6412
  %6426 = vmatpush.msra.mxu0 %v6210
  %6427 = vmatpush.msra.mxu0 %v6208
  %6428 = vmatpush.msra.mxu0 %v6206
  %6429 = vmatpush.msra.mxu0 %v6204
  %6430 = vmatmul.f32.gmra.mxu0 %v6221
  %v6431 = vpop.f32.mrf.mxu0
  %6432 = vmatmul.f32.gmra.mxu0 %v6224
  %v6433 = vpop.f32.mrf.mxu0
  %6434 = vmatmul.f32.gmra.mxu0 %v6227
  %v6435 = vpop.f32.mrf.mxu0
  %v6436 = vadd.f32 %v6218, %v6435
  %6437 = vmatmul.f32.gmra.mxu0 %v6230
  %v6438 = vpop.f32.mrf.mxu0
  %v6439 = vadd.f32 %v6218, %v6438
  %6440 = vmatmul.f32.gmra.mxu0 %v6233
  %v6441 = vpop.f32.mrf.mxu0
  %v6442 = vadd.f32 %v6218, %v6441
  %6443 = vmatmul.f32.gmra.mxu0 %v6236
  %v6444 = vpop.f32.mrf.mxu0
  %v6445 = vadd.f32 %v6218, %v6444
  %6446 = vmatmul.f32.gmra.mxu0 %v6239
  %v6447 = vpop.f32.mrf.mxu0
  %v6448 = vadd.f32 %v6218, %v6447
  %6449 = vmatmul.f32.gmra.mxu0 %v6242
  %v6450 = vpop.f32.mrf.mxu0
  %v6451 = vadd.f32 %v6218, %v6450
  %6452 = vmatmul.f32.gmra.mxu0 %v6245
  %v6453 = vpop.f32.mrf.mxu0
  %v6454 = vadd.f32 %v6218, %v6453
  %6455 = vmatmul.f32.gmra.mxu0 %v6248
  %v6456 = vpop.f32.mrf.mxu0
  %v6457 = vadd.f32 %v6218, %v6456
  %6458 = vmatmul.f32.gmra.mxu0 %v6251
  %v6459 = vpop.f32.mrf.mxu0
  %v6460 = vadd.f32 %v6218, %v6459
  %6461 = vmatmul.f32.gmra.mxu0 %v6254
  %v6462 = vpop.f32.mrf.mxu0
  %v6463 = vadd.f32 %v6218, %v6462
  %6464 = vmatmul.f32.gmra.mxu0 %v6257
  %v6465 = vpop.f32.mrf.mxu0
  %v6466 = vadd.f32 %v6218, %v6465
  %6467 = vmatmul.f32.gmra.mxu0 %v6260
  %v6468 = vpop.f32.mrf.mxu0
  %v6469 = vadd.f32 %v6218, %v6468
  %6470 = vmatmul.f32.gmra.mxu0 %v6263
  %v6471 = vpop.f32.mrf.mxu0
  %v6472 = vadd.f32 %v6218, %v6471
  %6473 = vmatmul.f32.gmra.mxu0 %v6266
  %v6474 = vpop.f32.mrf.mxu0
  %v6475 = vadd.f32 %v6218, %v6474
  %6476 = vmatmul.f32.gmra.mxu0 %v6269
  %v6477 = vpop.f32.mrf.mxu0
  %v6478 = vadd.f32 %v6218, %v6477
  %6479 = vmatmul.f32.gmra.mxu0 %v6272
  %v6480 = vpop.f32.mrf.mxu0
  %v6481 = vadd.f32 %v6218, %v6480
  %6482 = vmatmul.f32.gmra.mxu0 %v6275
  %v6483 = vpop.f32.mrf.mxu0
  %v6484 = vadd.f32 %v6218, %v6483
  %6485 = vmatmul.f32.gmra.mxu0 %v6278
  %v6486 = vpop.f32.mrf.mxu0
  %v6487 = vadd.f32 %v6218, %v6486
  %6488 = vmatmul.f32.gmra.mxu0 %v6281
  %v6489 = vpop.f32.mrf.mxu0
  %v6490 = vadd.f32 %v6218, %v6489
  %6491 = vmatmul.f32.gmra.mxu0 %v6284
  %v6492 = vpop.f32.mrf.mxu0
  %v6493 = vadd.f32 %v6218, %v6492
  %6494 = vmatmul.f32.gmra.mxu0 %v6287
  %v6495 = vpop.f32.mrf.mxu0
  %v6496 = vadd.f32 %v6218, %v6495
  %6497 = vmatmul.f32.gmra.mxu0 %v6290
  %v6498 = vpop.f32.mrf.mxu0
  %v6499 = vadd.f32 %v6218, %v6498
  %6500 = vmatmul.f32.gmra.mxu0 %v6293
  %v6501 = vpop.f32.mrf.mxu0
  %v6502 = vadd.f32 %v6218, %v6501
  %6503 = vmatmul.f32.gmra.mxu0 %v6296
  %v6504 = vpop.f32.mrf.mxu0
  %v6505 = vadd.f32 %v6218, %v6504
  %6506 = vmatmul.f32.gmra.mxu0 %v6299
  %v6507 = vpop.f32.mrf.mxu0
  %v6508 = vadd.f32 %v6218, %v6507
  %6509 = vmatmul.f32.gmra.mxu0 %v6302
  %v6510 = vpop.f32.mrf.mxu0
  %v6511 = vadd.f32 %v6218, %v6510
  %6512 = vmatmul.f32.gmra.mxu0 %v6305
  %v6513 = vpop.f32.mrf.mxu0
  %v6514 = vadd.f32 %v6218, %v6513
  %6515 = vmatmul.f32.gmra.mxu0 %v6308
  %v6516 = vpop.f32.mrf.mxu0
  %v6517 = vadd.f32 %v6218, %v6516
  %6518 = vmatmul.f32.gmra.mxu0 %v6311
  %v6519 = vpop.f32.mrf.mxu0
  %6520 = vmatmul.f32.gmra.mxu0 %v6314
  %v6521 = vpop.f32.mrf.mxu0
  %6522 = vmatmul.f32.gmra.mxu0 %v6317
  %v6523 = vpop.f32.mrf.mxu0
  %6524 = vmatmul.f32.gmra.mxu0 %v6320
  %v6525 = vpop.f32.mrf.mxu0
  %6526 = vmatmul.f32.gmra.mxu0 %v6323
  %v6527 = vpop.f32.mrf.mxu0
  %v6528 = vadd.f32 %v6218, %v6527
  %6529 = vmatmul.f32.gmra.mxu0 %v6326
  %v6530 = vpop.f32.mrf.mxu0
  %v6531 = vadd.f32 %v6218, %v6530
  %6532 = vmatmul.f32.gmra.mxu0 %v6329
  %v6533 = vpop.f32.mrf.mxu0
  %v6534 = vadd.f32 %v6218, %v6533
  %6535 = vmatmul.f32.gmra.mxu0 %v6332
  %v6536 = vpop.f32.mrf.mxu0
  %v6537 = vadd.f32 %v6218, %v6536
  %6538 = vmatmul.f32.gmra.mxu0 %v6335
  %v6539 = vpop.f32.mrf.mxu0
  %v6540 = vadd.f32 %v6218, %v6539
  %6541 = vmatmul.f32.gmra.mxu0 %v6338
  %v6542 = vpop.f32.mrf.mxu0
  %v6543 = vadd.f32 %v6218, %v6542
  %6544 = vmatmul.f32.gmra.mxu0 %v6341
  %v6545 = vpop.f32.mrf.mxu0
  %v6546 = vadd.f32 %v6218, %v6545
  %6547 = vmatmul.f32.gmra.mxu0 %v6344
  %v6548 = vpop.f32.mrf.mxu0
  %v6549 = vadd.f32 %v6218, %v6548
  %6550 = vmatmul.f32.gmra.mxu0 %v6347
  %v6551 = vpop.f32.mrf.mxu0
  %v6552 = vadd.f32 %v6218, %v6551
  %6553 = vmatmul.f32.gmra.mxu0 %v6350
  %v6554 = vpop.f32.mrf.mxu0
  %v6555 = vadd.f32 %v6218, %v6554
  %6556 = vmatmul.f32.gmra.mxu0 %v6353
  %v6557 = vpop.f32.mrf.mxu0
  %v6558 = vadd.f32 %v6218, %v6557
  %6559 = vmatmul.f32.gmra.mxu0 %v6356
  %v6560 = vpop.f32.mrf.mxu0
  %v6561 = vadd.f32 %v6218, %v6560
  %6562 = vmatmul.f32.gmra.mxu0 %v6359
  %v6563 = vpop.f32.mrf.mxu0
  %v6564 = vadd.f32 %v6218, %v6563
  %6565 = vmatmul.f32.gmra.mxu0 %v6362
  %v6566 = vpop.f32.mrf.mxu0
  %v6567 = vadd.f32 %v6218, %v6566
  %6568 = vmatmul.f32.gmra.mxu0 %v6365
  %v6569 = vpop.f32.mrf.mxu0
  %v6570 = vadd.f32 %v6218, %v6569
  %6571 = vmatmul.f32.gmra.mxu0 %v6368
  %v6572 = vpop.f32.mrf.mxu0
  %v6573 = vadd.f32 %v6218, %v6572
  %6574 = vmatmul.f32.gmra.mxu0 %v6371
  %v6575 = vpop.f32.mrf.mxu0
  %v6576 = vadd.f32 %v6218, %v6575
  %6577 = vmatmul.f32.gmra.mxu0 %v6374
  %v6578 = vpop.f32.mrf.mxu0
  %v6579 = vadd.f32 %v6218, %v6578
  %6580 = vmatmul.f32.gmra.mxu0 %v6377
  %v6581 = vpop.f32.mrf.mxu0
  %v6582 = vadd.f32 %v6218, %v6581
  %6583 = vmatmul.f32.gmra.mxu0 %v6380
  %v6584 = vpop.f32.mrf.mxu0
  %v6585 = vadd.f32 %v6218, %v6584
  %6586 = vmatmul.f32.gmra.mxu0 %v6383
  %v6587 = vpop.f32.mrf.mxu0
  %v6588 = vadd.f32 %v6218, %v6587
  %6589 = vmatmul.f32.gmra.mxu0 %v6386
  %v6590 = vpop.f32.mrf.mxu0
  %v6591 = vadd.f32 %v6218, %v6590
  %6592 = vmatmul.f32.gmra.mxu0 %v6389
  %v6593 = vpop.f32.mrf.mxu0
  %v6594 = vadd.f32 %v6218, %v6593
  %6595 = vmatmul.f32.gmra.mxu0 %v6392
  %v6596 = vpop.f32.mrf.mxu0
  %v6597 = vadd.f32 %v6218, %v6596
  %6598 = vmatmul.f32.gmra.mxu0 %v6395
  %v6599 = vpop.f32.mrf.mxu0
  %v6600 = vadd.f32 %v6218, %v6599
  %6601 = vmatmul.f32.gmra.mxu0 %v6398
  %v6602 = vpop.f32.mrf.mxu0
  %v6603 = vadd.f32 %v6218, %v6602
  %6604 = vmatmul.f32.gmra.mxu0 %v6401
  %v6605 = vpop.f32.mrf.mxu0
  %v6606 = vadd.f32 %v6218, %v6605
  %6607 = vmatmul.f32.gmra.mxu0 %v6404
  %v6608 = vpop.f32.mrf.mxu0
  %v6609 = vadd.f32 %v6218, %v6608
  %6610 = vmatmul.f32.gmra.mxu0 %v6407
  %v6611 = vpop.f32.mrf.mxu0
  %6612 = vmatmul.f32.gmra.mxu0 %v6410
  %v6613 = vpop.f32.mrf.mxu0
  %6614 = vdwg.mxu0
  %6615 = vst.msk [vmem:[#allocation2] sm:$0xff] %vm2914, 0.0
  %6616 = vst.msk [vmem:[#allocation2 + $0x8] sm:$0xff] %vm2914, 0.0
  %vm6617 = vcmask 25600
  %6618 = vst.msk [vmem:[#allocation2 + $0x10] sm:$0x3] %vm6617, 0.0
  %6619 = vst.msk [vmem:[#allocation2 + $0x18] sm:$0xff] %vm2914, 0.0
  %6620 = vst.msk [vmem:[#allocation2 + $0x20] sm:$0xff] %vm2914, 0.0
  %6621 = vst.msk [vmem:[#allocation2 + $0x28] sm:$0x3] %vm6617, 0.0
  %6622 = vst.msk [vmem:[#allocation2 + $0x30] sm:$0xff] %vm2914, 0.0
  %6623 = vst.msk [vmem:[#allocation2 + $0x38] sm:$0xff] %vm2914, 0.0
  %6624 = vst.msk [vmem:[#allocation2 + $0x40] sm:$0x3] %vm6617, 0.0
  %6625 = vst.msk [vmem:[#allocation2 + $0x48] sm:$0xff] %vm2914, 0.0
  %6626 = vst.msk [vmem:[#allocation2 + $0x50] sm:$0xff] %vm2914, 0.0
  %6627 = vst.msk [vmem:[#allocation2 + $0x58] sm:$0x3] %vm6617, 0.0
  %6628 = vst.msk [vmem:[#allocation2 + $0x60] sm:$0xff] %vm2914, 0.0
  %6629 = vst.msk [vmem:[#allocation2 + $0x68] sm:$0xff] %vm2914, 0.0
  %6630 = vst.msk [vmem:[#allocation2 + $0x70] sm:$0x3] %vm6617, 0.0
  %6631 = vst.msk [vmem:[#allocation2 + $0x78] sm:$0xff] %vm2914, 0.0
  %6632 = vst.msk [vmem:[#allocation2 + $0x80] sm:$0xff] %vm2914, 0.0
  %6633 = vst.msk [vmem:[#allocation2 + $0x88] sm:$0x3] %vm6617, 0.0
  %6634 = vst.msk [vmem:[#allocation2 + $0x90] sm:$0xff] %vm2914, 0.0
  %6635 = vst.msk [vmem:[#allocation2 + $0x98] sm:$0xff] %vm2914, 0.0
  %6636 = vst.msk [vmem:[#allocation2 + $0xa0] sm:$0x3] %vm6617, 0.0
  %6637 = vst.msk [vmem:[#allocation2 + $0xa8] sm:$0xff] %vm2914, 0.0
  %6638 = vst.msk [vmem:[#allocation2 + $0xb0] sm:$0xff] %vm2914, 0.0
  %6639 = vst.msk [vmem:[#allocation2 + $0xb8] sm:$0x3] %vm6617, 0.0
  %6640 = vst.msk [vmem:[#allocation2 + $0xc0] sm:$0xff] %vm2914, 0.0
  %6641 = vst.msk [vmem:[#allocation2 + $0xc8] sm:$0xff] %vm2914, 0.0
  %6642 = vst.msk [vmem:[#allocation2 + $0xd0] sm:$0x3] %vm6617, 0.0
  %6643 = vst.msk [vmem:[#allocation2 + $0xd8] sm:$0xff] %vm2914, 0.0
  %6644 = vst.msk [vmem:[#allocation2 + $0xe0] sm:$0xff] %vm2914, 0.0
  %6645 = vst.msk [vmem:[#allocation2 + $0xe8] sm:$0x3] %vm6617, 0.0
  %6646 = vst.msk [vmem:[#allocation2 + $0xf0] sm:$0xff] %vm2914, 0.0
  %6647 = vst.msk [vmem:[#allocation2 + $0xf8] sm:$0xff] %vm2914, 0.0
  %6648 = vst.msk [vmem:[#allocation2 + $0x100] sm:$0x3] %vm6617, 0.0
  %6649 = vst.msk [vmem:[#allocation2 + $0x108] sm:$0xff] %vm2914, 0.0
  %6650 = vst.msk [vmem:[#allocation2 + $0x110] sm:$0xff] %vm2914, 0.0
  %6651 = vst.msk [vmem:[#allocation2 + $0x118] sm:$0x3] %vm6617, 0.0
  %6652 = vst.msk [vmem:[#allocation2 + $0x120] sm:$0xff] %vm2914, 0.0
  %6653 = vst.msk [vmem:[#allocation2 + $0x128] sm:$0xff] %vm2914, 0.0
  %6654 = vst.msk [vmem:[#allocation2 + $0x130] sm:$0x3] %vm6617, 0.0
  %6655 = vst.msk [vmem:[#allocation2 + $0x138] sm:$0xff] %vm2914, 0.0
  %6656 = vst.msk [vmem:[#allocation2 + $0x140] sm:$0xff] %vm2914, 0.0
  %6657 = vst.msk [vmem:[#allocation2 + $0x148] sm:$0x3] %vm6617, 0.0
  %6658 = vst.msk [vmem:[#allocation2 + $0x150] sm:$0xff] %vm2914, 0.0
  %6659 = vst.msk [vmem:[#allocation2 + $0x158] sm:$0xff] %vm2914, 0.0
  %6660 = vst.msk [vmem:[#allocation2 + $0x160] sm:$0x3] %vm6617, 0.0
  %6661 = vst.msk [vmem:[#allocation2 + $0x168] sm:$0xff] %vm2914, 0.0
  %6662 = vst.msk [vmem:[#allocation2 + $0x170] sm:$0xff] %vm2914, 0.0
  %6663 = vst.msk [vmem:[#allocation2 + $0x178] sm:$0x3] %vm6617, 0.0
  %6664 = vst.msk [vmem:[#allocation2 + $0x180] sm:$0xff] %vm2914, 0.0
  %6665 = vst.msk [vmem:[#allocation2 + $0x188] sm:$0xff] %vm2914, 0.0
  %6666 = vst.msk [vmem:[#allocation2 + $0x190] sm:$0x3] %vm6617, 0.0
  %6667 = vst.msk [vmem:[#allocation2 + $0x198] sm:$0xff] %vm2914, 0.0
  %6668 = vst.msk [vmem:[#allocation2 + $0x1a0] sm:$0xff] %vm2914, 0.0
  %6669 = vst.msk [vmem:[#allocation2 + $0x1a8] sm:$0x3] %vm6617, 0.0
  %6670 = vst.msk [vmem:[#allocation2 + $0x1b0] sm:$0xff] %vm2914, 0.0
  %6671 = vst.msk [vmem:[#allocation2 + $0x1b8] sm:$0xff] %vm2914, 0.0
  %6672 = vst.msk [vmem:[#allocation2 + $0x1c0] sm:$0x3] %vm6617, 0.0
  %6673 = vst.msk [vmem:[#allocation2 + $0x1c8] sm:$0xff] %vm2914, 0.0
  %6674 = vst.msk [vmem:[#allocation2 + $0x1d0] sm:$0xff] %vm2914, 0.0
  %6675 = vst.msk [vmem:[#allocation2 + $0x1d8] sm:$0x3] %vm6617, 0.0
  %6676 = vst.msk [vmem:[#allocation2 + $0x1e0] sm:$0xff] %vm2914, 0.0
  %6677 = vst.msk [vmem:[#allocation2 + $0x1e8] sm:$0xff] %vm2914, 0.0
  %6678 = vst.msk [vmem:[#allocation2 + $0x1f0] sm:$0x3] %vm6617, 0.0
  %6679 = vst.msk [vmem:[#allocation2 + $0x1f8] sm:$0xff] %vm2914, 0.0
  %6680 = vst.msk [vmem:[#allocation2 + $0x200] sm:$0xff] %vm2914, 0.0
  %6681 = vst.msk [vmem:[#allocation2 + $0x208] sm:$0x3] %vm6617, 0.0
  %6682 = vst.msk [vmem:[#allocation2 + $0x210] sm:$0xff] %vm2914, 0.0
  %6683 = vst.msk [vmem:[#allocation2 + $0x218] sm:$0xff] %vm2914, 0.0
  %6684 = vst.msk [vmem:[#allocation2 + $0x220] sm:$0x3] %vm6617, 0.0
  %6685 = vst.msk [vmem:[#allocation2 + $0x228] sm:$0xff] %vm2914, 0.0
  %6686 = vst.msk [vmem:[#allocation2 + $0x230] sm:$0xff] %vm2914, 0.0
  %6687 = vst.msk [vmem:[#allocation2 + $0x238] sm:$0x3] %vm6617, 0.0
  %6688 = vst.msk [vmem:[#allocation2 + $0x240] sm:$0xff] %vm2914, 0.0
  %6689 = vst.msk [vmem:[#allocation2 + $0x248] sm:$0xff] %vm2914, 0.0
  %6690 = vst.msk [vmem:[#allocation2 + $0x250] sm:$0x3] %vm6617, 0.0
  %6691 = vst.msk [vmem:[#allocation2 + $0x258] sm:$0xff] %vm2914, 0.0
  %6692 = vst.msk [vmem:[#allocation2 + $0x260] sm:$0xff] %vm2914, 0.0
  %6693 = vst.msk [vmem:[#allocation2 + $0x268] sm:$0x3] %vm6617, 0.0
  %6694 = vst.msk [vmem:[#allocation2 + $0x270] sm:$0xff] %vm2914, 0.0
  %6695 = vst.msk [vmem:[#allocation2 + $0x278] sm:$0xff] %vm2914, 0.0
  %6696 = vst.msk [vmem:[#allocation2 + $0x280] sm:$0x3] %vm6617, 0.0
  %6697 = vst.msk [vmem:[#allocation2 + $0x288] sm:$0xff] %vm2914, 0.0
  %6698 = vst.msk [vmem:[#allocation2 + $0x290] sm:$0xff] %vm2914, 0.0
  %6699 = vst.msk [vmem:[#allocation2 + $0x298] sm:$0x3] %vm6617, 0.0
  %6700 = vst.msk [vmem:[#allocation2 + $0x2a0] sm:$0xff] %vm2914, 0.0
  %6701 = vst.msk [vmem:[#allocation2 + $0x2a8] sm:$0xff] %vm2914, 0.0
  %6702 = vst.msk [vmem:[#allocation2 + $0x2b0] sm:$0x3] %vm6617, 0.0
  %6703 = vst.msk [vmem:[#allocation2 + $0x2b8] sm:$0xff] %vm2914, 0.0
  %6704 = vst.msk [vmem:[#allocation2 + $0x2c0] sm:$0xff] %vm2914, 0.0
  %6705 = vst.msk [vmem:[#allocation2 + $0x2c8] sm:$0x3] %vm6617, 0.0
  %6706 = vst.msk [vmem:[#allocation2 + $0x2d0] sm:$0xff] %vm2914, 0.0
  %6707 = vst.msk [vmem:[#allocation2 + $0x2d8] sm:$0xff] %vm2914, 0.0
  %6708 = vst.msk [vmem:[#allocation2 + $0x2e0] sm:$0x3] %vm6617, 0.0
  %6709 = vst.msk [vmem:[#allocation2 + $0x2e8] sm:$0xff] %vm2914, 0.0
  %6710 = vst.msk [vmem:[#allocation2 + $0x2f0] sm:$0xff] %vm2914, 0.0
  %6711 = vst.msk [vmem:[#allocation2 + $0x2f8] sm:$0x3] %vm6617, 0.0
  %6712 = vst.msk [vmem:[#allocation2 + $0x300] sm:$0xff] %vm2914, 0.0
  %6713 = vst.msk [vmem:[#allocation2 + $0x308] sm:$0xff] %vm2914, 0.0
  %6714 = vst.msk [vmem:[#allocation2 + $0x310] sm:$0x3] %vm6617, 0.0
  %6715 = vst.msk [vmem:[#allocation2 + $0x318] sm:$0xff] %vm2914, 0.0
  %6716 = vst.msk [vmem:[#allocation2 + $0x320] sm:$0xff] %vm2914, 0.0
  %6717 = vst.msk [vmem:[#allocation2 + $0x328] sm:$0x3] %vm6617, 0.0
  %6718 = vst.msk [vmem:[#allocation2 + $0x330] sm:$0xff] %vm2914, 0.0
  %6719 = vst.msk [vmem:[#allocation2 + $0x338] sm:$0xff] %vm2914, 0.0
  %6720 = vst.msk [vmem:[#allocation2 + $0x340] sm:$0x3] %vm6617, 0.0
  %6721 = vst.msk [vmem:[#allocation2 + $0x348] sm:$0xff] %vm2914, 0.0
  %6722 = vst.msk [vmem:[#allocation2 + $0x350] sm:$0xff] %vm2914, 0.0
  %6723 = vst.msk [vmem:[#allocation2 + $0x358] sm:$0x3] %vm6617, 0.0
  %6788 = vrot.lane.b32.xlu0 %v6008, 124
  %v6789 = vpop.permute.xlu0 %6788
  %6790 = vrot.lane.b32.xlu0 %v6011, 124
  %v6791 = vpop.permute.xlu0 %6790
  %6792 = vrot.lane.b32.xlu0 %v6014, 124
  %v6793 = vpop.permute.xlu0 %6792
  %6794 = vrot.lane.b32.xlu0 %v6017, 124
  %v6795 = vpop.permute.xlu0 %6794
  %6796 = vrot.lane.b32.xlu0 %v6020, 124
  %v6797 = vpop.permute.xlu0 %6796
  %6798 = vrot.lane.b32.xlu0 %v6023, 124
  %v6799 = vpop.permute.xlu0 %6798
  %6800 = vrot.lane.b32.xlu0 %v6026, 124
  %v6801 = vpop.permute.xlu0 %6800
  %6802 = vrot.lane.b32.xlu0 %v6029, 124
  %v6803 = vpop.permute.xlu0 %6802
  %6804 = vrot.lane.b32.xlu0 %v6032, 124
  %v6805 = vpop.permute.xlu0 %6804
  %6806 = vrot.lane.b32.xlu0 %v6035, 124
  %v6807 = vpop.permute.xlu0 %6806
  %6808 = vrot.lane.b32.xlu0 %v6038, 124
  %v6809 = vpop.permute.xlu0 %6808
  %6810 = vrot.lane.b32.xlu0 %v6041, 124
  %v6811 = vpop.permute.xlu0 %6810
  %6812 = vrot.lane.b32.xlu0 %v6044, 124
  %v6813 = vpop.permute.xlu0 %6812
  %6814 = vrot.lane.b32.xlu0 %v6047, 124
  %v6815 = vpop.permute.xlu0 %6814
  %6816 = vrot.lane.b32.xlu0 %v6050, 124
  %v6817 = vpop.permute.xlu0 %6816
  %6818 = vrot.lane.b32.xlu0 %v6053, 124
  %v6819 = vpop.permute.xlu0 %6818
  %6820 = vrot.lane.b32.xlu0 %v6056, 124
  %v6821 = vpop.permute.xlu0 %6820
  %6822 = vrot.lane.b32.xlu0 %v6059, 124
  %v6823 = vpop.permute.xlu0 %6822
  %6824 = vrot.lane.b32.xlu0 %v6062, 124
  %v6825 = vpop.permute.xlu0 %6824
  %6826 = vrot.lane.b32.xlu0 %v6065, 124
  %v6827 = vpop.permute.xlu0 %6826
  %6828 = vrot.lane.b32.xlu0 %v6068, 124
  %v6829 = vpop.permute.xlu0 %6828
  %6830 = vrot.lane.b32.xlu0 %v6071, 124
  %v6831 = vpop.permute.xlu0 %6830
  %6832 = vrot.lane.b32.xlu0 %v6074, 124
  %v6833 = vpop.permute.xlu0 %6832
  %6834 = vrot.lane.b32.xlu0 %v6077, 124
  %v6835 = vpop.permute.xlu0 %6834
  %6836 = vrot.lane.b32.xlu0 %v6080, 124
  %v6837 = vpop.permute.xlu0 %6836
  %6838 = vrot.lane.b32.xlu0 %v6083, 124
  %v6839 = vpop.permute.xlu0 %6838
  %6840 = vrot.lane.b32.xlu0 %v6086, 124
  %v6841 = vpop.permute.xlu0 %6840
  %6842 = vrot.lane.b32.xlu0 %v6089, 124
  %v6843 = vpop.permute.xlu0 %6842
  %6844 = vrot.lane.b32.xlu0 %v6092, 124
  %v6845 = vpop.permute.xlu0 %6844
  %6846 = vrot.lane.b32.xlu0 %v6095, 124
  %v6847 = vpop.permute.xlu0 %6846
  %6848 = vrot.lane.b32.xlu0 %v6098, 124
  %v6849 = vpop.permute.xlu0 %6848
  %6850 = vrot.lane.b32.xlu0 %v6101, 124
  %v6851 = vpop.permute.xlu0 %6850
  %6852 = vrot.lane.b32.xlu0 %v6104, 124
  %v6853 = vpop.permute.xlu0 %6852
  %6854 = vrot.lane.b32.xlu0 %v6107, 124
  %v6855 = vpop.permute.xlu0 %6854
  %6856 = vrot.lane.b32.xlu0 %v6110, 124
  %v6857 = vpop.permute.xlu0 %6856
  %6858 = vrot.lane.b32.xlu0 %v6113, 124
  %v6859 = vpop.permute.xlu0 %6858
  %6860 = vrot.lane.b32.xlu0 %v6116, 124
  %v6861 = vpop.permute.xlu0 %6860
  %6862 = vrot.lane.b32.xlu0 %v6119, 124
  %v6863 = vpop.permute.xlu0 %6862
  %6864 = vrot.lane.b32.xlu0 %v6122, 124
  %v6865 = vpop.permute.xlu0 %6864
  %6866 = vrot.lane.b32.xlu0 %v6125, 124
  %v6867 = vpop.permute.xlu0 %6866
  %6868 = vrot.lane.b32.xlu0 %v6128, 124
  %v6869 = vpop.permute.xlu0 %6868
  %6870 = vrot.lane.b32.xlu0 %v6131, 124
  %v6871 = vpop.permute.xlu0 %6870
  %6872 = vrot.lane.b32.xlu0 %v6134, 124
  %v6873 = vpop.permute.xlu0 %6872
  %6874 = vrot.lane.b32.xlu0 %v6137, 124
  %v6875 = vpop.permute.xlu0 %6874
  %6876 = vrot.lane.b32.xlu0 %v6140, 124
  %v6877 = vpop.permute.xlu0 %6876
  %6878 = vrot.lane.b32.xlu0 %v6143, 124
  %v6879 = vpop.permute.xlu0 %6878
  %6880 = vrot.lane.b32.xlu0 %v6146, 124
  %v6881 = vpop.permute.xlu0 %6880
  %6882 = vrot.lane.b32.xlu0 %v6149, 124
  %v6883 = vpop.permute.xlu0 %6882
  %6884 = vrot.lane.b32.xlu0 %v6152, 124
  %v6885 = vpop.permute.xlu0 %6884
  %6886 = vrot.lane.b32.xlu0 %v6155, 124
  %v6887 = vpop.permute.xlu0 %6886
  %6888 = vrot.lane.b32.xlu0 %v6158, 124
  %v6889 = vpop.permute.xlu0 %6888
  %6890 = vrot.lane.b32.xlu0 %v6161, 124
  %v6891 = vpop.permute.xlu0 %6890
  %6892 = vrot.lane.b32.xlu0 %v6164, 124
  %v6893 = vpop.permute.xlu0 %6892
  %6894 = vrot.lane.b32.xlu0 %v6167, 124
  %v6895 = vpop.permute.xlu0 %6894
  %6896 = vrot.lane.b32.xlu0 %v6170, 124
  %v6897 = vpop.permute.xlu0 %6896
  %6898 = vrot.lane.b32.xlu0 %v6173, 124
  %v6899 = vpop.permute.xlu0 %6898
  %6900 = vrot.lane.b32.xlu0 %v6176, 124
  %v6901 = vpop.permute.xlu0 %6900
  %6902 = vrot.lane.b32.xlu0 %v6179, 124
  %v6903 = vpop.permute.xlu0 %6902
  %6904 = vrot.lane.b32.xlu0 %v6182, 124
  %v6905 = vpop.permute.xlu0 %6904
  %6906 = vrot.lane.b32.xlu0 %v6185, 124
  %v6907 = vpop.permute.xlu0 %6906
  %6908 = vrot.lane.b32.xlu0 %v6188, 124
  %v6909 = vpop.permute.xlu0 %6908
  %6910 = vrot.lane.b32.xlu0 %v6191, 124
  %v6911 = vpop.permute.xlu0 %6910
  %6912 = vrot.lane.b32.xlu0 %v6194, 124
  %v6913 = vpop.permute.xlu0 %6912
  %6914 = vrot.lane.b32.xlu0 %v6197, 124
  %v6915 = vpop.permute.xlu0 %6914
  %s6980 = scalar_lea.vmem [#allocation2], 24
  %6981 = vst.msk [vmem:[%s6980 + $0x1] sm:$0xff] %vm2914, %v6789
  %6982 = vst.msk [vmem:[%s6980 + $0x9] sm:$0xff] %vm2914, %v6791
  %6983 = vst.msk [vmem:[%s6980 + $0x19] sm:$0xff] %vm2914, %v6793
  %6984 = vst.msk [vmem:[%s6980 + $0x21] sm:$0xff] %vm2914, %v6795
  %6985 = vst.msk [vmem:[%s6980 + $0x31] sm:$0xff] %vm2914, %v6797
  %6986 = vst.msk [vmem:[%s6980 + $0x39] sm:$0xff] %vm2914, %v6799
  %6987 = vst.msk [vmem:[%s6980 + $0x49] sm:$0xff] %vm2914, %v6801
  %6988 = vst.msk [vmem:[%s6980 + $0x51] sm:$0xff] %vm2914, %v6803
  %6989 = vst.msk [vmem:[%s6980 + $0x61] sm:$0xff] %vm2914, %v6805
  %6990 = vst.msk [vmem:[%s6980 + $0x69] sm:$0xff] %vm2914, %v6807
  %6991 = vst.msk [vmem:[%s6980 + $0x79] sm:$0xff] %vm2914, %v6809
  %6992 = vst.msk [vmem:[%s6980 + $0x81] sm:$0xff] %vm2914, %v6811
  %6993 = vst.msk [vmem:[%s6980 + $0x91] sm:$0xff] %vm2914, %v6813
  %6994 = vst.msk [vmem:[%s6980 + $0x99] sm:$0xff] %vm2914, %v6815
  %6995 = vst.msk [vmem:[%s6980 + $0xa9] sm:$0xff] %vm2914, %v6817
  %6996 = vst.msk [vmem:[%s6980 + $0xb1] sm:$0xff] %vm2914, %v6819
  %6997 = vst.msk [vmem:[%s6980 + $0xc1] sm:$0xff] %vm2914, %v6821
  %6998 = vst.msk [vmem:[%s6980 + $0xc9] sm:$0xff] %vm2914, %v6823
  %6999 = vst.msk [vmem:[%s6980 + $0xd9] sm:$0xff] %vm2914, %v6825
  %7000 = vst.msk [vmem:[%s6980 + $0xe1] sm:$0xff] %vm2914, %v6827
  %7001 = vst.msk [vmem:[%s6980 + $0xf1] sm:$0xff] %vm2914, %v6829
  %7002 = vst.msk [vmem:[%s6980 + $0xf9] sm:$0xff] %vm2914, %v6831
  %7003 = vst.msk [vmem:[%s6980 + $0x109] sm:$0xff] %vm2914, %v6833
  %7004 = vst.msk [vmem:[%s6980 + $0x111] sm:$0xff] %vm2914, %v6835
  %7005 = vst.msk [vmem:[%s6980 + $0x121] sm:$0xff] %vm2914, %v6837
  %7006 = vst.msk [vmem:[%s6980 + $0x129] sm:$0xff] %vm2914, %v6839
  %7007 = vst.msk [vmem:[%s6980 + $0x139] sm:$0xff] %vm2914, %v6841
  %7008 = vst.msk [vmem:[%s6980 + $0x141] sm:$0xff] %vm2914, %v6843
  %7009 = vst.msk [vmem:[%s6980 + $0x151] sm:$0xff] %vm2914, %v6845
  %7010 = vst.msk [vmem:[%s6980 + $0x159] sm:$0xff] %vm2914, %v6847
  %7011 = vst.msk [vmem:[%s6980 + $0x169] sm:$0xff] %vm2914, %v6849
  %7012 = vst.msk [vmem:[%s6980 + $0x171] sm:$0xff] %vm2914, %v6851
  %7013 = vst.msk [vmem:[%s6980 + $0x1b1] sm:$0xff] %vm2914, %v6853
  %7014 = vst.msk [vmem:[%s6980 + $0x1b9] sm:$0xff] %vm2914, %v6855
  %7015 = vst.msk [vmem:[%s6980 + $0x1c9] sm:$0xff] %vm2914, %v6857
  %7016 = vst.msk [vmem:[%s6980 + $0x1d1] sm:$0xff] %vm2914, %v6859
  %7017 = vst.msk [vmem:[%s6980 + $0x1e1] sm:$0xff] %vm2914, %v6861
  %7018 = vst.msk [vmem:[%s6980 + $0x1e9] sm:$0xff] %vm2914, %v6863
  %7019 = vst.msk [vmem:[%s6980 + $0x1f9] sm:$0xff] %vm2914, %v6865
  %7020 = vst.msk [vmem:[%s6980 + $0x201] sm:$0xff] %vm2914, %v6867
  %7021 = vst.msk [vmem:[%s6980 + $0x211] sm:$0xff] %vm2914, %v6869
  %7022 = vst.msk [vmem:[%s6980 + $0x219] sm:$0xff] %vm2914, %v6871
  %7023 = vst.msk [vmem:[%s6980 + $0x229] sm:$0xff] %vm2914, %v6873
  %7024 = vst.msk [vmem:[%s6980 + $0x231] sm:$0xff] %vm2914, %v6875
  %7025 = vst.msk [vmem:[%s6980 + $0x241] sm:$0xff] %vm2914, %v6877
  %7026 = vst.msk [vmem:[%s6980 + $0x249] sm:$0xff] %vm2914, %v6879
  %7027 = vst.msk [vmem:[%s6980 + $0x259] sm:$0xff] %vm2914, %v6881
  %7028 = vst.msk [vmem:[%s6980 + $0x261] sm:$0xff] %vm2914, %v6883
  %7029 = vst.msk [vmem:[%s6980 + $0x271] sm:$0xff] %vm2914, %v6885
  %7030 = vst.msk [vmem:[%s6980 + $0x279] sm:$0xff] %vm2914, %v6887
  %7031 = vst.msk [vmem:[%s6980 + $0x289] sm:$0xff] %vm2914, %v6889
  %7032 = vst.msk [vmem:[%s6980 + $0x291] sm:$0xff] %vm2914, %v6891
  %7033 = vst.msk [vmem:[%s6980 + $0x2a1] sm:$0xff] %vm2914, %v6893
  %7034 = vst.msk [vmem:[%s6980 + $0x2a9] sm:$0xff] %vm2914, %v6895
  %7035 = vst.msk [vmem:[%s6980 + $0x2b9] sm:$0xff] %vm2914, %v6897
  %7036 = vst.msk [vmem:[%s6980 + $0x2c1] sm:$0xff] %vm2914, %v6899
  %7037 = vst.msk [vmem:[%s6980 + $0x2d1] sm:$0xff] %vm2914, %v6901
  %7038 = vst.msk [vmem:[%s6980 + $0x2d9] sm:$0xff] %vm2914, %v6903
  %7039 = vst.msk [vmem:[%s6980 + $0x2e9] sm:$0xff] %vm2914, %v6905
  %7040 = vst.msk [vmem:[%s6980 + $0x2f1] sm:$0xff] %vm2914, %v6907
  %7041 = vst.msk [vmem:[%s6980 + $0x301] sm:$0xff] %vm2914, %v6909
  %7042 = vst.msk [vmem:[%s6980 + $0x309] sm:$0xff] %vm2914, %v6911
  %7043 = vst.msk [vmem:[%s6980 + $0x319] sm:$0xff] %vm2914, %v6913
  %7044 = vst.msk [vmem:[%s6980 + $0x321] sm:$0xff] %vm2914, %v6915
  %v7045 = vld [vmem:[#allocation2] sm:$0xff]
  %v7046 = vld [vmem:[#allocation2 + $0x8] sm:$0xff]
  %v7047 = vld [vmem:[#allocation2 + $0x18] sm:$0xff]
  %v7048 = vld [vmem:[#allocation2 + $0x20] sm:$0xff]
  %v7049 = vld [vmem:[#allocation2 + $0x30] sm:$0xff]
  %v7050 = vld [vmem:[#allocation2 + $0x38] sm:$0xff]
  %v7051 = vld [vmem:[#allocation2 + $0x48] sm:$0xff]
  %v7052 = vld [vmem:[#allocation2 + $0x50] sm:$0xff]
  %v7053 = vld [vmem:[#allocation2 + $0x60] sm:$0xff]
  %v7054 = vld [vmem:[#allocation2 + $0x68] sm:$0xff]
  %v7055 = vld [vmem:[#allocation2 + $0x78] sm:$0xff]
  %v7056 = vld [vmem:[#allocation2 + $0x80] sm:$0xff]
  %v7057 = vld [vmem:[#allocation2 + $0x90] sm:$0xff]
  %v7058 = vld [vmem:[#allocation2 + $0x98] sm:$0xff]
  %v7059 = vld [vmem:[#allocation2 + $0xa8] sm:$0xff]
  %v7060 = vld [vmem:[#allocation2 + $0xb0] sm:$0xff]
  %v7061 = vld [vmem:[#allocation2 + $0xc0] sm:$0xff]
  %v7062 = vld [vmem:[#allocation2 + $0xc8] sm:$0xff]
  %v7063 = vld [vmem:[#allocation2 + $0xd8] sm:$0xff]
  %v7064 = vld [vmem:[#allocation2 + $0xe0] sm:$0xff]
  %v7065 = vld [vmem:[#allocation2 + $0xf0] sm:$0xff]
  %v7066 = vld [vmem:[#allocation2 + $0xf8] sm:$0xff]
  %v7067 = vld [vmem:[#allocation2 + $0x108] sm:$0xff]
  %v7068 = vld [vmem:[#allocation2 + $0x110] sm:$0xff]
  %v7069 = vld [vmem:[#allocation2 + $0x120] sm:$0xff]
  %v7070 = vld [vmem:[#allocation2 + $0x128] sm:$0xff]
  %v7071 = vld [vmem:[#allocation2 + $0x138] sm:$0xff]
  %v7072 = vld [vmem:[#allocation2 + $0x140] sm:$0xff]
  %v7073 = vld [vmem:[#allocation2 + $0x150] sm:$0xff]
  %v7074 = vld [vmem:[#allocation2 + $0x158] sm:$0xff]
  %v7075 = vld [vmem:[#allocation2 + $0x168] sm:$0xff]
  %v7076 = vld [vmem:[#allocation2 + $0x170] sm:$0xff]
  %v7077 = vld [vmem:[#allocation2 + $0x1b0] sm:$0xff]
  %v7078 = vld [vmem:[#allocation2 + $0x1b8] sm:$0xff]
  %v7079 = vld [vmem:[#allocation2 + $0x1c8] sm:$0xff]
  %v7080 = vld [vmem:[#allocation2 + $0x1d0] sm:$0xff]
  %v7081 = vld [vmem:[#allocation2 + $0x1e0] sm:$0xff]
  %v7082 = vld [vmem:[#allocation2 + $0x1e8] sm:$0xff]
  %v7083 = vld [vmem:[#allocation2 + $0x1f8] sm:$0xff]
  %v7084 = vld [vmem:[#allocation2 + $0x200] sm:$0xff]
  %v7085 = vld [vmem:[#allocation2 + $0x210] sm:$0xff]
  %v7086 = vld [vmem:[#allocation2 + $0x218] sm:$0xff]
  %v7087 = vld [vmem:[#allocation2 + $0x228] sm:$0xff]
  %v7088 = vld [vmem:[#allocation2 + $0x230] sm:$0xff]
  %v7089 = vld [vmem:[#allocation2 + $0x240] sm:$0xff]
  %v7090 = vld [vmem:[#allocation2 + $0x248] sm:$0xff]
  %v7091 = vld [vmem:[#allocation2 + $0x258] sm:$0xff]
  %v7092 = vld [vmem:[#allocation2 + $0x260] sm:$0xff]
  %v7093 = vld [vmem:[#allocation2 + $0x270] sm:$0xff]
  %v7094 = vld [vmem:[#allocation2 + $0x278] sm:$0xff]
  %v7095 = vld [vmem:[#allocation2 + $0x288] sm:$0xff]
  %v7096 = vld [vmem:[#allocation2 + $0x290] sm:$0xff]
  %v7097 = vld [vmem:[#allocation2 + $0x2a0] sm:$0xff]
  %v7098 = vld [vmem:[#allocation2 + $0x2a8] sm:$0xff]
  %v7099 = vld [vmem:[#allocation2 + $0x2b8] sm:$0xff]
  %v7100 = vld [vmem:[#allocation2 + $0x2c0] sm:$0xff]
  %v7101 = vld [vmem:[#allocation2 + $0x2d0] sm:$0xff]
  %v7102 = vld [vmem:[#allocation2 + $0x2d8] sm:$0xff]
  %v7103 = vld [vmem:[#allocation2 + $0x2e8] sm:$0xff]
  %v7104 = vld [vmem:[#allocation2 + $0x2f0] sm:$0xff]
  %v7105 = vld [vmem:[#allocation2 + $0x300] sm:$0xff]
  %v7106 = vld [vmem:[#allocation2 + $0x308] sm:$0xff]
  %v7107 = vld [vmem:[#allocation2 + $0x318] sm:$0xff]
  %v7108 = vld [vmem:[#allocation2 + $0x320] sm:$0xff]
  %v7109 = vld [vmem:[#allocation2 + $0x1] sm:$0xff]
  %v7110 = vld [vmem:[#allocation2 + $0x9] sm:$0xff]
  %v7111 = vld [vmem:[#allocation2 + $0x19] sm:$0xff]
  %v7112 = vld [vmem:[#allocation2 + $0x21] sm:$0xff]
  %v7113 = vld [vmem:[#allocation2 + $0x31] sm:$0xff]
  %v7114 = vld [vmem:[#allocation2 + $0x39] sm:$0xff]
  %v7115 = vld [vmem:[#allocation2 + $0x49] sm:$0xff]
  %v7116 = vld [vmem:[#allocation2 + $0x51] sm:$0xff]
  %v7117 = vld [vmem:[#allocation2 + $0x61] sm:$0xff]
  %v7118 = vld [vmem:[#allocation2 + $0x69] sm:$0xff]
  %v7119 = vld [vmem:[#allocation2 + $0x79] sm:$0xff]
  %v7120 = vld [vmem:[#allocation2 + $0x81] sm:$0xff]
  %v7121 = vld [vmem:[#allocation2 + $0x91] sm:$0xff]
  %v7122 = vld [vmem:[#allocation2 + $0x99] sm:$0xff]
  %v7123 = vld [vmem:[#allocation2 + $0xa9] sm:$0xff]
  %v7124 = vld [vmem:[#allocation2 + $0xb1] sm:$0xff]
  %v7125 = vld [vmem:[#allocation2 + $0xc1] sm:$0xff]
  %v7126 = vld [vmem:[#allocation2 + $0xc9] sm:$0xff]
  %v7127 = vld [vmem:[#allocation2 + $0xd9] sm:$0xff]
  %v7128 = vld [vmem:[#allocation2 + $0xe1] sm:$0xff]
  %v7129 = vld [vmem:[#allocation2 + $0xf1] sm:$0xff]
  %v7130 = vld [vmem:[#allocation2 + $0xf9] sm:$0xff]
  %v7131 = vld [vmem:[#allocation2 + $0x109] sm:$0xff]
  %v7132 = vld [vmem:[#allocation2 + $0x111] sm:$0xff]
  %v7133 = vld [vmem:[#allocation2 + $0x121] sm:$0xff]
  %v7134 = vld [vmem:[#allocation2 + $0x129] sm:$0xff]
  %v7135 = vld [vmem:[#allocation2 + $0x139] sm:$0xff]
  %v7136 = vld [vmem:[#allocation2 + $0x141] sm:$0xff]
  %v7137 = vld [vmem:[#allocation2 + $0x151] sm:$0xff]
  %v7138 = vld [vmem:[#allocation2 + $0x159] sm:$0xff]
  %v7139 = vld [vmem:[#allocation2 + $0x169] sm:$0xff]
  %v7140 = vld [vmem:[#allocation2 + $0x171] sm:$0xff]
  %v7141 = vld [vmem:[#allocation2 + $0x1b1] sm:$0xff]
  %v7142 = vld [vmem:[#allocation2 + $0x1b9] sm:$0xff]
  %v7143 = vld [vmem:[#allocation2 + $0x1c9] sm:$0xff]
  %v7144 = vld [vmem:[#allocation2 + $0x1d1] sm:$0xff]
  %v7145 = vld [vmem:[#allocation2 + $0x1e1] sm:$0xff]
  %v7146 = vld [vmem:[#allocation2 + $0x1e9] sm:$0xff]
  %v7147 = vld [vmem:[#allocation2 + $0x1f9] sm:$0xff]
  %v7148 = vld [vmem:[#allocation2 + $0x201] sm:$0xff]
  %v7149 = vld [vmem:[#allocation2 + $0x211] sm:$0xff]
  %v7150 = vld [vmem:[#allocation2 + $0x219] sm:$0xff]
  %v7151 = vld [vmem:[#allocation2 + $0x229] sm:$0xff]
  %v7152 = vld [vmem:[#allocation2 + $0x231] sm:$0xff]
  %v7153 = vld [vmem:[#allocation2 + $0x241] sm:$0xff]
  %v7154 = vld [vmem:[#allocation2 + $0x249] sm:$0xff]
  %v7155 = vld [vmem:[#allocation2 + $0x259] sm:$0xff]
  %v7156 = vld [vmem:[#allocation2 + $0x261] sm:$0xff]
  %v7157 = vld [vmem:[#allocation2 + $0x271] sm:$0xff]
  %v7158 = vld [vmem:[#allocation2 + $0x279] sm:$0xff]
  %v7159 = vld [vmem:[#allocation2 + $0x289] sm:$0xff]
  %v7160 = vld [vmem:[#allocation2 + $0x291] sm:$0xff]
  %v7161 = vld [vmem:[#allocation2 + $0x2a1] sm:$0xff]
  %v7162 = vld [vmem:[#allocation2 + $0x2a9] sm:$0xff]
  %v7163 = vld [vmem:[#allocation2 + $0x2b9] sm:$0xff]
  %v7164 = vld [vmem:[#allocation2 + $0x2c1] sm:$0xff]
  %v7165 = vld [vmem:[#allocation2 + $0x2d1] sm:$0xff]
  %v7166 = vld [vmem:[#allocation2 + $0x2d9] sm:$0xff]
  %v7167 = vld [vmem:[#allocation2 + $0x2e9] sm:$0xff]
  %v7168 = vld [vmem:[#allocation2 + $0x2f1] sm:$0xff]
  %v7169 = vld [vmem:[#allocation2 + $0x301] sm:$0xff]
  %v7170 = vld [vmem:[#allocation2 + $0x309] sm:$0xff]
  %v7171 = vld [vmem:[#allocation2 + $0x319] sm:$0xff]
  %v7172 = vld [vmem:[#allocation2 + $0x321] sm:$0xff]
  %v7173 = vld [vmem:[#allocation2 + $0x2] sm:$0xff]
  %v7174 = vld [vmem:[#allocation2 + $0xa] sm:$0xff]
  %v7175 = vld [vmem:[#allocation2 + $0x1a] sm:$0xff]
  %v7176 = vld [vmem:[#allocation2 + $0x22] sm:$0xff]
  %v7177 = vld [vmem:[#allocation2 + $0x32] sm:$0xff]
  %v7178 = vld [vmem:[#allocation2 + $0x3a] sm:$0xff]
  %v7179 = vld [vmem:[#allocation2 + $0x4a] sm:$0xff]
  %v7180 = vld [vmem:[#allocation2 + $0x52] sm:$0xff]
  %v7181 = vld [vmem:[#allocation2 + $0x62] sm:$0xff]
  %v7182 = vld [vmem:[#allocation2 + $0x6a] sm:$0xff]
  %v7183 = vld [vmem:[#allocation2 + $0x7a] sm:$0xff]
  %v7184 = vld [vmem:[#allocation2 + $0x82] sm:$0xff]
  %v7185 = vld [vmem:[#allocation2 + $0x92] sm:$0xff]
  %v7186 = vld [vmem:[#allocation2 + $0x9a] sm:$0xff]
  %v7187 = vld [vmem:[#allocation2 + $0xaa] sm:$0xff]
  %v7188 = vld [vmem:[#allocation2 + $0xb2] sm:$0xff]
  %v7189 = vld [vmem:[#allocation2 + $0xc2] sm:$0xff]
  %v7190 = vld [vmem:[#allocation2 + $0xca] sm:$0xff]
  %v7191 = vld [vmem:[#allocation2 + $0xda] sm:$0xff]
  %v7192 = vld [vmem:[#allocation2 + $0xe2] sm:$0xff]
  %v7193 = vld [vmem:[#allocation2 + $0xf2] sm:$0xff]
  %v7194 = vld [vmem:[#allocation2 + $0xfa] sm:$0xff]
  %v7195 = vld [vmem:[#allocation2 + $0x10a] sm:$0xff]
  %v7196 = vld [vmem:[#allocation2 + $0x112] sm:$0xff]
  %v7197 = vld [vmem:[#allocation2 + $0x122] sm:$0xff]
  %v7198 = vld [vmem:[#allocation2 + $0x12a] sm:$0xff]
  %v7199 = vld [vmem:[#allocation2 + $0x13a] sm:$0xff]
  %v7200 = vld [vmem:[#allocation2 + $0x142] sm:$0xff]
  %v7201 = vld [vmem:[#allocation2 + $0x152] sm:$0xff]
  %v7202 = vld [vmem:[#allocation2 + $0x15a] sm:$0xff]
  %v7203 = vld [vmem:[#allocation2 + $0x16a] sm:$0xff]
  %v7204 = vld [vmem:[#allocation2 + $0x172] sm:$0xff]
  %v7205 = vld [vmem:[#allocation2 + $0x1b2] sm:$0xff]
  %v7206 = vld [vmem:[#allocation2 + $0x1ba] sm:$0xff]
  %v7207 = vld [vmem:[#allocation2 + $0x1ca] sm:$0xff]
  %v7208 = vld [vmem:[#allocation2 + $0x1d2] sm:$0xff]
  %v7209 = vld [vmem:[#allocation2 + $0x1e2] sm:$0xff]
  %v7210 = vld [vmem:[#allocation2 + $0x1ea] sm:$0xff]
  %v7211 = vld [vmem:[#allocation2 + $0x1fa] sm:$0xff]
  %v7212 = vld [vmem:[#allocation2 + $0x202] sm:$0xff]
  %v7213 = vld [vmem:[#allocation2 + $0x212] sm:$0xff]
  %v7214 = vld [vmem:[#allocation2 + $0x21a] sm:$0xff]
  %v7215 = vld [vmem:[#allocation2 + $0x22a] sm:$0xff]
  %v7216 = vld [vmem:[#allocation2 + $0x232] sm:$0xff]
  %v7217 = vld [vmem:[#allocation2 + $0x242] sm:$0xff]
  %v7218 = vld [vmem:[#allocation2 + $0x24a] sm:$0xff]
  %v7219 = vld [vmem:[#allocation2 + $0x25a] sm:$0xff]
  %v7220 = vld [vmem:[#allocation2 + $0x262] sm:$0xff]
  %v7221 = vld [vmem:[#allocation2 + $0x272] sm:$0xff]
  %v7222 = vld [vmem:[#allocation2 + $0x27a] sm:$0xff]
  %v7223 = vld [vmem:[#allocation2 + $0x28a] sm:$0xff]
  %v7224 = vld [vmem:[#allocation2 + $0x292] sm:$0xff]
  %v7225 = vld [vmem:[#allocation2 + $0x2a2] sm:$0xff]
  %v7226 = vld [vmem:[#allocation2 + $0x2aa] sm:$0xff]
  %v7227 = vld [vmem:[#allocation2 + $0x2ba] sm:$0xff]
  %v7228 = vld [vmem:[#allocation2 + $0x2c2] sm:$0xff]
  %v7229 = vld [vmem:[#allocation2 + $0x2d2] sm:$0xff]
  %v7230 = vld [vmem:[#allocation2 + $0x2da] sm:$0xff]
  %v7231 = vld [vmem:[#allocation2 + $0x2ea] sm:$0xff]
  %v7232 = vld [vmem:[#allocation2 + $0x2f2] sm:$0xff]
  %v7233 = vld [vmem:[#allocation2 + $0x302] sm:$0xff]
  %v7234 = vld [vmem:[#allocation2 + $0x30a] sm:$0xff]
  %v7235 = vld [vmem:[#allocation2 + $0x31a] sm:$0xff]
  %v7236 = vld [vmem:[#allocation2 + $0x322] sm:$0xff]
  %v7237 = vld [vmem:[%s6980] sm:$0xff]
  %v7238 = vld [vmem:[%s6980 + $0x8] sm:$0xff]
  %v7239 = vld [vmem:[%s6980 + $0x18] sm:$0xff]
  %v7240 = vld [vmem:[%s6980 + $0x20] sm:$0xff]
  %v7241 = vld [vmem:[%s6980 + $0x30] sm:$0xff]
  %v7242 = vld [vmem:[%s6980 + $0x38] sm:$0xff]
  %v7243 = vld [vmem:[%s6980 + $0x48] sm:$0xff]
  %v7244 = vld [vmem:[%s6980 + $0x50] sm:$0xff]
  %v7245 = vld [vmem:[%s6980 + $0x60] sm:$0xff]
  %v7246 = vld [vmem:[%s6980 + $0x68] sm:$0xff]
  %v7247 = vld [vmem:[%s6980 + $0x78] sm:$0xff]
  %v7248 = vld [vmem:[%s6980 + $0x80] sm:$0xff]
  %v7249 = vld [vmem:[%s6980 + $0x90] sm:$0xff]
  %v7250 = vld [vmem:[%s6980 + $0x98] sm:$0xff]
  %v7251 = vld [vmem:[%s6980 + $0xa8] sm:$0xff]
  %v7252 = vld [vmem:[%s6980 + $0xb0] sm:$0xff]
  %v7253 = vld [vmem:[%s6980 + $0xc0] sm:$0xff]
  %v7254 = vld [vmem:[%s6980 + $0xc8] sm:$0xff]
  %v7255 = vld [vmem:[%s6980 + $0xd8] sm:$0xff]
  %v7256 = vld [vmem:[%s6980 + $0xe0] sm:$0xff]
  %v7257 = vld [vmem:[%s6980 + $0xf0] sm:$0xff]
  %v7258 = vld [vmem:[%s6980 + $0xf8] sm:$0xff]
  %v7259 = vld [vmem:[%s6980 + $0x108] sm:$0xff]
  %v7260 = vld [vmem:[%s6980 + $0x110] sm:$0xff]
  %v7261 = vld [vmem:[%s6980 + $0x120] sm:$0xff]
  %v7262 = vld [vmem:[%s6980 + $0x128] sm:$0xff]
  %v7263 = vld [vmem:[%s6980 + $0x138] sm:$0xff]
  %v7264 = vld [vmem:[%s6980 + $0x140] sm:$0xff]
  %v7265 = vld [vmem:[%s6980 + $0x150] sm:$0xff]
  %v7266 = vld [vmem:[%s6980 + $0x158] sm:$0xff]
  %v7267 = vld [vmem:[%s6980 + $0x168] sm:$0xff]
  %v7268 = vld [vmem:[%s6980 + $0x170] sm:$0xff]
  %v7269 = vld [vmem:[%s6980 + $0x1b0] sm:$0xff]
  %v7270 = vld [vmem:[%s6980 + $0x1b8] sm:$0xff]
  %v7271 = vld [vmem:[%s6980 + $0x1c8] sm:$0xff]
  %v7272 = vld [vmem:[%s6980 + $0x1d0] sm:$0xff]
  %v7273 = vld [vmem:[%s6980 + $0x1e0] sm:$0xff]
  %v7274 = vld [vmem:[%s6980 + $0x1e8] sm:$0xff]
  %v7275 = vld [vmem:[%s6980 + $0x1f8] sm:$0xff]
  %v7276 = vld [vmem:[%s6980 + $0x200] sm:$0xff]
  %v7277 = vld [vmem:[%s6980 + $0x210] sm:$0xff]
  %v7278 = vld [vmem:[%s6980 + $0x218] sm:$0xff]
  %v7279 = vld [vmem:[%s6980 + $0x228] sm:$0xff]
  %v7280 = vld [vmem:[%s6980 + $0x230] sm:$0xff]
  %v7281 = vld [vmem:[%s6980 + $0x240] sm:$0xff]
  %v7282 = vld [vmem:[%s6980 + $0x248] sm:$0xff]
  %v7283 = vld [vmem:[%s6980 + $0x258] sm:$0xff]
  %v7284 = vld [vmem:[%s6980 + $0x260] sm:$0xff]
  %v7285 = vld [vmem:[%s6980 + $0x270] sm:$0xff]
  %v7286 = vld [vmem:[%s6980 + $0x278] sm:$0xff]
  %v7287 = vld [vmem:[%s6980 + $0x288] sm:$0xff]
  %v7288 = vld [vmem:[%s6980 + $0x290] sm:$0xff]
  %v7289 = vld [vmem:[%s6980 + $0x2a0] sm:$0xff]
  %v7290 = vld [vmem:[%s6980 + $0x2a8] sm:$0xff]
  %v7291 = vld [vmem:[%s6980 + $0x2b8] sm:$0xff]
  %v7292 = vld [vmem:[%s6980 + $0x2c0] sm:$0xff]
  %v7293 = vld [vmem:[%s6980 + $0x2d0] sm:$0xff]
  %v7294 = vld [vmem:[%s6980 + $0x2d8] sm:$0xff]
  %v7295 = vld [vmem:[%s6980 + $0x2e8] sm:$0xff]
  %v7296 = vld [vmem:[%s6980 + $0x2f0] sm:$0xff]
  %v7297 = vld [vmem:[%s6980 + $0x300] sm:$0xff]
  %v7298 = vld [vmem:[%s6980 + $0x308] sm:$0xff]
  %v7299 = vld [vmem:[%s6980 + $0x318] sm:$0xff]
  %v7300 = vld [vmem:[%s6980 + $0x320] sm:$0xff]
  %v7301 = vld [vmem:[%s6980 + $0x1] sm:$0xff]
  %v7302 = vld [vmem:[%s6980 + $0x9] sm:$0xff]
  %v7303 = vld [vmem:[%s6980 + $0x19] sm:$0xff]
  %v7304 = vld [vmem:[%s6980 + $0x21] sm:$0xff]
  %v7305 = vld [vmem:[%s6980 + $0x31] sm:$0xff]
  %v7306 = vld [vmem:[%s6980 + $0x39] sm:$0xff]
  %v7307 = vld [vmem:[%s6980 + $0x49] sm:$0xff]
  %v7308 = vld [vmem:[%s6980 + $0x51] sm:$0xff]
  %v7309 = vld [vmem:[%s6980 + $0x61] sm:$0xff]
  %v7310 = vld [vmem:[%s6980 + $0x69] sm:$0xff]
  %v7311 = vld [vmem:[%s6980 + $0x79] sm:$0xff]
  %v7312 = vld [vmem:[%s6980 + $0x81] sm:$0xff]
  %v7313 = vld [vmem:[%s6980 + $0x91] sm:$0xff]
  %v7314 = vld [vmem:[%s6980 + $0x99] sm:$0xff]
  %v7315 = vld [vmem:[%s6980 + $0xa9] sm:$0xff]
  %v7316 = vld [vmem:[%s6980 + $0xb1] sm:$0xff]
  %v7317 = vld [vmem:[%s6980 + $0xc1] sm:$0xff]
  %v7318 = vld [vmem:[%s6980 + $0xc9] sm:$0xff]
  %v7319 = vld [vmem:[%s6980 + $0xd9] sm:$0xff]
  %v7320 = vld [vmem:[%s6980 + $0xe1] sm:$0xff]
  %v7321 = vld [vmem:[%s6980 + $0xf1] sm:$0xff]
  %v7322 = vld [vmem:[%s6980 + $0xf9] sm:$0xff]
  %v7323 = vld [vmem:[%s6980 + $0x109] sm:$0xff]
  %v7324 = vld [vmem:[%s6980 + $0x111] sm:$0xff]
  %v7325 = vld [vmem:[%s6980 + $0x121] sm:$0xff]
  %v7326 = vld [vmem:[%s6980 + $0x129] sm:$0xff]
  %v7327 = vld [vmem:[%s6980 + $0x139] sm:$0xff]
  %v7328 = vld [vmem:[%s6980 + $0x141] sm:$0xff]
  %v7329 = vld [vmem:[%s6980 + $0x151] sm:$0xff]
  %v7330 = vld [vmem:[%s6980 + $0x159] sm:$0xff]
  %v7331 = vld [vmem:[%s6980 + $0x169] sm:$0xff]
  %v7332 = vld [vmem:[%s6980 + $0x171] sm:$0xff]
  %v7333 = vld [vmem:[%s6980 + $0x1b1] sm:$0xff]
  %v7334 = vld [vmem:[%s6980 + $0x1b9] sm:$0xff]
  %v7335 = vld [vmem:[%s6980 + $0x1c9] sm:$0xff]
  %v7336 = vld [vmem:[%s6980 + $0x1d1] sm:$0xff]
  %v7337 = vld [vmem:[%s6980 + $0x1e1] sm:$0xff]
  %v7338 = vld [vmem:[%s6980 + $0x1e9] sm:$0xff]
  %v7339 = vld [vmem:[%s6980 + $0x1f9] sm:$0xff]
  %v7340 = vld [vmem:[%s6980 + $0x201] sm:$0xff]
  %v7341 = vld [vmem:[%s6980 + $0x211] sm:$0xff]
  %v7342 = vld [vmem:[%s6980 + $0x219] sm:$0xff]
  %v7343 = vld [vmem:[%s6980 + $0x229] sm:$0xff]
  %v7344 = vld [vmem:[%s6980 + $0x231] sm:$0xff]
  %v7345 = vld [vmem:[%s6980 + $0x241] sm:$0xff]
  %v7346 = vld [vmem:[%s6980 + $0x249] sm:$0xff]
  %v7347 = vld [vmem:[%s6980 + $0x259] sm:$0xff]
  %v7348 = vld [vmem:[%s6980 + $0x261] sm:$0xff]
  %v7349 = vld [vmem:[%s6980 + $0x271] sm:$0xff]
  %v7350 = vld [vmem:[%s6980 + $0x279] sm:$0xff]
  %v7351 = vld [vmem:[%s6980 + $0x289] sm:$0xff]
  %v7352 = vld [vmem:[%s6980 + $0x291] sm:$0xff]
  %v7353 = vld [vmem:[%s6980 + $0x2a1] sm:$0xff]
  %v7354 = vld [vmem:[%s6980 + $0x2a9] sm:$0xff]
  %v7355 = vld [vmem:[%s6980 + $0x2b9] sm:$0xff]
  %v7356 = vld [vmem:[%s6980 + $0x2c1] sm:$0xff]
  %v7357 = vld [vmem:[%s6980 + $0x2d1] sm:$0xff]
  %v7358 = vld [vmem:[%s6980 + $0x2d9] sm:$0xff]
  %v7359 = vld [vmem:[%s6980 + $0x2e9] sm:$0xff]
  %v7360 = vld [vmem:[%s6980 + $0x2f1] sm:$0xff]
  %v7361 = vld [vmem:[%s6980 + $0x301] sm:$0xff]
  %v7362 = vld [vmem:[%s6980 + $0x309] sm:$0xff]
  %v7363 = vld [vmem:[%s6980 + $0x319] sm:$0xff]
  %v7364 = vld [vmem:[%s6980 + $0x321] sm:$0xff]
  %v7365 = vld [vmem:[%s6980 + $0x2] sm:$0xff]
  %v7366 = vld [vmem:[%s6980 + $0xa] sm:$0xff]
  %v7367 = vld [vmem:[%s6980 + $0x1a] sm:$0xff]
  %v7368 = vld [vmem:[%s6980 + $0x22] sm:$0xff]
  %v7369 = vld [vmem:[%s6980 + $0x32] sm:$0xff]
  %v7370 = vld [vmem:[%s6980 + $0x3a] sm:$0xff]
  %v7371 = vld [vmem:[%s6980 + $0x4a] sm:$0xff]
  %v7372 = vld [vmem:[%s6980 + $0x52] sm:$0xff]
  %v7373 = vld [vmem:[%s6980 + $0x62] sm:$0xff]
  %v7374 = vld [vmem:[%s6980 + $0x6a] sm:$0xff]
  %v7375 = vld [vmem:[%s6980 + $0x7a] sm:$0xff]
  %v7376 = vld [vmem:[%s6980 + $0x82] sm:$0xff]
  %v7377 = vld [vmem:[%s6980 + $0x92] sm:$0xff]
  %v7378 = vld [vmem:[%s6980 + $0x9a] sm:$0xff]
  %v7379 = vld [vmem:[%s6980 + $0xaa] sm:$0xff]
  %v7380 = vld [vmem:[%s6980 + $0xb2] sm:$0xff]
  %v7381 = vld [vmem:[%s6980 + $0xc2] sm:$0xff]
  %v7382 = vld [vmem:[%s6980 + $0xca] sm:$0xff]
  %v7383 = vld [vmem:[%s6980 + $0xda] sm:$0xff]
  %v7384 = vld [vmem:[%s6980 + $0xe2] sm:$0xff]
  %v7385 = vld [vmem:[%s6980 + $0xf2] sm:$0xff]
  %v7386 = vld [vmem:[%s6980 + $0xfa] sm:$0xff]
  %v7387 = vld [vmem:[%s6980 + $0x10a] sm:$0xff]
  %v7388 = vld [vmem:[%s6980 + $0x112] sm:$0xff]
  %v7389 = vld [vmem:[%s6980 + $0x122] sm:$0xff]
  %v7390 = vld [vmem:[%s6980 + $0x12a] sm:$0xff]
  %v7391 = vld [vmem:[%s6980 + $0x13a] sm:$0xff]
  %v7392 = vld [vmem:[%s6980 + $0x142] sm:$0xff]
  %v7393 = vld [vmem:[%s6980 + $0x152] sm:$0xff]
  %v7394 = vld [vmem:[%s6980 + $0x15a] sm:$0xff]
  %v7395 = vld [vmem:[%s6980 + $0x16a] sm:$0xff]
  %v7396 = vld [vmem:[%s6980 + $0x172] sm:$0xff]
  %v7397 = vld [vmem:[%s6980 + $0x1b2] sm:$0xff]
  %v7398 = vld [vmem:[%s6980 + $0x1ba] sm:$0xff]
  %v7399 = vld [vmem:[%s6980 + $0x1ca] sm:$0xff]
  %v7400 = vld [vmem:[%s6980 + $0x1d2] sm:$0xff]
  %v7401 = vld [vmem:[%s6980 + $0x1e2] sm:$0xff]
  %v7402 = vld [vmem:[%s6980 + $0x1ea] sm:$0xff]
  %v7403 = vld [vmem:[%s6980 + $0x1fa] sm:$0xff]
  %v7404 = vld [vmem:[%s6980 + $0x202] sm:$0xff]
  %v7405 = vld [vmem:[%s6980 + $0x212] sm:$0xff]
  %v7406 = vld [vmem:[%s6980 + $0x21a] sm:$0xff]
  %v7407 = vld [vmem:[%s6980 + $0x22a] sm:$0xff]
  %v7408 = vld [vmem:[%s6980 + $0x232] sm:$0xff]
  %v7409 = vld [vmem:[%s6980 + $0x242] sm:$0xff]
  %v7410 = vld [vmem:[%s6980 + $0x24a] sm:$0xff]
  %v7411 = vld [vmem:[%s6980 + $0x25a] sm:$0xff]
  %v7412 = vld [vmem:[%s6980 + $0x262] sm:$0xff]
  %v7413 = vld [vmem:[%s6980 + $0x272] sm:$0xff]
  %v7414 = vld [vmem:[%s6980 + $0x27a] sm:$0xff]
  %v7415 = vld [vmem:[%s6980 + $0x28a] sm:$0xff]
  %v7416 = vld [vmem:[%s6980 + $0x292] sm:$0xff]
  %v7417 = vld [vmem:[%s6980 + $0x2a2] sm:$0xff]
  %v7418 = vld [vmem:[%s6980 + $0x2aa] sm:$0xff]
  %v7419 = vld [vmem:[%s6980 + $0x2ba] sm:$0xff]
  %v7420 = vld [vmem:[%s6980 + $0x2c2] sm:$0xff]
  %v7421 = vld [vmem:[%s6980 + $0x2d2] sm:$0xff]
  %v7422 = vld [vmem:[%s6980 + $0x2da] sm:$0xff]
  %v7423 = vld [vmem:[%s6980 + $0x2ea] sm:$0xff]
  %v7424 = vld [vmem:[%s6980 + $0x2f2] sm:$0xff]
  %v7425 = vld [vmem:[%s6980 + $0x302] sm:$0xff]
  %v7426 = vld [vmem:[%s6980 + $0x30a] sm:$0xff]
  %v7427 = vld [vmem:[%s6980 + $0x31a] sm:$0xff]
  %v7428 = vld [vmem:[%s6980 + $0x322] sm:$0xff]
  %s7429 = scalar_lea.vmem [#allocation2], 48
  %v7430 = vld [vmem:[%s7429] sm:$0xff]
  %v7431 = vld [vmem:[%s7429 + $0x8] sm:$0xff]
  %v7432 = vld [vmem:[%s7429 + $0x18] sm:$0xff]
  %v7433 = vld [vmem:[%s7429 + $0x20] sm:$0xff]
  %v7434 = vld [vmem:[%s7429 + $0x30] sm:$0xff]
  %v7435 = vld [vmem:[%s7429 + $0x38] sm:$0xff]
  %v7436 = vld [vmem:[%s7429 + $0x48] sm:$0xff]
  %v7437 = vld [vmem:[%s7429 + $0x50] sm:$0xff]
  %v7438 = vld [vmem:[%s7429 + $0x60] sm:$0xff]
  %v7439 = vld [vmem:[%s7429 + $0x68] sm:$0xff]
  %v7440 = vld [vmem:[%s7429 + $0x78] sm:$0xff]
  %v7441 = vld [vmem:[%s7429 + $0x80] sm:$0xff]
  %v7442 = vld [vmem:[%s7429 + $0x90] sm:$0xff]
  %v7443 = vld [vmem:[%s7429 + $0x98] sm:$0xff]
  %v7444 = vld [vmem:[%s7429 + $0xa8] sm:$0xff]
  %v7445 = vld [vmem:[%s7429 + $0xb0] sm:$0xff]
  %v7446 = vld [vmem:[%s7429 + $0xc0] sm:$0xff]
  %v7447 = vld [vmem:[%s7429 + $0xc8] sm:$0xff]
  %v7448 = vld [vmem:[%s7429 + $0xd8] sm:$0xff]
  %v7449 = vld [vmem:[%s7429 + $0xe0] sm:$0xff]
  %v7450 = vld [vmem:[%s7429 + $0xf0] sm:$0xff]
  %v7451 = vld [vmem:[%s7429 + $0xf8] sm:$0xff]
  %v7452 = vld [vmem:[%s7429 + $0x108] sm:$0xff]
  %v7453 = vld [vmem:[%s7429 + $0x110] sm:$0xff]
  %v7454 = vld [vmem:[%s7429 + $0x120] sm:$0xff]
  %v7455 = vld [vmem:[%s7429 + $0x128] sm:$0xff]
  %v7456 = vld [vmem:[%s7429 + $0x138] sm:$0xff]
  %v7457 = vld [vmem:[%s7429 + $0x140] sm:$0xff]
  %v7458 = vld [vmem:[%s7429 + $0x150] sm:$0xff]
  %v7459 = vld [vmem:[%s7429 + $0x158] sm:$0xff]
  %v7460 = vld [vmem:[%s7429 + $0x168] sm:$0xff]
  %v7461 = vld [vmem:[%s7429 + $0x170] sm:$0xff]
  %v7462 = vld [vmem:[%s7429 + $0x1b0] sm:$0xff]
  %v7463 = vld [vmem:[%s7429 + $0x1b8] sm:$0xff]
  %v7464 = vld [vmem:[%s7429 + $0x1c8] sm:$0xff]
  %v7465 = vld [vmem:[%s7429 + $0x1d0] sm:$0xff]
  %v7466 = vld [vmem:[%s7429 + $0x1e0] sm:$0xff]
  %v7467 = vld [vmem:[%s7429 + $0x1e8] sm:$0xff]
  %v7468 = vld [vmem:[%s7429 + $0x1f8] sm:$0xff]
  %v7469 = vld [vmem:[%s7429 + $0x200] sm:$0xff]
  %v7470 = vld [vmem:[%s7429 + $0x210] sm:$0xff]
  %v7471 = vld [vmem:[%s7429 + $0x218] sm:$0xff]
  %v7472 = vld [vmem:[%s7429 + $0x228] sm:$0xff]
  %v7473 = vld [vmem:[%s7429 + $0x230] sm:$0xff]
  %v7474 = vld [vmem:[%s7429 + $0x240] sm:$0xff]
  %v7475 = vld [vmem:[%s7429 + $0x248] sm:$0xff]
  %v7476 = vld [vmem:[%s7429 + $0x258] sm:$0xff]
  %v7477 = vld [vmem:[%s7429 + $0x260] sm:$0xff]
  %v7478 = vld [vmem:[%s7429 + $0x270] sm:$0xff]
  %v7479 = vld [vmem:[%s7429 + $0x278] sm:$0xff]
  %v7480 = vld [vmem:[%s7429 + $0x288] sm:$0xff]
  %v7481 = vld [vmem:[%s7429 + $0x290] sm:$0xff]
  %v7482 = vld [vmem:[%s7429 + $0x2a0] sm:$0xff]
  %v7483 = vld [vmem:[%s7429 + $0x2a8] sm:$0xff]
  %v7484 = vld [vmem:[%s7429 + $0x2b8] sm:$0xff]
  %v7485 = vld [vmem:[%s7429 + $0x2c0] sm:$0xff]
  %v7486 = vld [vmem:[%s7429 + $0x2d0] sm:$0xff]
  %v7487 = vld [vmem:[%s7429 + $0x2d8] sm:$0xff]
  %v7488 = vld [vmem:[%s7429 + $0x2e8] sm:$0xff]
  %v7489 = vld [vmem:[%s7429 + $0x2f0] sm:$0xff]
  %v7490 = vld [vmem:[%s7429 + $0x300] sm:$0xff]
  %v7491 = vld [vmem:[%s7429 + $0x308] sm:$0xff]
  %v7492 = vld [vmem:[%s7429 + $0x318] sm:$0xff]
  %v7493 = vld [vmem:[%s7429 + $0x320] sm:$0xff]
  %v7494 = vld [vmem:[%s7429 + $0x1] sm:$0xff]
  %v7495 = vld [vmem:[%s7429 + $0x9] sm:$0xff]
  %v7496 = vld [vmem:[%s7429 + $0x19] sm:$0xff]
  %v7497 = vld [vmem:[%s7429 + $0x21] sm:$0xff]
  %v7498 = vld [vmem:[%s7429 + $0x31] sm:$0xff]
  %v7499 = vld [vmem:[%s7429 + $0x39] sm:$0xff]
  %v7500 = vld [vmem:[%s7429 + $0x49] sm:$0xff]
  %v7501 = vld [vmem:[%s7429 + $0x51] sm:$0xff]
  %v7502 = vld [vmem:[%s7429 + $0x61] sm:$0xff]
  %v7503 = vld [vmem:[%s7429 + $0x69] sm:$0xff]
  %v7504 = vld [vmem:[%s7429 + $0x79] sm:$0xff]
  %v7505 = vld [vmem:[%s7429 + $0x81] sm:$0xff]
  %v7506 = vld [vmem:[%s7429 + $0x91] sm:$0xff]
  %v7507 = vld [vmem:[%s7429 + $0x99] sm:$0xff]
  %v7508 = vld [vmem:[%s7429 + $0xa9] sm:$0xff]
  %v7509 = vld [vmem:[%s7429 + $0xb1] sm:$0xff]
  %v7510 = vld [vmem:[%s7429 + $0xc1] sm:$0xff]
  %v7511 = vld [vmem:[%s7429 + $0xc9] sm:$0xff]
  %v7512 = vld [vmem:[%s7429 + $0xd9] sm:$0xff]
  %v7513 = vld [vmem:[%s7429 + $0xe1] sm:$0xff]
  %v7514 = vld [vmem:[%s7429 + $0xf1] sm:$0xff]
  %v7515 = vld [vmem:[%s7429 + $0xf9] sm:$0xff]
  %v7516 = vld [vmem:[%s7429 + $0x109] sm:$0xff]
  %v7517 = vld [vmem:[%s7429 + $0x111] sm:$0xff]
  %v7518 = vld [vmem:[%s7429 + $0x121] sm:$0xff]
  %v7519 = vld [vmem:[%s7429 + $0x129] sm:$0xff]
  %v7520 = vld [vmem:[%s7429 + $0x139] sm:$0xff]
  %v7521 = vld [vmem:[%s7429 + $0x141] sm:$0xff]
  %v7522 = vld [vmem:[%s7429 + $0x151] sm:$0xff]
  %v7523 = vld [vmem:[%s7429 + $0x159] sm:$0xff]
  %v7524 = vld [vmem:[%s7429 + $0x169] sm:$0xff]
  %v7525 = vld [vmem:[%s7429 + $0x171] sm:$0xff]
  %v7526 = vld [vmem:[%s7429 + $0x1b1] sm:$0xff]
  %v7527 = vld [vmem:[%s7429 + $0x1b9] sm:$0xff]
  %v7528 = vld [vmem:[%s7429 + $0x1c9] sm:$0xff]
  %v7529 = vld [vmem:[%s7429 + $0x1d1] sm:$0xff]
  %v7530 = vld [vmem:[%s7429 + $0x1e1] sm:$0xff]
  %v7531 = vld [vmem:[%s7429 + $0x1e9] sm:$0xff]
  %v7532 = vld [vmem:[%s7429 + $0x1f9] sm:$0xff]
  %v7533 = vld [vmem:[%s7429 + $0x201] sm:$0xff]
  %v7534 = vld [vmem:[%s7429 + $0x211] sm:$0xff]
  %v7535 = vld [vmem:[%s7429 + $0x219] sm:$0xff]
  %v7536 = vld [vmem:[%s7429 + $0x229] sm:$0xff]
  %v7537 = vld [vmem:[%s7429 + $0x231] sm:$0xff]
  %v7538 = vld [vmem:[%s7429 + $0x241] sm:$0xff]
  %v7539 = vld [vmem:[%s7429 + $0x249] sm:$0xff]
  %v7540 = vld [vmem:[%s7429 + $0x259] sm:$0xff]
  %v7541 = vld [vmem:[%s7429 + $0x261] sm:$0xff]
  %v7542 = vld [vmem:[%s7429 + $0x271] sm:$0xff]
  %v7543 = vld [vmem:[%s7429 + $0x279] sm:$0xff]
  %v7544 = vld [vmem:[%s7429 + $0x289] sm:$0xff]
  %v7545 = vld [vmem:[%s7429 + $0x291] sm:$0xff]
  %v7546 = vld [vmem:[%s7429 + $0x2a1] sm:$0xff]
  %v7547 = vld [vmem:[%s7429 + $0x2a9] sm:$0xff]
  %v7548 = vld [vmem:[%s7429 + $0x2b9] sm:$0xff]
  %v7549 = vld [vmem:[%s7429 + $0x2c1] sm:$0xff]
  %v7550 = vld [vmem:[%s7429 + $0x2d1] sm:$0xff]
  %v7551 = vld [vmem:[%s7429 + $0x2d9] sm:$0xff]
  %v7552 = vld [vmem:[%s7429 + $0x2e9] sm:$0xff]
  %v7553 = vld [vmem:[%s7429 + $0x2f1] sm:$0xff]
  %v7554 = vld [vmem:[%s7429 + $0x301] sm:$0xff]
  %v7555 = vld [vmem:[%s7429 + $0x309] sm:$0xff]
  %v7556 = vld [vmem:[%s7429 + $0x319] sm:$0xff]
  %v7557 = vld [vmem:[%s7429 + $0x321] sm:$0xff]
  %v7558 = vld [vmem:[%s7429 + $0x2] sm:$0xff]
  %v7559 = vld [vmem:[%s7429 + $0xa] sm:$0xff]
  %v7560 = vld [vmem:[%s7429 + $0x1a] sm:$0xff]
  %v7561 = vld [vmem:[%s7429 + $0x22] sm:$0xff]
  %v7562 = vld [vmem:[%s7429 + $0x32] sm:$0xff]
  %v7563 = vld [vmem:[%s7429 + $0x3a] sm:$0xff]
  %v7564 = vld [vmem:[%s7429 + $0x4a] sm:$0xff]
  %v7565 = vld [vmem:[%s7429 + $0x52] sm:$0xff]
  %v7566 = vld [vmem:[%s7429 + $0x62] sm:$0xff]
  %v7567 = vld [vmem:[%s7429 + $0x6a] sm:$0xff]
  %v7568 = vld [vmem:[%s7429 + $0x7a] sm:$0xff]
  %v7569 = vld [vmem:[%s7429 + $0x82] sm:$0xff]
  %v7570 = vld [vmem:[%s7429 + $0x92] sm:$0xff]
  %v7571 = vld [vmem:[%s7429 + $0x9a] sm:$0xff]
  %v7572 = vld [vmem:[%s7429 + $0xaa] sm:$0xff]
  %v7573 = vld [vmem:[%s7429 + $0xb2] sm:$0xff]
  %v7574 = vld [vmem:[%s7429 + $0xc2] sm:$0xff]
  %v7575 = vld [vmem:[%s7429 + $0xca] sm:$0xff]
  %v7576 = vld [vmem:[%s7429 + $0xda] sm:$0xff]
  %v7577 = vld [vmem:[%s7429 + $0xe2] sm:$0xff]
  %v7578 = vld [vmem:[%s7429 + $0xf2] sm:$0xff]
  %v7579 = vld [vmem:[%s7429 + $0xfa] sm:$0xff]
  %v7580 = vld [vmem:[%s7429 + $0x10a] sm:$0xff]
  %v7581 = vld [vmem:[%s7429 + $0x112] sm:$0xff]
  %v7582 = vld [vmem:[%s7429 + $0x122] sm:$0xff]
  %v7583 = vld [vmem:[%s7429 + $0x12a] sm:$0xff]
  %v7584 = vld [vmem:[%s7429 + $0x13a] sm:$0xff]
  %v7585 = vld [vmem:[%s7429 + $0x142] sm:$0xff]
  %v7586 = vld [vmem:[%s7429 + $0x152] sm:$0xff]
  %v7587 = vld [vmem:[%s7429 + $0x15a] sm:$0xff]
  %v7588 = vld [vmem:[%s7429 + $0x16a] sm:$0xff]
  %v7589 = vld [vmem:[%s7429 + $0x172] sm:$0xff]
  %v7590 = vld [vmem:[%s7429 + $0x1b2] sm:$0xff]
  %v7591 = vld [vmem:[%s7429 + $0x1ba] sm:$0xff]
  %v7592 = vld [vmem:[%s7429 + $0x1ca] sm:$0xff]
  %v7593 = vld [vmem:[%s7429 + $0x1d2] sm:$0xff]
  %v7594 = vld [vmem:[%s7429 + $0x1e2] sm:$0xff]
  %v7595 = vld [vmem:[%s7429 + $0x1ea] sm:$0xff]
  %v7596 = vld [vmem:[%s7429 + $0x1fa] sm:$0xff]
  %v7597 = vld [vmem:[%s7429 + $0x202] sm:$0xff]
  %v7598 = vld [vmem:[%s7429 + $0x212] sm:$0xff]
  %v7599 = vld [vmem:[%s7429 + $0x21a] sm:$0xff]
  %v7600 = vld [vmem:[%s7429 + $0x22a] sm:$0xff]
  %v7601 = vld [vmem:[%s7429 + $0x232] sm:$0xff]
  %v7602 = vld [vmem:[%s7429 + $0x242] sm:$0xff]
  %v7603 = vld [vmem:[%s7429 + $0x24a] sm:$0xff]
  %v7604 = vld [vmem:[%s7429 + $0x25a] sm:$0xff]
  %v7605 = vld [vmem:[%s7429 + $0x262] sm:$0xff]
  %v7606 = vld [vmem:[%s7429 + $0x272] sm:$0xff]
  %v7607 = vld [vmem:[%s7429 + $0x27a] sm:$0xff]
  %v7608 = vld [vmem:[%s7429 + $0x28a] sm:$0xff]
  %v7609 = vld [vmem:[%s7429 + $0x292] sm:$0xff]
  %v7610 = vld [vmem:[%s7429 + $0x2a2] sm:$0xff]
  %v7611 = vld [vmem:[%s7429 + $0x2aa] sm:$0xff]
  %v7612 = vld [vmem:[%s7429 + $0x2ba] sm:$0xff]
  %v7613 = vld [vmem:[%s7429 + $0x2c2] sm:$0xff]
  %v7614 = vld [vmem:[%s7429 + $0x2d2] sm:$0xff]
  %v7615 = vld [vmem:[%s7429 + $0x2da] sm:$0xff]
  %v7616 = vld [vmem:[%s7429 + $0x2ea] sm:$0xff]
  %v7617 = vld [vmem:[%s7429 + $0x2f2] sm:$0xff]
  %v7618 = vld [vmem:[%s7429 + $0x302] sm:$0xff]
  %v7619 = vld [vmem:[%s7429 + $0x30a] sm:$0xff]
  %v7620 = vld [vmem:[%s7429 + $0x31a] sm:$0xff]
  %v7621 = vld [vmem:[%s7429 + $0x322] sm:$0xff]
  %7686 = vrot.lane.b32.xlu0 %v7109, 4
  %v7687 = vpop.permute.xlu0 %7686
  %7688 = vrot.lane.b32.xlu0 %v7110, 4
  %v7689 = vpop.permute.xlu0 %7688
  %7690 = vrot.lane.b32.xlu0 %v7111, 4
  %v7691 = vpop.permute.xlu0 %7690
  %7692 = vrot.lane.b32.xlu0 %v7112, 4
  %v7693 = vpop.permute.xlu0 %7692
  %7694 = vrot.lane.b32.xlu0 %v7113, 4
  %v7695 = vpop.permute.xlu0 %7694
  %7696 = vrot.lane.b32.xlu0 %v7114, 4
  %v7697 = vpop.permute.xlu0 %7696
  %7698 = vrot.lane.b32.xlu0 %v7115, 4
  %v7699 = vpop.permute.xlu0 %7698
  %7700 = vrot.lane.b32.xlu0 %v7116, 4
  %v7701 = vpop.permute.xlu0 %7700
  %7702 = vrot.lane.b32.xlu0 %v7117, 4
  %v7703 = vpop.permute.xlu0 %7702
  %7704 = vrot.lane.b32.xlu0 %v7118, 4
  %v7705 = vpop.permute.xlu0 %7704
  %7706 = vrot.lane.b32.xlu0 %v7119, 4
  %v7707 = vpop.permute.xlu0 %7706
  %7708 = vrot.lane.b32.xlu0 %v7120, 4
  %v7709 = vpop.permute.xlu0 %7708
  %7710 = vrot.lane.b32.xlu0 %v7121, 4
  %v7711 = vpop.permute.xlu0 %7710
  %7712 = vrot.lane.b32.xlu0 %v7122, 4
  %v7713 = vpop.permute.xlu0 %7712
  %7714 = vrot.lane.b32.xlu0 %v7123, 4
  %v7715 = vpop.permute.xlu0 %7714
  %7716 = vrot.lane.b32.xlu0 %v7124, 4
  %v7717 = vpop.permute.xlu0 %7716
  %7718 = vrot.lane.b32.xlu0 %v7125, 4
  %v7719 = vpop.permute.xlu0 %7718
  %7720 = vrot.lane.b32.xlu0 %v7126, 4
  %v7721 = vpop.permute.xlu0 %7720
  %7722 = vrot.lane.b32.xlu0 %v7127, 4
  %v7723 = vpop.permute.xlu0 %7722
  %7724 = vrot.lane.b32.xlu0 %v7128, 4
  %v7725 = vpop.permute.xlu0 %7724
  %7726 = vrot.lane.b32.xlu0 %v7129, 4
  %v7727 = vpop.permute.xlu0 %7726
  %7728 = vrot.lane.b32.xlu0 %v7130, 4
  %v7729 = vpop.permute.xlu0 %7728
  %7730 = vrot.lane.b32.xlu0 %v7131, 4
  %v7731 = vpop.permute.xlu0 %7730
  %7732 = vrot.lane.b32.xlu0 %v7132, 4
  %v7733 = vpop.permute.xlu0 %7732
  %7734 = vrot.lane.b32.xlu0 %v7133, 4
  %v7735 = vpop.permute.xlu0 %7734
  %7736 = vrot.lane.b32.xlu0 %v7134, 4
  %v7737 = vpop.permute.xlu0 %7736
  %7738 = vrot.lane.b32.xlu0 %v7135, 4
  %v7739 = vpop.permute.xlu0 %7738
  %7740 = vrot.lane.b32.xlu0 %v7136, 4
  %v7741 = vpop.permute.xlu0 %7740
  %7742 = vrot.lane.b32.xlu0 %v7137, 4
  %v7743 = vpop.permute.xlu0 %7742
  %7744 = vrot.lane.b32.xlu0 %v7138, 4
  %v7745 = vpop.permute.xlu0 %7744
  %7746 = vrot.lane.b32.xlu0 %v7139, 4
  %v7747 = vpop.permute.xlu0 %7746
  %7748 = vrot.lane.b32.xlu0 %v7140, 4
  %v7749 = vpop.permute.xlu0 %7748
  %7750 = vrot.lane.b32.xlu0 %v7141, 4
  %v7751 = vpop.permute.xlu0 %7750
  %7752 = vrot.lane.b32.xlu0 %v7142, 4
  %v7753 = vpop.permute.xlu0 %7752
  %7754 = vrot.lane.b32.xlu0 %v7143, 4
  %v7755 = vpop.permute.xlu0 %7754
  %7756 = vrot.lane.b32.xlu0 %v7144, 4
  %v7757 = vpop.permute.xlu0 %7756
  %7758 = vrot.lane.b32.xlu0 %v7145, 4
  %v7759 = vpop.permute.xlu0 %7758
  %7760 = vrot.lane.b32.xlu0 %v7146, 4
  %v7761 = vpop.permute.xlu0 %7760
  %7762 = vrot.lane.b32.xlu0 %v7147, 4
  %v7763 = vpop.permute.xlu0 %7762
  %7764 = vrot.lane.b32.xlu0 %v7148, 4
  %v7765 = vpop.permute.xlu0 %7764
  %7766 = vrot.lane.b32.xlu0 %v7149, 4
  %v7767 = vpop.permute.xlu0 %7766
  %7768 = vrot.lane.b32.xlu0 %v7150, 4
  %v7769 = vpop.permute.xlu0 %7768
  %7770 = vrot.lane.b32.xlu0 %v7151, 4
  %v7771 = vpop.permute.xlu0 %7770
  %7772 = vrot.lane.b32.xlu0 %v7152, 4
  %v7773 = vpop.permute.xlu0 %7772
  %7774 = vrot.lane.b32.xlu0 %v7153, 4
  %v7775 = vpop.permute.xlu0 %7774
  %7776 = vrot.lane.b32.xlu0 %v7154, 4
  %v7777 = vpop.permute.xlu0 %7776
  %7778 = vrot.lane.b32.xlu0 %v7155, 4
  %v7779 = vpop.permute.xlu0 %7778
  %7780 = vrot.lane.b32.xlu0 %v7156, 4
  %v7781 = vpop.permute.xlu0 %7780
  %7782 = vrot.lane.b32.xlu0 %v7157, 4
  %v7783 = vpop.permute.xlu0 %7782
  %7784 = vrot.lane.b32.xlu0 %v7158, 4
  %v7785 = vpop.permute.xlu0 %7784
  %7786 = vrot.lane.b32.xlu0 %v7159, 4
  %v7787 = vpop.permute.xlu0 %7786
  %7788 = vrot.lane.b32.xlu0 %v7160, 4
  %v7789 = vpop.permute.xlu0 %7788
  %7790 = vrot.lane.b32.xlu0 %v7161, 4
  %v7791 = vpop.permute.xlu0 %7790
  %7792 = vrot.lane.b32.xlu0 %v7162, 4
  %v7793 = vpop.permute.xlu0 %7792
  %7794 = vrot.lane.b32.xlu0 %v7163, 4
  %v7795 = vpop.permute.xlu0 %7794
  %7796 = vrot.lane.b32.xlu0 %v7164, 4
  %v7797 = vpop.permute.xlu0 %7796
  %7798 = vrot.lane.b32.xlu0 %v7165, 4
  %v7799 = vpop.permute.xlu0 %7798
  %7800 = vrot.lane.b32.xlu0 %v7166, 4
  %v7801 = vpop.permute.xlu0 %7800
  %7802 = vrot.lane.b32.xlu0 %v7167, 4
  %v7803 = vpop.permute.xlu0 %7802
  %7804 = vrot.lane.b32.xlu0 %v7168, 4
  %v7805 = vpop.permute.xlu0 %7804
  %7806 = vrot.lane.b32.xlu0 %v7169, 4
  %v7807 = vpop.permute.xlu0 %7806
  %7808 = vrot.lane.b32.xlu0 %v7170, 4
  %v7809 = vpop.permute.xlu0 %7808
  %7810 = vrot.lane.b32.xlu0 %v7171, 4
  %v7811 = vpop.permute.xlu0 %7810
  %7812 = vrot.lane.b32.xlu0 %v7172, 4
  %v7813 = vpop.permute.xlu0 %7812
  %7942 = vrot.lane.b32.xlu0 %v7173, 8
  %v7943 = vpop.permute.xlu0 %7942
  %7944 = vrot.lane.b32.xlu0 %v7174, 8
  %v7945 = vpop.permute.xlu0 %7944
  %7946 = vrot.lane.b32.xlu0 %v7175, 8
  %v7947 = vpop.permute.xlu0 %7946
  %7948 = vrot.lane.b32.xlu0 %v7176, 8
  %v7949 = vpop.permute.xlu0 %7948
  %7950 = vrot.lane.b32.xlu0 %v7177, 8
  %v7951 = vpop.permute.xlu0 %7950
  %7952 = vrot.lane.b32.xlu0 %v7178, 8
  %v7953 = vpop.permute.xlu0 %7952
  %7954 = vrot.lane.b32.xlu0 %v7179, 8
  %v7955 = vpop.permute.xlu0 %7954
  %7956 = vrot.lane.b32.xlu0 %v7180, 8
  %v7957 = vpop.permute.xlu0 %7956
  %7958 = vrot.lane.b32.xlu0 %v7181, 8
  %v7959 = vpop.permute.xlu0 %7958
  %7960 = vrot.lane.b32.xlu0 %v7182, 8
  %v7961 = vpop.permute.xlu0 %7960
  %7962 = vrot.lane.b32.xlu0 %v7183, 8
  %v7963 = vpop.permute.xlu0 %7962
  %7964 = vrot.lane.b32.xlu0 %v7184, 8
  %v7965 = vpop.permute.xlu0 %7964
  %7966 = vrot.lane.b32.xlu0 %v7185, 8
  %v7967 = vpop.permute.xlu0 %7966
  %7968 = vrot.lane.b32.xlu0 %v7186, 8
  %v7969 = vpop.permute.xlu0 %7968
  %7970 = vrot.lane.b32.xlu0 %v7187, 8
  %v7971 = vpop.permute.xlu0 %7970
  %7972 = vrot.lane.b32.xlu0 %v7188, 8
  %v7973 = vpop.permute.xlu0 %7972
  %7974 = vrot.lane.b32.xlu0 %v7189, 8
  %v7975 = vpop.permute.xlu0 %7974
  %7976 = vrot.lane.b32.xlu0 %v7190, 8
  %v7977 = vpop.permute.xlu0 %7976
  %7978 = vrot.lane.b32.xlu0 %v7191, 8
  %v7979 = vpop.permute.xlu0 %7978
  %7980 = vrot.lane.b32.xlu0 %v7192, 8
  %v7981 = vpop.permute.xlu0 %7980
  %7982 = vrot.lane.b32.xlu0 %v7193, 8
  %v7983 = vpop.permute.xlu0 %7982
  %7984 = vrot.lane.b32.xlu0 %v7194, 8
  %v7985 = vpop.permute.xlu0 %7984
  %7986 = vrot.lane.b32.xlu0 %v7195, 8
  %v7987 = vpop.permute.xlu0 %7986
  %7988 = vrot.lane.b32.xlu0 %v7196, 8
  %v7989 = vpop.permute.xlu0 %7988
  %7990 = vrot.lane.b32.xlu0 %v7197, 8
  %v7991 = vpop.permute.xlu0 %7990
  %7992 = vrot.lane.b32.xlu0 %v7198, 8
  %v7993 = vpop.permute.xlu0 %7992
  %7994 = vrot.lane.b32.xlu0 %v7199, 8
  %v7995 = vpop.permute.xlu0 %7994
  %7996 = vrot.lane.b32.xlu0 %v7200, 8
  %v7997 = vpop.permute.xlu0 %7996
  %7998 = vrot.lane.b32.xlu0 %v7201, 8
  %v7999 = vpop.permute.xlu0 %7998
  %8000 = vrot.lane.b32.xlu0 %v7202, 8
  %v8001 = vpop.permute.xlu0 %8000
  %8002 = vrot.lane.b32.xlu0 %v7203, 8
  %v8003 = vpop.permute.xlu0 %8002
  %8004 = vrot.lane.b32.xlu0 %v7204, 8
  %v8005 = vpop.permute.xlu0 %8004
  %8006 = vrot.lane.b32.xlu0 %v7205, 8
  %v8007 = vpop.permute.xlu0 %8006
  %8008 = vrot.lane.b32.xlu0 %v7206, 8
  %v8009 = vpop.permute.xlu0 %8008
  %8010 = vrot.lane.b32.xlu0 %v7207, 8
  %v8011 = vpop.permute.xlu0 %8010
  %8012 = vrot.lane.b32.xlu0 %v7208, 8
  %v8013 = vpop.permute.xlu0 %8012
  %8014 = vrot.lane.b32.xlu0 %v7209, 8
  %v8015 = vpop.permute.xlu0 %8014
  %8016 = vrot.lane.b32.xlu0 %v7210, 8
  %v8017 = vpop.permute.xlu0 %8016
  %8018 = vrot.lane.b32.xlu0 %v7211, 8
  %v8019 = vpop.permute.xlu0 %8018
  %8020 = vrot.lane.b32.xlu0 %v7212, 8
  %v8021 = vpop.permute.xlu0 %8020
  %8022 = vrot.lane.b32.xlu0 %v7213, 8
  %v8023 = vpop.permute.xlu0 %8022
  %8024 = vrot.lane.b32.xlu0 %v7214, 8
  %v8025 = vpop.permute.xlu0 %8024
  %8026 = vrot.lane.b32.xlu0 %v7215, 8
  %v8027 = vpop.permute.xlu0 %8026
  %8028 = vrot.lane.b32.xlu0 %v7216, 8
  %v8029 = vpop.permute.xlu0 %8028
  %8030 = vrot.lane.b32.xlu0 %v7217, 8
  %v8031 = vpop.permute.xlu0 %8030
  %8032 = vrot.lane.b32.xlu0 %v7218, 8
  %v8033 = vpop.permute.xlu0 %8032
  %8034 = vrot.lane.b32.xlu0 %v7219, 8
  %v8035 = vpop.permute.xlu0 %8034
  %8036 = vrot.lane.b32.xlu0 %v7220, 8
  %v8037 = vpop.permute.xlu0 %8036
  %8038 = vrot.lane.b32.xlu0 %v7221, 8
  %v8039 = vpop.permute.xlu0 %8038
  %8040 = vrot.lane.b32.xlu0 %v7222, 8
  %v8041 = vpop.permute.xlu0 %8040
  %8042 = vrot.lane.b32.xlu0 %v7223, 8
  %v8043 = vpop.permute.xlu0 %8042
  %8044 = vrot.lane.b32.xlu0 %v7224, 8
  %v8045 = vpop.permute.xlu0 %8044
  %8046 = vrot.lane.b32.xlu0 %v7225, 8
  %v8047 = vpop.permute.xlu0 %8046
  %8048 = vrot.lane.b32.xlu0 %v7226, 8
  %v8049 = vpop.permute.xlu0 %8048
  %8050 = vrot.lane.b32.xlu0 %v7227, 8
  %v8051 = vpop.permute.xlu0 %8050
  %8052 = vrot.lane.b32.xlu0 %v7228, 8
  %v8053 = vpop.permute.xlu0 %8052
  %8054 = vrot.lane.b32.xlu0 %v7229, 8
  %v8055 = vpop.permute.xlu0 %8054
  %8056 = vrot.lane.b32.xlu0 %v7230, 8
  %v8057 = vpop.permute.xlu0 %8056
  %8058 = vrot.lane.b32.xlu0 %v7231, 8
  %v8059 = vpop.permute.xlu0 %8058
  %8060 = vrot.lane.b32.xlu0 %v7232, 8
  %v8061 = vpop.permute.xlu0 %8060
  %8062 = vrot.lane.b32.xlu0 %v7233, 8
  %v8063 = vpop.permute.xlu0 %8062
  %8064 = vrot.lane.b32.xlu0 %v7234, 8
  %v8065 = vpop.permute.xlu0 %8064
  %8066 = vrot.lane.b32.xlu0 %v7235, 8
  %v8067 = vpop.permute.xlu0 %8066
  %8068 = vrot.lane.b32.xlu0 %v7236, 8
  %v8069 = vpop.permute.xlu0 %8068
  %8198 = vrot.lane.b32.xlu0 %v7237, 12
  %v8199 = vpop.permute.xlu0 %8198
  %8200 = vrot.lane.b32.xlu0 %v7238, 12
  %v8201 = vpop.permute.xlu0 %8200
  %8202 = vrot.lane.b32.xlu0 %v7239, 12
  %v8203 = vpop.permute.xlu0 %8202
  %8204 = vrot.lane.b32.xlu0 %v7240, 12
  %v8205 = vpop.permute.xlu0 %8204
  %8206 = vrot.lane.b32.xlu0 %v7241, 12
  %v8207 = vpop.permute.xlu0 %8206
  %8208 = vrot.lane.b32.xlu0 %v7242, 12
  %v8209 = vpop.permute.xlu0 %8208
  %8210 = vrot.lane.b32.xlu0 %v7243, 12
  %v8211 = vpop.permute.xlu0 %8210
  %8212 = vrot.lane.b32.xlu0 %v7244, 12
  %v8213 = vpop.permute.xlu0 %8212
  %8214 = vrot.lane.b32.xlu0 %v7245, 12
  %v8215 = vpop.permute.xlu0 %8214
  %8216 = vrot.lane.b32.xlu0 %v7246, 12
  %v8217 = vpop.permute.xlu0 %8216
  %8218 = vrot.lane.b32.xlu0 %v7247, 12
  %v8219 = vpop.permute.xlu0 %8218
  %8220 = vrot.lane.b32.xlu0 %v7248, 12
  %v8221 = vpop.permute.xlu0 %8220
  %8222 = vrot.lane.b32.xlu0 %v7249, 12
  %v8223 = vpop.permute.xlu0 %8222
  %8224 = vrot.lane.b32.xlu0 %v7250, 12
  %v8225 = vpop.permute.xlu0 %8224
  %8226 = vrot.lane.b32.xlu0 %v7251, 12
  %v8227 = vpop.permute.xlu0 %8226
  %8228 = vrot.lane.b32.xlu0 %v7252, 12
  %v8229 = vpop.permute.xlu0 %8228
  %8230 = vrot.lane.b32.xlu0 %v7253, 12
  %v8231 = vpop.permute.xlu0 %8230
  %8232 = vrot.lane.b32.xlu0 %v7254, 12
  %v8233 = vpop.permute.xlu0 %8232
  %8234 = vrot.lane.b32.xlu0 %v7255, 12
  %v8235 = vpop.permute.xlu0 %8234
  %8236 = vrot.lane.b32.xlu0 %v7256, 12
  %v8237 = vpop.permute.xlu0 %8236
  %8238 = vrot.lane.b32.xlu0 %v7257, 12
  %v8239 = vpop.permute.xlu0 %8238
  %8240 = vrot.lane.b32.xlu0 %v7258, 12
  %v8241 = vpop.permute.xlu0 %8240
  %8242 = vrot.lane.b32.xlu0 %v7259, 12
  %v8243 = vpop.permute.xlu0 %8242
  %8244 = vrot.lane.b32.xlu0 %v7260, 12
  %v8245 = vpop.permute.xlu0 %8244
  %8246 = vrot.lane.b32.xlu0 %v7261, 12
  %v8247 = vpop.permute.xlu0 %8246
  %8248 = vrot.lane.b32.xlu0 %v7262, 12
  %v8249 = vpop.permute.xlu0 %8248
  %8250 = vrot.lane.b32.xlu0 %v7263, 12
  %v8251 = vpop.permute.xlu0 %8250
  %8252 = vrot.lane.b32.xlu0 %v7264, 12
  %v8253 = vpop.permute.xlu0 %8252
  %8254 = vrot.lane.b32.xlu0 %v7265, 12
  %v8255 = vpop.permute.xlu0 %8254
  %8256 = vrot.lane.b32.xlu0 %v7266, 12
  %v8257 = vpop.permute.xlu0 %8256
  %8258 = vrot.lane.b32.xlu0 %v7267, 12
  %v8259 = vpop.permute.xlu0 %8258
  %8260 = vrot.lane.b32.xlu0 %v7268, 12
  %v8261 = vpop.permute.xlu0 %8260
  %8262 = vrot.lane.b32.xlu0 %v7269, 12
  %v8263 = vpop.permute.xlu0 %8262
  %8264 = vrot.lane.b32.xlu0 %v7270, 12
  %v8265 = vpop.permute.xlu0 %8264
  %8266 = vrot.lane.b32.xlu0 %v7271, 12
  %v8267 = vpop.permute.xlu0 %8266
  %8268 = vrot.lane.b32.xlu0 %v7272, 12
  %v8269 = vpop.permute.xlu0 %8268
  %8270 = vrot.lane.b32.xlu0 %v7273, 12
  %v8271 = vpop.permute.xlu0 %8270
  %8272 = vrot.lane.b32.xlu0 %v7274, 12
  %v8273 = vpop.permute.xlu0 %8272
  %8274 = vrot.lane.b32.xlu0 %v7275, 12
  %v8275 = vpop.permute.xlu0 %8274
  %8276 = vrot.lane.b32.xlu0 %v7276, 12
  %v8277 = vpop.permute.xlu0 %8276
  %8278 = vrot.lane.b32.xlu0 %v7277, 12
  %v8279 = vpop.permute.xlu0 %8278
  %8280 = vrot.lane.b32.xlu0 %v7278, 12
  %v8281 = vpop.permute.xlu0 %8280
  %8282 = vrot.lane.b32.xlu0 %v7279, 12
  %v8283 = vpop.permute.xlu0 %8282
  %8284 = vrot.lane.b32.xlu0 %v7280, 12
  %v8285 = vpop.permute.xlu0 %8284
  %8286 = vrot.lane.b32.xlu0 %v7281, 12
  %v8287 = vpop.permute.xlu0 %8286
  %8288 = vrot.lane.b32.xlu0 %v7282, 12
  %v8289 = vpop.permute.xlu0 %8288
  %8290 = vrot.lane.b32.xlu0 %v7283, 12
  %v8291 = vpop.permute.xlu0 %8290
  %8292 = vrot.lane.b32.xlu0 %v7284, 12
  %v8293 = vpop.permute.xlu0 %8292
  %8294 = vrot.lane.b32.xlu0 %v7285, 12
  %v8295 = vpop.permute.xlu0 %8294
  %8296 = vrot.lane.b32.xlu0 %v7286, 12
  %v8297 = vpop.permute.xlu0 %8296
  %8298 = vrot.lane.b32.xlu0 %v7287, 12
  %v8299 = vpop.permute.xlu0 %8298
  %8300 = vrot.lane.b32.xlu0 %v7288, 12
  %v8301 = vpop.permute.xlu0 %8300
  %8302 = vrot.lane.b32.xlu0 %v7289, 12
  %v8303 = vpop.permute.xlu0 %8302
  %8304 = vrot.lane.b32.xlu0 %v7290, 12
  %v8305 = vpop.permute.xlu0 %8304
  %8306 = vrot.lane.b32.xlu0 %v7291, 12
  %v8307 = vpop.permute.xlu0 %8306
  %8308 = vrot.lane.b32.xlu0 %v7292, 12
  %v8309 = vpop.permute.xlu0 %8308
  %8310 = vrot.lane.b32.xlu0 %v7293, 12
  %v8311 = vpop.permute.xlu0 %8310
  %8312 = vrot.lane.b32.xlu0 %v7294, 12
  %v8313 = vpop.permute.xlu0 %8312
  %8314 = vrot.lane.b32.xlu0 %v7295, 12
  %v8315 = vpop.permute.xlu0 %8314
  %8316 = vrot.lane.b32.xlu0 %v7296, 12
  %v8317 = vpop.permute.xlu0 %8316
  %8318 = vrot.lane.b32.xlu0 %v7297, 12
  %v8319 = vpop.permute.xlu0 %8318
  %8320 = vrot.lane.b32.xlu0 %v7298, 12
  %v8321 = vpop.permute.xlu0 %8320
  %8322 = vrot.lane.b32.xlu0 %v7299, 12
  %v8323 = vpop.permute.xlu0 %8322
  %8324 = vrot.lane.b32.xlu0 %v7300, 12
  %v8325 = vpop.permute.xlu0 %8324
  %8454 = vrot.lane.b32.xlu0 %v7301, 16
  %v8455 = vpop.permute.xlu0 %8454
  %8456 = vrot.lane.b32.xlu0 %v7302, 16
  %v8457 = vpop.permute.xlu0 %8456
  %8458 = vrot.lane.b32.xlu0 %v7303, 16
  %v8459 = vpop.permute.xlu0 %8458
  %8460 = vrot.lane.b32.xlu0 %v7304, 16
  %v8461 = vpop.permute.xlu0 %8460
  %8462 = vrot.lane.b32.xlu0 %v7305, 16
  %v8463 = vpop.permute.xlu0 %8462
  %8464 = vrot.lane.b32.xlu0 %v7306, 16
  %v8465 = vpop.permute.xlu0 %8464
  %8466 = vrot.lane.b32.xlu0 %v7307, 16
  %v8467 = vpop.permute.xlu0 %8466
  %8468 = vrot.lane.b32.xlu0 %v7308, 16
  %v8469 = vpop.permute.xlu0 %8468
  %8470 = vrot.lane.b32.xlu0 %v7309, 16
  %v8471 = vpop.permute.xlu0 %8470
  %8472 = vrot.lane.b32.xlu0 %v7310, 16
  %v8473 = vpop.permute.xlu0 %8472
  %8474 = vrot.lane.b32.xlu0 %v7311, 16
  %v8475 = vpop.permute.xlu0 %8474
  %8476 = vrot.lane.b32.xlu0 %v7312, 16
  %v8477 = vpop.permute.xlu0 %8476
  %8478 = vrot.lane.b32.xlu0 %v7313, 16
  %v8479 = vpop.permute.xlu0 %8478
  %8480 = vrot.lane.b32.xlu0 %v7314, 16
  %v8481 = vpop.permute.xlu0 %8480
  %8482 = vrot.lane.b32.xlu0 %v7315, 16
  %v8483 = vpop.permute.xlu0 %8482
  %8484 = vrot.lane.b32.xlu0 %v7316, 16
  %v8485 = vpop.permute.xlu0 %8484
  %8486 = vrot.lane.b32.xlu0 %v7317, 16
  %v8487 = vpop.permute.xlu0 %8486
  %8488 = vrot.lane.b32.xlu0 %v7318, 16
  %v8489 = vpop.permute.xlu0 %8488
  %8490 = vrot.lane.b32.xlu0 %v7319, 16
  %v8491 = vpop.permute.xlu0 %8490
  %8492 = vrot.lane.b32.xlu0 %v7320, 16
  %v8493 = vpop.permute.xlu0 %8492
  %8494 = vrot.lane.b32.xlu0 %v7321, 16
  %v8495 = vpop.permute.xlu0 %8494
  %8496 = vrot.lane.b32.xlu0 %v7322, 16
  %v8497 = vpop.permute.xlu0 %8496
  %8498 = vrot.lane.b32.xlu0 %v7323, 16
  %v8499 = vpop.permute.xlu0 %8498
  %8500 = vrot.lane.b32.xlu0 %v7324, 16
  %v8501 = vpop.permute.xlu0 %8500
  %8502 = vrot.lane.b32.xlu0 %v7325, 16
  %v8503 = vpop.permute.xlu0 %8502
  %8504 = vrot.lane.b32.xlu0 %v7326, 16
  %v8505 = vpop.permute.xlu0 %8504
  %8506 = vrot.lane.b32.xlu0 %v7327, 16
  %v8507 = vpop.permute.xlu0 %8506
  %8508 = vrot.lane.b32.xlu0 %v7328, 16
  %v8509 = vpop.permute.xlu0 %8508
  %8510 = vrot.lane.b32.xlu0 %v7329, 16
  %v8511 = vpop.permute.xlu0 %8510
  %8512 = vrot.lane.b32.xlu0 %v7330, 16
  %v8513 = vpop.permute.xlu0 %8512
  %8514 = vrot.lane.b32.xlu0 %v7331, 16
  %v8515 = vpop.permute.xlu0 %8514
  %8516 = vrot.lane.b32.xlu0 %v7332, 16
  %v8517 = vpop.permute.xlu0 %8516
  %8518 = vrot.lane.b32.xlu0 %v7333, 16
  %v8519 = vpop.permute.xlu0 %8518
  %8520 = vrot.lane.b32.xlu0 %v7334, 16
  %v8521 = vpop.permute.xlu0 %8520
  %8522 = vrot.lane.b32.xlu0 %v7335, 16
  %v8523 = vpop.permute.xlu0 %8522
  %8524 = vrot.lane.b32.xlu0 %v7336, 16
  %v8525 = vpop.permute.xlu0 %8524
  %8526 = vrot.lane.b32.xlu0 %v7337, 16
  %v8527 = vpop.permute.xlu0 %8526
  %8528 = vrot.lane.b32.xlu0 %v7338, 16
  %v8529 = vpop.permute.xlu0 %8528
  %8530 = vrot.lane.b32.xlu0 %v7339, 16
  %v8531 = vpop.permute.xlu0 %8530
  %8532 = vrot.lane.b32.xlu0 %v7340, 16
  %v8533 = vpop.permute.xlu0 %8532
  %8534 = vrot.lane.b32.xlu0 %v7341, 16
  %v8535 = vpop.permute.xlu0 %8534
  %8536 = vrot.lane.b32.xlu0 %v7342, 16
  %v8537 = vpop.permute.xlu0 %8536
  %8538 = vrot.lane.b32.xlu0 %v7343, 16
  %v8539 = vpop.permute.xlu0 %8538
  %8540 = vrot.lane.b32.xlu0 %v7344, 16
  %v8541 = vpop.permute.xlu0 %8540
  %8542 = vrot.lane.b32.xlu0 %v7345, 16
  %v8543 = vpop.permute.xlu0 %8542
  %8544 = vrot.lane.b32.xlu0 %v7346, 16
  %v8545 = vpop.permute.xlu0 %8544
  %8546 = vrot.lane.b32.xlu0 %v7347, 16
  %v8547 = vpop.permute.xlu0 %8546
  %8548 = vrot.lane.b32.xlu0 %v7348, 16
  %v8549 = vpop.permute.xlu0 %8548
  %8550 = vrot.lane.b32.xlu0 %v7349, 16
  %v8551 = vpop.permute.xlu0 %8550
  %8552 = vrot.lane.b32.xlu0 %v7350, 16
  %v8553 = vpop.permute.xlu0 %8552
  %8554 = vrot.lane.b32.xlu0 %v7351, 16
  %v8555 = vpop.permute.xlu0 %8554
  %8556 = vrot.lane.b32.xlu0 %v7352, 16
  %v8557 = vpop.permute.xlu0 %8556
  %8558 = vrot.lane.b32.xlu0 %v7353, 16
  %v8559 = vpop.permute.xlu0 %8558
  %8560 = vrot.lane.b32.xlu0 %v7354, 16
  %v8561 = vpop.permute.xlu0 %8560
  %8562 = vrot.lane.b32.xlu0 %v7355, 16
  %v8563 = vpop.permute.xlu0 %8562
  %8564 = vrot.lane.b32.xlu0 %v7356, 16
  %v8565 = vpop.permute.xlu0 %8564
  %8566 = vrot.lane.b32.xlu0 %v7357, 16
  %v8567 = vpop.permute.xlu0 %8566
  %8568 = vrot.lane.b32.xlu0 %v7358, 16
  %v8569 = vpop.permute.xlu0 %8568
  %8570 = vrot.lane.b32.xlu0 %v7359, 16
  %v8571 = vpop.permute.xlu0 %8570
  %8572 = vrot.lane.b32.xlu0 %v7360, 16
  %v8573 = vpop.permute.xlu0 %8572
  %8574 = vrot.lane.b32.xlu0 %v7361, 16
  %v8575 = vpop.permute.xlu0 %8574
  %8576 = vrot.lane.b32.xlu0 %v7362, 16
  %v8577 = vpop.permute.xlu0 %8576
  %8578 = vrot.lane.b32.xlu0 %v7363, 16
  %v8579 = vpop.permute.xlu0 %8578
  %8580 = vrot.lane.b32.xlu0 %v7364, 16
  %v8581 = vpop.permute.xlu0 %8580
  %8710 = vrot.lane.b32.xlu0 %v7365, 20
  %v8711 = vpop.permute.xlu0 %8710
  %8712 = vrot.lane.b32.xlu0 %v7366, 20
  %v8713 = vpop.permute.xlu0 %8712
  %8714 = vrot.lane.b32.xlu0 %v7367, 20
  %v8715 = vpop.permute.xlu0 %8714
  %8716 = vrot.lane.b32.xlu0 %v7368, 20
  %v8717 = vpop.permute.xlu0 %8716
  %8718 = vrot.lane.b32.xlu0 %v7369, 20
  %v8719 = vpop.permute.xlu0 %8718
  %8720 = vrot.lane.b32.xlu0 %v7370, 20
  %v8721 = vpop.permute.xlu0 %8720
  %8722 = vrot.lane.b32.xlu0 %v7371, 20
  %v8723 = vpop.permute.xlu0 %8722
  %8724 = vrot.lane.b32.xlu0 %v7372, 20
  %v8725 = vpop.permute.xlu0 %8724
  %8726 = vrot.lane.b32.xlu0 %v7373, 20
  %v8727 = vpop.permute.xlu0 %8726
  %8728 = vrot.lane.b32.xlu0 %v7374, 20
  %v8729 = vpop.permute.xlu0 %8728
  %8730 = vrot.lane.b32.xlu0 %v7375, 20
  %v8731 = vpop.permute.xlu0 %8730
  %8732 = vrot.lane.b32.xlu0 %v7376, 20
  %v8733 = vpop.permute.xlu0 %8732
  %8734 = vrot.lane.b32.xlu0 %v7377, 20
  %v8735 = vpop.permute.xlu0 %8734
  %8736 = vrot.lane.b32.xlu0 %v7378, 20
  %v8737 = vpop.permute.xlu0 %8736
  %8738 = vrot.lane.b32.xlu0 %v7379, 20
  %v8739 = vpop.permute.xlu0 %8738
  %8740 = vrot.lane.b32.xlu0 %v7380, 20
  %v8741 = vpop.permute.xlu0 %8740
  %8742 = vrot.lane.b32.xlu0 %v7381, 20
  %v8743 = vpop.permute.xlu0 %8742
  %8744 = vrot.lane.b32.xlu0 %v7382, 20
  %v8745 = vpop.permute.xlu0 %8744
  %8746 = vrot.lane.b32.xlu0 %v7383, 20
  %v8747 = vpop.permute.xlu0 %8746
  %8748 = vrot.lane.b32.xlu0 %v7384, 20
  %v8749 = vpop.permute.xlu0 %8748
  %8750 = vrot.lane.b32.xlu0 %v7385, 20
  %v8751 = vpop.permute.xlu0 %8750
  %8752 = vrot.lane.b32.xlu0 %v7386, 20
  %v8753 = vpop.permute.xlu0 %8752
  %8754 = vrot.lane.b32.xlu0 %v7387, 20
  %v8755 = vpop.permute.xlu0 %8754
  %8756 = vrot.lane.b32.xlu0 %v7388, 20
  %v8757 = vpop.permute.xlu0 %8756
  %8758 = vrot.lane.b32.xlu0 %v7389, 20
  %v8759 = vpop.permute.xlu0 %8758
  %8760 = vrot.lane.b32.xlu0 %v7390, 20
  %v8761 = vpop.permute.xlu0 %8760
  %8762 = vrot.lane.b32.xlu0 %v7391, 20
  %v8763 = vpop.permute.xlu0 %8762
  %8764 = vrot.lane.b32.xlu0 %v7392, 20
  %v8765 = vpop.permute.xlu0 %8764
  %8766 = vrot.lane.b32.xlu0 %v7393, 20
  %v8767 = vpop.permute.xlu0 %8766
  %8768 = vrot.lane.b32.xlu0 %v7394, 20
  %v8769 = vpop.permute.xlu0 %8768
  %8770 = vrot.lane.b32.xlu0 %v7395, 20
  %v8771 = vpop.permute.xlu0 %8770
  %8772 = vrot.lane.b32.xlu0 %v7396, 20
  %v8773 = vpop.permute.xlu0 %8772
  %8774 = vrot.lane.b32.xlu0 %v7397, 20
  %v8775 = vpop.permute.xlu0 %8774
  %8776 = vrot.lane.b32.xlu0 %v7398, 20
  %v8777 = vpop.permute.xlu0 %8776
  %8778 = vrot.lane.b32.xlu0 %v7399, 20
  %v8779 = vpop.permute.xlu0 %8778
  %8780 = vrot.lane.b32.xlu0 %v7400, 20
  %v8781 = vpop.permute.xlu0 %8780
  %8782 = vrot.lane.b32.xlu0 %v7401, 20
  %v8783 = vpop.permute.xlu0 %8782
  %8784 = vrot.lane.b32.xlu0 %v7402, 20
  %v8785 = vpop.permute.xlu0 %8784
  %8786 = vrot.lane.b32.xlu0 %v7403, 20
  %v8787 = vpop.permute.xlu0 %8786
  %8788 = vrot.lane.b32.xlu0 %v7404, 20
  %v8789 = vpop.permute.xlu0 %8788
  %8790 = vrot.lane.b32.xlu0 %v7405, 20
  %v8791 = vpop.permute.xlu0 %8790
  %8792 = vrot.lane.b32.xlu0 %v7406, 20
  %v8793 = vpop.permute.xlu0 %8792
  %8794 = vrot.lane.b32.xlu0 %v7407, 20
  %v8795 = vpop.permute.xlu0 %8794
  %8796 = vrot.lane.b32.xlu0 %v7408, 20
  %v8797 = vpop.permute.xlu0 %8796
  %8798 = vrot.lane.b32.xlu0 %v7409, 20
  %v8799 = vpop.permute.xlu0 %8798
  %8800 = vrot.lane.b32.xlu0 %v7410, 20
  %v8801 = vpop.permute.xlu0 %8800
  %8802 = vrot.lane.b32.xlu0 %v7411, 20
  %v8803 = vpop.permute.xlu0 %8802
  %8804 = vrot.lane.b32.xlu0 %v7412, 20
  %v8805 = vpop.permute.xlu0 %8804
  %8806 = vrot.lane.b32.xlu0 %v7413, 20
  %v8807 = vpop.permute.xlu0 %8806
  %8808 = vrot.lane.b32.xlu0 %v7414, 20
  %v8809 = vpop.permute.xlu0 %8808
  %8810 = vrot.lane.b32.xlu0 %v7415, 20
  %v8811 = vpop.permute.xlu0 %8810
  %8812 = vrot.lane.b32.xlu0 %v7416, 20
  %v8813 = vpop.permute.xlu0 %8812
  %8814 = vrot.lane.b32.xlu0 %v7417, 20
  %v8815 = vpop.permute.xlu0 %8814
  %8816 = vrot.lane.b32.xlu0 %v7418, 20
  %v8817 = vpop.permute.xlu0 %8816
  %8818 = vrot.lane.b32.xlu0 %v7419, 20
  %v8819 = vpop.permute.xlu0 %8818
  %8820 = vrot.lane.b32.xlu0 %v7420, 20
  %v8821 = vpop.permute.xlu0 %8820
  %8822 = vrot.lane.b32.xlu0 %v7421, 20
  %v8823 = vpop.permute.xlu0 %8822
  %8824 = vrot.lane.b32.xlu0 %v7422, 20
  %v8825 = vpop.permute.xlu0 %8824
  %8826 = vrot.lane.b32.xlu0 %v7423, 20
  %v8827 = vpop.permute.xlu0 %8826
  %8828 = vrot.lane.b32.xlu0 %v7424, 20
  %v8829 = vpop.permute.xlu0 %8828
  %8830 = vrot.lane.b32.xlu0 %v7425, 20
  %v8831 = vpop.permute.xlu0 %8830
  %8832 = vrot.lane.b32.xlu0 %v7426, 20
  %v8833 = vpop.permute.xlu0 %8832
  %8834 = vrot.lane.b32.xlu0 %v7427, 20
  %v8835 = vpop.permute.xlu0 %8834
  %8836 = vrot.lane.b32.xlu0 %v7428, 20
  %v8837 = vpop.permute.xlu0 %8836
  %8966 = vrot.lane.b32.xlu0 %v7430, 24
  %v8967 = vpop.permute.xlu0 %8966
  %8968 = vrot.lane.b32.xlu0 %v7431, 24
  %v8969 = vpop.permute.xlu0 %8968
  %8970 = vrot.lane.b32.xlu0 %v7432, 24
  %v8971 = vpop.permute.xlu0 %8970
  %8972 = vrot.lane.b32.xlu0 %v7433, 24
  %v8973 = vpop.permute.xlu0 %8972
  %8974 = vrot.lane.b32.xlu0 %v7434, 24
  %v8975 = vpop.permute.xlu0 %8974
  %8976 = vrot.lane.b32.xlu0 %v7435, 24
  %v8977 = vpop.permute.xlu0 %8976
  %8978 = vrot.lane.b32.xlu0 %v7436, 24
  %v8979 = vpop.permute.xlu0 %8978
  %8980 = vrot.lane.b32.xlu0 %v7437, 24
  %v8981 = vpop.permute.xlu0 %8980
  %8982 = vrot.lane.b32.xlu0 %v7438, 24
  %v8983 = vpop.permute.xlu0 %8982
  %8984 = vrot.lane.b32.xlu0 %v7439, 24
  %v8985 = vpop.permute.xlu0 %8984
  %8986 = vrot.lane.b32.xlu0 %v7440, 24
  %v8987 = vpop.permute.xlu0 %8986
  %8988 = vrot.lane.b32.xlu0 %v7441, 24
  %v8989 = vpop.permute.xlu0 %8988
  %8990 = vrot.lane.b32.xlu0 %v7442, 24
  %v8991 = vpop.permute.xlu0 %8990
  %8992 = vrot.lane.b32.xlu0 %v7443, 24
  %v8993 = vpop.permute.xlu0 %8992
  %8994 = vrot.lane.b32.xlu0 %v7444, 24
  %v8995 = vpop.permute.xlu0 %8994
  %8996 = vrot.lane.b32.xlu0 %v7445, 24
  %v8997 = vpop.permute.xlu0 %8996
  %8998 = vrot.lane.b32.xlu0 %v7446, 24
  %v8999 = vpop.permute.xlu0 %8998
  %9000 = vrot.lane.b32.xlu0 %v7447, 24
  %v9001 = vpop.permute.xlu0 %9000
  %9002 = vrot.lane.b32.xlu0 %v7448, 24
  %v9003 = vpop.permute.xlu0 %9002
  %9004 = vrot.lane.b32.xlu0 %v7449, 24
  %v9005 = vpop.permute.xlu0 %9004
  %9006 = vrot.lane.b32.xlu0 %v7450, 24
  %v9007 = vpop.permute.xlu0 %9006
  %9008 = vrot.lane.b32.xlu0 %v7451, 24
  %v9009 = vpop.permute.xlu0 %9008
  %9010 = vrot.lane.b32.xlu0 %v7452, 24
  %v9011 = vpop.permute.xlu0 %9010
  %9012 = vrot.lane.b32.xlu0 %v7453, 24
  %v9013 = vpop.permute.xlu0 %9012
  %9014 = vrot.lane.b32.xlu0 %v7454, 24
  %v9015 = vpop.permute.xlu0 %9014
  %9016 = vrot.lane.b32.xlu0 %v7455, 24
  %v9017 = vpop.permute.xlu0 %9016
  %9018 = vrot.lane.b32.xlu0 %v7456, 24
  %v9019 = vpop.permute.xlu0 %9018
  %9020 = vrot.lane.b32.xlu0 %v7457, 24
  %v9021 = vpop.permute.xlu0 %9020
  %9022 = vrot.lane.b32.xlu0 %v7458, 24
  %v9023 = vpop.permute.xlu0 %9022
  %9024 = vrot.lane.b32.xlu0 %v7459, 24
  %v9025 = vpop.permute.xlu0 %9024
  %9026 = vrot.lane.b32.xlu0 %v7460, 24
  %v9027 = vpop.permute.xlu0 %9026
  %9028 = vrot.lane.b32.xlu0 %v7461, 24
  %v9029 = vpop.permute.xlu0 %9028
  %9030 = vrot.lane.b32.xlu0 %v7462, 24
  %v9031 = vpop.permute.xlu0 %9030
  %9032 = vrot.lane.b32.xlu0 %v7463, 24
  %v9033 = vpop.permute.xlu0 %9032
  %9034 = vrot.lane.b32.xlu0 %v7464, 24
  %v9035 = vpop.permute.xlu0 %9034
  %9036 = vrot.lane.b32.xlu0 %v7465, 24
  %v9037 = vpop.permute.xlu0 %9036
  %9038 = vrot.lane.b32.xlu0 %v7466, 24
  %v9039 = vpop.permute.xlu0 %9038
  %9040 = vrot.lane.b32.xlu0 %v7467, 24
  %v9041 = vpop.permute.xlu0 %9040
  %9042 = vrot.lane.b32.xlu0 %v7468, 24
  %v9043 = vpop.permute.xlu0 %9042
  %9044 = vrot.lane.b32.xlu0 %v7469, 24
  %v9045 = vpop.permute.xlu0 %9044
  %9046 = vrot.lane.b32.xlu0 %v7470, 24
  %v9047 = vpop.permute.xlu0 %9046
  %9048 = vrot.lane.b32.xlu0 %v7471, 24
  %v9049 = vpop.permute.xlu0 %9048
  %9050 = vrot.lane.b32.xlu0 %v7472, 24
  %v9051 = vpop.permute.xlu0 %9050
  %9052 = vrot.lane.b32.xlu0 %v7473, 24
  %v9053 = vpop.permute.xlu0 %9052
  %9054 = vrot.lane.b32.xlu0 %v7474, 24
  %v9055 = vpop.permute.xlu0 %9054
  %9056 = vrot.lane.b32.xlu0 %v7475, 24
  %v9057 = vpop.permute.xlu0 %9056
  %9058 = vrot.lane.b32.xlu0 %v7476, 24
  %v9059 = vpop.permute.xlu0 %9058
  %9060 = vrot.lane.b32.xlu0 %v7477, 24
  %v9061 = vpop.permute.xlu0 %9060
  %9062 = vrot.lane.b32.xlu0 %v7478, 24
  %v9063 = vpop.permute.xlu0 %9062
  %9064 = vrot.lane.b32.xlu0 %v7479, 24
  %v9065 = vpop.permute.xlu0 %9064
  %9066 = vrot.lane.b32.xlu0 %v7480, 24
  %v9067 = vpop.permute.xlu0 %9066
  %9068 = vrot.lane.b32.xlu0 %v7481, 24
  %v9069 = vpop.permute.xlu0 %9068
  %9070 = vrot.lane.b32.xlu0 %v7482, 24
  %v9071 = vpop.permute.xlu0 %9070
  %9072 = vrot.lane.b32.xlu0 %v7483, 24
  %v9073 = vpop.permute.xlu0 %9072
  %9074 = vrot.lane.b32.xlu0 %v7484, 24
  %v9075 = vpop.permute.xlu0 %9074
  %9076 = vrot.lane.b32.xlu0 %v7485, 24
  %v9077 = vpop.permute.xlu0 %9076
  %9078 = vrot.lane.b32.xlu0 %v7486, 24
  %v9079 = vpop.permute.xlu0 %9078
  %9080 = vrot.lane.b32.xlu0 %v7487, 24
  %v9081 = vpop.permute.xlu0 %9080
  %9082 = vrot.lane.b32.xlu0 %v7488, 24
  %v9083 = vpop.permute.xlu0 %9082
  %9084 = vrot.lane.b32.xlu0 %v7489, 24
  %v9085 = vpop.permute.xlu0 %9084
  %9086 = vrot.lane.b32.xlu0 %v7490, 24
  %v9087 = vpop.permute.xlu0 %9086
  %9088 = vrot.lane.b32.xlu0 %v7491, 24
  %v9089 = vpop.permute.xlu0 %9088
  %9090 = vrot.lane.b32.xlu0 %v7492, 24
  %v9091 = vpop.permute.xlu0 %9090
  %9092 = vrot.lane.b32.xlu0 %v7493, 24
  %v9093 = vpop.permute.xlu0 %9092
  %9222 = vrot.lane.b32.xlu0 %v7494, 28
  %v9223 = vpop.permute.xlu0 %9222
  %9224 = vrot.lane.b32.xlu0 %v7495, 28
  %v9225 = vpop.permute.xlu0 %9224
  %9226 = vrot.lane.b32.xlu0 %v7496, 28
  %v9227 = vpop.permute.xlu0 %9226
  %9228 = vrot.lane.b32.xlu0 %v7497, 28
  %v9229 = vpop.permute.xlu0 %9228
  %9230 = vrot.lane.b32.xlu0 %v7498, 28
  %v9231 = vpop.permute.xlu0 %9230
  %9232 = vrot.lane.b32.xlu0 %v7499, 28
  %v9233 = vpop.permute.xlu0 %9232
  %9234 = vrot.lane.b32.xlu0 %v7500, 28
  %v9235 = vpop.permute.xlu0 %9234
  %9236 = vrot.lane.b32.xlu0 %v7501, 28
  %v9237 = vpop.permute.xlu0 %9236
  %9238 = vrot.lane.b32.xlu0 %v7502, 28
  %v9239 = vpop.permute.xlu0 %9238
  %9240 = vrot.lane.b32.xlu0 %v7503, 28
  %v9241 = vpop.permute.xlu0 %9240
  %9242 = vrot.lane.b32.xlu0 %v7504, 28
  %v9243 = vpop.permute.xlu0 %9242
  %9244 = vrot.lane.b32.xlu0 %v7505, 28
  %v9245 = vpop.permute.xlu0 %9244
  %9246 = vrot.lane.b32.xlu0 %v7506, 28
  %v9247 = vpop.permute.xlu0 %9246
  %9248 = vrot.lane.b32.xlu0 %v7507, 28
  %v9249 = vpop.permute.xlu0 %9248
  %9250 = vrot.lane.b32.xlu0 %v7508, 28
  %v9251 = vpop.permute.xlu0 %9250
  %9252 = vrot.lane.b32.xlu0 %v7509, 28
  %v9253 = vpop.permute.xlu0 %9252
  %9254 = vrot.lane.b32.xlu0 %v7510, 28
  %v9255 = vpop.permute.xlu0 %9254
  %9256 = vrot.lane.b32.xlu0 %v7511, 28
  %v9257 = vpop.permute.xlu0 %9256
  %9258 = vrot.lane.b32.xlu0 %v7512, 28
  %v9259 = vpop.permute.xlu0 %9258
  %9260 = vrot.lane.b32.xlu0 %v7513, 28
  %v9261 = vpop.permute.xlu0 %9260
  %9262 = vrot.lane.b32.xlu0 %v7514, 28
  %v9263 = vpop.permute.xlu0 %9262
  %9264 = vrot.lane.b32.xlu0 %v7515, 28
  %v9265 = vpop.permute.xlu0 %9264
  %9266 = vrot.lane.b32.xlu0 %v7516, 28
  %v9267 = vpop.permute.xlu0 %9266
  %9268 = vrot.lane.b32.xlu0 %v7517, 28
  %v9269 = vpop.permute.xlu0 %9268
  %9270 = vrot.lane.b32.xlu0 %v7518, 28
  %v9271 = vpop.permute.xlu0 %9270
  %9272 = vrot.lane.b32.xlu0 %v7519, 28
  %v9273 = vpop.permute.xlu0 %9272
  %9274 = vrot.lane.b32.xlu0 %v7520, 28
  %v9275 = vpop.permute.xlu0 %9274
  %9276 = vrot.lane.b32.xlu0 %v7521, 28
  %v9277 = vpop.permute.xlu0 %9276
  %9278 = vrot.lane.b32.xlu0 %v7522, 28
  %v9279 = vpop.permute.xlu0 %9278
  %9280 = vrot.lane.b32.xlu0 %v7523, 28
  %v9281 = vpop.permute.xlu0 %9280
  %9282 = vrot.lane.b32.xlu0 %v7524, 28
  %v9283 = vpop.permute.xlu0 %9282
  %9284 = vrot.lane.b32.xlu0 %v7525, 28
  %v9285 = vpop.permute.xlu0 %9284
  %9286 = vrot.lane.b32.xlu0 %v7526, 28
  %v9287 = vpop.permute.xlu0 %9286
  %9288 = vrot.lane.b32.xlu0 %v7527, 28
  %v9289 = vpop.permute.xlu0 %9288
  %9290 = vrot.lane.b32.xlu0 %v7528, 28
  %v9291 = vpop.permute.xlu0 %9290
  %9292 = vrot.lane.b32.xlu0 %v7529, 28
  %v9293 = vpop.permute.xlu0 %9292
  %9294 = vrot.lane.b32.xlu0 %v7530, 28
  %v9295 = vpop.permute.xlu0 %9294
  %9296 = vrot.lane.b32.xlu0 %v7531, 28
  %v9297 = vpop.permute.xlu0 %9296
  %9298 = vrot.lane.b32.xlu0 %v7532, 28
  %v9299 = vpop.permute.xlu0 %9298
  %9300 = vrot.lane.b32.xlu0 %v7533, 28
  %v9301 = vpop.permute.xlu0 %9300
  %9302 = vrot.lane.b32.xlu0 %v7534, 28
  %v9303 = vpop.permute.xlu0 %9302
  %9304 = vrot.lane.b32.xlu0 %v7535, 28
  %v9305 = vpop.permute.xlu0 %9304
  %9306 = vrot.lane.b32.xlu0 %v7536, 28
  %v9307 = vpop.permute.xlu0 %9306
  %9308 = vrot.lane.b32.xlu0 %v7537, 28
  %v9309 = vpop.permute.xlu0 %9308
  %9310 = vrot.lane.b32.xlu0 %v7538, 28
  %v9311 = vpop.permute.xlu0 %9310
  %9312 = vrot.lane.b32.xlu0 %v7539, 28
  %v9313 = vpop.permute.xlu0 %9312
  %9314 = vrot.lane.b32.xlu0 %v7540, 28
  %v9315 = vpop.permute.xlu0 %9314
  %9316 = vrot.lane.b32.xlu0 %v7541, 28
  %v9317 = vpop.permute.xlu0 %9316
  %9318 = vrot.lane.b32.xlu0 %v7542, 28
  %v9319 = vpop.permute.xlu0 %9318
  %9320 = vrot.lane.b32.xlu0 %v7543, 28
  %v9321 = vpop.permute.xlu0 %9320
  %9322 = vrot.lane.b32.xlu0 %v7544, 28
  %v9323 = vpop.permute.xlu0 %9322
  %9324 = vrot.lane.b32.xlu0 %v7545, 28
  %v9325 = vpop.permute.xlu0 %9324
  %9326 = vrot.lane.b32.xlu0 %v7546, 28
  %v9327 = vpop.permute.xlu0 %9326
  %9328 = vrot.lane.b32.xlu0 %v7547, 28
  %v9329 = vpop.permute.xlu0 %9328
  %9330 = vrot.lane.b32.xlu0 %v7548, 28
  %v9331 = vpop.permute.xlu0 %9330
  %9332 = vrot.lane.b32.xlu0 %v7549, 28
  %v9333 = vpop.permute.xlu0 %9332
  %9334 = vrot.lane.b32.xlu0 %v7550, 28
  %v9335 = vpop.permute.xlu0 %9334
  %9336 = vrot.lane.b32.xlu0 %v7551, 28
  %v9337 = vpop.permute.xlu0 %9336
  %9338 = vrot.lane.b32.xlu0 %v7552, 28
  %v9339 = vpop.permute.xlu0 %9338
  %9340 = vrot.lane.b32.xlu0 %v7553, 28
  %v9341 = vpop.permute.xlu0 %9340
  %9342 = vrot.lane.b32.xlu0 %v7554, 28
  %v9343 = vpop.permute.xlu0 %9342
  %9344 = vrot.lane.b32.xlu0 %v7555, 28
  %v9345 = vpop.permute.xlu0 %9344
  %9346 = vrot.lane.b32.xlu0 %v7556, 28
  %v9347 = vpop.permute.xlu0 %9346
  %9348 = vrot.lane.b32.xlu0 %v7557, 28
  %v9349 = vpop.permute.xlu0 %9348
  %9478 = vrot.lane.b32.xlu0 %v7558, 32
  %v9479 = vpop.permute.xlu0 %9478
  %9480 = vrot.lane.b32.xlu0 %v7559, 32
  %v9481 = vpop.permute.xlu0 %9480
  %9482 = vrot.lane.b32.xlu0 %v7560, 32
  %v9483 = vpop.permute.xlu0 %9482
  %9484 = vrot.lane.b32.xlu0 %v7561, 32
  %v9485 = vpop.permute.xlu0 %9484
  %9486 = vrot.lane.b32.xlu0 %v7562, 32
  %v9487 = vpop.permute.xlu0 %9486
  %9488 = vrot.lane.b32.xlu0 %v7563, 32
  %v9489 = vpop.permute.xlu0 %9488
  %9490 = vrot.lane.b32.xlu0 %v7564, 32
  %v9491 = vpop.permute.xlu0 %9490
  %9492 = vrot.lane.b32.xlu0 %v7565, 32
  %v9493 = vpop.permute.xlu0 %9492
  %9494 = vrot.lane.b32.xlu0 %v7566, 32
  %v9495 = vpop.permute.xlu0 %9494
  %9496 = vrot.lane.b32.xlu0 %v7567, 32
  %v9497 = vpop.permute.xlu0 %9496
  %9498 = vrot.lane.b32.xlu0 %v7568, 32
  %v9499 = vpop.permute.xlu0 %9498
  %9500 = vrot.lane.b32.xlu0 %v7569, 32
  %v9501 = vpop.permute.xlu0 %9500
  %9502 = vrot.lane.b32.xlu0 %v7570, 32
  %v9503 = vpop.permute.xlu0 %9502
  %9504 = vrot.lane.b32.xlu0 %v7571, 32
  %v9505 = vpop.permute.xlu0 %9504
  %9506 = vrot.lane.b32.xlu0 %v7572, 32
  %v9507 = vpop.permute.xlu0 %9506
  %9508 = vrot.lane.b32.xlu0 %v7573, 32
  %v9509 = vpop.permute.xlu0 %9508
  %9510 = vrot.lane.b32.xlu0 %v7574, 32
  %v9511 = vpop.permute.xlu0 %9510
  %9512 = vrot.lane.b32.xlu0 %v7575, 32
  %v9513 = vpop.permute.xlu0 %9512
  %9514 = vrot.lane.b32.xlu0 %v7576, 32
  %v9515 = vpop.permute.xlu0 %9514
  %9516 = vrot.lane.b32.xlu0 %v7577, 32
  %v9517 = vpop.permute.xlu0 %9516
  %9518 = vrot.lane.b32.xlu0 %v7578, 32
  %v9519 = vpop.permute.xlu0 %9518
  %9520 = vrot.lane.b32.xlu0 %v7579, 32
  %v9521 = vpop.permute.xlu0 %9520
  %9522 = vrot.lane.b32.xlu0 %v7580, 32
  %v9523 = vpop.permute.xlu0 %9522
  %9524 = vrot.lane.b32.xlu0 %v7581, 32
  %v9525 = vpop.permute.xlu0 %9524
  %9526 = vrot.lane.b32.xlu0 %v7582, 32
  %v9527 = vpop.permute.xlu0 %9526
  %9528 = vrot.lane.b32.xlu0 %v7583, 32
  %v9529 = vpop.permute.xlu0 %9528
  %9530 = vrot.lane.b32.xlu0 %v7584, 32
  %v9531 = vpop.permute.xlu0 %9530
  %9532 = vrot.lane.b32.xlu0 %v7585, 32
  %v9533 = vpop.permute.xlu0 %9532
  %9534 = vrot.lane.b32.xlu0 %v7586, 32
  %v9535 = vpop.permute.xlu0 %9534
  %9536 = vrot.lane.b32.xlu0 %v7587, 32
  %v9537 = vpop.permute.xlu0 %9536
  %9538 = vrot.lane.b32.xlu0 %v7588, 32
  %v9539 = vpop.permute.xlu0 %9538
  %9540 = vrot.lane.b32.xlu0 %v7589, 32
  %v9541 = vpop.permute.xlu0 %9540
  %9542 = vrot.lane.b32.xlu0 %v7590, 32
  %v9543 = vpop.permute.xlu0 %9542
  %9544 = vrot.lane.b32.xlu0 %v7591, 32
  %v9545 = vpop.permute.xlu0 %9544
  %9546 = vrot.lane.b32.xlu0 %v7592, 32
  %v9547 = vpop.permute.xlu0 %9546
  %9548 = vrot.lane.b32.xlu0 %v7593, 32
  %v9549 = vpop.permute.xlu0 %9548
  %9550 = vrot.lane.b32.xlu0 %v7594, 32
  %v9551 = vpop.permute.xlu0 %9550
  %9552 = vrot.lane.b32.xlu0 %v7595, 32
  %v9553 = vpop.permute.xlu0 %9552
  %9554 = vrot.lane.b32.xlu0 %v7596, 32
  %v9555 = vpop.permute.xlu0 %9554
  %9556 = vrot.lane.b32.xlu0 %v7597, 32
  %v9557 = vpop.permute.xlu0 %9556
  %9558 = vrot.lane.b32.xlu0 %v7598, 32
  %v9559 = vpop.permute.xlu0 %9558
  %9560 = vrot.lane.b32.xlu0 %v7599, 32
  %v9561 = vpop.permute.xlu0 %9560
  %9562 = vrot.lane.b32.xlu0 %v7600, 32
  %v9563 = vpop.permute.xlu0 %9562
  %9564 = vrot.lane.b32.xlu0 %v7601, 32
  %v9565 = vpop.permute.xlu0 %9564
  %9566 = vrot.lane.b32.xlu0 %v7602, 32
  %v9567 = vpop.permute.xlu0 %9566
  %9568 = vrot.lane.b32.xlu0 %v7603, 32
  %v9569 = vpop.permute.xlu0 %9568
  %9570 = vrot.lane.b32.xlu0 %v7604, 32
  %v9571 = vpop.permute.xlu0 %9570
  %9572 = vrot.lane.b32.xlu0 %v7605, 32
  %v9573 = vpop.permute.xlu0 %9572
  %9574 = vrot.lane.b32.xlu0 %v7606, 32
  %v9575 = vpop.permute.xlu0 %9574
  %9576 = vrot.lane.b32.xlu0 %v7607, 32
  %v9577 = vpop.permute.xlu0 %9576
  %9578 = vrot.lane.b32.xlu0 %v7608, 32
  %v9579 = vpop.permute.xlu0 %9578
  %9580 = vrot.lane.b32.xlu0 %v7609, 32
  %v9581 = vpop.permute.xlu0 %9580
  %9582 = vrot.lane.b32.xlu0 %v7610, 32
  %v9583 = vpop.permute.xlu0 %9582
  %9584 = vrot.lane.b32.xlu0 %v7611, 32
  %v9585 = vpop.permute.xlu0 %9584
  %9586 = vrot.lane.b32.xlu0 %v7612, 32
  %v9587 = vpop.permute.xlu0 %9586
  %9588 = vrot.lane.b32.xlu0 %v7613, 32
  %v9589 = vpop.permute.xlu0 %9588
  %9590 = vrot.lane.b32.xlu0 %v7614, 32
  %v9591 = vpop.permute.xlu0 %9590
  %9592 = vrot.lane.b32.xlu0 %v7615, 32
  %v9593 = vpop.permute.xlu0 %9592
  %9594 = vrot.lane.b32.xlu0 %v7616, 32
  %v9595 = vpop.permute.xlu0 %9594
  %9596 = vrot.lane.b32.xlu0 %v7617, 32
  %v9597 = vpop.permute.xlu0 %9596
  %9598 = vrot.lane.b32.xlu0 %v7618, 32
  %v9599 = vpop.permute.xlu0 %9598
  %9600 = vrot.lane.b32.xlu0 %v7619, 32
  %v9601 = vpop.permute.xlu0 %9600
  %9602 = vrot.lane.b32.xlu0 %v7620, 32
  %v9603 = vpop.permute.xlu0 %9602
  %9604 = vrot.lane.b32.xlu0 %v7621, 32
  %v9605 = vpop.permute.xlu0 %9604
  %v9670 = vsel %vm2914, %v7045, %v7687
  %v9671 = vsel %vm2914, %v7046, %v7689
  %v9672 = vsel %vm2914, %v7047, %v7691
  %v9673 = vsel %vm2914, %v7048, %v7693
  %v9674 = vsel %vm2914, %v7049, %v7695
  %v9675 = vsel %vm2914, %v7050, %v7697
  %v9676 = vsel %vm2914, %v7051, %v7699
  %v9677 = vsel %vm2914, %v7052, %v7701
  %v9678 = vsel %vm2914, %v7053, %v7703
  %v9679 = vsel %vm2914, %v7054, %v7705
  %v9680 = vsel %vm2914, %v7055, %v7707
  %v9681 = vsel %vm2914, %v7056, %v7709
  %v9682 = vsel %vm2914, %v7057, %v7711
  %v9683 = vsel %vm2914, %v7058, %v7713
  %v9684 = vsel %vm2914, %v7059, %v7715
  %v9685 = vsel %vm2914, %v7060, %v7717
  %v9686 = vsel %vm2914, %v7061, %v7719
  %v9687 = vsel %vm2914, %v7062, %v7721
  %v9688 = vsel %vm2914, %v7063, %v7723
  %v9689 = vsel %vm2914, %v7064, %v7725
  %v9690 = vsel %vm2914, %v7065, %v7727
  %v9691 = vsel %vm2914, %v7066, %v7729
  %v9692 = vsel %vm2914, %v7067, %v7731
  %v9693 = vsel %vm2914, %v7068, %v7733
  %v9694 = vsel %vm2914, %v7069, %v7735
  %v9695 = vsel %vm2914, %v7070, %v7737
  %v9696 = vsel %vm2914, %v7071, %v7739
  %v9697 = vsel %vm2914, %v7072, %v7741
  %v9698 = vsel %vm2914, %v7073, %v7743
  %v9699 = vsel %vm2914, %v7074, %v7745
  %v9700 = vsel %vm2914, %v7075, %v7747
  %v9701 = vsel %vm2914, %v7076, %v7749
  %v9702 = vsel %vm2914, %v7077, %v7751
  %v9703 = vsel %vm2914, %v7078, %v7753
  %v9704 = vsel %vm2914, %v7079, %v7755
  %v9705 = vsel %vm2914, %v7080, %v7757
  %v9706 = vsel %vm2914, %v7081, %v7759
  %v9707 = vsel %vm2914, %v7082, %v7761
  %v9708 = vsel %vm2914, %v7083, %v7763
  %v9709 = vsel %vm2914, %v7084, %v7765
  %v9710 = vsel %vm2914, %v7085, %v7767
  %v9711 = vsel %vm2914, %v7086, %v7769
  %v9712 = vsel %vm2914, %v7087, %v7771
  %v9713 = vsel %vm2914, %v7088, %v7773
  %v9714 = vsel %vm2914, %v7089, %v7775
  %v9715 = vsel %vm2914, %v7090, %v7777
  %v9716 = vsel %vm2914, %v7091, %v7779
  %v9717 = vsel %vm2914, %v7092, %v7781
  %v9718 = vsel %vm2914, %v7093, %v7783
  %v9719 = vsel %vm2914, %v7094, %v7785
  %v9720 = vsel %vm2914, %v7095, %v7787
  %v9721 = vsel %vm2914, %v7096, %v7789
  %v9722 = vsel %vm2914, %v7097, %v7791
  %v9723 = vsel %vm2914, %v7098, %v7793
  %v9724 = vsel %vm2914, %v7099, %v7795
  %v9725 = vsel %vm2914, %v7100, %v7797
  %v9726 = vsel %vm2914, %v7101, %v7799
  %v9727 = vsel %vm2914, %v7102, %v7801
  %v9728 = vsel %vm2914, %v7103, %v7803
  %v9729 = vsel %vm2914, %v7104, %v7805
  %v9730 = vsel %vm2914, %v7105, %v7807
  %v9731 = vsel %vm2914, %v7106, %v7809
  %v9732 = vsel %vm2914, %v7107, %v7811
  %v9733 = vsel %vm2914, %v7108, %v7813
  %v9734 = vsel %vm3011, %v9670, %v7943
  %v9735 = vsel %vm3011, %v9671, %v7945
  %v9736 = vsel %vm3011, %v9672, %v7947
  %v9737 = vsel %vm3011, %v9673, %v7949
  %v9738 = vsel %vm3011, %v9674, %v7951
  %v9739 = vsel %vm3011, %v9675, %v7953
  %v9740 = vsel %vm3011, %v9676, %v7955
  %v9741 = vsel %vm3011, %v9677, %v7957
  %v9742 = vsel %vm3011, %v9678, %v7959
  %v9743 = vsel %vm3011, %v9679, %v7961
  %v9744 = vsel %vm3011, %v9680, %v7963
  %v9745 = vsel %vm3011, %v9681, %v7965
  %v9746 = vsel %vm3011, %v9682, %v7967
  %v9747 = vsel %vm3011, %v9683, %v7969
  %v9748 = vsel %vm3011, %v9684, %v7971
  %v9749 = vsel %vm3011, %v9685, %v7973
  %v9750 = vsel %vm3011, %v9686, %v7975
  %v9751 = vsel %vm3011, %v9687, %v7977
  %v9752 = vsel %vm3011, %v9688, %v7979
  %v9753 = vsel %vm3011, %v9689, %v7981
  %v9754 = vsel %vm3011, %v9690, %v7983
  %v9755 = vsel %vm3011, %v9691, %v7985
  %v9756 = vsel %vm3011, %v9692, %v7987
  %v9757 = vsel %vm3011, %v9693, %v7989
  %v9758 = vsel %vm3011, %v9694, %v7991
  %v9759 = vsel %vm3011, %v9695, %v7993
  %v9760 = vsel %vm3011, %v9696, %v7995
  %v9761 = vsel %vm3011, %v9697, %v7997
  %v9762 = vsel %vm3011, %v9698, %v7999
  %v9763 = vsel %vm3011, %v9699, %v8001
  %v9764 = vsel %vm3011, %v9700, %v8003
  %v9765 = vsel %vm3011, %v9701, %v8005
  %v9766 = vsel %vm3011, %v9702, %v8007
  %v9767 = vsel %vm3011, %v9703, %v8009
  %v9768 = vsel %vm3011, %v9704, %v8011
  %v9769 = vsel %vm3011, %v9705, %v8013
  %v9770 = vsel %vm3011, %v9706, %v8015
  %v9771 = vsel %vm3011, %v9707, %v8017
  %v9772 = vsel %vm3011, %v9708, %v8019
  %v9773 = vsel %vm3011, %v9709, %v8021
  %v9774 = vsel %vm3011, %v9710, %v8023
  %v9775 = vsel %vm3011, %v9711, %v8025
  %v9776 = vsel %vm3011, %v9712, %v8027
  %v9777 = vsel %vm3011, %v9713, %v8029
  %v9778 = vsel %vm3011, %v9714, %v8031
  %v9779 = vsel %vm3011, %v9715, %v8033
  %v9780 = vsel %vm3011, %v9716, %v8035
  %v9781 = vsel %vm3011, %v9717, %v8037
  %v9782 = vsel %vm3011, %v9718, %v8039
  %v9783 = vsel %vm3011, %v9719, %v8041
  %v9784 = vsel %vm3011, %v9720, %v8043
  %v9785 = vsel %vm3011, %v9721, %v8045
  %v9786 = vsel %vm3011, %v9722, %v8047
  %v9787 = vsel %vm3011, %v9723, %v8049
  %v9788 = vsel %vm3011, %v9724, %v8051
  %v9789 = vsel %vm3011, %v9725, %v8053
  %v9790 = vsel %vm3011, %v9726, %v8055
  %v9791 = vsel %vm3011, %v9727, %v8057
  %v9792 = vsel %vm3011, %v9728, %v8059
  %v9793 = vsel %vm3011, %v9729, %v8061
  %v9794 = vsel %vm3011, %v9730, %v8063
  %v9795 = vsel %vm3011, %v9731, %v8065
  %v9796 = vsel %vm3011, %v9732, %v8067
  %v9797 = vsel %vm3011, %v9733, %v8069
  %v9798 = vsel %vm3108, %v9734, %v8199
  %v9799 = vsel %vm3108, %v9735, %v8201
  %v9800 = vsel %vm3108, %v9736, %v8203
  %v9801 = vsel %vm3108, %v9737, %v8205
  %v9802 = vsel %vm3108, %v9738, %v8207
  %v9803 = vsel %vm3108, %v9739, %v8209
  %v9804 = vsel %vm3108, %v9740, %v8211
  %v9805 = vsel %vm3108, %v9741, %v8213
  %v9806 = vsel %vm3108, %v9742, %v8215
  %v9807 = vsel %vm3108, %v9743, %v8217
  %v9808 = vsel %vm3108, %v9744, %v8219
  %v9809 = vsel %vm3108, %v9745, %v8221
  %v9810 = vsel %vm3108, %v9746, %v8223
  %v9811 = vsel %vm3108, %v9747, %v8225
  %v9812 = vsel %vm3108, %v9748, %v8227
  %v9813 = vsel %vm3108, %v9749, %v8229
  %v9814 = vsel %vm3108, %v9750, %v8231
  %v9815 = vsel %vm3108, %v9751, %v8233
  %v9816 = vsel %vm3108, %v9752, %v8235
  %v9817 = vsel %vm3108, %v9753, %v8237
  %v9818 = vsel %vm3108, %v9754, %v8239
  %v9819 = vsel %vm3108, %v9755, %v8241
  %v9820 = vsel %vm3108, %v9756, %v8243
  %v9821 = vsel %vm3108, %v9757, %v8245
  %v9822 = vsel %vm3108, %v9758, %v8247
  %v9823 = vsel %vm3108, %v9759, %v8249
  %v9824 = vsel %vm3108, %v9760, %v8251
  %v9825 = vsel %vm3108, %v9761, %v8253
  %v9826 = vsel %vm3108, %v9762, %v8255
  %v9827 = vsel %vm3108, %v9763, %v8257
  %v9828 = vsel %vm3108, %v9764, %v8259
  %v9829 = vsel %vm3108, %v9765, %v8261
  %v9830 = vsel %vm3108, %v9766, %v8263
  %v9831 = vsel %vm3108, %v9767, %v8265
  %v9832 = vsel %vm3108, %v9768, %v8267
  %v9833 = vsel %vm3108, %v9769, %v8269
  %v9834 = vsel %vm3108, %v9770, %v8271
  %v9835 = vsel %vm3108, %v9771, %v8273
  %v9836 = vsel %vm3108, %v9772, %v8275
  %v9837 = vsel %vm3108, %v9773, %v8277
  %v9838 = vsel %vm3108, %v9774, %v8279
  %v9839 = vsel %vm3108, %v9775, %v8281
  %v9840 = vsel %vm3108, %v9776, %v8283
  %v9841 = vsel %vm3108, %v9777, %v8285
  %v9842 = vsel %vm3108, %v9778, %v8287
  %v9843 = vsel %vm3108, %v9779, %v8289
  %v9844 = vsel %vm3108, %v9780, %v8291
  %v9845 = vsel %vm3108, %v9781, %v8293
  %v9846 = vsel %vm3108, %v9782, %v8295
  %v9847 = vsel %vm3108, %v9783, %v8297
  %v9848 = vsel %vm3108, %v9784, %v8299
  %v9849 = vsel %vm3108, %v9785, %v8301
  %v9850 = vsel %vm3108, %v9786, %v8303
  %v9851 = vsel %vm3108, %v9787, %v8305
  %v9852 = vsel %vm3108, %v9788, %v8307
  %v9853 = vsel %vm3108, %v9789, %v8309
  %v9854 = vsel %vm3108, %v9790, %v8311
  %v9855 = vsel %vm3108, %v9791, %v8313
  %v9856 = vsel %vm3108, %v9792, %v8315
  %v9857 = vsel %vm3108, %v9793, %v8317
  %v9858 = vsel %vm3108, %v9794, %v8319
  %v9859 = vsel %vm3108, %v9795, %v8321
  %v9860 = vsel %vm3108, %v9796, %v8323
  %v9861 = vsel %vm3108, %v9797, %v8325
  %v9862 = vsel %vm3205, %v9798, %v8455
  %v9863 = vsel %vm3205, %v9799, %v8457
  %v9864 = vsel %vm3205, %v9800, %v8459
  %v9865 = vsel %vm3205, %v9801, %v8461
  %v9866 = vsel %vm3205, %v9802, %v8463
  %v9867 = vsel %vm3205, %v9803, %v8465
  %v9868 = vsel %vm3205, %v9804, %v8467
  %v9869 = vsel %vm3205, %v9805, %v8469
  %v9870 = vsel %vm3205, %v9806, %v8471
  %v9871 = vsel %vm3205, %v9807, %v8473
  %v9872 = vsel %vm3205, %v9808, %v8475
  %v9873 = vsel %vm3205, %v9809, %v8477
  %v9874 = vsel %vm3205, %v9810, %v8479
  %v9875 = vsel %vm3205, %v9811, %v8481
  %v9876 = vsel %vm3205, %v9812, %v8483
  %v9877 = vsel %vm3205, %v9813, %v8485
  %v9878 = vsel %vm3205, %v9814, %v8487
  %v9879 = vsel %vm3205, %v9815, %v8489
  %v9880 = vsel %vm3205, %v9816, %v8491
  %v9881 = vsel %vm3205, %v9817, %v8493
  %v9882 = vsel %vm3205, %v9818, %v8495
  %v9883 = vsel %vm3205, %v9819, %v8497
  %v9884 = vsel %vm3205, %v9820, %v8499
  %v9885 = vsel %vm3205, %v9821, %v8501
  %v9886 = vsel %vm3205, %v9822, %v8503
  %v9887 = vsel %vm3205, %v9823, %v8505
  %v9888 = vsel %vm3205, %v9824, %v8507
  %v9889 = vsel %vm3205, %v9825, %v8509
  %v9890 = vsel %vm3205, %v9826, %v8511
  %v9891 = vsel %vm3205, %v9827, %v8513
  %v9892 = vsel %vm3205, %v9828, %v8515
  %v9893 = vsel %vm3205, %v9829, %v8517
  %v9894 = vsel %vm3205, %v9830, %v8519
  %v9895 = vsel %vm3205, %v9831, %v8521
  %v9896 = vsel %vm3205, %v9832, %v8523
  %v9897 = vsel %vm3205, %v9833, %v8525
  %v9898 = vsel %vm3205, %v9834, %v8527
  %v9899 = vsel %vm3205, %v9835, %v8529
  %v9900 = vsel %vm3205, %v9836, %v8531
  %v9901 = vsel %vm3205, %v9837, %v8533
  %v9902 = vsel %vm3205, %v9838, %v8535
  %v9903 = vsel %vm3205, %v9839, %v8537
  %v9904 = vsel %vm3205, %v9840, %v8539
  %v9905 = vsel %vm3205, %v9841, %v8541
  %v9906 = vsel %vm3205, %v9842, %v8543
  %v9907 = vsel %vm3205, %v9843, %v8545
  %v9908 = vsel %vm3205, %v9844, %v8547
  %v9909 = vsel %vm3205, %v9845, %v8549
  %v9910 = vsel %vm3205, %v9846, %v8551
  %v9911 = vsel %vm3205, %v9847, %v8553
  %v9912 = vsel %vm3205, %v9848, %v8555
  %v9913 = vsel %vm3205, %v9849, %v8557
  %v9914 = vsel %vm3205, %v9850, %v8559
  %v9915 = vsel %vm3205, %v9851, %v8561
  %v9916 = vsel %vm3205, %v9852, %v8563
  %v9917 = vsel %vm3205, %v9853, %v8565
  %v9918 = vsel %vm3205, %v9854, %v8567
  %v9919 = vsel %vm3205, %v9855, %v8569
  %v9920 = vsel %vm3205, %v9856, %v8571
  %v9921 = vsel %vm3205, %v9857, %v8573
  %v9922 = vsel %vm3205, %v9858, %v8575
  %v9923 = vsel %vm3205, %v9859, %v8577
  %v9924 = vsel %vm3205, %v9860, %v8579
  %v9925 = vsel %vm3205, %v9861, %v8581
  %v9926 = vsel %vm3302, %v9862, %v8711
  %v9927 = vsel %vm3302, %v9863, %v8713
  %v9928 = vsel %vm3302, %v9864, %v8715
  %v9929 = vsel %vm3302, %v9865, %v8717
  %v9930 = vsel %vm3302, %v9866, %v8719
  %v9931 = vsel %vm3302, %v9867, %v8721
  %v9932 = vsel %vm3302, %v9868, %v8723
  %v9933 = vsel %vm3302, %v9869, %v8725
  %v9934 = vsel %vm3302, %v9870, %v8727
  %v9935 = vsel %vm3302, %v9871, %v8729
  %v9936 = vsel %vm3302, %v9872, %v8731
  %v9937 = vsel %vm3302, %v9873, %v8733
  %v9938 = vsel %vm3302, %v9874, %v8735
  %v9939 = vsel %vm3302, %v9875, %v8737
  %v9940 = vsel %vm3302, %v9876, %v8739
  %v9941 = vsel %vm3302, %v9877, %v8741
  %v9942 = vsel %vm3302, %v9878, %v8743
  %v9943 = vsel %vm3302, %v9879, %v8745
  %v9944 = vsel %vm3302, %v9880, %v8747
  %v9945 = vsel %vm3302, %v9881, %v8749
  %v9946 = vsel %vm3302, %v9882, %v8751
  %v9947 = vsel %vm3302, %v9883, %v8753
  %v9948 = vsel %vm3302, %v9884, %v8755
  %v9949 = vsel %vm3302, %v9885, %v8757
  %v9950 = vsel %vm3302, %v9886, %v8759
  %v9951 = vsel %vm3302, %v9887, %v8761
  %v9952 = vsel %vm3302, %v9888, %v8763
  %v9953 = vsel %vm3302, %v9889, %v8765
  %v9954 = vsel %vm3302, %v9890, %v8767
  %v9955 = vsel %vm3302, %v9891, %v8769
  %v9956 = vsel %vm3302, %v9892, %v8771
  %v9957 = vsel %vm3302, %v9893, %v8773
  %v9958 = vsel %vm3302, %v9894, %v8775
  %v9959 = vsel %vm3302, %v9895, %v8777
  %v9960 = vsel %vm3302, %v9896, %v8779
  %v9961 = vsel %vm3302, %v9897, %v8781
  %v9962 = vsel %vm3302, %v9898, %v8783
  %v9963 = vsel %vm3302, %v9899, %v8785
  %v9964 = vsel %vm3302, %v9900, %v8787
  %v9965 = vsel %vm3302, %v9901, %v8789
  %v9966 = vsel %vm3302, %v9902, %v8791
  %v9967 = vsel %vm3302, %v9903, %v8793
  %v9968 = vsel %vm3302, %v9904, %v8795
  %v9969 = vsel %vm3302, %v9905, %v8797
  %v9970 = vsel %vm3302, %v9906, %v8799
  %v9971 = vsel %vm3302, %v9907, %v8801
  %v9972 = vsel %vm3302, %v9908, %v8803
  %v9973 = vsel %vm3302, %v9909, %v8805
  %v9974 = vsel %vm3302, %v9910, %v8807
  %v9975 = vsel %vm3302, %v9911, %v8809
  %v9976 = vsel %vm3302, %v9912, %v8811
  %v9977 = vsel %vm3302, %v9913, %v8813
  %v9978 = vsel %vm3302, %v9914, %v8815
  %v9979 = vsel %vm3302, %v9915, %v8817
  %v9980 = vsel %vm3302, %v9916, %v8819
  %v9981 = vsel %vm3302, %v9917, %v8821
  %v9982 = vsel %vm3302, %v9918, %v8823
  %v9983 = vsel %vm3302, %v9919, %v8825
  %v9984 = vsel %vm3302, %v9920, %v8827
  %v9985 = vsel %vm3302, %v9921, %v8829
  %v9986 = vsel %vm3302, %v9922, %v8831
  %v9987 = vsel %vm3302, %v9923, %v8833
  %v9988 = vsel %vm3302, %v9924, %v8835
  %v9989 = vsel %vm3302, %v9925, %v8837
  %v9990 = vsel %vm3399, %v9926, %v8967
  %v9991 = vsel %vm3399, %v9927, %v8969
  %v9992 = vsel %vm3399, %v9928, %v8971
  %v9993 = vsel %vm3399, %v9929, %v8973
  %v9994 = vsel %vm3399, %v9930, %v8975
  %v9995 = vsel %vm3399, %v9931, %v8977
  %v9996 = vsel %vm3399, %v9932, %v8979
  %v9997 = vsel %vm3399, %v9933, %v8981
  %v9998 = vsel %vm3399, %v9934, %v8983
  %v9999 = vsel %vm3399, %v9935, %v8985
  %v10000 = vsel %vm3399, %v9936, %v8987
  %v10001 = vsel %vm3399, %v9937, %v8989
  %v10002 = vsel %vm3399, %v9938, %v8991
  %v10003 = vsel %vm3399, %v9939, %v8993
  %v10004 = vsel %vm3399, %v9940, %v8995
  %v10005 = vsel %vm3399, %v9941, %v8997
  %v10006 = vsel %vm3399, %v9942, %v8999
  %v10007 = vsel %vm3399, %v9943, %v9001
  %v10008 = vsel %vm3399, %v9944, %v9003
  %v10009 = vsel %vm3399, %v9945, %v9005
  %v10010 = vsel %vm3399, %v9946, %v9007
  %v10011 = vsel %vm3399, %v9947, %v9009
  %v10012 = vsel %vm3399, %v9948, %v9011
  %v10013 = vsel %vm3399, %v9949, %v9013
  %v10014 = vsel %vm3399, %v9950, %v9015
  %v10015 = vsel %vm3399, %v9951, %v9017
  %v10016 = vsel %vm3399, %v9952, %v9019
  %v10017 = vsel %vm3399, %v9953, %v9021
  %v10018 = vsel %vm3399, %v9954, %v9023
  %v10019 = vsel %vm3399, %v9955, %v9025
  %v10020 = vsel %vm3399, %v9956, %v9027
  %v10021 = vsel %vm3399, %v9957, %v9029
  %v10022 = vsel %vm3399, %v9958, %v9031
  %v10023 = vsel %vm3399, %v9959, %v9033
  %v10024 = vsel %vm3399, %v9960, %v9035
  %v10025 = vsel %vm3399, %v9961, %v9037
  %v10026 = vsel %vm3399, %v9962, %v9039
  %v10027 = vsel %vm3399, %v9963, %v9041
  %v10028 = vsel %vm3399, %v9964, %v9043
  %v10029 = vsel %vm3399, %v9965, %v9045
  %v10030 = vsel %vm3399, %v9966, %v9047
  %v10031 = vsel %vm3399, %v9967, %v9049
  %v10032 = vsel %vm3399, %v9968, %v9051
  %v10033 = vsel %vm3399, %v9969, %v9053
  %v10034 = vsel %vm3399, %v9970, %v9055
  %v10035 = vsel %vm3399, %v9971, %v9057
  %v10036 = vsel %vm3399, %v9972, %v9059
  %v10037 = vsel %vm3399, %v9973, %v9061
  %v10038 = vsel %vm3399, %v9974, %v9063
  %v10039 = vsel %vm3399, %v9975, %v9065
  %v10040 = vsel %vm3399, %v9976, %v9067
  %v10041 = vsel %vm3399, %v9977, %v9069
  %v10042 = vsel %vm3399, %v9978, %v9071
  %v10043 = vsel %vm3399, %v9979, %v9073
  %v10044 = vsel %vm3399, %v9980, %v9075
  %v10045 = vsel %vm3399, %v9981, %v9077
  %v10046 = vsel %vm3399, %v9982, %v9079
  %v10047 = vsel %vm3399, %v9983, %v9081
  %v10048 = vsel %vm3399, %v9984, %v9083
  %v10049 = vsel %vm3399, %v9985, %v9085
  %v10050 = vsel %vm3399, %v9986, %v9087
  %v10051 = vsel %vm3399, %v9987, %v9089
  %v10052 = vsel %vm3399, %v9988, %v9091
  %v10053 = vsel %vm3399, %v9989, %v9093
  %v10054 = vsel %vm3496, %v9990, %v9223
  %v10055 = vsel %vm3496, %v9991, %v9225
  %v10056 = vsel %vm3496, %v9992, %v9227
  %v10057 = vsel %vm3496, %v9993, %v9229
  %v10058 = vsel %vm3496, %v9994, %v9231
  %v10059 = vsel %vm3496, %v9995, %v9233
  %v10060 = vsel %vm3496, %v9996, %v9235
  %v10061 = vsel %vm3496, %v9997, %v9237
  %v10062 = vsel %vm3496, %v9998, %v9239
  %v10063 = vsel %vm3496, %v9999, %v9241
  %v10064 = vsel %vm3496, %v10000, %v9243
  %v10065 = vsel %vm3496, %v10001, %v9245
  %v10066 = vsel %vm3496, %v10002, %v9247
  %v10067 = vsel %vm3496, %v10003, %v9249
  %v10068 = vsel %vm3496, %v10004, %v9251
  %v10069 = vsel %vm3496, %v10005, %v9253
  %v10070 = vsel %vm3496, %v10006, %v9255
  %v10071 = vsel %vm3496, %v10007, %v9257
  %v10072 = vsel %vm3496, %v10008, %v9259
  %v10073 = vsel %vm3496, %v10009, %v9261
  %v10074 = vsel %vm3496, %v10010, %v9263
  %v10075 = vsel %vm3496, %v10011, %v9265
  %v10076 = vsel %vm3496, %v10012, %v9267
  %v10077 = vsel %vm3496, %v10013, %v9269
  %v10078 = vsel %vm3496, %v10014, %v9271
  %v10079 = vsel %vm3496, %v10015, %v9273
  %v10080 = vsel %vm3496, %v10016, %v9275
  %v10081 = vsel %vm3496, %v10017, %v9277
  %v10082 = vsel %vm3496, %v10018, %v9279
  %v10083 = vsel %vm3496, %v10019, %v9281
  %v10084 = vsel %vm3496, %v10020, %v9283
  %v10085 = vsel %vm3496, %v10021, %v9285
  %v10086 = vsel %vm3496, %v10022, %v9287
  %v10087 = vsel %vm3496, %v10023, %v9289
  %v10088 = vsel %vm3496, %v10024, %v9291
  %v10089 = vsel %vm3496, %v10025, %v9293
  %v10090 = vsel %vm3496, %v10026, %v9295
  %v10091 = vsel %vm3496, %v10027, %v9297
  %v10092 = vsel %vm3496, %v10028, %v9299
  %v10093 = vsel %vm3496, %v10029, %v9301
  %v10094 = vsel %vm3496, %v10030, %v9303
  %v10095 = vsel %vm3496, %v10031, %v9305
  %v10096 = vsel %vm3496, %v10032, %v9307
  %v10097 = vsel %vm3496, %v10033, %v9309
  %v10098 = vsel %vm3496, %v10034, %v9311
  %v10099 = vsel %vm3496, %v10035, %v9313
  %v10100 = vsel %vm3496, %v10036, %v9315
  %v10101 = vsel %vm3496, %v10037, %v9317
  %v10102 = vsel %vm3496, %v10038, %v9319
  %v10103 = vsel %vm3496, %v10039, %v9321
  %v10104 = vsel %vm3496, %v10040, %v9323
  %v10105 = vsel %vm3496, %v10041, %v9325
  %v10106 = vsel %vm3496, %v10042, %v9327
  %v10107 = vsel %vm3496, %v10043, %v9329
  %v10108 = vsel %vm3496, %v10044, %v9331
  %v10109 = vsel %vm3496, %v10045, %v9333
  %v10110 = vsel %vm3496, %v10046, %v9335
  %v10111 = vsel %vm3496, %v10047, %v9337
  %v10112 = vsel %vm3496, %v10048, %v9339
  %v10113 = vsel %vm3496, %v10049, %v9341
  %v10114 = vsel %vm3496, %v10050, %v9343
  %v10115 = vsel %vm3496, %v10051, %v9345
  %v10116 = vsel %vm3496, %v10052, %v9347
  %v10117 = vsel %vm3496, %v10053, %v9349
  %v10118 = vsel %vm3593, %v10054, %v9479
  %v10119 = vsel %vm3593, %v10055, %v9481
  %v10120 = vsel %vm3593, %v10056, %v9483
  %v10121 = vsel %vm3593, %v10057, %v9485
  %v10122 = vsel %vm3593, %v10058, %v9487
  %v10123 = vsel %vm3593, %v10059, %v9489
  %v10124 = vsel %vm3593, %v10060, %v9491
  %v10125 = vsel %vm3593, %v10061, %v9493
  %v10126 = vsel %vm3593, %v10062, %v9495
  %v10127 = vsel %vm3593, %v10063, %v9497
  %v10128 = vsel %vm3593, %v10064, %v9499
  %v10129 = vsel %vm3593, %v10065, %v9501
  %v10130 = vsel %vm3593, %v10066, %v9503
  %v10131 = vsel %vm3593, %v10067, %v9505
  %v10132 = vsel %vm3593, %v10068, %v9507
  %v10133 = vsel %vm3593, %v10069, %v9509
  %v10134 = vsel %vm3593, %v10070, %v9511
  %v10135 = vsel %vm3593, %v10071, %v9513
  %v10136 = vsel %vm3593, %v10072, %v9515
  %v10137 = vsel %vm3593, %v10073, %v9517
  %v10138 = vsel %vm3593, %v10074, %v9519
  %v10139 = vsel %vm3593, %v10075, %v9521
  %v10140 = vsel %vm3593, %v10076, %v9523
  %v10141 = vsel %vm3593, %v10077, %v9525
  %v10142 = vsel %vm3593, %v10078, %v9527
  %v10143 = vsel %vm3593, %v10079, %v9529
  %v10144 = vsel %vm3593, %v10080, %v9531
  %v10145 = vsel %vm3593, %v10081, %v9533
  %v10146 = vsel %vm3593, %v10082, %v9535
  %v10147 = vsel %vm3593, %v10083, %v9537
  %v10148 = vsel %vm3593, %v10084, %v9539
  %v10149 = vsel %vm3593, %v10085, %v9541
  %v10150 = vsel %vm3593, %v10086, %v9543
  %v10151 = vsel %vm3593, %v10087, %v9545
  %v10152 = vsel %vm3593, %v10088, %v9547
  %v10153 = vsel %vm3593, %v10089, %v9549
  %v10154 = vsel %vm3593, %v10090, %v9551
  %v10155 = vsel %vm3593, %v10091, %v9553
  %v10156 = vsel %vm3593, %v10092, %v9555
  %v10157 = vsel %vm3593, %v10093, %v9557
  %v10158 = vsel %vm3593, %v10094, %v9559
  %v10159 = vsel %vm3593, %v10095, %v9561
  %v10160 = vsel %vm3593, %v10096, %v9563
  %v10161 = vsel %vm3593, %v10097, %v9565
  %v10162 = vsel %vm3593, %v10098, %v9567
  %v10163 = vsel %vm3593, %v10099, %v9569
  %v10164 = vsel %vm3593, %v10100, %v9571
  %v10165 = vsel %vm3593, %v10101, %v9573
  %v10166 = vsel %vm3593, %v10102, %v9575
  %v10167 = vsel %vm3593, %v10103, %v9577
  %v10168 = vsel %vm3593, %v10104, %v9579
  %v10169 = vsel %vm3593, %v10105, %v9581
  %v10170 = vsel %vm3593, %v10106, %v9583
  %v10171 = vsel %vm3593, %v10107, %v9585
  %v10172 = vsel %vm3593, %v10108, %v9587
  %v10173 = vsel %vm3593, %v10109, %v9589
  %v10174 = vsel %vm3593, %v10110, %v9591
  %v10175 = vsel %vm3593, %v10111, %v9593
  %v10176 = vsel %vm3593, %v10112, %v9595
  %v10177 = vsel %vm3593, %v10113, %v9597
  %v10178 = vsel %vm3593, %v10114, %v9599
  %v10179 = vsel %vm3593, %v10115, %v9601
  %v10180 = vsel %vm3593, %v10116, %v9603
  %v10181 = vsel %vm3593, %v10117, %v9605
  %10182 = vrot.lane.b32.xlu0 %v134, 116
  %v10183 = vpop.permute.xlu0 %10182
  %10184 = vrot.lane.b32.xlu0 %v135, 116
  %v10185 = vpop.permute.xlu0 %10184
  %10186 = vrot.lane.b32.xlu0 %v136, 116
  %v10187 = vpop.permute.xlu0 %10186
  %10188 = vrot.lane.b32.xlu0 %v137, 116
  %v10189 = vpop.permute.xlu0 %10188
  %10190 = vrot.lane.b32.xlu0 %v138, 116
  %v10191 = vpop.permute.xlu0 %10190
  %10196 = vrot.lane.b32.xlu0 %v5856, 116
  %v10197 = vpop.permute.xlu0 %10196
  %v10200 = vsel %vm5858, %v10118, 0
  %v10203 = vsel %vm5858, %v10119, 0
  %v10206 = vsel %vm5858, %v10120, 0
  %v10209 = vsel %vm5858, %v10121, 0
  %v10212 = vsel %vm5858, %v10122, 0
  %v10215 = vsel %vm5858, %v10123, 0
  %v10218 = vsel %vm5858, %v10124, 0
  %v10221 = vsel %vm5858, %v10125, 0
  %v10224 = vsel %vm5858, %v10126, 0
  %v10227 = vsel %vm5858, %v10127, 0
  %v10230 = vsel %vm5858, %v10128, 0
  %v10233 = vsel %vm5858, %v10129, 0
  %v10236 = vsel %vm5858, %v10130, 0
  %v10239 = vsel %vm5858, %v10131, 0
  %v10242 = vsel %vm5858, %v10132, 0
  %v10245 = vsel %vm5858, %v10133, 0
  %v10248 = vsel %vm5858, %v10134, 0
  %v10251 = vsel %vm5858, %v10135, 0
  %v10254 = vsel %vm5858, %v10136, 0
  %v10257 = vsel %vm5858, %v10137, 0
  %v10260 = vsel %vm5858, %v10138, 0
  %v10263 = vsel %vm5858, %v10139, 0
  %v10266 = vsel %vm5858, %v10140, 0
  %v10269 = vsel %vm5858, %v10141, 0
  %v10272 = vsel %vm5858, %v10142, 0
  %v10275 = vsel %vm5858, %v10143, 0
  %v10278 = vsel %vm5858, %v10144, 0
  %v10281 = vsel %vm5858, %v10145, 0
  %v10284 = vsel %vm5858, %v10146, 0
  %v10287 = vsel %vm5858, %v10147, 0
  %v10290 = vsel %vm5858, %v10148, 0
  %v10293 = vsel %vm5858, %v10149, 0
  %v10296 = vsel %vm5858, %v10150, 0
  %v10299 = vsel %vm5858, %v10151, 0
  %v10302 = vsel %vm5858, %v10152, 0
  %v10305 = vsel %vm5858, %v10153, 0
  %v10308 = vsel %vm5858, %v10154, 0
  %v10311 = vsel %vm5858, %v10155, 0
  %v10314 = vsel %vm5858, %v10156, 0
  %v10317 = vsel %vm5858, %v10157, 0
  %v10320 = vsel %vm5858, %v10158, 0
  %v10323 = vsel %vm5858, %v10159, 0
  %v10326 = vsel %vm5858, %v10160, 0
  %v10329 = vsel %vm5858, %v10161, 0
  %v10332 = vsel %vm5858, %v10162, 0
  %v10335 = vsel %vm5858, %v10163, 0
  %v10338 = vsel %vm5858, %v10164, 0
  %v10341 = vsel %vm5858, %v10165, 0
  %v10344 = vsel %vm5858, %v10166, 0
  %v10347 = vsel %vm5858, %v10167, 0
  %v10350 = vsel %vm5858, %v10168, 0
  %v10353 = vsel %vm5858, %v10169, 0
  %v10356 = vsel %vm5858, %v10170, 0
  %v10359 = vsel %vm5858, %v10171, 0
  %v10362 = vsel %vm5858, %v10172, 0
  %v10365 = vsel %vm5858, %v10173, 0
  %v10368 = vsel %vm5858, %v10174, 0
  %v10371 = vsel %vm5858, %v10175, 0
  %v10374 = vsel %vm5858, %v10176, 0
  %v10377 = vsel %vm5858, %v10177, 0
  %v10380 = vsel %vm5858, %v10178, 0
  %v10383 = vsel %vm5858, %v10179, 0
  %v10386 = vsel %vm5858, %v10180, 0
  %v10389 = vsel %vm5858, %v10181, 0
  %v10391 = vsel %vm4154, %v10191, 0
  %10393 = vmatpush.msra.mxu0 0.0
  %10394 = vmatpush.msra.mxu0 0.0
  %10395 = vmatpush.msra.mxu0 0.0
  %10396 = vmatpush.msra.mxu0 0.0
  %10397 = vmatpush.msra.mxu0 0.0
  %10398 = vmatpush.msra.mxu0 0.0
  %10399 = vmatpush.msra.mxu0 0.0
  %10400 = vmatpush.msra.mxu0 0.0
  %10401 = vmatpush.msra.mxu0 0.0
  %10402 = vmatpush.msra.mxu0 0.0
  %10403 = vmatpush.msra.mxu0 0.0
  %10404 = vmatpush.msra.mxu0 %v10391
  %10405 = vmatpush.msra.mxu0 %v10189
  %10406 = vmatpush.msra.mxu0 %v10187
  %10407 = vmatpush.msra.mxu0 %v10185
  %10408 = vmatpush.msra.mxu0 %v10183
  %10409 = vmatmul.f32.gmra.mxu0 %v10200
  %v10410 = vpop.f32.mrf.mxu0
  %10411 = vmatmul.f32.gmra.mxu0 %v10203
  %v10412 = vpop.f32.mrf.mxu0
  %10413 = vmatmul.f32.gmra.mxu0 %v10206
  %v10414 = vpop.f32.mrf.mxu0
  %v10415 = vadd.f32 %v10197, %v10414
  %10416 = vmatmul.f32.gmra.mxu0 %v10209
  %v10417 = vpop.f32.mrf.mxu0
  %v10418 = vadd.f32 %v10197, %v10417
  %10419 = vmatmul.f32.gmra.mxu0 %v10212
  %v10420 = vpop.f32.mrf.mxu0
  %v10421 = vadd.f32 %v10197, %v10420
  %10422 = vmatmul.f32.gmra.mxu0 %v10215
  %v10423 = vpop.f32.mrf.mxu0
  %v10424 = vadd.f32 %v10197, %v10423
  %10425 = vmatmul.f32.gmra.mxu0 %v10218
  %v10426 = vpop.f32.mrf.mxu0
  %v10427 = vadd.f32 %v10197, %v10426
  %10428 = vmatmul.f32.gmra.mxu0 %v10221
  %v10429 = vpop.f32.mrf.mxu0
  %v10430 = vadd.f32 %v10197, %v10429
  %10431 = vmatmul.f32.gmra.mxu0 %v10224
  %v10432 = vpop.f32.mrf.mxu0
  %v10433 = vadd.f32 %v10197, %v10432
  %10434 = vmatmul.f32.gmra.mxu0 %v10227
  %v10435 = vpop.f32.mrf.mxu0
  %v10436 = vadd.f32 %v10197, %v10435
  %10437 = vmatmul.f32.gmra.mxu0 %v10230
  %v10438 = vpop.f32.mrf.mxu0
  %v10439 = vadd.f32 %v10197, %v10438
  %10440 = vmatmul.f32.gmra.mxu0 %v10233
  %v10441 = vpop.f32.mrf.mxu0
  %v10442 = vadd.f32 %v10197, %v10441
  %10443 = vmatmul.f32.gmra.mxu0 %v10236
  %v10444 = vpop.f32.mrf.mxu0
  %v10445 = vadd.f32 %v10197, %v10444
  %10446 = vmatmul.f32.gmra.mxu0 %v10239
  %v10447 = vpop.f32.mrf.mxu0
  %v10448 = vadd.f32 %v10197, %v10447
  %10449 = vmatmul.f32.gmra.mxu0 %v10242
  %v10450 = vpop.f32.mrf.mxu0
  %v10451 = vadd.f32 %v10197, %v10450
  %10452 = vmatmul.f32.gmra.mxu0 %v10245
  %v10453 = vpop.f32.mrf.mxu0
  %v10454 = vadd.f32 %v10197, %v10453
  %10455 = vmatmul.f32.gmra.mxu0 %v10248
  %v10456 = vpop.f32.mrf.mxu0
  %v10457 = vadd.f32 %v10197, %v10456
  %10458 = vmatmul.f32.gmra.mxu0 %v10251
  %v10459 = vpop.f32.mrf.mxu0
  %v10460 = vadd.f32 %v10197, %v10459
  %10461 = vmatmul.f32.gmra.mxu0 %v10254
  %v10462 = vpop.f32.mrf.mxu0
  %v10463 = vadd.f32 %v10197, %v10462
  %10464 = vmatmul.f32.gmra.mxu0 %v10257
  %v10465 = vpop.f32.mrf.mxu0
  %v10466 = vadd.f32 %v10197, %v10465
  %10467 = vmatmul.f32.gmra.mxu0 %v10260
  %v10468 = vpop.f32.mrf.mxu0
  %v10469 = vadd.f32 %v10197, %v10468
  %10470 = vmatmul.f32.gmra.mxu0 %v10263
  %v10471 = vpop.f32.mrf.mxu0
  %v10472 = vadd.f32 %v10197, %v10471
  %10473 = vmatmul.f32.gmra.mxu0 %v10266
  %v10474 = vpop.f32.mrf.mxu0
  %v10475 = vadd.f32 %v10197, %v10474
  %10476 = vmatmul.f32.gmra.mxu0 %v10269
  %v10477 = vpop.f32.mrf.mxu0
  %v10478 = vadd.f32 %v10197, %v10477
  %10479 = vmatmul.f32.gmra.mxu0 %v10272
  %v10480 = vpop.f32.mrf.mxu0
  %v10481 = vadd.f32 %v10197, %v10480
  %10482 = vmatmul.f32.gmra.mxu0 %v10275
  %v10483 = vpop.f32.mrf.mxu0
  %v10484 = vadd.f32 %v10197, %v10483
  %10485 = vmatmul.f32.gmra.mxu0 %v10278
  %v10486 = vpop.f32.mrf.mxu0
  %v10487 = vadd.f32 %v10197, %v10486
  %10488 = vmatmul.f32.gmra.mxu0 %v10281
  %v10489 = vpop.f32.mrf.mxu0
  %v10490 = vadd.f32 %v10197, %v10489
  %10491 = vmatmul.f32.gmra.mxu0 %v10284
  %v10492 = vpop.f32.mrf.mxu0
  %v10493 = vadd.f32 %v10197, %v10492
  %10494 = vmatmul.f32.gmra.mxu0 %v10287
  %v10495 = vpop.f32.mrf.mxu0
  %v10496 = vadd.f32 %v10197, %v10495
  %10497 = vmatmul.f32.gmra.mxu0 %v10290
  %v10498 = vpop.f32.mrf.mxu0
  %10499 = vmatmul.f32.gmra.mxu0 %v10293
  %v10500 = vpop.f32.mrf.mxu0
  %10501 = vmatmul.f32.gmra.mxu0 %v10296
  %v10502 = vpop.f32.mrf.mxu0
  %10503 = vmatmul.f32.gmra.mxu0 %v10299
  %v10504 = vpop.f32.mrf.mxu0
  %10505 = vmatmul.f32.gmra.mxu0 %v10302
  %v10506 = vpop.f32.mrf.mxu0
  %v10507 = vadd.f32 %v10197, %v10506
  %10508 = vmatmul.f32.gmra.mxu0 %v10305
  %v10509 = vpop.f32.mrf.mxu0
  %v10510 = vadd.f32 %v10197, %v10509
  %10511 = vmatmul.f32.gmra.mxu0 %v10308
  %v10512 = vpop.f32.mrf.mxu0
  %v10513 = vadd.f32 %v10197, %v10512
  %10514 = vmatmul.f32.gmra.mxu0 %v10311
  %v10515 = vpop.f32.mrf.mxu0
  %v10516 = vadd.f32 %v10197, %v10515
  %10517 = vmatmul.f32.gmra.mxu0 %v10314
  %v10518 = vpop.f32.mrf.mxu0
  %v10519 = vadd.f32 %v10197, %v10518
  %10520 = vmatmul.f32.gmra.mxu0 %v10317
  %v10521 = vpop.f32.mrf.mxu0
  %v10522 = vadd.f32 %v10197, %v10521
  %10523 = vmatmul.f32.gmra.mxu0 %v10320
  %v10524 = vpop.f32.mrf.mxu0
  %v10525 = vadd.f32 %v10197, %v10524
  %10526 = vmatmul.f32.gmra.mxu0 %v10323
  %v10527 = vpop.f32.mrf.mxu0
  %v10528 = vadd.f32 %v10197, %v10527
  %10529 = vmatmul.f32.gmra.mxu0 %v10326
  %v10530 = vpop.f32.mrf.mxu0
  %v10531 = vadd.f32 %v10197, %v10530
  %10532 = vmatmul.f32.gmra.mxu0 %v10329
  %v10533 = vpop.f32.mrf.mxu0
  %v10534 = vadd.f32 %v10197, %v10533
  %10535 = vmatmul.f32.gmra.mxu0 %v10332
  %v10536 = vpop.f32.mrf.mxu0
  %v10537 = vadd.f32 %v10197, %v10536
  %10538 = vmatmul.f32.gmra.mxu0 %v10335
  %v10539 = vpop.f32.mrf.mxu0
  %v10540 = vadd.f32 %v10197, %v10539
  %10541 = vmatmul.f32.gmra.mxu0 %v10338
  %v10542 = vpop.f32.mrf.mxu0
  %v10543 = vadd.f32 %v10197, %v10542
  %10544 = vmatmul.f32.gmra.mxu0 %v10341
  %v10545 = vpop.f32.mrf.mxu0
  %v10546 = vadd.f32 %v10197, %v10545
  %10547 = vmatmul.f32.gmra.mxu0 %v10344
  %v10548 = vpop.f32.mrf.mxu0
  %v10549 = vadd.f32 %v10197, %v10548
  %10550 = vmatmul.f32.gmra.mxu0 %v10347
  %v10551 = vpop.f32.mrf.mxu0
  %v10552 = vadd.f32 %v10197, %v10551
  %10553 = vmatmul.f32.gmra.mxu0 %v10350
  %v10554 = vpop.f32.mrf.mxu0
  %v10555 = vadd.f32 %v10197, %v10554
  %10556 = vmatmul.f32.gmra.mxu0 %v10353
  %v10557 = vpop.f32.mrf.mxu0
  %v10558 = vadd.f32 %v10197, %v10557
  %10559 = vmatmul.f32.gmra.mxu0 %v10356
  %v10560 = vpop.f32.mrf.mxu0
  %v10561 = vadd.f32 %v10197, %v10560
  %10562 = vmatmul.f32.gmra.mxu0 %v10359
  %v10563 = vpop.f32.mrf.mxu0
  %v10564 = vadd.f32 %v10197, %v10563
  %10565 = vmatmul.f32.gmra.mxu0 %v10362
  %v10566 = vpop.f32.mrf.mxu0
  %v10567 = vadd.f32 %v10197, %v10566
  %10568 = vmatmul.f32.gmra.mxu0 %v10365
  %v10569 = vpop.f32.mrf.mxu0
  %v10570 = vadd.f32 %v10197, %v10569
  %10571 = vmatmul.f32.gmra.mxu0 %v10368
  %v10572 = vpop.f32.mrf.mxu0
  %v10573 = vadd.f32 %v10197, %v10572
  %10574 = vmatmul.f32.gmra.mxu0 %v10371
  %v10575 = vpop.f32.mrf.mxu0
  %v10576 = vadd.f32 %v10197, %v10575
  %10577 = vmatmul.f32.gmra.mxu0 %v10374
  %v10578 = vpop.f32.mrf.mxu0
  %v10579 = vadd.f32 %v10197, %v10578
  %10580 = vmatmul.f32.gmra.mxu0 %v10377
  %v10581 = vpop.f32.mrf.mxu0
  %v10582 = vadd.f32 %v10197, %v10581
  %10583 = vmatmul.f32.gmra.mxu0 %v10380
  %v10584 = vpop.f32.mrf.mxu0
  %v10585 = vadd.f32 %v10197, %v10584
  %10586 = vmatmul.f32.gmra.mxu0 %v10383
  %v10587 = vpop.f32.mrf.mxu0
  %v10588 = vadd.f32 %v10197, %v10587
  %10589 = vmatmul.f32.gmra.mxu0 %v10386
  %v10590 = vpop.f32.mrf.mxu0
  %10591 = vmatmul.f32.gmra.mxu0 %v10389
  %v10592 = vpop.f32.mrf.mxu0
  %10593 = vdwg.mxu0
  %10650 = vrot.lane.b32.xlu0 %v10415, 4
  %v10651 = vpop.permute.xlu0 %10650
  %10652 = vrot.lane.b32.xlu0 %v10418, 4
  %v10653 = vpop.permute.xlu0 %10652
  %10654 = vrot.lane.b32.xlu0 %v10421, 4
  %v10655 = vpop.permute.xlu0 %10654
  %10656 = vrot.lane.b32.xlu0 %v10424, 4
  %v10657 = vpop.permute.xlu0 %10656
  %10658 = vrot.lane.b32.xlu0 %v10427, 4
  %v10659 = vpop.permute.xlu0 %10658
  %10660 = vrot.lane.b32.xlu0 %v10430, 4
  %v10661 = vpop.permute.xlu0 %10660
  %10662 = vrot.lane.b32.xlu0 %v10433, 4
  %v10663 = vpop.permute.xlu0 %10662
  %10664 = vrot.lane.b32.xlu0 %v10436, 4
  %v10665 = vpop.permute.xlu0 %10664
  %10666 = vrot.lane.b32.xlu0 %v10439, 4
  %v10667 = vpop.permute.xlu0 %10666
  %10668 = vrot.lane.b32.xlu0 %v10442, 4
  %v10669 = vpop.permute.xlu0 %10668
  %10670 = vrot.lane.b32.xlu0 %v10445, 4
  %v10671 = vpop.permute.xlu0 %10670
  %10672 = vrot.lane.b32.xlu0 %v10448, 4
  %v10673 = vpop.permute.xlu0 %10672
  %10674 = vrot.lane.b32.xlu0 %v10451, 4
  %v10675 = vpop.permute.xlu0 %10674
  %10676 = vrot.lane.b32.xlu0 %v10454, 4
  %v10677 = vpop.permute.xlu0 %10676
  %10678 = vrot.lane.b32.xlu0 %v10457, 4
  %v10679 = vpop.permute.xlu0 %10678
  %10680 = vrot.lane.b32.xlu0 %v10460, 4
  %v10681 = vpop.permute.xlu0 %10680
  %10682 = vrot.lane.b32.xlu0 %v10463, 4
  %v10683 = vpop.permute.xlu0 %10682
  %10684 = vrot.lane.b32.xlu0 %v10466, 4
  %v10685 = vpop.permute.xlu0 %10684
  %10686 = vrot.lane.b32.xlu0 %v10469, 4
  %v10687 = vpop.permute.xlu0 %10686
  %10688 = vrot.lane.b32.xlu0 %v10472, 4
  %v10689 = vpop.permute.xlu0 %10688
  %10690 = vrot.lane.b32.xlu0 %v10475, 4
  %v10691 = vpop.permute.xlu0 %10690
  %10692 = vrot.lane.b32.xlu0 %v10478, 4
  %v10693 = vpop.permute.xlu0 %10692
  %10694 = vrot.lane.b32.xlu0 %v10481, 4
  %v10695 = vpop.permute.xlu0 %10694
  %10696 = vrot.lane.b32.xlu0 %v10484, 4
  %v10697 = vpop.permute.xlu0 %10696
  %10698 = vrot.lane.b32.xlu0 %v10487, 4
  %v10699 = vpop.permute.xlu0 %10698
  %10700 = vrot.lane.b32.xlu0 %v10490, 4
  %v10701 = vpop.permute.xlu0 %10700
  %10702 = vrot.lane.b32.xlu0 %v10493, 4
  %v10703 = vpop.permute.xlu0 %10702
  %10704 = vrot.lane.b32.xlu0 %v10496, 4
  %v10705 = vpop.permute.xlu0 %10704
  %10706 = vrot.lane.b32.xlu0 %v10507, 4
  %v10707 = vpop.permute.xlu0 %10706
  %10708 = vrot.lane.b32.xlu0 %v10510, 4
  %v10709 = vpop.permute.xlu0 %10708
  %10710 = vrot.lane.b32.xlu0 %v10513, 4
  %v10711 = vpop.permute.xlu0 %10710
  %10712 = vrot.lane.b32.xlu0 %v10516, 4
  %v10713 = vpop.permute.xlu0 %10712
  %10714 = vrot.lane.b32.xlu0 %v10519, 4
  %v10715 = vpop.permute.xlu0 %10714
  %10716 = vrot.lane.b32.xlu0 %v10522, 4
  %v10717 = vpop.permute.xlu0 %10716
  %10718 = vrot.lane.b32.xlu0 %v10525, 4
  %v10719 = vpop.permute.xlu0 %10718
  %10720 = vrot.lane.b32.xlu0 %v10528, 4
  %v10721 = vpop.permute.xlu0 %10720
  %10722 = vrot.lane.b32.xlu0 %v10531, 4
  %v10723 = vpop.permute.xlu0 %10722
  %10724 = vrot.lane.b32.xlu0 %v10534, 4
  %v10725 = vpop.permute.xlu0 %10724
  %10726 = vrot.lane.b32.xlu0 %v10537, 4
  %v10727 = vpop.permute.xlu0 %10726
  %10728 = vrot.lane.b32.xlu0 %v10540, 4
  %v10729 = vpop.permute.xlu0 %10728
  %10730 = vrot.lane.b32.xlu0 %v10543, 4
  %v10731 = vpop.permute.xlu0 %10730
  %10732 = vrot.lane.b32.xlu0 %v10546, 4
  %v10733 = vpop.permute.xlu0 %10732
  %10734 = vrot.lane.b32.xlu0 %v10549, 4
  %v10735 = vpop.permute.xlu0 %10734
  %10736 = vrot.lane.b32.xlu0 %v10552, 4
  %v10737 = vpop.permute.xlu0 %10736
  %10738 = vrot.lane.b32.xlu0 %v10555, 4
  %v10739 = vpop.permute.xlu0 %10738
  %10740 = vrot.lane.b32.xlu0 %v10558, 4
  %v10741 = vpop.permute.xlu0 %10740
  %10742 = vrot.lane.b32.xlu0 %v10561, 4
  %v10743 = vpop.permute.xlu0 %10742
  %10744 = vrot.lane.b32.xlu0 %v10564, 4
  %v10745 = vpop.permute.xlu0 %10744
  %10746 = vrot.lane.b32.xlu0 %v10567, 4
  %v10747 = vpop.permute.xlu0 %10746
  %10748 = vrot.lane.b32.xlu0 %v10570, 4
  %v10749 = vpop.permute.xlu0 %10748
  %10750 = vrot.lane.b32.xlu0 %v10573, 4
  %v10751 = vpop.permute.xlu0 %10750
  %10752 = vrot.lane.b32.xlu0 %v10576, 4
  %v10753 = vpop.permute.xlu0 %10752
  %10754 = vrot.lane.b32.xlu0 %v10579, 4
  %v10755 = vpop.permute.xlu0 %10754
  %10756 = vrot.lane.b32.xlu0 %v10582, 4
  %v10757 = vpop.permute.xlu0 %10756
  %10758 = vrot.lane.b32.xlu0 %v10585, 4
  %v10759 = vpop.permute.xlu0 %10758
  %10760 = vrot.lane.b32.xlu0 %v10588, 4
  %v10761 = vpop.permute.xlu0 %10760
  %10874 = vrot.lane.b32.xlu0 %v6436, 8
  %v10875 = vpop.permute.xlu0 %10874
  %10876 = vrot.lane.b32.xlu0 %v6439, 8
  %v10877 = vpop.permute.xlu0 %10876
  %10878 = vrot.lane.b32.xlu0 %v6442, 8
  %v10879 = vpop.permute.xlu0 %10878
  %10880 = vrot.lane.b32.xlu0 %v6445, 8
  %v10881 = vpop.permute.xlu0 %10880
  %10882 = vrot.lane.b32.xlu0 %v6448, 8
  %v10883 = vpop.permute.xlu0 %10882
  %10884 = vrot.lane.b32.xlu0 %v6451, 8
  %v10885 = vpop.permute.xlu0 %10884
  %10886 = vrot.lane.b32.xlu0 %v6454, 8
  %v10887 = vpop.permute.xlu0 %10886
  %10888 = vrot.lane.b32.xlu0 %v6457, 8
  %v10889 = vpop.permute.xlu0 %10888
  %10890 = vrot.lane.b32.xlu0 %v6460, 8
  %v10891 = vpop.permute.xlu0 %10890
  %10892 = vrot.lane.b32.xlu0 %v6463, 8
  %v10893 = vpop.permute.xlu0 %10892
  %10894 = vrot.lane.b32.xlu0 %v6466, 8
  %v10895 = vpop.permute.xlu0 %10894
  %10896 = vrot.lane.b32.xlu0 %v6469, 8
  %v10897 = vpop.permute.xlu0 %10896
  %10898 = vrot.lane.b32.xlu0 %v6472, 8
  %v10899 = vpop.permute.xlu0 %10898
  %10900 = vrot.lane.b32.xlu0 %v6475, 8
  %v10901 = vpop.permute.xlu0 %10900
  %10902 = vrot.lane.b32.xlu0 %v6478, 8
  %v10903 = vpop.permute.xlu0 %10902
  %10904 = vrot.lane.b32.xlu0 %v6481, 8
  %v10905 = vpop.permute.xlu0 %10904
  %10906 = vrot.lane.b32.xlu0 %v6484, 8
  %v10907 = vpop.permute.xlu0 %10906
  %10908 = vrot.lane.b32.xlu0 %v6487, 8
  %v10909 = vpop.permute.xlu0 %10908
  %10910 = vrot.lane.b32.xlu0 %v6490, 8
  %v10911 = vpop.permute.xlu0 %10910
  %10912 = vrot.lane.b32.xlu0 %v6493, 8
  %v10913 = vpop.permute.xlu0 %10912
  %10914 = vrot.lane.b32.xlu0 %v6496, 8
  %v10915 = vpop.permute.xlu0 %10914
  %10916 = vrot.lane.b32.xlu0 %v6499, 8
  %v10917 = vpop.permute.xlu0 %10916
  %10918 = vrot.lane.b32.xlu0 %v6502, 8
  %v10919 = vpop.permute.xlu0 %10918
  %10920 = vrot.lane.b32.xlu0 %v6505, 8
  %v10921 = vpop.permute.xlu0 %10920
  %10922 = vrot.lane.b32.xlu0 %v6508, 8
  %v10923 = vpop.permute.xlu0 %10922
  %10924 = vrot.lane.b32.xlu0 %v6511, 8
  %v10925 = vpop.permute.xlu0 %10924
  %10926 = vrot.lane.b32.xlu0 %v6514, 8
  %v10927 = vpop.permute.xlu0 %10926
  %10928 = vrot.lane.b32.xlu0 %v6517, 8
  %v10929 = vpop.permute.xlu0 %10928
  %10930 = vrot.lane.b32.xlu0 %v6528, 8
  %v10931 = vpop.permute.xlu0 %10930
  %10932 = vrot.lane.b32.xlu0 %v6531, 8
  %v10933 = vpop.permute.xlu0 %10932
  %10934 = vrot.lane.b32.xlu0 %v6534, 8
  %v10935 = vpop.permute.xlu0 %10934
  %10936 = vrot.lane.b32.xlu0 %v6537, 8
  %v10937 = vpop.permute.xlu0 %10936
  %10938 = vrot.lane.b32.xlu0 %v6540, 8
  %v10939 = vpop.permute.xlu0 %10938
  %10940 = vrot.lane.b32.xlu0 %v6543, 8
  %v10941 = vpop.permute.xlu0 %10940
  %10942 = vrot.lane.b32.xlu0 %v6546, 8
  %v10943 = vpop.permute.xlu0 %10942
  %10944 = vrot.lane.b32.xlu0 %v6549, 8
  %v10945 = vpop.permute.xlu0 %10944
  %10946 = vrot.lane.b32.xlu0 %v6552, 8
  %v10947 = vpop.permute.xlu0 %10946
  %10948 = vrot.lane.b32.xlu0 %v6555, 8
  %v10949 = vpop.permute.xlu0 %10948
  %10950 = vrot.lane.b32.xlu0 %v6558, 8
  %v10951 = vpop.permute.xlu0 %10950
  %10952 = vrot.lane.b32.xlu0 %v6561, 8
  %v10953 = vpop.permute.xlu0 %10952
  %10954 = vrot.lane.b32.xlu0 %v6564, 8
  %v10955 = vpop.permute.xlu0 %10954
  %10956 = vrot.lane.b32.xlu0 %v6567, 8
  %v10957 = vpop.permute.xlu0 %10956
  %10958 = vrot.lane.b32.xlu0 %v6570, 8
  %v10959 = vpop.permute.xlu0 %10958
  %10960 = vrot.lane.b32.xlu0 %v6573, 8
  %v10961 = vpop.permute.xlu0 %10960
  %10962 = vrot.lane.b32.xlu0 %v6576, 8
  %v10963 = vpop.permute.xlu0 %10962
  %10964 = vrot.lane.b32.xlu0 %v6579, 8
  %v10965 = vpop.permute.xlu0 %10964
  %10966 = vrot.lane.b32.xlu0 %v6582, 8
  %v10967 = vpop.permute.xlu0 %10966
  %10968 = vrot.lane.b32.xlu0 %v6585, 8
  %v10969 = vpop.permute.xlu0 %10968
  %10970 = vrot.lane.b32.xlu0 %v6588, 8
  %v10971 = vpop.permute.xlu0 %10970
  %10972 = vrot.lane.b32.xlu0 %v6591, 8
  %v10973 = vpop.permute.xlu0 %10972
  %10974 = vrot.lane.b32.xlu0 %v6594, 8
  %v10975 = vpop.permute.xlu0 %10974
  %10976 = vrot.lane.b32.xlu0 %v6597, 8
  %v10977 = vpop.permute.xlu0 %10976
  %10978 = vrot.lane.b32.xlu0 %v6600, 8
  %v10979 = vpop.permute.xlu0 %10978
  %10980 = vrot.lane.b32.xlu0 %v6603, 8
  %v10981 = vpop.permute.xlu0 %10980
  %10982 = vrot.lane.b32.xlu0 %v6606, 8
  %v10983 = vpop.permute.xlu0 %10982
  %10984 = vrot.lane.b32.xlu0 %v6609, 8
  %v10985 = vpop.permute.xlu0 %10984
  %v11042 = vsel %vm2914, %v6014, %v10651
  %v11043 = vsel %vm2914, %v6017, %v10653
  %v11044 = vsel %vm2914, %v6020, %v10655
  %v11045 = vsel %vm2914, %v6023, %v10657
  %v11046 = vsel %vm2914, %v6026, %v10659
  %v11047 = vsel %vm2914, %v6029, %v10661
  %v11048 = vsel %vm2914, %v6032, %v10663
  %v11049 = vsel %vm2914, %v6035, %v10665
  %v11050 = vsel %vm2914, %v6038, %v10667
  %v11051 = vsel %vm2914, %v6041, %v10669
  %v11052 = vsel %vm2914, %v6044, %v10671
  %v11053 = vsel %vm2914, %v6047, %v10673
  %v11054 = vsel %vm2914, %v6050, %v10675
  %v11055 = vsel %vm2914, %v6053, %v10677
  %v11056 = vsel %vm2914, %v6056, %v10679
  %v11057 = vsel %vm2914, %v6059, %v10681
  %v11058 = vsel %vm2914, %v6062, %v10683
  %v11059 = vsel %vm2914, %v6065, %v10685
  %v11060 = vsel %vm2914, %v6068, %v10687
  %v11061 = vsel %vm2914, %v6071, %v10689
  %v11062 = vsel %vm2914, %v6074, %v10691
  %v11063 = vsel %vm2914, %v6077, %v10693
  %v11064 = vsel %vm2914, %v6080, %v10695
  %v11065 = vsel %vm2914, %v6083, %v10697
  %v11066 = vsel %vm2914, %v6086, %v10699
  %v11067 = vsel %vm2914, %v6089, %v10701
  %v11068 = vsel %vm2914, %v6092, %v10703
  %v11069 = vsel %vm2914, %v6095, %v10705
  %v11070 = vsel %vm2914, %v6110, %v10707
  %v11071 = vsel %vm2914, %v6113, %v10709
  %v11072 = vsel %vm2914, %v6116, %v10711
  %v11073 = vsel %vm2914, %v6119, %v10713
  %v11074 = vsel %vm2914, %v6122, %v10715
  %v11075 = vsel %vm2914, %v6125, %v10717
  %v11076 = vsel %vm2914, %v6128, %v10719
  %v11077 = vsel %vm2914, %v6131, %v10721
  %v11078 = vsel %vm2914, %v6134, %v10723
  %v11079 = vsel %vm2914, %v6137, %v10725
  %v11080 = vsel %vm2914, %v6140, %v10727
  %v11081 = vsel %vm2914, %v6143, %v10729
  %v11082 = vsel %vm2914, %v6146, %v10731
  %v11083 = vsel %vm2914, %v6149, %v10733
  %v11084 = vsel %vm2914, %v6152, %v10735
  %v11085 = vsel %vm2914, %v6155, %v10737
  %v11086 = vsel %vm2914, %v6158, %v10739
  %v11087 = vsel %vm2914, %v6161, %v10741
  %v11088 = vsel %vm2914, %v6164, %v10743
  %v11089 = vsel %vm2914, %v6167, %v10745
  %v11090 = vsel %vm2914, %v6170, %v10747
  %v11091 = vsel %vm2914, %v6173, %v10749
  %v11092 = vsel %vm2914, %v6176, %v10751
  %v11093 = vsel %vm2914, %v6179, %v10753
  %v11094 = vsel %vm2914, %v6182, %v10755
  %v11095 = vsel %vm2914, %v6185, %v10757
  %v11096 = vsel %vm2914, %v6188, %v10759
  %v11097 = vsel %vm2914, %v6191, %v10761
  %v11098 = vsel %vm3011, %v11042, %v10875
  %v11099 = vsel %vm3011, %v11043, %v10877
  %v11100 = vsel %vm3011, %v11044, %v10879
  %v11101 = vsel %vm3011, %v11045, %v10881
  %v11102 = vsel %vm3011, %v11046, %v10883
  %v11103 = vsel %vm3011, %v11047, %v10885
  %v11104 = vsel %vm3011, %v11048, %v10887
  %v11105 = vsel %vm3011, %v11049, %v10889
  %v11106 = vsel %vm3011, %v11050, %v10891
  %v11107 = vsel %vm3011, %v11051, %v10893
  %v11108 = vsel %vm3011, %v11052, %v10895
  %v11109 = vsel %vm3011, %v11053, %v10897
  %v11110 = vsel %vm3011, %v11054, %v10899
  %v11111 = vsel %vm3011, %v11055, %v10901
  %v11112 = vsel %vm3011, %v11056, %v10903
  %v11113 = vsel %vm3011, %v11057, %v10905
  %v11114 = vsel %vm3011, %v11058, %v10907
  %v11115 = vsel %vm3011, %v11059, %v10909
  %v11116 = vsel %vm3011, %v11060, %v10911
  %v11117 = vsel %vm3011, %v11061, %v10913
  %v11118 = vsel %vm3011, %v11062, %v10915
  %v11119 = vsel %vm3011, %v11063, %v10917
  %v11120 = vsel %vm3011, %v11064, %v10919
  %v11121 = vsel %vm3011, %v11065, %v10921
  %v11122 = vsel %vm3011, %v11066, %v10923
  %v11123 = vsel %vm3011, %v11067, %v10925
  %v11124 = vsel %vm3011, %v11068, %v10927
  %v11125 = vsel %vm3011, %v11069, %v10929
  %v11126 = vsel %vm3011, %v11070, %v10931
  %v11127 = vsel %vm3011, %v11071, %v10933
  %v11128 = vsel %vm3011, %v11072, %v10935
  %v11129 = vsel %vm3011, %v11073, %v10937
  %v11130 = vsel %vm3011, %v11074, %v10939
  %v11131 = vsel %vm3011, %v11075, %v10941
  %v11132 = vsel %vm3011, %v11076, %v10943
  %v11133 = vsel %vm3011, %v11077, %v10945
  %v11134 = vsel %vm3011, %v11078, %v10947
  %v11135 = vsel %vm3011, %v11079, %v10949
  %v11136 = vsel %vm3011, %v11080, %v10951
  %v11137 = vsel %vm3011, %v11081, %v10953
  %v11138 = vsel %vm3011, %v11082, %v10955
  %v11139 = vsel %vm3011, %v11083, %v10957
  %v11140 = vsel %vm3011, %v11084, %v10959
  %v11141 = vsel %vm3011, %v11085, %v10961
  %v11142 = vsel %vm3011, %v11086, %v10963
  %v11143 = vsel %vm3011, %v11087, %v10965
  %v11144 = vsel %vm3011, %v11088, %v10967
  %v11145 = vsel %vm3011, %v11089, %v10969
  %v11146 = vsel %vm3011, %v11090, %v10971
  %v11147 = vsel %vm3011, %v11091, %v10973
  %v11148 = vsel %vm3011, %v11092, %v10975
  %v11149 = vsel %vm3011, %v11093, %v10977
  %v11150 = vsel %vm3011, %v11094, %v10979
  %v11151 = vsel %vm3011, %v11095, %v10981
  %v11152 = vsel %vm3011, %v11096, %v10983
  %v11153 = vsel %vm3011, %v11097, %v10985
  %v11154 = vsub.f32 0.0, %v11098
  %v11155 = vsub.f32 0.0, %v11099
  %v11156 = vsub.f32 0.0, %v11100
  %v11157 = vsub.f32 0.0, %v11101
  %v11158 = vsub.f32 0.0, %v11102
  %v11159 = vsub.f32 0.0, %v11103
  %v11160 = vsub.f32 0.0, %v11104
  %v11161 = vsub.f32 0.0, %v11105
  %v11162 = vsub.f32 0.0, %v11106
  %v11163 = vsub.f32 0.0, %v11107
  %v11164 = vsub.f32 0.0, %v11108
  %v11165 = vsub.f32 0.0, %v11109
  %v11166 = vsub.f32 0.0, %v11110
  %v11167 = vsub.f32 0.0, %v11111
  %v11168 = vsub.f32 0.0, %v11112
  %v11169 = vsub.f32 0.0, %v11113
  %v11170 = vsub.f32 0.0, %v11114
  %v11171 = vsub.f32 0.0, %v11115
  %v11172 = vsub.f32 0.0, %v11116
  %v11173 = vsub.f32 0.0, %v11117
  %v11174 = vsub.f32 0.0, %v11118
  %v11175 = vsub.f32 0.0, %v11119
  %v11176 = vsub.f32 0.0, %v11120
  %v11177 = vsub.f32 0.0, %v11121
  %v11178 = vsub.f32 0.0, %v11122
  %v11179 = vsub.f32 0.0, %v11123
  %v11180 = vsub.f32 0.0, %v11124
  %v11181 = vsub.f32 0.0, %v11125
  %v11182 = vsub.f32 0.0, %v11126
  %v11183 = vsub.f32 0.0, %v11127
  %v11184 = vsub.f32 0.0, %v11128
  %v11185 = vsub.f32 0.0, %v11129
  %v11186 = vsub.f32 0.0, %v11130
  %v11187 = vsub.f32 0.0, %v11131
  %v11188 = vsub.f32 0.0, %v11132
  %v11189 = vsub.f32 0.0, %v11133
  %v11190 = vsub.f32 0.0, %v11134
  %v11191 = vsub.f32 0.0, %v11135
  %v11192 = vsub.f32 0.0, %v11136
  %v11193 = vsub.f32 0.0, %v11137
  %v11194 = vsub.f32 0.0, %v11138
  %v11195 = vsub.f32 0.0, %v11139
  %v11196 = vsub.f32 0.0, %v11140
  %v11197 = vsub.f32 0.0, %v11141
  %v11198 = vsub.f32 0.0, %v11142
  %v11199 = vsub.f32 0.0, %v11143
  %v11200 = vsub.f32 0.0, %v11144
  %v11201 = vsub.f32 0.0, %v11145
  %v11202 = vsub.f32 0.0, %v11146
  %v11203 = vsub.f32 0.0, %v11147
  %v11204 = vsub.f32 0.0, %v11148
  %v11205 = vsub.f32 0.0, %v11149
  %v11206 = vsub.f32 0.0, %v11150
  %v11207 = vsub.f32 0.0, %v11151
  %v11208 = vsub.f32 0.0, %v11152
  %v11209 = vsub.f32 0.0, %v11153
  %11266 = vrot.lane.b32.xlu0 %v11154, 12
  %v11267 = vpop.permute.xlu0 %11266
  %11268 = vrot.lane.b32.xlu0 %v11155, 12
  %v11269 = vpop.permute.xlu0 %11268
  %11270 = vrot.lane.b32.xlu0 %v11156, 12
  %v11271 = vpop.permute.xlu0 %11270
  %11272 = vrot.lane.b32.xlu0 %v11157, 12
  %v11273 = vpop.permute.xlu0 %11272
  %11274 = vrot.lane.b32.xlu0 %v11158, 12
  %v11275 = vpop.permute.xlu0 %11274
  %11276 = vrot.lane.b32.xlu0 %v11159, 12
  %v11277 = vpop.permute.xlu0 %11276
  %11278 = vrot.lane.b32.xlu0 %v11160, 12
  %v11279 = vpop.permute.xlu0 %11278
  %11280 = vrot.lane.b32.xlu0 %v11161, 12
  %v11281 = vpop.permute.xlu0 %11280
  %11282 = vrot.lane.b32.xlu0 %v11162, 12
  %v11283 = vpop.permute.xlu0 %11282
  %11284 = vrot.lane.b32.xlu0 %v11163, 12
  %v11285 = vpop.permute.xlu0 %11284
  %11286 = vrot.lane.b32.xlu0 %v11164, 12
  %v11287 = vpop.permute.xlu0 %11286
  %11288 = vrot.lane.b32.xlu0 %v11165, 12
  %v11289 = vpop.permute.xlu0 %11288
  %11290 = vrot.lane.b32.xlu0 %v11166, 12
  %v11291 = vpop.permute.xlu0 %11290
  %11292 = vrot.lane.b32.xlu0 %v11167, 12
  %v11293 = vpop.permute.xlu0 %11292
  %11294 = vrot.lane.b32.xlu0 %v11168, 12
  %v11295 = vpop.permute.xlu0 %11294
  %11296 = vrot.lane.b32.xlu0 %v11169, 12
  %v11297 = vpop.permute.xlu0 %11296
  %11298 = vrot.lane.b32.xlu0 %v11170, 12
  %v11299 = vpop.permute.xlu0 %11298
  %11300 = vrot.lane.b32.xlu0 %v11171, 12
  %v11301 = vpop.permute.xlu0 %11300
  %11302 = vrot.lane.b32.xlu0 %v11172, 12
  %v11303 = vpop.permute.xlu0 %11302
  %11304 = vrot.lane.b32.xlu0 %v11173, 12
  %v11305 = vpop.permute.xlu0 %11304
  %11306 = vrot.lane.b32.xlu0 %v11174, 12
  %v11307 = vpop.permute.xlu0 %11306
  %11308 = vrot.lane.b32.xlu0 %v11175, 12
  %v11309 = vpop.permute.xlu0 %11308
  %11310 = vrot.lane.b32.xlu0 %v11176, 12
  %v11311 = vpop.permute.xlu0 %11310
  %11312 = vrot.lane.b32.xlu0 %v11177, 12
  %v11313 = vpop.permute.xlu0 %11312
  %11314 = vrot.lane.b32.xlu0 %v11178, 12
  %v11315 = vpop.permute.xlu0 %11314
  %11316 = vrot.lane.b32.xlu0 %v11179, 12
  %v11317 = vpop.permute.xlu0 %11316
  %11318 = vrot.lane.b32.xlu0 %v11180, 12
  %v11319 = vpop.permute.xlu0 %11318
  %11320 = vrot.lane.b32.xlu0 %v11181, 12
  %v11321 = vpop.permute.xlu0 %11320
  %11322 = vrot.lane.b32.xlu0 %v11182, 12
  %v11323 = vpop.permute.xlu0 %11322
  %11324 = vrot.lane.b32.xlu0 %v11183, 12
  %v11325 = vpop.permute.xlu0 %11324
  %11326 = vrot.lane.b32.xlu0 %v11184, 12
  %v11327 = vpop.permute.xlu0 %11326
  %11328 = vrot.lane.b32.xlu0 %v11185, 12
  %v11329 = vpop.permute.xlu0 %11328
  %11330 = vrot.lane.b32.xlu0 %v11186, 12
  %v11331 = vpop.permute.xlu0 %11330
  %11332 = vrot.lane.b32.xlu0 %v11187, 12
  %v11333 = vpop.permute.xlu0 %11332
  %11334 = vrot.lane.b32.xlu0 %v11188, 12
  %v11335 = vpop.permute.xlu0 %11334
  %11336 = vrot.lane.b32.xlu0 %v11189, 12
  %v11337 = vpop.permute.xlu0 %11336
  %11338 = vrot.lane.b32.xlu0 %v11190, 12
  %v11339 = vpop.permute.xlu0 %11338
  %11340 = vrot.lane.b32.xlu0 %v11191, 12
  %v11341 = vpop.permute.xlu0 %11340
  %11342 = vrot.lane.b32.xlu0 %v11192, 12
  %v11343 = vpop.permute.xlu0 %11342
  %11344 = vrot.lane.b32.xlu0 %v11193, 12
  %v11345 = vpop.permute.xlu0 %11344
  %11346 = vrot.lane.b32.xlu0 %v11194, 12
  %v11347 = vpop.permute.xlu0 %11346
  %11348 = vrot.lane.b32.xlu0 %v11195, 12
  %v11349 = vpop.permute.xlu0 %11348
  %11350 = vrot.lane.b32.xlu0 %v11196, 12
  %v11351 = vpop.permute.xlu0 %11350
  %11352 = vrot.lane.b32.xlu0 %v11197, 12
  %v11353 = vpop.permute.xlu0 %11352
  %11354 = vrot.lane.b32.xlu0 %v11198, 12
  %v11355 = vpop.permute.xlu0 %11354
  %11356 = vrot.lane.b32.xlu0 %v11199, 12
  %v11357 = vpop.permute.xlu0 %11356
  %11358 = vrot.lane.b32.xlu0 %v11200, 12
  %v11359 = vpop.permute.xlu0 %11358
  %11360 = vrot.lane.b32.xlu0 %v11201, 12
  %v11361 = vpop.permute.xlu0 %11360
  %11362 = vrot.lane.b32.xlu0 %v11202, 12
  %v11363 = vpop.permute.xlu0 %11362
  %11364 = vrot.lane.b32.xlu0 %v11203, 12
  %v11365 = vpop.permute.xlu0 %11364
  %11366 = vrot.lane.b32.xlu0 %v11204, 12
  %v11367 = vpop.permute.xlu0 %11366
  %11368 = vrot.lane.b32.xlu0 %v11205, 12
  %v11369 = vpop.permute.xlu0 %11368
  %11370 = vrot.lane.b32.xlu0 %v11206, 12
  %v11371 = vpop.permute.xlu0 %11370
  %11372 = vrot.lane.b32.xlu0 %v11207, 12
  %v11373 = vpop.permute.xlu0 %11372
  %11374 = vrot.lane.b32.xlu0 %v11208, 12
  %v11375 = vpop.permute.xlu0 %11374
  %11376 = vrot.lane.b32.xlu0 %v11209, 12
  %v11377 = vpop.permute.xlu0 %11376
  %v11434 = vsel %vm3108, %v11098, %v11267
  %v11435 = vsel %vm3108, %v11099, %v11269
  %v11436 = vsel %vm3108, %v11100, %v11271
  %v11437 = vsel %vm3108, %v11101, %v11273
  %v11438 = vsel %vm3108, %v11102, %v11275
  %v11439 = vsel %vm3108, %v11103, %v11277
  %v11440 = vsel %vm3108, %v11104, %v11279
  %v11441 = vsel %vm3108, %v11105, %v11281
  %v11442 = vsel %vm3108, %v11106, %v11283
  %v11443 = vsel %vm3108, %v11107, %v11285
  %v11444 = vsel %vm3108, %v11108, %v11287
  %v11445 = vsel %vm3108, %v11109, %v11289
  %v11446 = vsel %vm3108, %v11110, %v11291
  %v11447 = vsel %vm3108, %v11111, %v11293
  %v11448 = vsel %vm3108, %v11112, %v11295
  %v11449 = vsel %vm3108, %v11113, %v11297
  %v11450 = vsel %vm3108, %v11114, %v11299
  %v11451 = vsel %vm3108, %v11115, %v11301
  %v11452 = vsel %vm3108, %v11116, %v11303
  %v11453 = vsel %vm3108, %v11117, %v11305
  %v11454 = vsel %vm3108, %v11118, %v11307
  %v11455 = vsel %vm3108, %v11119, %v11309
  %v11456 = vsel %vm3108, %v11120, %v11311
  %v11457 = vsel %vm3108, %v11121, %v11313
  %v11458 = vsel %vm3108, %v11122, %v11315
  %v11459 = vsel %vm3108, %v11123, %v11317
  %v11460 = vsel %vm3108, %v11124, %v11319
  %v11461 = vsel %vm3108, %v11125, %v11321
  %v11462 = vsel %vm3108, %v11126, %v11323
  %v11463 = vsel %vm3108, %v11127, %v11325
  %v11464 = vsel %vm3108, %v11128, %v11327
  %v11465 = vsel %vm3108, %v11129, %v11329
  %v11466 = vsel %vm3108, %v11130, %v11331
  %v11467 = vsel %vm3108, %v11131, %v11333
  %v11468 = vsel %vm3108, %v11132, %v11335
  %v11469 = vsel %vm3108, %v11133, %v11337
  %v11470 = vsel %vm3108, %v11134, %v11339
  %v11471 = vsel %vm3108, %v11135, %v11341
  %v11472 = vsel %vm3108, %v11136, %v11343
  %v11473 = vsel %vm3108, %v11137, %v11345
  %v11474 = vsel %vm3108, %v11138, %v11347
  %v11475 = vsel %vm3108, %v11139, %v11349
  %v11476 = vsel %vm3108, %v11140, %v11351
  %v11477 = vsel %vm3108, %v11141, %v11353
  %v11478 = vsel %vm3108, %v11142, %v11355
  %v11479 = vsel %vm3108, %v11143, %v11357
  %v11480 = vsel %vm3108, %v11144, %v11359
  %v11481 = vsel %vm3108, %v11145, %v11361
  %v11482 = vsel %vm3108, %v11146, %v11363
  %v11483 = vsel %vm3108, %v11147, %v11365
  %v11484 = vsel %vm3108, %v11148, %v11367
  %v11485 = vsel %vm3108, %v11149, %v11369
  %v11486 = vsel %vm3108, %v11150, %v11371
  %v11487 = vsel %vm3108, %v11151, %v11373
  %v11488 = vsel %vm3108, %v11152, %v11375
  %v11489 = vsel %vm3108, %v11153, %v11377
  %v11490 = vmax.f32 %v11434, 0.0
  %v11491 = vmax.f32 %v11435, 0.0
  %v11492 = vmax.f32 %v11436, 0.0
  %v11493 = vmax.f32 %v11437, 0.0
  %v11494 = vmax.f32 %v11438, 0.0
  %v11495 = vmax.f32 %v11439, 0.0
  %v11496 = vmax.f32 %v11440, 0.0
  %v11497 = vmax.f32 %v11441, 0.0
  %v11498 = vmax.f32 %v11442, 0.0
  %v11499 = vmax.f32 %v11443, 0.0
  %v11500 = vmax.f32 %v11444, 0.0
  %v11501 = vmax.f32 %v11445, 0.0
  %v11502 = vmax.f32 %v11446, 0.0
  %v11503 = vmax.f32 %v11447, 0.0
  %v11504 = vmax.f32 %v11448, 0.0
  %v11505 = vmax.f32 %v11449, 0.0
  %v11506 = vmax.f32 %v11450, 0.0
  %v11507 = vmax.f32 %v11451, 0.0
  %v11508 = vmax.f32 %v11452, 0.0
  %v11509 = vmax.f32 %v11453, 0.0
  %v11510 = vmax.f32 %v11454, 0.0
  %v11511 = vmax.f32 %v11455, 0.0
  %v11512 = vmax.f32 %v11456, 0.0
  %v11513 = vmax.f32 %v11457, 0.0
  %v11514 = vmax.f32 %v11458, 0.0
  %v11515 = vmax.f32 %v11459, 0.0
  %v11516 = vmax.f32 %v11460, 0.0
  %v11517 = vmax.f32 %v11461, 0.0
  %v11518 = vmax.f32 %v11462, 0.0
  %v11519 = vmax.f32 %v11463, 0.0
  %v11520 = vmax.f32 %v11464, 0.0
  %v11521 = vmax.f32 %v11465, 0.0
  %v11522 = vmax.f32 %v11466, 0.0
  %v11523 = vmax.f32 %v11467, 0.0
  %v11524 = vmax.f32 %v11468, 0.0
  %v11525 = vmax.f32 %v11469, 0.0
  %v11526 = vmax.f32 %v11470, 0.0
  %v11527 = vmax.f32 %v11471, 0.0
  %v11528 = vmax.f32 %v11472, 0.0
  %v11529 = vmax.f32 %v11473, 0.0
  %v11530 = vmax.f32 %v11474, 0.0
  %v11531 = vmax.f32 %v11475, 0.0
  %v11532 = vmax.f32 %v11476, 0.0
  %v11533 = vmax.f32 %v11477, 0.0
  %v11534 = vmax.f32 %v11478, 0.0
  %v11535 = vmax.f32 %v11479, 0.0
  %v11536 = vmax.f32 %v11480, 0.0
  %v11537 = vmax.f32 %v11481, 0.0
  %v11538 = vmax.f32 %v11482, 0.0
  %v11539 = vmax.f32 %v11483, 0.0
  %v11540 = vmax.f32 %v11484, 0.0
  %v11541 = vmax.f32 %v11485, 0.0
  %v11542 = vmax.f32 %v11486, 0.0
  %v11543 = vmax.f32 %v11487, 0.0
  %v11544 = vmax.f32 %v11488, 0.0
  %v11545 = vmax.f32 %v11489, 0.0
  %vm11546 = vcmask 195585
  %v11547 = vsel %vm11546, %v11490, 0.0
  %v11548 = vsel %vm11546, %v11492, 0.0
  %v11549 = vadd.f32 %v11547, %v11548
  %v11550 = vsel %vm11546, %v11494, 0.0
  %v11551 = vadd.f32 %v11549, %v11550
  %v11552 = vsel %vm11546, %v11496, 0.0
  %v11553 = vadd.f32 %v11551, %v11552
  %v11554 = vsel %vm11546, %v11498, 0.0
  %v11555 = vadd.f32 %v11553, %v11554
  %v11556 = vsel %vm11546, %v11500, 0.0
  %v11557 = vadd.f32 %v11555, %v11556
  %v11558 = vsel %vm11546, %v11502, 0.0
  %v11559 = vadd.f32 %v11557, %v11558
  %v11560 = vsel %vm11546, %v11504, 0.0
  %v11561 = vadd.f32 %v11559, %v11560
  %v11562 = vsel %vm11546, %v11506, 0.0
  %v11563 = vadd.f32 %v11561, %v11562
  %v11564 = vsel %vm11546, %v11508, 0.0
  %v11565 = vadd.f32 %v11563, %v11564
  %v11566 = vsel %vm11546, %v11510, 0.0
  %v11567 = vadd.f32 %v11565, %v11566
  %v11568 = vsel %vm11546, %v11512, 0.0
  %v11569 = vadd.f32 %v11567, %v11568
  %v11570 = vsel %vm11546, %v11514, 0.0
  %v11571 = vadd.f32 %v11569, %v11570
  %v11572 = vsel %vm11546, %v11516, 0.0
  %v11573 = vadd.f32 %v11571, %v11572
  %vm11574 = vcmask 194560
  %v11575 = vsel %vm11574, %v11491, 0.0
  %v11576 = vsel %vm11574, %v11493, 0.0
  %v11577 = vadd.f32 %v11575, %v11576
  %v11578 = vsel %vm11574, %v11495, 0.0
  %v11579 = vadd.f32 %v11577, %v11578
  %v11580 = vsel %vm11574, %v11497, 0.0
  %v11581 = vadd.f32 %v11579, %v11580
  %v11582 = vsel %vm11574, %v11499, 0.0
  %v11583 = vadd.f32 %v11581, %v11582
  %v11584 = vsel %vm11574, %v11501, 0.0
  %v11585 = vadd.f32 %v11583, %v11584
  %v11586 = vsel %vm11574, %v11503, 0.0
  %v11587 = vadd.f32 %v11585, %v11586
  %v11588 = vsel %vm11574, %v11505, 0.0
  %v11589 = vadd.f32 %v11587, %v11588
  %v11590 = vsel %vm11574, %v11507, 0.0
  %v11591 = vadd.f32 %v11589, %v11590
  %v11592 = vsel %vm11574, %v11509, 0.0
  %v11593 = vadd.f32 %v11591, %v11592
  %v11594 = vsel %vm11574, %v11511, 0.0
  %v11595 = vadd.f32 %v11593, %v11594
  %v11596 = vsel %vm11574, %v11513, 0.0
  %v11597 = vadd.f32 %v11595, %v11596
  %v11598 = vsel %vm11574, %v11515, 0.0
  %v11599 = vadd.f32 %v11597, %v11598
  %v11600 = vsel %vm11574, %v11517, 0.0
  %v11601 = vadd.f32 %v11599, %v11600
  %v11602 = vsel %vm11546, %v11518, 0.0
  %v11603 = vsel %vm11546, %v11520, 0.0
  %v11604 = vadd.f32 %v11602, %v11603
  %v11605 = vsel %vm11546, %v11522, 0.0
  %v11606 = vadd.f32 %v11604, %v11605
  %v11607 = vsel %vm11546, %v11524, 0.0
  %v11608 = vadd.f32 %v11606, %v11607
  %v11609 = vsel %vm11546, %v11526, 0.0
  %v11610 = vadd.f32 %v11608, %v11609
  %v11611 = vsel %vm11546, %v11528, 0.0
  %v11612 = vadd.f32 %v11610, %v11611
  %v11613 = vsel %vm11546, %v11530, 0.0
  %v11614 = vadd.f32 %v11612, %v11613
  %v11615 = vsel %vm11546, %v11532, 0.0
  %v11616 = vadd.f32 %v11614, %v11615
  %v11617 = vsel %vm11546, %v11534, 0.0
  %v11618 = vadd.f32 %v11616, %v11617
  %v11619 = vsel %vm11546, %v11536, 0.0
  %v11620 = vadd.f32 %v11618, %v11619
  %v11621 = vsel %vm11546, %v11538, 0.0
  %v11622 = vadd.f32 %v11620, %v11621
  %v11623 = vsel %vm11546, %v11540, 0.0
  %v11624 = vadd.f32 %v11622, %v11623
  %v11625 = vsel %vm11546, %v11542, 0.0
  %v11626 = vadd.f32 %v11624, %v11625
  %v11627 = vsel %vm11546, %v11544, 0.0
  %v11628 = vadd.f32 %v11626, %v11627
  %v11629 = vsel %vm11574, %v11519, 0.0
  %v11630 = vsel %vm11574, %v11521, 0.0
  %v11631 = vadd.f32 %v11629, %v11630
  %v11632 = vsel %vm11574, %v11523, 0.0
  %v11633 = vadd.f32 %v11631, %v11632
  %v11634 = vsel %vm11574, %v11525, 0.0
  %v11635 = vadd.f32 %v11633, %v11634
  %v11636 = vsel %vm11574, %v11527, 0.0
  %v11637 = vadd.f32 %v11635, %v11636
  %v11638 = vsel %vm11574, %v11529, 0.0
  %v11639 = vadd.f32 %v11637, %v11638
  %v11640 = vsel %vm11574, %v11531, 0.0
  %v11641 = vadd.f32 %v11639, %v11640
  %v11642 = vsel %vm11574, %v11533, 0.0
  %v11643 = vadd.f32 %v11641, %v11642
  %v11644 = vsel %vm11574, %v11535, 0.0
  %v11645 = vadd.f32 %v11643, %v11644
  %v11646 = vsel %vm11574, %v11537, 0.0
  %v11647 = vadd.f32 %v11645, %v11646
  %v11648 = vsel %vm11574, %v11539, 0.0
  %v11649 = vadd.f32 %v11647, %v11648
  %v11650 = vsel %vm11574, %v11541, 0.0
  %v11651 = vadd.f32 %v11649, %v11650
  %v11652 = vsel %vm11574, %v11543, 0.0
  %v11653 = vadd.f32 %v11651, %v11652
  %v11654 = vsel %vm11574, %v11545, 0.0
  %v11655 = vadd.f32 %v11653, %v11654
  %v11660 = vrot.slane %v11573, 1
  %v11661 = vrot.slane %v11601, 1
  %v11662 = vsel %vm236, %v11660, %v11661
  %v11663 = vrot.slane %v11628, 1
  %v11664 = vrot.slane %v11655, 1
  %v11665 = vsel %vm236, %v11663, %v11664
  %v11670 = vsel %vm3399, %v11662, 0.0
  %vm11671 = vcmask 193536
  %v11672 = vsel %vm11671, %v11661, 0.0
  %v11673 = vadd.f32 %v11670, %v11672
  %v11674 = vrot.slane %v11673, 4
  %v11675 = vadd.f32 %v11673, %v11674
  %v11676 = vrot.slane %v11675, 2
  %v11677 = vadd.f32 %v11675, %v11676
  %v11678 = vrot.slane %v11677, 1
  %v11679 = vadd.f32 %v11677, %v11678
  %v11680 = vsel %vm3399, %v11665, 0.0
  %v11681 = vsel %vm11671, %v11664, 0.0
  %v11682 = vadd.f32 %v11680, %v11681
  %v11683 = vrot.slane %v11682, 4
  %v11684 = vadd.f32 %v11682, %v11683
  %v11685 = vrot.slane %v11684, 2
  %v11686 = vadd.f32 %v11684, %v11685
  %v11687 = vrot.slane %v11686, 1
  %v11688 = vadd.f32 %v11686, %v11687
  %v11689 = vmul.f32 %v11679, 0.0051020407
  %v11690 = vmul.f32 %v11688, 0.0051020407
  %v11691 = vsub.f32 %v11490, %v11689
  %v11692 = vsub.f32 %v11491, %v11689
  %v11693 = vsub.f32 %v11492, %v11689
  %v11694 = vsub.f32 %v11493, %v11689
  %v11695 = vsub.f32 %v11494, %v11689
  %v11696 = vsub.f32 %v11495, %v11689
  %v11697 = vsub.f32 %v11496, %v11689
  %v11698 = vsub.f32 %v11497, %v11689
  %v11699 = vsub.f32 %v11498, %v11689
  %v11700 = vsub.f32 %v11499, %v11689
  %v11701 = vsub.f32 %v11500, %v11689
  %v11702 = vsub.f32 %v11501, %v11689
  %v11703 = vsub.f32 %v11502, %v11689
  %v11704 = vsub.f32 %v11503, %v11689
  %v11705 = vsub.f32 %v11504, %v11689
  %v11706 = vsub.f32 %v11505, %v11689
  %v11707 = vsub.f32 %v11506, %v11689
  %v11708 = vsub.f32 %v11507, %v11689
  %v11709 = vsub.f32 %v11508, %v11689
  %v11710 = vsub.f32 %v11509, %v11689
  %v11711 = vsub.f32 %v11510, %v11689
  %v11712 = vsub.f32 %v11511, %v11689
  %v11713 = vsub.f32 %v11512, %v11689
  %v11714 = vsub.f32 %v11513, %v11689
  %v11715 = vsub.f32 %v11514, %v11689
  %v11716 = vsub.f32 %v11515, %v11689
  %v11717 = vsub.f32 %v11516, %v11689
  %v11718 = vsub.f32 %v11517, %v11689
  %v11719 = vsub.f32 %v11518, %v11690
  %v11720 = vsub.f32 %v11519, %v11690
  %v11721 = vsub.f32 %v11520, %v11690
  %v11722 = vsub.f32 %v11521, %v11690
  %v11723 = vsub.f32 %v11522, %v11690
  %v11724 = vsub.f32 %v11523, %v11690
  %v11725 = vsub.f32 %v11524, %v11690
  %v11726 = vsub.f32 %v11525, %v11690
  %v11727 = vsub.f32 %v11526, %v11690
  %v11728 = vsub.f32 %v11527, %v11690
  %v11729 = vsub.f32 %v11528, %v11690
  %v11730 = vsub.f32 %v11529, %v11690
  %v11731 = vsub.f32 %v11530, %v11690
  %v11732 = vsub.f32 %v11531, %v11690
  %v11733 = vsub.f32 %v11532, %v11690
  %v11734 = vsub.f32 %v11533, %v11690
  %v11735 = vsub.f32 %v11534, %v11690
  %v11736 = vsub.f32 %v11535, %v11690
  %v11737 = vsub.f32 %v11536, %v11690
  %v11738 = vsub.f32 %v11537, %v11690
  %v11739 = vsub.f32 %v11538, %v11690
  %v11740 = vsub.f32 %v11539, %v11690
  %v11741 = vsub.f32 %v11540, %v11690
  %v11742 = vsub.f32 %v11541, %v11690
  %v11743 = vsub.f32 %v11542, %v11690
  %v11744 = vsub.f32 %v11543, %v11690
  %v11745 = vsub.f32 %v11544, %v11690
  %v11746 = vsub.f32 %v11545, %v11690
  %v11747 = vmul.f32 %v11691, %v11691
  %v11748 = vmul.f32 %v11692, %v11692
  %v11749 = vmul.f32 %v11693, %v11693
  %v11750 = vmul.f32 %v11694, %v11694
  %v11751 = vmul.f32 %v11695, %v11695
  %v11752 = vmul.f32 %v11696, %v11696
  %v11753 = vmul.f32 %v11697, %v11697
  %v11754 = vmul.f32 %v11698, %v11698
  %v11755 = vmul.f32 %v11699, %v11699
  %v11756 = vmul.f32 %v11700, %v11700
  %v11757 = vmul.f32 %v11701, %v11701
  %v11758 = vmul.f32 %v11702, %v11702
  %v11759 = vmul.f32 %v11703, %v11703
  %v11760 = vmul.f32 %v11704, %v11704
  %v11761 = vmul.f32 %v11705, %v11705
  %v11762 = vmul.f32 %v11706, %v11706
  %v11763 = vmul.f32 %v11707, %v11707
  %v11764 = vmul.f32 %v11708, %v11708
  %v11765 = vmul.f32 %v11709, %v11709
  %v11766 = vmul.f32 %v11710, %v11710
  %v11767 = vmul.f32 %v11711, %v11711
  %v11768 = vmul.f32 %v11712, %v11712
  %v11769 = vmul.f32 %v11713, %v11713
  %v11770 = vmul.f32 %v11714, %v11714
  %v11771 = vmul.f32 %v11715, %v11715
  %v11772 = vmul.f32 %v11716, %v11716
  %v11773 = vmul.f32 %v11717, %v11717
  %v11774 = vmul.f32 %v11718, %v11718
  %v11775 = vmul.f32 %v11719, %v11719
  %v11776 = vmul.f32 %v11720, %v11720
  %v11777 = vmul.f32 %v11721, %v11721
  %v11778 = vmul.f32 %v11722, %v11722
  %v11779 = vmul.f32 %v11723, %v11723
  %v11780 = vmul.f32 %v11724, %v11724
  %v11781 = vmul.f32 %v11725, %v11725
  %v11782 = vmul.f32 %v11726, %v11726
  %v11783 = vmul.f32 %v11727, %v11727
  %v11784 = vmul.f32 %v11728, %v11728
  %v11785 = vmul.f32 %v11729, %v11729
  %v11786 = vmul.f32 %v11730, %v11730
  %v11787 = vmul.f32 %v11731, %v11731
  %v11788 = vmul.f32 %v11732, %v11732
  %v11789 = vmul.f32 %v11733, %v11733
  %v11790 = vmul.f32 %v11734, %v11734
  %v11791 = vmul.f32 %v11735, %v11735
  %v11792 = vmul.f32 %v11736, %v11736
  %v11793 = vmul.f32 %v11737, %v11737
  %v11794 = vmul.f32 %v11738, %v11738
  %v11795 = vmul.f32 %v11739, %v11739
  %v11796 = vmul.f32 %v11740, %v11740
  %v11797 = vmul.f32 %v11741, %v11741
  %v11798 = vmul.f32 %v11742, %v11742
  %v11799 = vmul.f32 %v11743, %v11743
  %v11800 = vmul.f32 %v11744, %v11744
  %v11801 = vmul.f32 %v11745, %v11745
  %v11802 = vmul.f32 %v11746, %v11746
  %v11803 = vsel %vm11546, %v11747, 0.0
  %v11804 = vsel %vm11546, %v11749, 0.0
  %v11805 = vadd.f32 %v11803, %v11804
  %v11806 = vsel %vm11546, %v11751, 0.0
  %v11807 = vadd.f32 %v11805, %v11806
  %v11808 = vsel %vm11546, %v11753, 0.0
  %v11809 = vadd.f32 %v11807, %v11808
  %v11810 = vsel %vm11546, %v11755, 0.0
  %v11811 = vadd.f32 %v11809, %v11810
  %v11812 = vsel %vm11546, %v11757, 0.0
  %v11813 = vadd.f32 %v11811, %v11812
  %v11814 = vsel %vm11546, %v11759, 0.0
  %v11815 = vadd.f32 %v11813, %v11814
  %v11816 = vsel %vm11546, %v11761, 0.0
  %v11817 = vadd.f32 %v11815, %v11816
  %v11818 = vsel %vm11546, %v11763, 0.0
  %v11819 = vadd.f32 %v11817, %v11818
  %v11820 = vsel %vm11546, %v11765, 0.0
  %v11821 = vadd.f32 %v11819, %v11820
  %v11822 = vsel %vm11546, %v11767, 0.0
  %v11823 = vadd.f32 %v11821, %v11822
  %v11824 = vsel %vm11546, %v11769, 0.0
  %v11825 = vadd.f32 %v11823, %v11824
  %v11826 = vsel %vm11546, %v11771, 0.0
  %v11827 = vadd.f32 %v11825, %v11826
  %v11828 = vsel %vm11546, %v11773, 0.0
  %v11829 = vadd.f32 %v11827, %v11828
  %v11830 = vsel %vm11574, %v11748, 0.0
  %v11831 = vsel %vm11574, %v11750, 0.0
  %v11832 = vadd.f32 %v11830, %v11831
  %v11833 = vsel %vm11574, %v11752, 0.0
  %v11834 = vadd.f32 %v11832, %v11833
  %v11835 = vsel %vm11574, %v11754, 0.0
  %v11836 = vadd.f32 %v11834, %v11835
  %v11837 = vsel %vm11574, %v11756, 0.0
  %v11838 = vadd.f32 %v11836, %v11837
  %v11839 = vsel %vm11574, %v11758, 0.0
  %v11840 = vadd.f32 %v11838, %v11839
  %v11841 = vsel %vm11574, %v11760, 0.0
  %v11842 = vadd.f32 %v11840, %v11841
  %v11843 = vsel %vm11574, %v11762, 0.0
  %v11844 = vadd.f32 %v11842, %v11843
  %v11845 = vsel %vm11574, %v11764, 0.0
  %v11846 = vadd.f32 %v11844, %v11845
  %v11847 = vsel %vm11574, %v11766, 0.0
  %v11848 = vadd.f32 %v11846, %v11847
  %v11849 = vsel %vm11574, %v11768, 0.0
  %v11850 = vadd.f32 %v11848, %v11849
  %v11851 = vsel %vm11574, %v11770, 0.0
  %v11852 = vadd.f32 %v11850, %v11851
  %v11853 = vsel %vm11574, %v11772, 0.0
  %v11854 = vadd.f32 %v11852, %v11853
  %v11855 = vsel %vm11574, %v11774, 0.0
  %v11856 = vadd.f32 %v11854, %v11855
  %v11857 = vsel %vm11546, %v11775, 0.0
  %v11858 = vsel %vm11546, %v11777, 0.0
  %v11859 = vadd.f32 %v11857, %v11858
  %v11860 = vsel %vm11546, %v11779, 0.0
  %v11861 = vadd.f32 %v11859, %v11860
  %v11862 = vsel %vm11546, %v11781, 0.0
  %v11863 = vadd.f32 %v11861, %v11862
  %v11864 = vsel %vm11546, %v11783, 0.0
  %v11865 = vadd.f32 %v11863, %v11864
  %v11866 = vsel %vm11546, %v11785, 0.0
  %v11867 = vadd.f32 %v11865, %v11866
  %v11868 = vsel %vm11546, %v11787, 0.0
  %v11869 = vadd.f32 %v11867, %v11868
  %v11870 = vsel %vm11546, %v11789, 0.0
  %v11871 = vadd.f32 %v11869, %v11870
  %v11872 = vsel %vm11546, %v11791, 0.0
  %v11873 = vadd.f32 %v11871, %v11872
  %v11874 = vsel %vm11546, %v11793, 0.0
  %v11875 = vadd.f32 %v11873, %v11874
  %v11876 = vsel %vm11546, %v11795, 0.0
  %v11877 = vadd.f32 %v11875, %v11876
  %v11878 = vsel %vm11546, %v11797, 0.0
  %v11879 = vadd.f32 %v11877, %v11878
  %v11880 = vsel %vm11546, %v11799, 0.0
  %v11881 = vadd.f32 %v11879, %v11880
  %v11882 = vsel %vm11546, %v11801, 0.0
  %v11883 = vadd.f32 %v11881, %v11882
  %v11884 = vsel %vm11574, %v11776, 0.0
  %v11885 = vsel %vm11574, %v11778, 0.0
  %v11886 = vadd.f32 %v11884, %v11885
  %v11887 = vsel %vm11574, %v11780, 0.0
  %v11888 = vadd.f32 %v11886, %v11887
  %v11889 = vsel %vm11574, %v11782, 0.0
  %v11890 = vadd.f32 %v11888, %v11889
  %v11891 = vsel %vm11574, %v11784, 0.0
  %v11892 = vadd.f32 %v11890, %v11891
  %v11893 = vsel %vm11574, %v11786, 0.0
  %v11894 = vadd.f32 %v11892, %v11893
  %v11895 = vsel %vm11574, %v11788, 0.0
  %v11896 = vadd.f32 %v11894, %v11895
  %v11897 = vsel %vm11574, %v11790, 0.0
  %v11898 = vadd.f32 %v11896, %v11897
  %v11899 = vsel %vm11574, %v11792, 0.0
  %v11900 = vadd.f32 %v11898, %v11899
  %v11901 = vsel %vm11574, %v11794, 0.0
  %v11902 = vadd.f32 %v11900, %v11901
  %v11903 = vsel %vm11574, %v11796, 0.0
  %v11904 = vadd.f32 %v11902, %v11903
  %v11905 = vsel %vm11574, %v11798, 0.0
  %v11906 = vadd.f32 %v11904, %v11905
  %v11907 = vsel %vm11574, %v11800, 0.0
  %v11908 = vadd.f32 %v11906, %v11907
  %v11909 = vsel %vm11574, %v11802, 0.0
  %v11910 = vadd.f32 %v11908, %v11909
  %v11915 = vrot.slane %v11829, 1
  %v11916 = vrot.slane %v11856, 1
  %v11917 = vsel %vm236, %v11915, %v11916
  %v11918 = vrot.slane %v11883, 1
  %v11919 = vrot.slane %v11910, 1
  %v11920 = vsel %vm236, %v11918, %v11919
  %v11925 = vsel %vm3399, %v11917, 0.0
  %v11926 = vsel %vm11671, %v11916, 0.0
  %v11927 = vadd.f32 %v11925, %v11926
  %v11928 = vrot.slane %v11927, 4
  %v11929 = vadd.f32 %v11927, %v11928
  %v11930 = vrot.slane %v11929, 2
  %v11931 = vadd.f32 %v11929, %v11930
  %v11932 = vrot.slane %v11931, 1
  %v11933 = vadd.f32 %v11931, %v11932
  %v11934 = vsel %vm3399, %v11920, 0.0
  %v11935 = vsel %vm11671, %v11919, 0.0
  %v11936 = vadd.f32 %v11934, %v11935
  %v11937 = vrot.slane %v11936, 4
  %v11938 = vadd.f32 %v11936, %v11937
  %v11939 = vrot.slane %v11938, 2
  %v11940 = vadd.f32 %v11938, %v11939
  %v11941 = vrot.slane %v11940, 1
  %v11942 = vadd.f32 %v11940, %v11941
  %v11943 = vmul.f32 %v11933, 0.0051020407
  %v11944 = vmul.f32 %v11942, 0.0051020407
  %v11945 = vadd.f32 %v11943, 1e-05
  %v11946 = vadd.f32 %v11944, 1e-05
  %v11947 = vrsqrt.pop %v11945
  %v11948 = vmul.f32 %v11947, %v11945
  %v11949 = vmul.f32 %v11948, %v11947
  %v11950 = vmul.f32 0.5, %v11949
  %v11951 = vsub.f32 1.5, %v11950
  %v11952 = vmul.f32 %v11947, %v11951
  %vm11953 = vweird.f32 %v11945
  %vm11954 = vweird.f32 %v11947
  %vm11955 = vmor %vm11953, %vm11954
  %v11956 = vsel %vm11955, %v11947, %v11952
  %v11957 = vrsqrt.pop %v11946
  %v11958 = vmul.f32 %v11957, %v11946
  %v11959 = vmul.f32 %v11958, %v11957
  %v11960 = vmul.f32 0.5, %v11959
  %v11961 = vsub.f32 1.5, %v11960
  %v11962 = vmul.f32 %v11957, %v11961
  %vm11963 = vweird.f32 %v11946
  %vm11964 = vweird.f32 %v11957
  %vm11965 = vmor %vm11963, %vm11964
  %v11966 = vsel %vm11965, %v11957, %v11962
  %v11967 = vmul.f32 %v11691, %v11956
  %v11968 = vmul.f32 %v11692, %v11956
  %v11969 = vmul.f32 %v11693, %v11956
  %v11970 = vmul.f32 %v11694, %v11956
  %v11971 = vmul.f32 %v11695, %v11956
  %v11972 = vmul.f32 %v11696, %v11956
  %v11973 = vmul.f32 %v11697, %v11956
  %v11974 = vmul.f32 %v11698, %v11956
  %v11975 = vmul.f32 %v11699, %v11956
  %v11976 = vmul.f32 %v11700, %v11956
  %v11977 = vmul.f32 %v11701, %v11956
  %v11978 = vmul.f32 %v11702, %v11956
  %v11979 = vmul.f32 %v11703, %v11956
  %v11980 = vmul.f32 %v11704, %v11956
  %v11981 = vmul.f32 %v11705, %v11956
  %v11982 = vmul.f32 %v11706, %v11956
  %v11983 = vmul.f32 %v11707, %v11956
  %v11984 = vmul.f32 %v11708, %v11956
  %v11985 = vmul.f32 %v11709, %v11956
  %v11986 = vmul.f32 %v11710, %v11956
  %v11987 = vmul.f32 %v11711, %v11956
  %v11988 = vmul.f32 %v11712, %v11956
  %v11989 = vmul.f32 %v11713, %v11956
  %v11990 = vmul.f32 %v11714, %v11956
  %v11991 = vmul.f32 %v11715, %v11956
  %v11992 = vmul.f32 %v11716, %v11956
  %v11993 = vmul.f32 %v11717, %v11956
  %v11994 = vmul.f32 %v11718, %v11956
  %v11995 = vmul.f32 %v11719, %v11966
  %v11996 = vmul.f32 %v11720, %v11966
  %v11997 = vmul.f32 %v11721, %v11966
  %v11998 = vmul.f32 %v11722, %v11966
  %v11999 = vmul.f32 %v11723, %v11966
  %v12000 = vmul.f32 %v11724, %v11966
  %v12001 = vmul.f32 %v11725, %v11966
  %v12002 = vmul.f32 %v11726, %v11966
  %v12003 = vmul.f32 %v11727, %v11966
  %v12004 = vmul.f32 %v11728, %v11966
  %v12005 = vmul.f32 %v11729, %v11966
  %v12006 = vmul.f32 %v11730, %v11966
  %v12007 = vmul.f32 %v11731, %v11966
  %v12008 = vmul.f32 %v11732, %v11966
  %v12009 = vmul.f32 %v11733, %v11966
  %v12010 = vmul.f32 %v11734, %v11966
  %v12011 = vmul.f32 %v11735, %v11966
  %v12012 = vmul.f32 %v11736, %v11966
  %v12013 = vmul.f32 %v11737, %v11966
  %v12014 = vmul.f32 %v11738, %v11966
  %v12015 = vmul.f32 %v11739, %v11966
  %v12016 = vmul.f32 %v11740, %v11966
  %v12017 = vmul.f32 %v11741, %v11966
  %v12018 = vmul.f32 %v11742, %v11966
  %v12019 = vmul.f32 %v11743, %v11966
  %v12020 = vmul.f32 %v11744, %v11966
  %v12021 = vmul.f32 %v11745, %v11966
  %v12022 = vmul.f32 %v11746, %v11966
  %v12023 = vsel %vm11546, %v11967, -inf
  %v12024 = vsel %vm11546, %v11969, -inf
  %v12025 = vmax.f32 %v12023, %v12024
  %v12026 = vsel %vm11574, %v11968, -inf
  %v12027 = vsel %vm11574, %v11970, -inf
  %v12028 = vmax.f32 %v12026, %v12027
  %v12029 = vsel %vm11546, %v11971, -inf
  %v12030 = vsel %vm11546, %v11973, -inf
  %v12031 = vmax.f32 %v12029, %v12030
  %v12032 = vsel %vm11574, %v11972, -inf
  %v12033 = vsel %vm11574, %v11974, -inf
  %v12034 = vmax.f32 %v12032, %v12033
  %v12035 = vsel %vm11546, %v11975, -inf
  %v12036 = vsel %vm11546, %v11977, -inf
  %v12037 = vmax.f32 %v12035, %v12036
  %v12038 = vsel %vm11574, %v11976, -inf
  %v12039 = vsel %vm11574, %v11978, -inf
  %v12040 = vmax.f32 %v12038, %v12039
  %v12041 = vsel %vm11546, %v11979, -inf
  %v12042 = vsel %vm11546, %v11981, -inf
  %v12043 = vmax.f32 %v12041, %v12042
  %v12044 = vsel %vm11574, %v11980, -inf
  %v12045 = vsel %vm11574, %v11982, -inf
  %v12046 = vmax.f32 %v12044, %v12045
  %v12047 = vsel %vm11546, %v11983, -inf
  %v12048 = vsel %vm11546, %v11985, -inf
  %v12049 = vmax.f32 %v12047, %v12048
  %v12050 = vsel %vm11574, %v11984, -inf
  %v12051 = vsel %vm11574, %v11986, -inf
  %v12052 = vmax.f32 %v12050, %v12051
  %v12053 = vsel %vm11546, %v11987, -inf
  %v12054 = vsel %vm11546, %v11989, -inf
  %v12055 = vmax.f32 %v12053, %v12054
  %v12056 = vsel %vm11574, %v11988, -inf
  %v12057 = vsel %vm11574, %v11990, -inf
  %v12058 = vmax.f32 %v12056, %v12057
  %v12059 = vsel %vm11546, %v11991, -inf
  %v12060 = vsel %vm11546, %v11993, -inf
  %v12061 = vmax.f32 %v12059, %v12060
  %v12062 = vsel %vm11574, %v11992, -inf
  %v12063 = vsel %vm11574, %v11994, -inf
  %v12064 = vmax.f32 %v12062, %v12063
  %v12065 = vsel %vm11546, %v11995, -inf
  %v12066 = vsel %vm11546, %v11997, -inf
  %v12067 = vmax.f32 %v12065, %v12066
  %v12068 = vsel %vm11574, %v11996, -inf
  %v12069 = vsel %vm11574, %v11998, -inf
  %v12070 = vmax.f32 %v12068, %v12069
  %v12071 = vsel %vm11546, %v11999, -inf
  %v12072 = vsel %vm11546, %v12001, -inf
  %v12073 = vmax.f32 %v12071, %v12072
  %v12074 = vsel %vm11574, %v12000, -inf
  %v12075 = vsel %vm11574, %v12002, -inf
  %v12076 = vmax.f32 %v12074, %v12075
  %v12077 = vsel %vm11546, %v12003, -inf
  %v12078 = vsel %vm11546, %v12005, -inf
  %v12079 = vmax.f32 %v12077, %v12078
  %v12080 = vsel %vm11574, %v12004, -inf
  %v12081 = vsel %vm11574, %v12006, -inf
  %v12082 = vmax.f32 %v12080, %v12081
  %v12083 = vsel %vm11546, %v12007, -inf
  %v12084 = vsel %vm11546, %v12009, -inf
  %v12085 = vmax.f32 %v12083, %v12084
  %v12086 = vsel %vm11574, %v12008, -inf
  %v12087 = vsel %vm11574, %v12010, -inf
  %v12088 = vmax.f32 %v12086, %v12087
  %v12089 = vsel %vm11546, %v12011, -inf
  %v12090 = vsel %vm11546, %v12013, -inf
  %v12091 = vmax.f32 %v12089, %v12090
  %v12092 = vsel %vm11574, %v12012, -inf
  %v12093 = vsel %vm11574, %v12014, -inf
  %v12094 = vmax.f32 %v12092, %v12093
  %v12095 = vsel %vm11546, %v12015, -inf
  %v12096 = vsel %vm11546, %v12017, -inf
  %v12097 = vmax.f32 %v12095, %v12096
  %v12098 = vsel %vm11574, %v12016, -inf
  %v12099 = vsel %vm11574, %v12018, -inf
  %v12100 = vmax.f32 %v12098, %v12099
  %v12101 = vsel %vm11546, %v12019, -inf
  %v12102 = vsel %vm11546, %v12021, -inf
  %v12103 = vmax.f32 %v12101, %v12102
  %v12104 = vsel %vm11574, %v12020, -inf
  %v12105 = vsel %vm11574, %v12022, -inf
  %v12106 = vmax.f32 %v12104, %v12105
  %v12135 = vrot.slane %v12025, 1
  %v12136 = vrot.slane %v12028, 1
  %v12137 = vsel %vm236, %v12135, %v12136
  %v12138 = vrot.slane %v12031, 1
  %v12139 = vrot.slane %v12034, 1
  %v12140 = vsel %vm236, %v12138, %v12139
  %v12141 = vrot.slane %v12037, 1
  %v12142 = vrot.slane %v12040, 1
  %v12143 = vsel %vm236, %v12141, %v12142
  %v12144 = vrot.slane %v12043, 1
  %v12145 = vrot.slane %v12046, 1
  %v12146 = vsel %vm236, %v12144, %v12145
  %v12147 = vrot.slane %v12049, 1
  %v12148 = vrot.slane %v12052, 1
  %v12149 = vsel %vm236, %v12147, %v12148
  %v12150 = vrot.slane %v12055, 1
  %v12151 = vrot.slane %v12058, 1
  %v12152 = vsel %vm236, %v12150, %v12151
  %v12153 = vrot.slane %v12061, 1
  %v12154 = vrot.slane %v12064, 1
  %v12155 = vsel %vm236, %v12153, %v12154
  %v12156 = vrot.slane %v12067, 1
  %v12157 = vrot.slane %v12070, 1
  %v12158 = vsel %vm236, %v12156, %v12157
  %v12159 = vrot.slane %v12073, 1
  %v12160 = vrot.slane %v12076, 1
  %v12161 = vsel %vm236, %v12159, %v12160
  %v12162 = vrot.slane %v12079, 1
  %v12163 = vrot.slane %v12082, 1
  %v12164 = vsel %vm236, %v12162, %v12163
  %v12165 = vrot.slane %v12085, 1
  %v12166 = vrot.slane %v12088, 1
  %v12167 = vsel %vm236, %v12165, %v12166
  %v12168 = vrot.slane %v12091, 1
  %v12169 = vrot.slane %v12094, 1
  %v12170 = vsel %vm236, %v12168, %v12169
  %v12171 = vrot.slane %v12097, 1
  %v12172 = vrot.slane %v12100, 1
  %v12173 = vsel %vm236, %v12171, %v12172
  %v12174 = vrot.slane %v12103, 1
  %v12175 = vrot.slane %v12106, 1
  %v12176 = vsel %vm236, %v12174, %v12175
  %v12205 = vmax.f32 %v12025, %v12137
  %v12206 = vmax.f32 %v12028, %v12136
  %v12207 = vmax.f32 %v12031, %v12140
  %v12208 = vmax.f32 %v12034, %v12139
  %v12209 = vmax.f32 %v12037, %v12143
  %v12210 = vmax.f32 %v12040, %v12142
  %v12211 = vmax.f32 %v12043, %v12146
  %v12212 = vmax.f32 %v12046, %v12145
  %v12213 = vmax.f32 %v12049, %v12149
  %v12214 = vmax.f32 %v12052, %v12148
  %v12215 = vmax.f32 %v12055, %v12152
  %v12216 = vmax.f32 %v12058, %v12151
  %v12217 = vmax.f32 %v12061, %v12155
  %v12218 = vmax.f32 %v12064, %v12154
  %v12219 = vmax.f32 %v12067, %v12158
  %v12220 = vmax.f32 %v12070, %v12157
  %v12221 = vmax.f32 %v12073, %v12161
  %v12222 = vmax.f32 %v12076, %v12160
  %v12223 = vmax.f32 %v12079, %v12164
  %v12224 = vmax.f32 %v12082, %v12163
  %v12225 = vmax.f32 %v12085, %v12167
  %v12226 = vmax.f32 %v12088, %v12166
  %v12227 = vmax.f32 %v12091, %v12170
  %v12228 = vmax.f32 %v12094, %v12169
  %v12229 = vmax.f32 %v12097, %v12173
  %v12230 = vmax.f32 %v12100, %v12172
  %v12231 = vmax.f32 %v12103, %v12176
  %v12232 = vmax.f32 %v12106, %v12175
  %12233 = vst.msk [vmem:[%s3 - $0x1] sm:$0xfe] %vm11546, %v12205
  %12234 = vst.msk [vmem:[%s3 + $0x7] sm:$0x3f] %vm11671, %v12206
  %12235 = vst.msk [vmem:[%s3 + $0xf] sm:$0xfe] %vm11546, %v12207
  %12236 = vst.msk [vmem:[%s3 + $0x17] sm:$0x3f] %vm11671, %v12208
  %12237 = vst.msk [vmem:[%s3 + $0x1f] sm:$0xfe] %vm11546, %v12209
  %12238 = vst.msk [vmem:[%s3 + $0x27] sm:$0x3f] %vm11671, %v12210
  %12239 = vst.msk [vmem:[%s3 + $0x2f] sm:$0xfe] %vm11546, %v12211
  %12240 = vst.msk [vmem:[%s3 + $0x37] sm:$0x3f] %vm11671, %v12212
  %12241 = vst.msk [vmem:[%s3 + $0x3f] sm:$0xfe] %vm11546, %v12213
  %12242 = vst.msk [vmem:[%s3 + $0x47] sm:$0x3f] %vm11671, %v12214
  %12243 = vst.msk [vmem:[%s3 + $0x4f] sm:$0xfe] %vm11546, %v12215
  %12244 = vst.msk [vmem:[%s3 + $0x57] sm:$0x3f] %vm11671, %v12216
  %12245 = vst.msk [vmem:[%s3 + $0x5f] sm:$0xfe] %vm11546, %v12217
  %12246 = vst.msk [vmem:[%s3 + $0x67] sm:$0x3f] %vm11671, %v12218
  %12247 = vst.msk [vmem:[%s3 + $0x6f] sm:$0xfe] %vm11546, %v12219
  %12248 = vst.msk [vmem:[%s3 + $0x77] sm:$0x3f] %vm11671, %v12220
  %12249 = vst.msk [vmem:[%s3 + $0x7f] sm:$0xfe] %vm11546, %v12221
  %12250 = vst.msk [vmem:[%s3 + $0x87] sm:$0x3f] %vm11671, %v12222
  %12251 = vst.msk [vmem:[%s3 + $0x8f] sm:$0xfe] %vm11546, %v12223
  %12252 = vst.msk [vmem:[%s3 + $0x97] sm:$0x3f] %vm11671, %v12224
  %12253 = vst.msk [vmem:[%s3 + $0x9f] sm:$0xfe] %vm11546, %v12225
  %12254 = vst.msk [vmem:[%s3 + $0xa7] sm:$0x3f] %vm11671, %v12226
  %12255 = vst.msk [vmem:[%s3 + $0xaf] sm:$0xfe] %vm11546, %v12227
  %12256 = vst.msk [vmem:[%s3 + $0xb7] sm:$0x3f] %vm11671, %v12228
  %12257 = vst.msk [vmem:[%s3 + $0xbf] sm:$0xfe] %vm11546, %v12229
  %12258 = vst.msk [vmem:[%s3 + $0xc7] sm:$0x3f] %vm11671, %v12230
  %12259 = vst.msk [vmem:[%s3 + $0xcf] sm:$0xfe] %vm11546, %v12231
  %12260 = vst.msk [vmem:[%s3 + $0xd7] sm:$0x3f] %vm11671, %v12232
  // Predicated region
  $region14: #{conv_block_forward.1} parent=0 // pred_check
    _
  $region15: #{conv_block_forward.1} parent=0 // pred_check_branch
    %12262 = sbr.rel (0) target = $region17
  $region16: #{conv_block_forward.1} parent=0 // pred_region
    _
  $region17: #{conv_block_forward.1} parent=0 // pred_fallthru
    _
  // Predicated region
  $region18: #{conv_block_forward.1} parent=0 // pred_check
    _
  $region19: #{conv_block_forward.1} parent=0 // pred_check_branch
    %12264 = sbr.rel (0) target = $region21
  $region20: #{conv_block_forward.1} parent=0 // pred_region
    _
  $region21: #{conv_block_forward.1} parent=0 // pred_fallthru
    _

</llo_original>
